<compile_context>
chip_gen: v7x
topology: tpu7x:2x2x1
jax: 0.10.0
libtpu: 0.0.40
codegen_flags: <defaults>
</compile_context>

<pallas_src>
import functools

import jax
import jax.numpy as jnp
from jax import lax
from jax.experimental import pallas as pl
from jax.experimental.pallas import tpu as pltpu


# ---- stage-1 (motif scan) constants ------------------------------------------
_K1 = 51                   # largest scan kernel (51 / 15 / 3)
_PAD1 = 25                 # its 'same' padding
_CIN = 4                   # one-hot DNA channels
_CIN_PAD = 8               # padded to 8 so 16 taps x 8 ch = 128-deep contraction
_S1_TAPS = 16              # taps folded per contraction block
_S1_BLOCKS = 4             # ceil(64 / 16)
_K1_PAD = _S1_BLOCKS * _S1_TAPS        # 64 (taps 51..63 are zero)

# ---- stage-2 (deconv head) constants ------------------------------------------
_K2 = 601                  # largest head kernel (601 / 15 / 601)
_PAD2 = 300                # its 'same' padding
_COUT = 10
_G = 24                    # taps per MXU group -> RHS width 240 (fits 256 cols)
_S2_GROUPS = -(-_K2 // _G)             # 26
_K2_PAD = _S2_GROUPS * _G              # 624
_HALO_L = 304              # left zero halo (multiple of 8)
_TAP_OFF = _HALO_L - _PAD2             # 4: real taps embedded at offset 4
_HALO_R = _K2_PAD - _HALO_L + _TAP_OFF + (_HALO_L - _PAD2)  # see below
_HALO_R = _K2_PAD - _PAD2 - _TAP_OFF   # 320: right zero halo (multiple of 8)


def _round_up(x, m):
    return (x + m - 1) // m * m


def _softplus(x):
    # numerically-stable softplus (matches torch.nn.Softplus to <2e-9).
    return jnp.maximum(x, 0.0) + jnp.log1p(jnp.exp(-jnp.abs(x)))


def _vmem_limit_bytes():
    cap = 64 * 1024 * 1024
    try:  # generation-dependent: ~96 MiB on v5e/v6e, ~48 MiB on v7x
        cap = int(pltpu.get_tpu_info().vmem_capacity_bytes)
    except Exception:
        pass
    return min(int(cap * 3) // 4, 100 * 1024 * 1024)


# ------------------------------------------------------------------------------
# stage 1: fused (3 branches x 2 strands) conv -> (+bias)*scale -> softplus,
# taps folded into the contraction, written into a zero-halo'd bf16 buffer.
# ------------------------------------------------------------------------------
def _stage1_kernel(x_ref, w_ref, b_ref, s_ref, out_ref):
    Lp2, C = out_ref.shape
    L = Lp2 - _HALO_L - _HALO_R
    acc = jnp.zeros((L, C), jnp.float32)
    for j in range(_S1_BLOCKS):                       # 4 lane-dense 128-deep dots
        xs = x_ref[j * _S1_TAPS:j * _S1_TAPS + L, :]  # (L, 128) bf16, aligned
        acc = acc + jnp.dot(xs, w_ref[j], preferred_element_type=jnp.float32)
    y = _softplus((acc + b_ref[...]) * s_ref[...])
    out_ref[0:_HALO_L, :] = jnp.zeros((_HALO_L, C), out_ref.dtype)
    out_ref[_HALO_L:_HALO_L + L, :] = y.astype(out_ref.dtype)
    out_ref[_HALO_L + L:Lp2, :] = jnp.zeros((_HALO_R, C), out_ref.dtype)


def _stage1_call(x_unf, w1b, b1, s1, *, L):
    N, Lx, CU = x_unf.shape                  # CU == 128
    _, _, C = w1b.shape
    Lp2 = L + _HALO_L + _HALO_R
    return pl.pallas_call(
        _stage1_kernel,
        out_shape=jax.ShapeDtypeStruct((N, Lp2, C), jnp.bfloat16),
        grid=(N,),
        in_specs=[
            pl.BlockSpec((None, Lx, CU), lambda n: (n, 0, 0)),      # unfolded x
            pl.BlockSpec((_S1_BLOCKS, CU, C), lambda n: (0, 0, 0)),  # fused weights
            pl.BlockSpec((1, C), lambda n: (0, 0)),                  # bias
            pl.BlockSpec((1, C), lambda n: (0, 0)),                  # scale
        ],
        out_specs=pl.BlockSpec((None, Lp2, C), lambda n: (n, 0, 0)),
        compiler_params=pltpu.CompilerParams(
            dimension_semantics=("parallel",),
            vmem_limit_bytes=_vmem_limit_bytes()),
        cost_estimate=pl.CostEstimate(
            flops=2 * N * L * _K1_PAD * _CIN_PAD * C,
            transcendentals=2 * N * L * C,
            bytes_accessed=2 * (N * Lx * CU + _S1_BLOCKS * CU * C + N * Lp2 * C)),
    )(x_unf, w1b, b1, s1)


# ------------------------------------------------------------------------------
# stage 2: fused 601-tap conv over C2pad channels, 24 taps per MXU group.
# Each group: (TL+24, C) @ (C, 240) matmul + 24 shifted (TL,10) adds.
# ------------------------------------------------------------------------------
def _stage2_kernel(x_ref, w_ref, b_ref, out_ref):
    TL, Cout = out_ref.shape
    n_groups = w_ref.shape[0]
    row0 = pl.program_id(1) * TL             # tap offset baked into the weights

    def group(g0, acc):
        start = pl.multiple_of(row0 + g0 * _G, 8)        # 8-aligned window
        xwin = x_ref[pl.ds(start, TL + _G), :]           # (TL+24, C) bf16
        q = jnp.dot(xwin, w_ref[g0], preferred_element_type=jnp.float32)
        for g in range(_G):                  # static unroll: Y[l,o]+=Q[l+g,g*10+o]
            acc = acc + q[g:g + TL, g * Cout:(g + 1) * Cout]
        return acc

    acc = lax.fori_loop(0, n_groups, group, jnp.zeros((TL, Cout), jnp.float32))
    out_ref[...] = _softplus(acc + b_ref[...]).astype(out_ref.dtype)


def _pick_l_tile(L):
    for t in (1024, 512, 256, 128, 64, 32, 16, 8):
        if L % t == 0:
            return t
    return L


def _stage2_call(act, w2g, b2, *, L):
    N, Lp2, C = act.shape
    n_groups, _, GW = w2g.shape
    TL = _pick_l_tile(L)
    return pl.pallas_call(
        _stage2_kernel,
        out_shape=jax.ShapeDtypeStruct((N, L, _COUT), jnp.float32),
        grid=(N, L // TL),
        in_specs=[
            pl.BlockSpec((None, Lp2, C), lambda n, t: (n, 0, 0)),     # halo'd acts
            pl.BlockSpec((n_groups, C, GW), lambda n, t: (0, 0, 0)),  # grouped w2
            pl.BlockSpec((1, _COUT), lambda n, t: (0, 0)),            # summed bias
        ],
        out_specs=pl.BlockSpec((None, TL, _COUT), lambda n, t: (n, t, 0)),
        compiler_params=pltpu.CompilerParams(
            dimension_semantics=("parallel", "parallel"),
            vmem_limit_bytes=_vmem_limit_bytes()),
        cost_estimate=pl.CostEstimate(
            flops=2 * N * L * _K2_PAD * C * _COUT,
            transcendentals=2 * N * L * _COUT,
            bytes_accessed=(2 * N * Lp2 * C + 2 * n_groups * C * GW
                            + 4 * N * L * _COUT)),
    )(act, w2g, b2)


# ------------------------------------------------------------------------------
# parameter setup & weight repacking (plain JAX glue, all tiny arrays)
# ------------------------------------------------------------------------------
def init_params(key, n_motifs):
    ks = jax.random.split(key, 12)

    def rnd(k, shape, s=0.05):
        return s * jax.random.normal(k, shape, dtype=jnp.float32)

    return {
        # PyTorch Conv1d weight layout: (C_out, C_in, K)
        'conv_w':       rnd(ks[0], (n_motifs, 4, 51)),
        'conv_b':       rnd(ks[1], (n_motifs,)),
        'conv_inr_w':   rnd(ks[2], (10, 4, 15)),
        'conv_inr_b':   rnd(ks[3], (10,)),
        'conv_sim_w':   rnd(ks[4], (32, 4, 3)),
        'conv_sim_b':   rnd(ks[5], (32,)),
        'deconv_w':     rnd(ks[6], (10, 2 * n_motifs, 601), s=0.02),  # FFTConv1d ~ Conv1d
        'deconv_b':     rnd(ks[7], (10,)),
        'deconv_inr_w': rnd(ks[8], (20, 10, 15)),   # ConvTranspose1d (C_in, C_out, K)
        'deconv_inr_b': rnd(ks[9], (10,)),
        'deconv_sim_w': rnd(ks[10], (10, 64, 601), s=0.02),
        'deconv_sim_b': rnd(ks[11], (10,)),
        'scaler':  jnp.array([1.1], jnp.float32),
        'scaler2': jnp.array([0.9], jnp.float32),
    }


def _deconv_inr_equiv_oik(wt_iok):
    # ConvTranspose1d(stride=1, padding=p) == Conv1d(padding=K-1-p) with
    # W_conv[o, i, k] = W_t[i, o, K-1-k].  K=15, p=7 -> same-padding conv.
    return jnp.flip(jnp.transpose(wt_iok, (1, 0, 2)), axis=2)


def _build_stage1_params(p, n_motifs, c2pad, s1, s2):
    """Fused stage-1 weights (_S1_BLOCKS, 128, c2pad), bias/scale (1, c2pad).

    Output-channel order [convF|convR|inrF|inrR|simF|simR|pad] matches the
    in-channel order of the fused stage-2 weights.
    """
    def branch(w_oik):
        co, ci, kb = w_oik.shape
        off = (_K1 - kb) // 2
        w_fwd = jnp.transpose(w_oik, (2, 1, 0))                    # (kb, ci, co)
        # reverse-complement strand == conv with tap- and channel-flipped weights
        w_rev = jnp.transpose(w_oik[:, ::-1, ::-1], (2, 1, 0))
        blk = jnp.concatenate([w_fwd, w_rev], axis=2)              # (kb, ci, 2co)
        return jnp.pad(blk, ((off, _K1 - kb - off), (0, _CIN_PAD - ci), (0, 0)))

    w1 = jnp.concatenate([branch(p['conv_w']),
                          branch(p['conv_inr_w']),
                          branch(p['conv_sim_w'])], axis=2)        # (51, 8, c2)
    c2 = w1.shape[2]
    w1 = jnp.pad(w1, ((0, _K1_PAD - _K1), (0, 0), (0, c2pad - c2)))
    # fold 16 taps into the contraction axis: (4, 128, c2pad), bf16 MXU operand
    w1b = w1.reshape(_S1_BLOCKS, _S1_TAPS * _CIN_PAD, c2pad).astype(jnp.bfloat16)

    bias = jnp.concatenate([p['conv_b'], p['conv_b'],
                            p['conv_inr_b'], p['conv_inr_b'],
                            p['conv_sim_b'], p['conv_sim_b']])
    bias = jnp.pad(bias, (0, c2pad - c2)).reshape(1, c2pad).astype(jnp.float32)

    scale = jnp.concatenate([
        jnp.full((2 * n_motifs,), s1, jnp.float32),
        jnp.ones((20,), jnp.float32),
        jnp.full((64,), s2, jnp.float32),
        jnp.ones((c2pad - c2,), jnp.float32)]).reshape(1, c2pad)
    return w1b, bias, scale


def _build_stage2_params(p, n_motifs, c2pad):
    """Fused, tap-grouped stage-2 weights (26, c2pad, 240) + summed bias (1,10).

    Padded in-channels keep ZERO weights (the activation holds softplus(0) there).
    """
    wa = p['deconv_w']                                    # (10, 2n, 601)
    wb = _deconv_inr_equiv_oik(p['deconv_inr_w'])         # (10, 20, 15)
    off = (_K2 - wb.shape[2]) // 2                        # 293: centre K=15 in K=601
    wb = jnp.pad(wb, ((0, 0), (0, 0), (off, _K2 - wb.shape[2] - off)))
    wc = p['deconv_sim_w']                                # (10, 64, 601)
    w = jnp.concatenate([wa, wb, wc], axis=1)             # (10, c2, 601)
    w = jnp.pad(w, ((0, 0), (0, c2pad - w.shape[1]),
                    (_TAP_OFF, _K2_PAD - _K2 - _TAP_OFF)))  # (10, c2pad, 624)
    w_koc = jnp.transpose(w, (2, 0, 1))                   # (624, 10, c2pad)
    w2g = (w_koc.reshape(_S2_GROUPS, _G, _COUT, c2pad)
           .transpose(0, 3, 1, 2)
           .reshape(_S2_GROUPS, c2pad, _G * _COUT)).astype(jnp.bfloat16)
    b2 = (p['deconv_b'] + p['deconv_inr_b'] + p['deconv_sim_b']
          ).reshape(1, _COUT).astype(jnp.float32)
    return w2g, b2


# ------------------------------------------------------------------------------
# forward pass
# ------------------------------------------------------------------------------
def simplenet_forward(x_ncl, p, withscaler=True):
    """x_ncl: (N, 4, L) float32 (PyTorch NCL). Returns (N, 10, L) float32."""
    N, cin, L = x_ncl.shape
    assert cin == _CIN and L % 8 == 0
    n_motifs = p['conv_w'].shape[0]
    c2 = 2 * n_motifs + 20 + 64
    c2pad = _round_up(c2, 128)

    s1 = p['scaler'][0] ** 2 if withscaler else jnp.float32(1.0)
    s2 = p['scaler2'][0] ** 2 if withscaler else jnp.float32(1.0)

    # channels-last, channels 4 -> 8, length padded for the 64-tap frame
    x = jnp.transpose(x_ncl, (0, 2, 1)).astype(jnp.float32)
    x_pad = jnp.pad(x, ((0, 0), (_PAD1, _K1_PAD - _PAD1), (0, _CIN_PAD - _CIN)))
    x_pad = x_pad.astype(jnp.bfloat16)
    # unfold 16 taps into the channel axis: X16[l, t*8+c] = x_pad[l+t, c]
    xu_rows = L + (_S1_BLOCKS - 1) * _S1_TAPS             # L + 48
    x_unf = jnp.concatenate(
        [x_pad[:, t:t + xu_rows, :] for t in range(_S1_TAPS)], axis=-1)

    w1b, b1, sc1 = _build_stage1_params(p, n_motifs, c2pad, s1, s2)
    act = _stage1_call(x_unf, w1b, b1, sc1, L=L)          # (N, L+624, c2pad) bf16

    w2g, b2 = _build_stage2_params(p, n_motifs, c2pad)
    out = _stage2_call(act, w2g, b2, L=L)                 # (N, L, 10) f32
    return jnp.transpose(out, (0, 2, 1))                  # (N, 10, L)


# ------------------------------------------------------------------------------
# pure-JAX reference (NCL, f32 lax convs) for the numerical check
# ------------------------------------------------------------------------------
def _conv1d_ncl(x, w_oik, b, pad):
    out = lax.conv_general_dilated(
        x, w_oik, window_strides=(1,), padding=[(pad, pad)],
        dimension_numbers=('NCH', 'OIH', 'NCH'),
        precision=lax.Precision.HIGHEST)
    return out + b[None, :, None]


def reference_forward(x, p, withscaler=True):
    x_rc = jnp.flip(x, axis=(1, 2))

    def branch(w, b, pad):
        return jnp.concatenate(
            [_conv1d_ncl(x, w, b, pad),
             jnp.flip(_conv1d_ncl(x_rc, w, b, pad), axis=2)], axis=1)

    y     = branch(p['conv_w'],     p['conv_b'],     25)
    y_inr = branch(p['conv_inr_w'], p['conv_inr_b'],  7)
    y_sim = branch(p['conv_sim_w'], p['conv_sim_b'],  1)
    s1 = p['scaler'][0] ** 2 if withscaler else 1.0
    s2 = p['scaler2'][0] ** 2 if withscaler else 1.0
    yact      = _softplus(y * s1)
    y_inr_act = _softplus(y_inr)
    y_sim_act = _softplus(y_sim * s2)
    d = (_conv1d_ncl(yact, p['deconv_w'], p['deconv_b'], 300)
         + _conv1d_ncl(y_inr_act, _deconv_inr_equiv_oik(p['deconv_inr_w']),
                       p['deconv_inr_b'], 7)
         + _conv1d_ncl(y_sim_act, p['deconv_sim_w'], p['deconv_sim_b'], 300))
    return _softplus(d)


# ------------------------------------------------------------------------------
if __name__ == "__main__":
    N, L, n_motifs = 2, 256, 8
    key = jax.random.PRNGKey(0)
    kx, kp = jax.random.split(key)
    params = init_params(kp, n_motifs)
    x = jax.random.normal(kx, (N, 4, L), dtype=jnp.float32)   # (N, C=4, L)

    fwd = jax.jit(functools.partial(simplenet_forward, withscaler=True))
    y = fwd(x, params)
    jax.block_until_ready(y)

    assert y.shape == (N, 10, L), y.shape
    assert bool(jnp.all(jnp.isfinite(y)))

    y_ref = reference_forward(x, params)
    # bf16 MXU operands (f32 accumulate) through the 601x~100-deep head give
    # ~0.2-0.3% relative error; a 2.5e-2 mixed-relative bound keeps >2x headroom
    # while still catching any indexing / weight-repacking bug (which would be O(1)).
    err = float(jnp.max(jnp.abs(y - y_ref) / (1.0 + jnp.abs(y_ref))))
    assert err < 2.5e-2, f"mixed relative err vs f32 reference: {err}"

    print("KERNEL_OK")
</pallas_src>

<mosaic_0001>
module attributes {stable_mosaic.version = 11 : i64} {
  func.func @_stage1_kernel(%arg0: i32, %arg1: memref<1x304x128xbf16, #tpu.memory_space<vmem>>, %arg2: memref<4x128x128xbf16, #tpu.memory_space<vmem>>, %arg3: memref<1x128xf32, #tpu.memory_space<vmem>>, %arg4: memref<1x128xf32, #tpu.memory_space<vmem>>, %arg5: memref<1x880x128xbf16, #tpu.memory_space<vmem>>) attributes {dimension_semantics = [#tpu.dimension_semantics<parallel>], iteration_bounds = array<i64: 2>, scalar_prefetch = 0 : i64, scratch_operands = 0 : i64, tpu.core_type = #tpu.core_type<tc>, window_params = [{transform_indices = @transform_0, window_bounds = array<i64: 1, 304, 128>}, {pipeline_mode = #tpu.pipeline_mode<synchronous>, transform_indices = @transform_1, window_bounds = array<i64: 4, 128, 128>}, {pipeline_mode = #tpu.pipeline_mode<synchronous>, transform_indices = @transform_2, window_bounds = array<i64: 1, 128>}, {pipeline_mode = #tpu.pipeline_mode<synchronous>, transform_indices = @transform_3, window_bounds = array<i64: 1, 128>}, {transform_indices = @transform_4, window_bounds = array<i64: 1, 880, 128>}]} {
    %cst = arith.constant 0.000000e+00 : f32
    %0 = vector.broadcast %cst : f32 to vector<256x128xf32>
    %c0 = arith.constant 0 : index
    %c0_0 = arith.constant 0 : index
    %c0_1 = arith.constant 0 : index
    %1 = vector.load %arg1[%c0, %c0_0, %c0_1] : memref<1x304x128xbf16, #tpu.memory_space<vmem>>, vector<1x256x128xbf16>
    %2 = vector.shape_cast %1 : vector<1x256x128xbf16> to vector<256x128xbf16>
    %c0_2 = arith.constant 0 : index
    %c0_3 = arith.constant 0 : index
    %c0_4 = arith.constant 0 : index
    %3 = vector.load %arg2[%c0_2, %c0_3, %c0_4] : memref<4x128x128xbf16, #tpu.memory_space<vmem>>, vector<1x128x128xbf16>
    %4 = vector.shape_cast %3 : vector<1x128x128xbf16> to vector<128x128xbf16>
    %cst_5 = arith.constant dense<0.000000e+00> : vector<256x128xf32>
    %5 = tpu.matmul %2, %4, %cst_5 {dimension_numbers = #tpu.dot_dimension_numbers<[1], [0], [0], [1], [0, 0, 1, 1], [], []>} : vector<256x128xbf16>, vector<128x128xbf16>, vector<256x128xf32> -> vector<256x128xf32>
    %6 = arith.addf %0, %5 : vector<256x128xf32>
    %c0_6 = arith.constant 0 : index
    %c16 = arith.constant 16 : index
    %c0_7 = arith.constant 0 : index
    %7 = vector.load %arg1[%c0_6, %c16, %c0_7] : memref<1x304x128xbf16, #tpu.memory_space<vmem>>, vector<1x256x128xbf16>
    %8 = vector.shape_cast %7 : vector<1x256x128xbf16> to vector<256x128xbf16>
    %c1 = arith.constant 1 : index
    %c0_8 = arith.constant 0 : index
    %c0_9 = arith.constant 0 : index
    %9 = vector.load %arg2[%c1, %c0_8, %c0_9] : memref<4x128x128xbf16, #tpu.memory_space<vmem>>, vector<1x128x128xbf16>
    %10 = vector.shape_cast %9 : vector<1x128x128xbf16> to vector<128x128xbf16>
    %cst_10 = arith.constant dense<0.000000e+00> : vector<256x128xf32>
    %11 = tpu.matmul %8, %10, %cst_10 {dimension_numbers = #tpu.dot_dimension_numbers<[1], [0], [0], [1], [0, 0, 1, 1], [], []>} : vector<256x128xbf16>, vector<128x128xbf16>, vector<256x128xf32> -> vector<256x128xf32>
    %12 = arith.addf %6, %11 : vector<256x128xf32>
    %c0_11 = arith.constant 0 : index
    %c32 = arith.constant 32 : index
    %c0_12 = arith.constant 0 : index
    %13 = vector.load %arg1[%c0_11, %c32, %c0_12] : memref<1x304x128xbf16, #tpu.memory_space<vmem>>, vector<1x256x128xbf16>
    %14 = vector.shape_cast %13 : vector<1x256x128xbf16> to vector<256x128xbf16>
    %c2 = arith.constant 2 : index
    %c0_13 = arith.constant 0 : index
    %c0_14 = arith.constant 0 : index
    %15 = vector.load %arg2[%c2, %c0_13, %c0_14] : memref<4x128x128xbf16, #tpu.memory_space<vmem>>, vector<1x128x128xbf16>
    %16 = vector.shape_cast %15 : vector<1x128x128xbf16> to vector<128x128xbf16>
    %cst_15 = arith.constant dense<0.000000e+00> : vector<256x128xf32>
    %17 = tpu.matmul %14, %16, %cst_15 {dimension_numbers = #tpu.dot_dimension_numbers<[1], [0], [0], [1], [0, 0, 1, 1], [], []>} : vector<256x128xbf16>, vector<128x128xbf16>, vector<256x128xf32> -> vector<256x128xf32>
    %18 = arith.addf %12, %17 : vector<256x128xf32>
    %c0_16 = arith.constant 0 : index
    %c48 = arith.constant 48 : index
    %c0_17 = arith.constant 0 : index
    %19 = vector.load %arg1[%c0_16, %c48, %c0_17] : memref<1x304x128xbf16, #tpu.memory_space<vmem>>, vector<1x256x128xbf16>
    %20 = vector.shape_cast %19 : vector<1x256x128xbf16> to vector<256x128xbf16>
    %c3 = arith.constant 3 : index
    %c0_18 = arith.constant 0 : index
    %c0_19 = arith.constant 0 : index
    %21 = vector.load %arg2[%c3, %c0_18, %c0_19] : memref<4x128x128xbf16, #tpu.memory_space<vmem>>, vector<1x128x128xbf16>
    %22 = vector.shape_cast %21 : vector<1x128x128xbf16> to vector<128x128xbf16>
    %cst_20 = arith.constant dense<0.000000e+00> : vector<256x128xf32>
    %23 = tpu.matmul %20, %22, %cst_20 {dimension_numbers = #tpu.dot_dimension_numbers<[1], [0], [0], [1], [0, 0, 1, 1], [], []>} : vector<256x128xbf16>, vector<128x128xbf16>, vector<256x128xf32> -> vector<256x128xf32>
    %24 = arith.addf %18, %23 : vector<256x128xf32>
    %c0_21 = arith.constant 0 : index
    %c0_22 = arith.constant 0 : index
    %25 = vector.load %arg3[%c0_21, %c0_22] : memref<1x128xf32, #tpu.memory_space<vmem>>, vector<1x128xf32>
    %26 = vector.broadcast %25 : vector<1x128xf32> to vector<256x128xf32>
    %27 = arith.addf %24, %26 : vector<256x128xf32>
    %c0_23 = arith.constant 0 : index
    %c0_24 = arith.constant 0 : index
    %28 = vector.load %arg4[%c0_23, %c0_24] : memref<1x128xf32, #tpu.memory_space<vmem>>, vector<1x128xf32>
    %29 = vector.broadcast %28 : vector<1x128xf32> to vector<256x128xf32>
    %30 = arith.mulf %27, %29 : vector<256x128xf32>
    %cst_25 = arith.constant 0.000000e+00 : f32
    %31 = vector.broadcast %cst_25 : f32 to vector<256x128xf32>
    %32 = arith.maximumf %30, %31 : vector<256x128xf32>
    %33 = math.absf %30 : vector<256x128xf32>
    %cst_26 = arith.constant 0.000000e+00 : f32
    %34 = vector.broadcast %cst_26 : f32 to vector<256x128xf32>
    %35 = arith.subf %34, %33 : vector<256x128xf32>
    %36 = math.exp %35 : vector<256x128xf32>
    %37 = math.log1p %36 : vector<256x128xf32>
    %38 = arith.addf %32, %37 : vector<256x128xf32>
    %cst_27 = arith.constant 0.000000e+00 : bf16
    %39 = vector.broadcast %cst_27 : bf16 to vector<304x128xbf16>
    %c0_28 = arith.constant 0 : index
    %c0_29 = arith.constant 0 : index
    %c0_30 = arith.constant 0 : index
    %40 = vector.load %arg5[%c0_28, %c0_29, %c0_30] : memref<1x880x128xbf16, #tpu.memory_space<vmem>>, vector<1x304x128xbf16>
    %41 = vector.shape_cast %40 : vector<1x304x128xbf16> to vector<304x128xbf16>
    %42 = vector.shape_cast %39 : vector<304x128xbf16> to vector<1x304x128xbf16>
    tpu.vector_store %arg5[%c0_28, %c0_29, %c0_30], %42 {strides = array<i32>} : memref<1x880x128xbf16, #tpu.memory_space<vmem>>, vector<1x304x128xbf16>,
    %43 = arith.truncf %38 : vector<256x128xf32> to vector<256x128xbf16>
    %c0_31 = arith.constant 0 : index
    %c304 = arith.constant 304 : index
    %c0_32 = arith.constant 0 : index
    %44 = vector.load %arg5[%c0_31, %c304, %c0_32] : memref<1x880x128xbf16, #tpu.memory_space<vmem>>, vector<1x256x128xbf16>
    %45 = vector.shape_cast %44 : vector<1x256x128xbf16> to vector<256x128xbf16>
    %46 = vector.shape_cast %43 : vector<256x128xbf16> to vector<1x256x128xbf16>
    tpu.vector_store %arg5[%c0_31, %c304, %c0_32], %46 {strides = array<i32>} : memref<1x880x128xbf16, #tpu.memory_space<vmem>>, vector<1x256x128xbf16>,
    %cst_33 = arith.constant 0.000000e+00 : bf16
    %47 = vector.broadcast %cst_33 : bf16 to vector<320x128xbf16>
    %c0_34 = arith.constant 0 : index
    %c560 = arith.constant 560 : index
    %c0_35 = arith.constant 0 : index
    %48 = vector.load %arg5[%c0_34, %c560, %c0_35] : memref<1x880x128xbf16, #tpu.memory_space<vmem>>, vector<1x320x128xbf16>
    %49 = vector.shape_cast %48 : vector<1x320x128xbf16> to vector<320x128xbf16>
    %50 = vector.shape_cast %47 : vector<320x128xbf16> to vector<1x320x128xbf16>
    tpu.vector_store %arg5[%c0_34, %c560, %c0_35], %50 {strides = array<i32>} : memref<1x880x128xbf16, #tpu.memory_space<vmem>>, vector<1x320x128xbf16>,
    return
  }
  func.func @transform_0(%arg0: i32) -> (i32, i32, i32) {
    %c0_i32 = arith.constant 0 : i32
    %c0_i32_0 = arith.constant 0 : i32
    %c0_i32_1 = arith.constant 0 : i32
    return %arg0, %c0_i32, %c0_i32_0 : i32, i32, i32
  }
  func.func @transform_1(%arg0: i32) -> (i32, i32, i32) {
    %c0_i32 = arith.constant 0 : i32
    %c0_i32_0 = arith.constant 0 : i32
    %c0_i32_1 = arith.constant 0 : i32
    %c0_i32_2 = arith.constant 0 : i32
    return %c0_i32, %c0_i32_0, %c0_i32_1 : i32, i32, i32
  }
  func.func @transform_2(%arg0: i32) -> (i32, i32) {
    %c0_i32 = arith.constant 0 : i32
    %c0_i32_0 = arith.constant 0 : i32
    %c0_i32_1 = arith.constant 0 : i32
    return %c0_i32, %c0_i32_0 : i32, i32
  }
  func.func @transform_3(%arg0: i32) -> (i32, i32) {
    %c0_i32 = arith.constant 0 : i32
    %c0_i32_0 = arith.constant 0 : i32
    %c0_i32_1 = arith.constant 0 : i32
    return %c0_i32, %c0_i32_0 : i32, i32
  }
  func.func @transform_4(%arg0: i32) -> (i32, i32, i32) {
    %c0_i32 = arith.constant 0 : i32
    %c0_i32_0 = arith.constant 0 : i32
    %c0_i32_1 = arith.constant 0 : i32
    return %arg0, %c0_i32, %c0_i32_0 : i32, i32, i32
  }
}

module attributes {stable_mosaic.version = 11 : i64} {
  func.func @_stage2_kernel(%arg0: i32, %arg1: i32, %arg2: memref<1x880x128xbf16, #tpu.memory_space<vmem>>, %arg3: memref<26x128x240xbf16, #tpu.memory_space<vmem>>, %arg4: memref<1x10xf32, #tpu.memory_space<vmem>>, %arg5: memref<1x256x10xf32, #tpu.memory_space<vmem>>) attributes {dimension_semantics = [#tpu.dimension_semantics<parallel>, #tpu.dimension_semantics<parallel>], iteration_bounds = array<i64: 2, 1>, scalar_prefetch = 0 : i64, scratch_operands = 0 : i64, tpu.core_type = #tpu.core_type<tc>, window_params = [{transform_indices = @transform_0, window_bounds = array<i64: 1, 880, 128>}, {pipeline_mode = #tpu.pipeline_mode<synchronous>, transform_indices = @transform_1, window_bounds = array<i64: 26, 128, 240>}, {pipeline_mode = #tpu.pipeline_mode<synchronous>, transform_indices = @transform_2, window_bounds = array<i64: 1, 10>}, {transform_indices = @transform_3, window_bounds = array<i64: 1, 256, 10>}]} {
    %c256_i32 = arith.constant 256 : i32
    %0 = arith.muli %arg1, %c256_i32 : i32
    %cst = arith.constant 0.000000e+00 : f32
    %1 = vector.broadcast %cst : f32 to vector<256x10xf32>
    %c0_i32 = arith.constant 0 : i32
    %c26_i32 = arith.constant 26 : i32
    %2 = arith.addi %c0_i32, %c26_i32 : i32
    %c1_i32 = arith.constant 1 : i32
    %3 = scf.for %arg6 = %c0_i32 to %2 step %c1_i32 iter_args(%arg7 = %1) -> (vector<256x10xf32>)  : i32 {
      %c24_i32 = arith.constant 24 : i32
      %18 = arith.muli %arg6, %c24_i32 : i32
      %19 = arith.addi %0, %18 : i32
      %20 = tpu.assume_multiple %19, 8 : i32
      %c0_7 = arith.constant 0 : index
      %21 = arith.index_cast %20 : i32 to index
      %c0_8 = arith.constant 0 : index
      %22 = vector.load %arg2[%c0_7, %21, %c0_8] : memref<1x880x128xbf16, #tpu.memory_space<vmem>>, vector<1x280x128xbf16>
      %23 = vector.shape_cast %22 : vector<1x280x128xbf16> to vector<280x128xbf16>
      %24 = arith.index_cast %arg6 : i32 to index
      %c0_9 = arith.constant 0 : index
      %c0_10 = arith.constant 0 : index
      %25 = vector.load %arg3[%24, %c0_9, %c0_10] : memref<26x128x240xbf16, #tpu.memory_space<vmem>>, vector<1x128x240xbf16>
      %26 = vector.shape_cast %25 : vector<1x128x240xbf16> to vector<128x240xbf16>
      %cst_11 = arith.constant dense<0.000000e+00> : vector<280x240xf32>
      %27 = tpu.matmul %23, %26, %cst_11 {dimension_numbers = #tpu.dot_dimension_numbers<[1], [0], [0], [1], [0, 0, 1, 1], [], []>} : vector<280x128xbf16>, vector<128x240xbf16>, vector<280x240xf32> -> vector<280x240xf32>
      %28 = vector.extract_strided_slice %27 {offsets = [0, 0], sizes = [256, 10], strides = [1, 1]} : vector<280x240xf32> to vector<256x10xf32>
      %29 = arith.addf %arg7, %28 : vector<256x10xf32>
      %30 = vector.extract_strided_slice %27 {offsets = [1, 10], sizes = [256, 10], strides = [1, 1]} : vector<280x240xf32> to vector<256x10xf32>
      %31 = arith.addf %29, %30 : vector<256x10xf32>
      %32 = vector.extract_strided_slice %27 {offsets = [2, 20], sizes = [256, 10], strides = [1, 1]} : vector<280x240xf32> to vector<256x10xf32>
      %33 = arith.addf %31, %32 : vector<256x10xf32>
      %34 = vector.extract_strided_slice %27 {offsets = [3, 30], sizes = [256, 10], strides = [1, 1]} : vector<280x240xf32> to vector<256x10xf32>
      %35 = arith.addf %33, %34 : vector<256x10xf32>
      %36 = vector.extract_strided_slice %27 {offsets = [4, 40], sizes = [256, 10], strides = [1, 1]} : vector<280x240xf32> to vector<256x10xf32>
      %37 = arith.addf %35, %36 : vector<256x10xf32>
      %38 = vector.extract_strided_slice %27 {offsets = [5, 50], sizes = [256, 10], strides = [1, 1]} : vector<280x240xf32> to vector<256x10xf32>
      %39 = arith.addf %37, %38 : vector<256x10xf32>
      %40 = vector.extract_strided_slice %27 {offsets = [6, 60], sizes = [256, 10], strides = [1, 1]} : vector<280x240xf32> to vector<256x10xf32>
      %41 = arith.addf %39, %40 : vector<256x10xf32>
      %42 = vector.extract_strided_slice %27 {offsets = [7, 70], sizes = [256, 10], strides = [1, 1]} : vector<280x240xf32> to vector<256x10xf32>
      %43 = arith.addf %41, %42 : vector<256x10xf32>
      %44 = vector.extract_strided_slice %27 {offsets = [8, 80], sizes = [256, 10], strides = [1, 1]} : vector<280x240xf32> to vector<256x10xf32>
      %45 = arith.addf %43, %44 : vector<256x10xf32>
      %46 = vector.extract_strided_slice %27 {offsets = [9, 90], sizes = [256, 10], strides = [1, 1]} : vector<280x240xf32> to vector<256x10xf32>
      %47 = arith.addf %45, %46 : vector<256x10xf32>
      %48 = vector.extract_strided_slice %27 {offsets = [10, 100], sizes = [256, 10], strides = [1, 1]} : vector<280x240xf32> to vector<256x10xf32>
      %49 = arith.addf %47, %48 : vector<256x10xf32>
      %50 = vector.extract_strided_slice %27 {offsets = [11, 110], sizes = [256, 10], strides = [1, 1]} : vector<280x240xf32> to vector<256x10xf32>
      %51 = arith.addf %49, %50 : vector<256x10xf32>
      %52 = vector.extract_strided_slice %27 {offsets = [12, 120], sizes = [256, 10], strides = [1, 1]} : vector<280x240xf32> to vector<256x10xf32>
      %53 = arith.addf %51, %52 : vector<256x10xf32>
      %54 = vector.extract_strided_slice %27 {offsets = [13, 130], sizes = [256, 10], strides = [1, 1]} : vector<280x240xf32> to vector<256x10xf32>
      %55 = arith.addf %53, %54 : vector<256x10xf32>
      %56 = vector.extract_strided_slice %27 {offsets = [14, 140], sizes = [256, 10], strides = [1, 1]} : vector<280x240xf32> to vector<256x10xf32>
      %57 = arith.addf %55, %56 : vector<256x10xf32>
      %58 = vector.extract_strided_slice %27 {offsets = [15, 150], sizes = [256, 10], strides = [1, 1]} : vector<280x240xf32> to vector<256x10xf32>
      %59 = arith.addf %57, %58 : vector<256x10xf32>
      %60 = vector.extract_strided_slice %27 {offsets = [16, 160], sizes = [256, 10], strides = [1, 1]} : vector<280x240xf32> to vector<256x10xf32>
      %61 = arith.addf %59, %60 : vector<256x10xf32>
      %62 = vector.extract_strided_slice %27 {offsets = [17, 170], sizes = [256, 10], strides = [1, 1]} : vector<280x240xf32> to vector<256x10xf32>
      %63 = arith.addf %61, %62 : vector<256x10xf32>
      %64 = vector.extract_strided_slice %27 {offsets = [18, 180], sizes = [256, 10], strides = [1, 1]} : vector<280x240xf32> to vector<256x10xf32>
      %65 = arith.addf %63, %64 : vector<256x10xf32>
      %66 = vector.extract_strided_slice %27 {offsets = [19, 190], sizes = [256, 10], strides = [1, 1]} : vector<280x240xf32> to vector<256x10xf32>
      %67 = arith.addf %65, %66 : vector<256x10xf32>
      %68 = vector.extract_strided_slice %27 {offsets = [20, 200], sizes = [256, 10], strides = [1, 1]} : vector<280x240xf32> to vector<256x10xf32>
      %69 = arith.addf %67, %68 : vector<256x10xf32>
      %70 = vector.extract_strided_slice %27 {offsets = [21, 210], sizes = [256, 10], strides = [1, 1]} : vector<280x240xf32> to vector<256x10xf32>
      %71 = arith.addf %69, %70 : vector<256x10xf32>
      %72 = vector.extract_strided_slice %27 {offsets = [22, 220], sizes = [256, 10], strides = [1, 1]} : vector<280x240xf32> to vector<256x10xf32>
      %73 = arith.addf %71, %72 : vector<256x10xf32>
      %74 = vector.extract_strided_slice %27 {offsets = [23, 230], sizes = [256, 10], strides = [1, 1]} : vector<280x240xf32> to vector<256x10xf32>
      %75 = arith.addf %73, %74 : vector<256x10xf32>
      scf.yield %75 : vector<256x10xf32>
    }
    %c26_i32_0 = arith.constant 26 : i32
    %c0 = arith.constant 0 : index
    %c0_1 = arith.constant 0 : index
    %4 = vector.load %arg4[%c0, %c0_1] : memref<1x10xf32, #tpu.memory_space<vmem>>, vector<1x10xf32>
    %5 = vector.broadcast %4 : vector<1x10xf32> to vector<256x10xf32>
    %6 = arith.addf %3, %5 : vector<256x10xf32>
    %cst_2 = arith.constant 0.000000e+00 : f32
    %7 = vector.broadcast %cst_2 : f32 to vector<256x10xf32>
    %8 = arith.maximumf %6, %7 : vector<256x10xf32>
    %9 = math.absf %6 : vector<256x10xf32>
    %cst_3 = arith.constant 0.000000e+00 : f32
    %10 = vector.broadcast %cst_3 : f32 to vector<256x10xf32>
    %11 = arith.subf %10, %9 : vector<256x10xf32>
    %12 = math.exp %11 : vector<256x10xf32>
    %13 = math.log1p %12 : vector<256x10xf32>
    %14 = arith.addf %8, %13 : vector<256x10xf32>
    %c0_4 = arith.constant 0 : index
    %c0_5 = arith.constant 0 : index
    %c0_6 = arith.constant 0 : index
    %15 = vector.load %arg5[%c0_4, %c0_5, %c0_6] : memref<1x256x10xf32, #tpu.memory_space<vmem>>, vector<1x256x10xf32>
    %16 = vector.shape_cast %15 : vector<1x256x10xf32> to vector<256x10xf32>
    %17 = vector.shape_cast %14 : vector<256x10xf32> to vector<1x256x10xf32>
    tpu.vector_store %arg5[%c0_4, %c0_5, %c0_6], %17 {strides = array<i32>} : memref<1x256x10xf32, #tpu.memory_space<vmem>>, vector<1x256x10xf32>,
    return
  }
  func.func @transform_0(%arg0: i32, %arg1: i32) -> (i32, i32, i32) {
    %c0_i32 = arith.constant 0 : i32
    %c0_i32_0 = arith.constant 0 : i32
    %c0_i32_1 = arith.constant 0 : i32
    return %arg0, %c0_i32, %c0_i32_0 : i32, i32, i32
  }
  func.func @transform_1(%arg0: i32, %arg1: i32) -> (i32, i32, i32) {
    %c0_i32 = arith.constant 0 : i32
    %c0_i32_0 = arith.constant 0 : i32
    %c0_i32_1 = arith.constant 0 : i32
    %c0_i32_2 = arith.constant 0 : i32
    return %c0_i32, %c0_i32_0, %c0_i32_1 : i32, i32, i32
  }
  func.func @transform_2(%arg0: i32, %arg1: i32) -> (i32, i32) {
    %c0_i32 = arith.constant 0 : i32
    %c0_i32_0 = arith.constant 0 : i32
    %c0_i32_1 = arith.constant 0 : i32
    return %c0_i32, %c0_i32_0 : i32, i32
  }
  func.func @transform_3(%arg0: i32, %arg1: i32) -> (i32, i32, i32) {
    %c0_i32 = arith.constant 0 : i32
    %c0_i32_0 = arith.constant 0 : i32
    return %arg0, %arg1, %c0_i32 : i32, i32, i32
  }
}

</mosaic_0001>

<llo_original>
// kernel: simplenet_forward.2
$region0: #{simplenet_forward.2}
  #allocation0 [shape = 'u32[]', space=smem, size = 0x4, offset = 0x4, fixed_abs, tag = 'smem constant byte address 0x4 - core index']
  #allocation1 [shape = 'u32[144,128]{1,0:T(1,128)}', space=vmem, size = 0x12000, scoped, tag = 'internal scratch']
  %s0 = inlined_call_operand.vmem [shape: bf16[2,304,128], index: 0, kind: input, shape index: {}]
  %s1 = inlined_call_operand.vmem [shape: bf16[4,128,128], index: 1, kind: input, shape index: {}]
  %s2 = inlined_call_operand.vmem [shape: f32[1,128], index: 2, kind: input, shape index: {}]
  %s3 = inlined_call_operand.vmem [shape: f32[1,128], index: 3, kind: input, shape index: {}]
  %s4 = inlined_call_operand.vmem [shape: bf16[2,880,128], index: 4, kind: output, shape index: {}]
  %s5 = sld [smem:[#allocation0]]
  $region49: #{simplenet_forward.2} parent=0
    _
  %s7 = ssub.s32 1, %s5
  %s8 = scalar_select 0, %s7, %s5
  loop: start=0, step=1, limit=4
  $region2: #{simplenet_forward.2} parent=0 // loop_pre_header
    _
  $region3: #{simplenet_forward.2} parent=0 // loop_header
    %s10 = sphi 0, %s14
    %p11 = scmp.ge.s32.totalorder %s10, 4
    %s20 = sphi 0, %s22
    %s23 = sphi 0, %s20
    %s24 = sphi 0, %s23
    %s40 = sphi 0, %s24
    %s44 = sphi 0, %s44
    %s46 = sphi 0, %s44
    %s47 = sphi 0, %s46
    %s61 = sphi 0, %s47
    %s65 = sphi 0, %s65
    %s67 = sphi 0, %s65
    %s68 = sphi 0, %s67
    %s82 = sphi 0, %s68
    %s86 = sphi 0, %s86
    %s88 = sphi 0, %s86
    %s89 = sphi 0, %s88
    %s103 = sphi 0, %s89
    %s109 = sphi 0, %s111
    %s112 = sphi 0, %s109
    %s113 = sphi 0, %s112
    %s129 = sphi 0, %s113
  $region4: #{simplenet_forward.2} parent=0 // loop_header_branch
    %13 = sbr.rel (%p11) target = $region8
  $region5: #{simplenet_forward.2} parent=0 // loop_body
    %s15 = ssub.s32 %s10, 1
    %s16 = ssub.s32 %s10, 2
    %s17 = sadd.s32 %s10, 1
    %s18 = ssub.s32 %s10, %s17
    %p19 = scmp.eq.s32.totalorder %s18, 0
    %s21 = sadd.s32 %s20, 1
    %s22 = scalar_select %p19, %s20, %s21
    %p25 = pneg %p19
    %p26 = scmp.eq.s32.totalorder %s10, 1
    %p27 = por %p25, %p26
    %p28 = scmp.ne.s32.totalorder %s20, %s23
    %p29 = scmp.eq.s32.totalorder %s10, 0
    %p30 = por %p28, %p29
    %p31 = scmp.ne.s32.totalorder %s20, %s23
    %p32 = scmp.eq.s32.totalorder %s15, 1
    %p33 = por %p31, %p32
    %p34 = scmp.ne.s32.totalorder %s23, %s24
    %p35 = scmp.eq.s32.totalorder %s15, 0
    %p36 = por %p34, %p35
    %p37 = scmp.ne.s32.totalorder %s23, %s24
    %p38 = scmp.eq.s32.totalorder %s16, 1
    %p39 = por %p37, %p38
    %p41 = scmp.ne.s32.totalorder %s24, %s40
    %p42 = scmp.eq.s32.totalorder %s16, 0
    %p43 = por %p41, %p42
    %s45 = sadd.s32 %s44, 1
    %p48 = scmp.eq.s32.totalorder %s10, 1
    %p49 = scmp.ne.s32.totalorder %s44, %s46
    %p50 = scmp.eq.s32.totalorder %s10, 0
    %p51 = por %p49, %p50
    %p52 = scmp.ne.s32.totalorder %s44, %s46
    %p53 = scmp.eq.s32.totalorder %s15, 1
    %p54 = por %p52, %p53
    %p55 = scmp.ne.s32.totalorder %s46, %s47
    %p56 = scmp.eq.s32.totalorder %s15, 0
    %p57 = por %p55, %p56
    %p58 = scmp.ne.s32.totalorder %s46, %s47
    %p59 = scmp.eq.s32.totalorder %s16, 1
    %p60 = por %p58, %p59
    %p62 = scmp.ne.s32.totalorder %s47, %s61
    %p63 = scmp.eq.s32.totalorder %s16, 0
    %p64 = por %p62, %p63
    %s66 = sadd.s32 %s65, 1
    %p69 = scmp.eq.s32.totalorder %s10, 1
    %p70 = scmp.ne.s32.totalorder %s65, %s67
    %p71 = scmp.eq.s32.totalorder %s10, 0
    %p72 = por %p70, %p71
    %p73 = scmp.ne.s32.totalorder %s65, %s67
    %p74 = scmp.eq.s32.totalorder %s15, 1
    %p75 = por %p73, %p74
    %p76 = scmp.ne.s32.totalorder %s67, %s68
    %p77 = scmp.eq.s32.totalorder %s15, 0
    %p78 = por %p76, %p77
    %p79 = scmp.ne.s32.totalorder %s67, %s68
    %p80 = scmp.eq.s32.totalorder %s16, 1
    %p81 = por %p79, %p80
    %p83 = scmp.ne.s32.totalorder %s68, %s82
    %p84 = scmp.eq.s32.totalorder %s16, 0
    %p85 = por %p83, %p84
    %s87 = sadd.s32 %s86, 1
    %p90 = scmp.eq.s32.totalorder %s10, 1
    %p91 = scmp.ne.s32.totalorder %s86, %s88
    %p92 = scmp.eq.s32.totalorder %s10, 0
    %p93 = por %p91, %p92
    %p94 = scmp.ne.s32.totalorder %s86, %s88
    %p95 = scmp.eq.s32.totalorder %s15, 1
    %p96 = por %p94, %p95
    %p97 = scmp.ne.s32.totalorder %s88, %s89
    %p98 = scmp.eq.s32.totalorder %s15, 0
    %p99 = por %p97, %p98
    %p100 = scmp.ne.s32.totalorder %s88, %s89
    %p101 = scmp.eq.s32.totalorder %s16, 1
    %p102 = por %p100, %p101
    %p104 = scmp.ne.s32.totalorder %s89, %s103
    %p105 = scmp.eq.s32.totalorder %s16, 0
    %p106 = por %p104, %p105
    %s107 = ssub.s32 %s10, %s17
    %p108 = scmp.eq.s32.totalorder %s107, 0
    %s110 = sadd.s32 %s109, 1
    %s111 = scalar_select %p108, %s109, %s110
    %p114 = pneg %p108
    %p115 = scmp.eq.s32.totalorder %s10, 1
    %p116 = por %p114, %p115
    %p117 = scmp.ne.s32.totalorder %s109, %s112
    %p118 = scmp.eq.s32.totalorder %s10, 0
    %p119 = por %p117, %p118
    %p120 = scmp.ne.s32.totalorder %s109, %s112
    %p121 = scmp.eq.s32.totalorder %s15, 1
    %p122 = por %p120, %p121
    %p123 = scmp.ne.s32.totalorder %s112, %s113
    %p124 = scmp.eq.s32.totalorder %s15, 0
    %p125 = por %p123, %p124
    %p126 = scmp.ne.s32.totalorder %s112, %s113
    %p127 = scmp.eq.s32.totalorder %s16, 1
    %p128 = por %p126, %p127
    %p130 = scmp.ne.s32.totalorder %s113, %s129
    %p131 = scmp.eq.s32.totalorder %s16, 0
    %p132 = por %p130, %p131
    %p133 = scmp.le.s32.totalorder 1, %s10
    %p134 = scmp.lt.s32.totalorder %s10, 3
    %p135 = pnand %p133, %p134
    %p136 = pneg %p135
    // Predicated region
    $region9: #{simplenet_forward.2} parent=5 // pred_check
      _
    $region10: #{simplenet_forward.2} parent=5 // pred_check_branch
      %138 = sbr.rel (%p135) target = $region12
    $region11: #{simplenet_forward.2} parent=5 // pred_region
      %s139 = ssub.s32 %s10, 1
      // Predicated region
      $region13: #{simplenet_forward.2} parent=11 // pred_check
        %p140 = pneg %p57
      $region14: #{simplenet_forward.2} parent=11 // pred_check_branch
        %142 = sbr.rel (%p140) target = $region16
      $region15: #{simplenet_forward.2} parent=11 // pred_region
        _
      $region16: #{simplenet_forward.2} parent=11 // pred_fallthru
        _
      // Predicated region
      $region17: #{simplenet_forward.2} parent=11 // pred_check
        %p143 = pneg %p78
      $region18: #{simplenet_forward.2} parent=11 // pred_check_branch
        %145 = sbr.rel (%p143) target = $region20
      $region19: #{simplenet_forward.2} parent=11 // pred_region
        _
      $region20: #{simplenet_forward.2} parent=11 // pred_fallthru
        _
      // Predicated region
      $region21: #{simplenet_forward.2} parent=11 // pred_check
        %p146 = pneg %p99
      $region22: #{simplenet_forward.2} parent=11 // pred_check_branch
        %148 = sbr.rel (%p146) target = $region24
      $region23: #{simplenet_forward.2} parent=11 // pred_region
        _
      $region24: #{simplenet_forward.2} parent=11 // pred_fallthru
        _
    $region12: #{simplenet_forward.2} parent=5 // pred_fallthru
      _
    %p149 = scmp.lt.s32.totalorder %s10, 2
    // Predicated region
    $region25: #{simplenet_forward.2} parent=5 // pred_check
      %p150 = pneg %p149
    $region26: #{simplenet_forward.2} parent=5 // pred_check_branch
      %152 = sbr.rel (%p150) target = $region28
    $region27: #{simplenet_forward.2} parent=5 // pred_region
      // Predicated region
      $region29: #{simplenet_forward.2} parent=27 // pred_check
        %p153 = pneg %p30
      $region30: #{simplenet_forward.2} parent=27 // pred_check_branch
        %155 = sbr.rel (%p153) target = $region32
      $region31: #{simplenet_forward.2} parent=27 // pred_region
        %p156 = scmp.lt.s32.totalorder %s10, 1
        %s157 = scalar_select %p156, %s10, 1
        %s158 = smul.addr %s157, 38
        %s159 = smul.addr %s158, 4
        %s160 = scalar_lea.vmem %s0, %s159
      $region32: #{simplenet_forward.2} parent=27 // pred_fallthru
        _
    $region28: #{simplenet_forward.2} parent=5 // pred_fallthru
      _
    %p161 = scmp.le.s32.totalorder 1, %s10
    %p162 = scmp.lt.s32.totalorder %s10, 3
    %p163 = pnand %p161, %p162
    %p164 = pneg %p163
    // Predicated region
    $region33: #{simplenet_forward.2} parent=5 // pred_check
      _
    $region34: #{simplenet_forward.2} parent=5 // pred_check_branch
      %166 = sbr.rel (%p163) target = $region36
    $region35: #{simplenet_forward.2} parent=5 // pred_region
      %s167 = ssub.s32 %s10, 1
      %p168 = scmp.lt.s32.totalorder %s15, 1
      %s169 = scalar_select %p168, %s15, 1
      %s170 = smul.addr %s169, 38
      %s171 = smul.addr %s170, 4
      %s172 = scalar_lea.vmem %s0, %s171
      %p173 = pneg %p36
      %p174 = pneg %p33
      %p175 = pneg %p57
      %p176 = pneg %p54
      %p177 = pneg %p78
      %p178 = pneg %p75
      %p179 = pneg %p99
      %p180 = pneg %p96
      %p181 = pneg %p125
      %p182 = pneg %p122
      %p183 = scmp.lt.s32.totalorder %s15, 1
      %s184 = scalar_select %p183, %s15, 1
      %s185 = smul.addr %s184, 110
      %s186 = smul.addr %s185, 4
      %s187 = scalar_lea.vmem %s4, %s186
      %p188 = scmp.lt.s32.totalorder %s15, 1
      %s189 = scalar_select %p188, %s15, 1
      %s190 = smul.addr %s189, 38
      %s191 = smul.addr %s190, 4
      %s192 = scalar_lea.vmem %s0, %s191
      %p193 = scmp.lt.s32.totalorder %s15, 1
      %s194 = scalar_select %p193, %s15, 1
      %s195 = smul.addr %s194, 110
      %s196 = smul.addr %s195, 4
      %s197 = scalar_lea.vmem %s4, %s196
      %v199 = vld [vmem:[%s192] sm:$0xf]
      %v200 = vld [vmem:[%s192 + $0x4] sm:$0xf]
      %v201 = vld [vmem:[%s192 + $0x8] sm:$0xf]
      %v202 = vld [vmem:[%s192 + $0xc] sm:$0xf]
      %v203 = vld [vmem:[%s192 + $0x10] sm:$0xf]
      %v204 = vld [vmem:[%s192 + $0x14] sm:$0xf]
      %v205 = vld [vmem:[%s192 + $0x18] sm:$0xf]
      %v206 = vld [vmem:[%s192 + $0x1c] sm:$0xf]
      %v207 = vld [vmem:[%s192 + $0x20] sm:$0xf]
      %v208 = vld [vmem:[%s192 + $0x24] sm:$0xf]
      %v209 = vld [vmem:[%s192 + $0x28] sm:$0xf]
      %v210 = vld [vmem:[%s192 + $0x2c] sm:$0xf]
      %v211 = vld [vmem:[%s192 + $0x30] sm:$0xf]
      %v212 = vld [vmem:[%s192 + $0x34] sm:$0xf]
      %v213 = vld [vmem:[%s192 + $0x38] sm:$0xf]
      %v214 = vld [vmem:[%s192 + $0x3c] sm:$0xf]
      %v215 = vld [vmem:[%s192 + $0x40] sm:$0xf]
      %v216 = vld [vmem:[%s192 + $0x44] sm:$0xf]
      %v217 = vld [vmem:[%s192 + $0x48] sm:$0xf]
      %v218 = vld [vmem:[%s192 + $0x4c] sm:$0xf]
      %v219 = vld [vmem:[%s192 + $0x50] sm:$0xf]
      %v220 = vld [vmem:[%s192 + $0x54] sm:$0xf]
      %v221 = vld [vmem:[%s192 + $0x58] sm:$0xf]
      %v222 = vld [vmem:[%s192 + $0x5c] sm:$0xf]
      %v223 = vld [vmem:[%s192 + $0x60] sm:$0xf]
      %v224 = vld [vmem:[%s192 + $0x64] sm:$0xf]
      %v225 = vld [vmem:[%s192 + $0x68] sm:$0xf]
      %v226 = vld [vmem:[%s192 + $0x6c] sm:$0xf]
      %v227 = vld [vmem:[%s192 + $0x70] sm:$0xf]
      %v228 = vld [vmem:[%s192 + $0x74] sm:$0xf]
      %v229 = vld [vmem:[%s192 + $0x78] sm:$0xf]
      %v230 = vld [vmem:[%s192 + $0x7c] sm:$0xf]
      %v231 = vld [vmem:[%s1] sm:$0xf]
      %v232 = vld [vmem:[%s1 + $0x4] sm:$0xf]
      %v233 = vld [vmem:[%s1 + $0x8] sm:$0xf]
      %v234 = vld [vmem:[%s1 + $0xc] sm:$0xf]
      %v235 = vld [vmem:[%s1 + $0x10] sm:$0xf]
      %v236 = vld [vmem:[%s1 + $0x14] sm:$0xf]
      %v237 = vld [vmem:[%s1 + $0x18] sm:$0xf]
      %v238 = vld [vmem:[%s1 + $0x1c] sm:$0xf]
      %v239 = vld [vmem:[%s1 + $0x20] sm:$0xf]
      %v240 = vld [vmem:[%s1 + $0x24] sm:$0xf]
      %v241 = vld [vmem:[%s1 + $0x28] sm:$0xf]
      %v242 = vld [vmem:[%s1 + $0x2c] sm:$0xf]
      %v243 = vld [vmem:[%s1 + $0x30] sm:$0xf]
      %v244 = vld [vmem:[%s1 + $0x34] sm:$0xf]
      %v245 = vld [vmem:[%s1 + $0x38] sm:$0xf]
      %v246 = vld [vmem:[%s1 + $0x3c] sm:$0xf]
      %v247 = vld [vmem:[%s192 + $0x80] sm:$0xf]
      %v248 = vld [vmem:[%s192 + $0x84] sm:$0xf]
      %s249 = scalar_lea.vmem %s1, 64
      %v250 = vld [vmem:[%s249] sm:$0xf]
      %v251 = vld [vmem:[%s249 + $0x4] sm:$0xf]
      %v252 = vld [vmem:[%s249 + $0x8] sm:$0xf]
      %v253 = vld [vmem:[%s249 + $0xc] sm:$0xf]
      %v254 = vld [vmem:[%s249 + $0x10] sm:$0xf]
      %v255 = vld [vmem:[%s249 + $0x14] sm:$0xf]
      %v256 = vld [vmem:[%s249 + $0x18] sm:$0xf]
      %v257 = vld [vmem:[%s249 + $0x1c] sm:$0xf]
      %v258 = vld [vmem:[%s249 + $0x20] sm:$0xf]
      %v259 = vld [vmem:[%s249 + $0x24] sm:$0xf]
      %v260 = vld [vmem:[%s249 + $0x28] sm:$0xf]
      %v261 = vld [vmem:[%s249 + $0x2c] sm:$0xf]
      %v262 = vld [vmem:[%s249 + $0x30] sm:$0xf]
      %v263 = vld [vmem:[%s249 + $0x34] sm:$0xf]
      %v264 = vld [vmem:[%s249 + $0x38] sm:$0xf]
      %v265 = vld [vmem:[%s249 + $0x3c] sm:$0xf]
      %v298 = vunpack.c.l.b16 %v201
      %v299 = vunpack.c.l.b16 %v202
      %v300 = vunpack.c.l.b16 %v203
      %v301 = vunpack.c.l.b16 %v204
      %v302 = vunpack.c.l.b16 %v205
      %v303 = vunpack.c.l.b16 %v206
      %v304 = vunpack.c.l.b16 %v207
      %v305 = vunpack.c.l.b16 %v208
      %v306 = vunpack.c.l.b16 %v209
      %v307 = vunpack.c.l.b16 %v210
      %v308 = vunpack.c.l.b16 %v211
      %v309 = vunpack.c.l.b16 %v212
      %v310 = vunpack.c.l.b16 %v213
      %v311 = vunpack.c.l.b16 %v214
      %v312 = vunpack.c.l.b16 %v215
      %v313 = vunpack.c.l.b16 %v216
      %v314 = vunpack.c.l.b16 %v217
      %v315 = vunpack.c.l.b16 %v218
      %v316 = vunpack.c.l.b16 %v219
      %v317 = vunpack.c.l.b16 %v220
      %v318 = vunpack.c.l.b16 %v221
      %v319 = vunpack.c.l.b16 %v222
      %v320 = vunpack.c.l.b16 %v223
      %v321 = vunpack.c.l.b16 %v224
      %v322 = vunpack.c.l.b16 %v225
      %v323 = vunpack.c.l.b16 %v226
      %v324 = vunpack.c.l.b16 %v227
      %v325 = vunpack.c.l.b16 %v228
      %v326 = vunpack.c.l.b16 %v229
      %v327 = vunpack.c.l.b16 %v230
      %v328 = vunpack.c.l.b16 %v247
      %v329 = vunpack.c.l.b16 %v248
      %v330 = vpack.c.b16 %v299, %v298
      %v331 = vpack.c.b16 %v301, %v300
      %v332 = vpack.c.b16 %v303, %v302
      %v333 = vpack.c.b16 %v305, %v304
      %v334 = vpack.c.b16 %v307, %v306
      %v335 = vpack.c.b16 %v309, %v308
      %v336 = vpack.c.b16 %v311, %v310
      %v337 = vpack.c.b16 %v313, %v312
      %v338 = vpack.c.b16 %v315, %v314
      %v339 = vpack.c.b16 %v317, %v316
      %v340 = vpack.c.b16 %v319, %v318
      %v341 = vpack.c.b16 %v321, %v320
      %v342 = vpack.c.b16 %v323, %v322
      %v343 = vpack.c.b16 %v325, %v324
      %v344 = vpack.c.b16 %v327, %v326
      %v345 = vpack.c.b16 %v329, %v328
      %v378 = vunpack.c.l.b16 %v250
      %v379 = vunpack.c.l.b16 %v251
      %v380 = vunpack.c.l.b16 %v252
      %v381 = vunpack.c.l.b16 %v253
      %v382 = vunpack.c.l.b16 %v254
      %v383 = vunpack.c.l.b16 %v255
      %v384 = vunpack.c.l.b16 %v256
      %v385 = vunpack.c.l.b16 %v257
      %v386 = vunpack.c.l.b16 %v258
      %v387 = vunpack.c.l.b16 %v259
      %v388 = vunpack.c.l.b16 %v260
      %v389 = vunpack.c.l.b16 %v261
      %v390 = vunpack.c.l.b16 %v262
      %v391 = vunpack.c.l.b16 %v263
      %v392 = vunpack.c.l.b16 %v264
      %v393 = vunpack.c.l.b16 %v265
      %v394 = vpack.c.b16 %v379, %v378
      %v395 = vpack.c.b16 %v381, %v380
      %v396 = vpack.c.b16 %v383, %v382
      %v397 = vpack.c.b16 %v385, %v384
      %v398 = vpack.c.b16 %v387, %v386
      %v399 = vpack.c.b16 %v389, %v388
      %v400 = vpack.c.b16 %v391, %v390
      %v401 = vpack.c.b16 %v393, %v392
      %410 = vmatprep.subr.bf16.mxu0 0
      %411 = vmatpush1.bf16.msra.mxu0 %v394
      %412 = vmatprep.subr.bf16.mxu0 0
      %413 = vmatpush1.bf16.msra.mxu0 %v395
      %414 = vmatprep.subr.bf16.mxu0 0
      %415 = vmatpush1.bf16.msra.mxu0 %v396
      %416 = vmatprep.subr.bf16.mxu0 0
      %417 = vmatpush1.bf16.msra.mxu0 %v397
      %418 = vmatprep.subr.bf16.mxu0 0
      %419 = vmatpush1.bf16.msra.mxu0 %v398
      %420 = vmatprep.subr.bf16.mxu0 0
      %421 = vmatpush1.bf16.msra.mxu0 %v399
      %422 = vmatprep.subr.bf16.mxu0 0
      %423 = vmatpush1.bf16.msra.mxu0 %v400
      %424 = vmatprep.subr.bf16.mxu0 0
      %425 = vmatpush1.bf16.msra.mxu0 %v401
      %426 = vmatprep.subr.bf16.mxu0 0
      %427 = vmatpush1.bf16.msra.mxu0 0
      %428 = vmatprep.subr.bf16.mxu0 0
      %429 = vmatpush1.bf16.msra.mxu0 0
      %430 = vmatprep.subr.bf16.mxu0 0
      %431 = vmatpush1.bf16.msra.mxu0 0
      %432 = vmatprep.subr.bf16.mxu0 0
      %433 = vmatpush1.bf16.msra.mxu0 0
      %434 = vmatprep.subr.bf16.mxu0 0
      %435 = vmatpush1.bf16.msra.mxu0 0
      %436 = vmatprep.subr.bf16.mxu0 0
      %437 = vmatpush1.bf16.msra.mxu0 0
      %438 = vmatprep.subr.bf16.mxu0 0
      %439 = vmatpush1.bf16.msra.mxu0 0
      %440 = vmatprep.subr.bf16.mxu0 0
      %441 = vmatpush1.bf16.msra.mxu0 0
      %442 = vmatprep.mubr.bf16.mxu0 0
      %443 = vmatmul.mubr.bf16.gmra.mrb[0].mxu0 %v330
      %v444 = vpop.f32.mrb[0].mxu0
      %v445 = vadd.f32 0.0, %v444
      %v446 = vpop.f32.mrb[0].mxu0
      %v447 = vpop.f32.mrb[0].mxu0
      %v448 = vadd.f32 0.0, %v447
      %v449 = vpop.f32.mrb[0].mxu0
      %450 = vmatprep.mubr.bf16.mxu0 0
      %451 = vmatmul.mubr.bf16.gmra.mrb[0].mxu0 %v331
      %v452 = vpop.f32.mrb[0].mxu0
      %v453 = vadd.f32 0.0, %v452
      %v454 = vpop.f32.mrb[0].mxu0
      %v455 = vpop.f32.mrb[0].mxu0
      %v456 = vadd.f32 0.0, %v455
      %v457 = vpop.f32.mrb[0].mxu0
      %458 = vmatprep.mubr.bf16.mxu0 0
      %459 = vmatmul.mubr.bf16.gmra.mrb[0].mxu0 %v332
      %v460 = vpop.f32.mrb[0].mxu0
      %v461 = vadd.f32 0.0, %v460
      %v462 = vpop.f32.mrb[0].mxu0
      %v463 = vpop.f32.mrb[0].mxu0
      %v464 = vadd.f32 0.0, %v463
      %v465 = vpop.f32.mrb[0].mxu0
      %466 = vmatprep.mubr.bf16.mxu0 0
      %467 = vmatmul.mubr.bf16.gmra.mrb[0].mxu0 %v333
      %v468 = vpop.f32.mrb[0].mxu0
      %v469 = vadd.f32 0.0, %v468
      %v470 = vpop.f32.mrb[0].mxu0
      %v471 = vpop.f32.mrb[0].mxu0
      %v472 = vadd.f32 0.0, %v471
      %v473 = vpop.f32.mrb[0].mxu0
      %474 = vmatprep.mubr.bf16.mxu0 0
      %475 = vmatmul.mubr.bf16.gmra.mrb[0].mxu0 %v334
      %v476 = vpop.f32.mrb[0].mxu0
      %v477 = vadd.f32 0.0, %v476
      %v478 = vpop.f32.mrb[0].mxu0
      %v479 = vpop.f32.mrb[0].mxu0
      %v480 = vadd.f32 0.0, %v479
      %v481 = vpop.f32.mrb[0].mxu0
      %482 = vmatprep.mubr.bf16.mxu0 0
      %483 = vmatmul.mubr.bf16.gmra.mrb[0].mxu0 %v335
      %v484 = vpop.f32.mrb[0].mxu0
      %v485 = vadd.f32 0.0, %v484
      %v486 = vpop.f32.mrb[0].mxu0
      %v487 = vpop.f32.mrb[0].mxu0
      %v488 = vadd.f32 0.0, %v487
      %v489 = vpop.f32.mrb[0].mxu0
      %490 = vmatprep.mubr.bf16.mxu0 0
      %491 = vmatmul.mubr.bf16.gmra.mrb[0].mxu0 %v336
      %v492 = vpop.f32.mrb[0].mxu0
      %v493 = vadd.f32 0.0, %v492
      %v494 = vpop.f32.mrb[0].mxu0
      %v495 = vpop.f32.mrb[0].mxu0
      %v496 = vadd.f32 0.0, %v495
      %v497 = vpop.f32.mrb[0].mxu0
      %498 = vmatprep.mubr.bf16.mxu0 0
      %499 = vmatmul.mubr.bf16.gmra.mrb[0].mxu0 %v337
      %v500 = vpop.f32.mrb[0].mxu0
      %v501 = vadd.f32 0.0, %v500
      %v502 = vpop.f32.mrb[0].mxu0
      %v503 = vpop.f32.mrb[0].mxu0
      %v504 = vadd.f32 0.0, %v503
      %v505 = vpop.f32.mrb[0].mxu0
      %506 = vmatprep.mubr.bf16.mxu0 0
      %507 = vmatmul.mubr.bf16.gmra.mrb[0].mxu0 %v338
      %v508 = vpop.f32.mrb[0].mxu0
      %v509 = vadd.f32 0.0, %v508
      %v510 = vpop.f32.mrb[0].mxu0
      %v511 = vpop.f32.mrb[0].mxu0
      %v512 = vadd.f32 0.0, %v511
      %v513 = vpop.f32.mrb[0].mxu0
      %514 = vmatprep.mubr.bf16.mxu0 0
      %515 = vmatmul.mubr.bf16.gmra.mrb[0].mxu0 %v339
      %v516 = vpop.f32.mrb[0].mxu0
      %v517 = vadd.f32 0.0, %v516
      %v518 = vpop.f32.mrb[0].mxu0
      %v519 = vpop.f32.mrb[0].mxu0
      %v520 = vadd.f32 0.0, %v519
      %v521 = vpop.f32.mrb[0].mxu0
      %522 = vmatprep.mubr.bf16.mxu0 0
      %523 = vmatmul.mubr.bf16.gmra.mrb[0].mxu0 %v340
      %v524 = vpop.f32.mrb[0].mxu0
      %v525 = vadd.f32 0.0, %v524
      %v526 = vpop.f32.mrb[0].mxu0
      %v527 = vpop.f32.mrb[0].mxu0
      %v528 = vadd.f32 0.0, %v527
      %v529 = vpop.f32.mrb[0].mxu0
      %530 = vmatprep.mubr.bf16.mxu0 0
      %531 = vmatmul.mubr.bf16.gmra.mrb[0].mxu0 %v341
      %v532 = vpop.f32.mrb[0].mxu0
      %v533 = vadd.f32 0.0, %v532
      %v534 = vpop.f32.mrb[0].mxu0
      %v535 = vpop.f32.mrb[0].mxu0
      %v536 = vadd.f32 0.0, %v535
      %v537 = vpop.f32.mrb[0].mxu0
      %538 = vmatprep.mubr.bf16.mxu0 0
      %539 = vmatmul.mubr.bf16.gmra.mrb[0].mxu0 %v342
      %v540 = vpop.f32.mrb[0].mxu0
      %v541 = vadd.f32 0.0, %v540
      %v542 = vpop.f32.mrb[0].mxu0
      %v543 = vpop.f32.mrb[0].mxu0
      %v544 = vadd.f32 0.0, %v543
      %v545 = vpop.f32.mrb[0].mxu0
      %546 = vmatprep.mubr.bf16.mxu0 0
      %547 = vmatmul.mubr.bf16.gmra.mrb[0].mxu0 %v343
      %v548 = vpop.f32.mrb[0].mxu0
      %v549 = vadd.f32 0.0, %v548
      %v550 = vpop.f32.mrb[0].mxu0
      %v551 = vpop.f32.mrb[0].mxu0
      %v552 = vadd.f32 0.0, %v551
      %v553 = vpop.f32.mrb[0].mxu0
      %554 = vmatprep.mubr.bf16.mxu0 0
      %555 = vmatmul.mubr.bf16.gmra.mrb[0].mxu0 %v344
      %v556 = vpop.f32.mrb[0].mxu0
      %v557 = vadd.f32 0.0, %v556
      %v558 = vpop.f32.mrb[0].mxu0
      %v559 = vpop.f32.mrb[0].mxu0
      %v560 = vadd.f32 0.0, %v559
      %v561 = vpop.f32.mrb[0].mxu0
      %562 = vmatprep.mubr.bf16.mxu0 0
      %563 = vmatmul.mubr.bf16.gmra.mrb[0].mxu0 %v345
      %v564 = vpop.f32.mrb[0].mxu0
      %v565 = vadd.f32 0.0, %v564
      %v566 = vpop.f32.mrb[0].mxu0
      %v567 = vpop.f32.mrb[0].mxu0
      %v568 = vadd.f32 0.0, %v567
      %v569 = vpop.f32.mrb[0].mxu0
      %570 = vdwg.mxu0
      %v573 = vunpack.c.l.b16 %v199
      %v574 = vunpack.c.l.b16 %v200
      %v575 = vpack.c.b16 %v574, %v573
      %v593 = vunpack.c.l.b16 %v231
      %v594 = vunpack.c.l.b16 %v232
      %v595 = vunpack.c.l.b16 %v233
      %v596 = vunpack.c.l.b16 %v234
      %v597 = vunpack.c.l.b16 %v235
      %v598 = vunpack.c.l.b16 %v236
      %v599 = vunpack.c.l.b16 %v237
      %v600 = vunpack.c.l.b16 %v238
      %v601 = vunpack.c.l.b16 %v239
      %v602 = vunpack.c.l.b16 %v240
      %v603 = vunpack.c.l.b16 %v241
      %v604 = vunpack.c.l.b16 %v242
      %v605 = vunpack.c.l.b16 %v243
      %v606 = vunpack.c.l.b16 %v244
      %v607 = vunpack.c.l.b16 %v245
      %v608 = vunpack.c.l.b16 %v246
      %v609 = vpack.c.b16 %v594, %v593
      %v610 = vpack.c.b16 %v596, %v595
      %v611 = vpack.c.b16 %v598, %v597
      %v612 = vpack.c.b16 %v600, %v599
      %v613 = vpack.c.b16 %v602, %v601
      %v614 = vpack.c.b16 %v604, %v603
      %v615 = vpack.c.b16 %v606, %v605
      %v616 = vpack.c.b16 %v608, %v607
      %625 = vmatprep.subr.bf16.mxu0 0
      %626 = vmatpush1.bf16.msra.mxu0 %v609
      %627 = vmatprep.subr.bf16.mxu0 0
      %628 = vmatpush1.bf16.msra.mxu0 %v610
      %629 = vmatprep.subr.bf16.mxu0 0
      %630 = vmatpush1.bf16.msra.mxu0 %v611
      %631 = vmatprep.subr.bf16.mxu0 0
      %632 = vmatpush1.bf16.msra.mxu0 %v612
      %633 = vmatprep.subr.bf16.mxu0 0
      %634 = vmatpush1.bf16.msra.mxu0 %v613
      %635 = vmatprep.subr.bf16.mxu0 0
      %636 = vmatpush1.bf16.msra.mxu0 %v614
      %637 = vmatprep.subr.bf16.mxu0 0
      %638 = vmatpush1.bf16.msra.mxu0 %v615
      %639 = vmatprep.subr.bf16.mxu0 0
      %640 = vmatpush1.bf16.msra.mxu0 %v616
      %641 = vmatprep.subr.bf16.mxu0 0
      %642 = vmatpush1.bf16.msra.mxu0 0
      %643 = vmatprep.subr.bf16.mxu0 0
      %644 = vmatpush1.bf16.msra.mxu0 0
      %645 = vmatprep.subr.bf16.mxu0 0
      %646 = vmatpush1.bf16.msra.mxu0 0
      %647 = vmatprep.subr.bf16.mxu0 0
      %648 = vmatpush1.bf16.msra.mxu0 0
      %649 = vmatprep.subr.bf16.mxu0 0
      %650 = vmatpush1.bf16.msra.mxu0 0
      %651 = vmatprep.subr.bf16.mxu0 0
      %652 = vmatpush1.bf16.msra.mxu0 0
      %653 = vmatprep.subr.bf16.mxu0 0
      %654 = vmatpush1.bf16.msra.mxu0 0
      %655 = vmatprep.subr.bf16.mxu0 0
      %656 = vmatpush1.bf16.msra.mxu0 0
      %657 = vmatprep.mubr.bf16.mxu0 0
      %658 = vmatmul.mubr.bf16.gmra.mrb[0].mxu0 %v575
      %v659 = vpop.f32.mrb[0].mxu0
      %v660 = vadd.f32 %v445, %v659
      %v661 = vpop.f32.mrb[0].mxu0
      %v662 = vpop.f32.mrb[0].mxu0
      %v663 = vadd.f32 %v448, %v662
      %v664 = vpop.f32.mrb[0].mxu0
      %665 = vmatprep.mubr.bf16.mxu0 0
      %666 = vmatmul.mubr.bf16.gmra.mrb[0].mxu0 %v330
      %v667 = vpop.f32.mrb[0].mxu0
      %v668 = vadd.f32 %v453, %v667
      %v669 = vpop.f32.mrb[0].mxu0
      %v670 = vpop.f32.mrb[0].mxu0
      %v671 = vadd.f32 %v456, %v670
      %v672 = vpop.f32.mrb[0].mxu0
      %673 = vmatprep.mubr.bf16.mxu0 0
      %674 = vmatmul.mubr.bf16.gmra.mrb[0].mxu0 %v331
      %v675 = vpop.f32.mrb[0].mxu0
      %v676 = vadd.f32 %v461, %v675
      %v677 = vpop.f32.mrb[0].mxu0
      %v678 = vpop.f32.mrb[0].mxu0
      %v679 = vadd.f32 %v464, %v678
      %v680 = vpop.f32.mrb[0].mxu0
      %681 = vmatprep.mubr.bf16.mxu0 0
      %682 = vmatmul.mubr.bf16.gmra.mrb[0].mxu0 %v332
      %v683 = vpop.f32.mrb[0].mxu0
      %v684 = vadd.f32 %v469, %v683
      %v685 = vpop.f32.mrb[0].mxu0
      %v686 = vpop.f32.mrb[0].mxu0
      %v687 = vadd.f32 %v472, %v686
      %v688 = vpop.f32.mrb[0].mxu0
      %689 = vmatprep.mubr.bf16.mxu0 0
      %690 = vmatmul.mubr.bf16.gmra.mrb[0].mxu0 %v333
      %v691 = vpop.f32.mrb[0].mxu0
      %v692 = vadd.f32 %v477, %v691
      %v693 = vpop.f32.mrb[0].mxu0
      %v694 = vpop.f32.mrb[0].mxu0
      %v695 = vadd.f32 %v480, %v694
      %v696 = vpop.f32.mrb[0].mxu0
      %697 = vmatprep.mubr.bf16.mxu0 0
      %698 = vmatmul.mubr.bf16.gmra.mrb[0].mxu0 %v334
      %v699 = vpop.f32.mrb[0].mxu0
      %v700 = vadd.f32 %v485, %v699
      %v701 = vpop.f32.mrb[0].mxu0
      %v702 = vpop.f32.mrb[0].mxu0
      %v703 = vadd.f32 %v488, %v702
      %v704 = vpop.f32.mrb[0].mxu0
      %705 = vmatprep.mubr.bf16.mxu0 0
      %706 = vmatmul.mubr.bf16.gmra.mrb[0].mxu0 %v335
      %v707 = vpop.f32.mrb[0].mxu0
      %v708 = vadd.f32 %v493, %v707
      %v709 = vpop.f32.mrb[0].mxu0
      %v710 = vpop.f32.mrb[0].mxu0
      %v711 = vadd.f32 %v496, %v710
      %v712 = vpop.f32.mrb[0].mxu0
      %713 = vmatprep.mubr.bf16.mxu0 0
      %714 = vmatmul.mubr.bf16.gmra.mrb[0].mxu0 %v336
      %v715 = vpop.f32.mrb[0].mxu0
      %v716 = vadd.f32 %v501, %v715
      %v717 = vpop.f32.mrb[0].mxu0
      %v718 = vpop.f32.mrb[0].mxu0
      %v719 = vadd.f32 %v504, %v718
      %v720 = vpop.f32.mrb[0].mxu0
      %721 = vmatprep.mubr.bf16.mxu0 0
      %722 = vmatmul.mubr.bf16.gmra.mrb[0].mxu0 %v337
      %v723 = vpop.f32.mrb[0].mxu0
      %v724 = vadd.f32 %v509, %v723
      %v725 = vpop.f32.mrb[0].mxu0
      %v726 = vpop.f32.mrb[0].mxu0
      %v727 = vadd.f32 %v512, %v726
      %v728 = vpop.f32.mrb[0].mxu0
      %729 = vmatprep.mubr.bf16.mxu0 0
      %730 = vmatmul.mubr.bf16.gmra.mrb[0].mxu0 %v338
      %v731 = vpop.f32.mrb[0].mxu0
      %v732 = vadd.f32 %v517, %v731
      %v733 = vpop.f32.mrb[0].mxu0
      %v734 = vpop.f32.mrb[0].mxu0
      %v735 = vadd.f32 %v520, %v734
      %v736 = vpop.f32.mrb[0].mxu0
      %737 = vmatprep.mubr.bf16.mxu0 0
      %738 = vmatmul.mubr.bf16.gmra.mrb[0].mxu0 %v339
      %v739 = vpop.f32.mrb[0].mxu0
      %v740 = vadd.f32 %v525, %v739
      %v741 = vpop.f32.mrb[0].mxu0
      %v742 = vpop.f32.mrb[0].mxu0
      %v743 = vadd.f32 %v528, %v742
      %v744 = vpop.f32.mrb[0].mxu0
      %745 = vmatprep.mubr.bf16.mxu0 0
      %746 = vmatmul.mubr.bf16.gmra.mrb[0].mxu0 %v340
      %v747 = vpop.f32.mrb[0].mxu0
      %v748 = vadd.f32 %v533, %v747
      %v749 = vpop.f32.mrb[0].mxu0
      %v750 = vpop.f32.mrb[0].mxu0
      %v751 = vadd.f32 %v536, %v750
      %v752 = vpop.f32.mrb[0].mxu0
      %753 = vmatprep.mubr.bf16.mxu0 0
      %754 = vmatmul.mubr.bf16.gmra.mrb[0].mxu0 %v341
      %v755 = vpop.f32.mrb[0].mxu0
      %v756 = vadd.f32 %v541, %v755
      %v757 = vpop.f32.mrb[0].mxu0
      %v758 = vpop.f32.mrb[0].mxu0
      %v759 = vadd.f32 %v544, %v758
      %v760 = vpop.f32.mrb[0].mxu0
      %761 = vmatprep.mubr.bf16.mxu0 0
      %762 = vmatmul.mubr.bf16.gmra.mrb[0].mxu0 %v342
      %v763 = vpop.f32.mrb[0].mxu0
      %v764 = vadd.f32 %v549, %v763
      %v765 = vpop.f32.mrb[0].mxu0
      %v766 = vpop.f32.mrb[0].mxu0
      %v767 = vadd.f32 %v552, %v766
      %v768 = vpop.f32.mrb[0].mxu0
      %769 = vmatprep.mubr.bf16.mxu0 0
      %770 = vmatmul.mubr.bf16.gmra.mrb[0].mxu0 %v343
      %v771 = vpop.f32.mrb[0].mxu0
      %v772 = vadd.f32 %v557, %v771
      %v773 = vpop.f32.mrb[0].mxu0
      %v774 = vpop.f32.mrb[0].mxu0
      %v775 = vadd.f32 %v560, %v774
      %v776 = vpop.f32.mrb[0].mxu0
      %777 = vmatprep.mubr.bf16.mxu0 0
      %778 = vmatmul.mubr.bf16.gmra.mrb[0].mxu0 %v344
      %v779 = vpop.f32.mrb[0].mxu0
      %v780 = vadd.f32 %v565, %v779
      %v781 = vpop.f32.mrb[0].mxu0
      %v782 = vpop.f32.mrb[0].mxu0
      %v783 = vadd.f32 %v568, %v782
      %v784 = vpop.f32.mrb[0].mxu0
      %785 = vdwg.mxu0
      %v786 = vld [vmem:[%s192 + $0x10] sm:$0xf]
      %v787 = vld [vmem:[%s192 + $0x14] sm:$0xf]
      %v788 = vld [vmem:[%s192 + $0x18] sm:$0xf]
      %v789 = vld [vmem:[%s192 + $0x1c] sm:$0xf]
      %v790 = vld [vmem:[%s192 + $0x20] sm:$0xf]
      %v791 = vld [vmem:[%s192 + $0x24] sm:$0xf]
      %v792 = vld [vmem:[%s192 + $0x28] sm:$0xf]
      %v793 = vld [vmem:[%s192 + $0x2c] sm:$0xf]
      %v794 = vld [vmem:[%s192 + $0x30] sm:$0xf]
      %v795 = vld [vmem:[%s192 + $0x34] sm:$0xf]
      %v796 = vld [vmem:[%s192 + $0x38] sm:$0xf]
      %v797 = vld [vmem:[%s192 + $0x3c] sm:$0xf]
      %v798 = vld [vmem:[%s192 + $0x40] sm:$0xf]
      %v799 = vld [vmem:[%s192 + $0x44] sm:$0xf]
      %v800 = vld [vmem:[%s192 + $0x48] sm:$0xf]
      %v801 = vld [vmem:[%s192 + $0x4c] sm:$0xf]
      %v802 = vld [vmem:[%s192 + $0x50] sm:$0xf]
      %v803 = vld [vmem:[%s192 + $0x54] sm:$0xf]
      %v804 = vld [vmem:[%s192 + $0x58] sm:$0xf]
      %v805 = vld [vmem:[%s192 + $0x5c] sm:$0xf]
      %v806 = vld [vmem:[%s192 + $0x60] sm:$0xf]
      %v807 = vld [vmem:[%s192 + $0x64] sm:$0xf]
      %v808 = vld [vmem:[%s192 + $0x68] sm:$0xf]
      %v809 = vld [vmem:[%s192 + $0x6c] sm:$0xf]
      %v810 = vld [vmem:[%s192 + $0x70] sm:$0xf]
      %v811 = vld [vmem:[%s192 + $0x74] sm:$0xf]
      %v812 = vld [vmem:[%s192 + $0x78] sm:$0xf]
      %v813 = vld [vmem:[%s192 + $0x7c] sm:$0xf]
      %v814 = vld [vmem:[%s192 + $0x80] sm:$0xf]
      %v815 = vld [vmem:[%s192 + $0x84] sm:$0xf]
      %v816 = vld [vmem:[%s192 + $0x88] sm:$0xf]
      %v817 = vld [vmem:[%s192 + $0x8c] sm:$0xf]
      %s818 = scalar_lea.vmem %s1, 128
      %v819 = vld [vmem:[%s818] sm:$0xf]
      %v820 = vld [vmem:[%s818 + $0x4] sm:$0xf]
      %v821 = vld [vmem:[%s818 + $0x8] sm:$0xf]
      %v822 = vld [vmem:[%s818 + $0xc] sm:$0xf]
      %v823 = vld [vmem:[%s818 + $0x10] sm:$0xf]
      %v824 = vld [vmem:[%s818 + $0x14] sm:$0xf]
      %v825 = vld [vmem:[%s818 + $0x18] sm:$0xf]
      %v826 = vld [vmem:[%s818 + $0x1c] sm:$0xf]
      %v827 = vld [vmem:[%s818 + $0x20] sm:$0xf]
      %v828 = vld [vmem:[%s818 + $0x24] sm:$0xf]
      %v829 = vld [vmem:[%s818 + $0x28] sm:$0xf]
      %v830 = vld [vmem:[%s818 + $0x2c] sm:$0xf]
      %v831 = vld [vmem:[%s818 + $0x30] sm:$0xf]
      %v832 = vld [vmem:[%s818 + $0x34] sm:$0xf]
      %v833 = vld [vmem:[%s818 + $0x38] sm:$0xf]
      %v834 = vld [vmem:[%s818 + $0x3c] sm:$0xf]
      %v867 = vunpack.c.l.b16 %v786
      %v868 = vunpack.c.l.b16 %v787
      %v869 = vunpack.c.l.b16 %v788
      %v870 = vunpack.c.l.b16 %v789
      %v871 = vunpack.c.l.b16 %v790
      %v872 = vunpack.c.l.b16 %v791
      %v873 = vunpack.c.l.b16 %v792
      %v874 = vunpack.c.l.b16 %v793
      %v875 = vunpack.c.l.b16 %v794
      %v876 = vunpack.c.l.b16 %v795
      %v877 = vunpack.c.l.b16 %v796
      %v878 = vunpack.c.l.b16 %v797
      %v879 = vunpack.c.l.b16 %v798
      %v880 = vunpack.c.l.b16 %v799
      %v881 = vunpack.c.l.b16 %v800
      %v882 = vunpack.c.l.b16 %v801
      %v883 = vunpack.c.l.b16 %v802
      %v884 = vunpack.c.l.b16 %v803
      %v885 = vunpack.c.l.b16 %v804
      %v886 = vunpack.c.l.b16 %v805
      %v887 = vunpack.c.l.b16 %v806
      %v888 = vunpack.c.l.b16 %v807
      %v889 = vunpack.c.l.b16 %v808
      %v890 = vunpack.c.l.b16 %v809
      %v891 = vunpack.c.l.b16 %v810
      %v892 = vunpack.c.l.b16 %v811
      %v893 = vunpack.c.l.b16 %v812
      %v894 = vunpack.c.l.b16 %v813
      %v895 = vunpack.c.l.b16 %v814
      %v896 = vunpack.c.l.b16 %v815
      %v897 = vunpack.c.l.b16 %v816
      %v898 = vunpack.c.l.b16 %v817
      %v899 = vpack.c.b16 %v868, %v867
      %v900 = vpack.c.b16 %v870, %v869
      %v901 = vpack.c.b16 %v872, %v871
      %v902 = vpack.c.b16 %v874, %v873
      %v903 = vpack.c.b16 %v876, %v875
      %v904 = vpack.c.b16 %v878, %v877
      %v905 = vpack.c.b16 %v880, %v879
      %v906 = vpack.c.b16 %v882, %v881
      %v907 = vpack.c.b16 %v884, %v883
      %v908 = vpack.c.b16 %v886, %v885
      %v909 = vpack.c.b16 %v888, %v887
      %v910 = vpack.c.b16 %v890, %v889
      %v911 = vpack.c.b16 %v892, %v891
      %v912 = vpack.c.b16 %v894, %v893
      %v913 = vpack.c.b16 %v896, %v895
      %v914 = vpack.c.b16 %v898, %v897
      %v947 = vunpack.c.l.b16 %v819
      %v948 = vunpack.c.l.b16 %v820
      %v949 = vunpack.c.l.b16 %v821
      %v950 = vunpack.c.l.b16 %v822
      %v951 = vunpack.c.l.b16 %v823
      %v952 = vunpack.c.l.b16 %v824
      %v953 = vunpack.c.l.b16 %v825
      %v954 = vunpack.c.l.b16 %v826
      %v955 = vunpack.c.l.b16 %v827
      %v956 = vunpack.c.l.b16 %v828
      %v957 = vunpack.c.l.b16 %v829
      %v958 = vunpack.c.l.b16 %v830
      %v959 = vunpack.c.l.b16 %v831
      %v960 = vunpack.c.l.b16 %v832
      %v961 = vunpack.c.l.b16 %v833
      %v962 = vunpack.c.l.b16 %v834
      %v963 = vpack.c.b16 %v948, %v947
      %v964 = vpack.c.b16 %v950, %v949
      %v965 = vpack.c.b16 %v952, %v951
      %v966 = vpack.c.b16 %v954, %v953
      %v967 = vpack.c.b16 %v956, %v955
      %v968 = vpack.c.b16 %v958, %v957
      %v969 = vpack.c.b16 %v960, %v959
      %v970 = vpack.c.b16 %v962, %v961
      %979 = vmatprep.subr.bf16.mxu0 0
      %980 = vmatpush1.bf16.msra.mxu0 %v963
      %981 = vmatprep.subr.bf16.mxu0 0
      %982 = vmatpush1.bf16.msra.mxu0 %v964
      %983 = vmatprep.subr.bf16.mxu0 0
      %984 = vmatpush1.bf16.msra.mxu0 %v965
      %985 = vmatprep.subr.bf16.mxu0 0
      %986 = vmatpush1.bf16.msra.mxu0 %v966
      %987 = vmatprep.subr.bf16.mxu0 0
      %988 = vmatpush1.bf16.msra.mxu0 %v967
      %989 = vmatprep.subr.bf16.mxu0 0
      %990 = vmatpush1.bf16.msra.mxu0 %v968
      %991 = vmatprep.subr.bf16.mxu0 0
      %992 = vmatpush1.bf16.msra.mxu0 %v969
      %993 = vmatprep.subr.bf16.mxu0 0
      %994 = vmatpush1.bf16.msra.mxu0 %v970
      %995 = vmatprep.subr.bf16.mxu0 0
      %996 = vmatpush1.bf16.msra.mxu0 0
      %997 = vmatprep.subr.bf16.mxu0 0
      %998 = vmatpush1.bf16.msra.mxu0 0
      %999 = vmatprep.subr.bf16.mxu0 0
      %1000 = vmatpush1.bf16.msra.mxu0 0
      %1001 = vmatprep.subr.bf16.mxu0 0
      %1002 = vmatpush1.bf16.msra.mxu0 0
      %1003 = vmatprep.subr.bf16.mxu0 0
      %1004 = vmatpush1.bf16.msra.mxu0 0
      %1005 = vmatprep.subr.bf16.mxu0 0
      %1006 = vmatpush1.bf16.msra.mxu0 0
      %1007 = vmatprep.subr.bf16.mxu0 0
      %1008 = vmatpush1.bf16.msra.mxu0 0
      %1009 = vmatprep.subr.bf16.mxu0 0
      %1010 = vmatpush1.bf16.msra.mxu0 0
      %1011 = vmatprep.mubr.bf16.mxu0 0
      %1012 = vmatmul.mubr.bf16.gmra.mrb[0].mxu0 %v899
      %v1013 = vpop.f32.mrb[0].mxu0
      %v1014 = vadd.f32 0.0, %v1013
      %v1015 = vpop.f32.mrb[0].mxu0
      %v1016 = vpop.f32.mrb[0].mxu0
      %v1017 = vadd.f32 0.0, %v1016
      %v1018 = vpop.f32.mrb[0].mxu0
      %1019 = vmatprep.mubr.bf16.mxu0 0
      %1020 = vmatmul.mubr.bf16.gmra.mrb[0].mxu0 %v900
      %v1021 = vpop.f32.mrb[0].mxu0
      %v1022 = vadd.f32 0.0, %v1021
      %v1023 = vpop.f32.mrb[0].mxu0
      %v1024 = vpop.f32.mrb[0].mxu0
      %v1025 = vadd.f32 0.0, %v1024
      %v1026 = vpop.f32.mrb[0].mxu0
      %1027 = vmatprep.mubr.bf16.mxu0 0
      %1028 = vmatmul.mubr.bf16.gmra.mrb[0].mxu0 %v901
      %v1029 = vpop.f32.mrb[0].mxu0
      %v1030 = vadd.f32 0.0, %v1029
      %v1031 = vpop.f32.mrb[0].mxu0
      %v1032 = vpop.f32.mrb[0].mxu0
      %v1033 = vadd.f32 0.0, %v1032
      %v1034 = vpop.f32.mrb[0].mxu0
      %1035 = vmatprep.mubr.bf16.mxu0 0
      %1036 = vmatmul.mubr.bf16.gmra.mrb[0].mxu0 %v902
      %v1037 = vpop.f32.mrb[0].mxu0
      %v1038 = vadd.f32 0.0, %v1037
      %v1039 = vpop.f32.mrb[0].mxu0
      %v1040 = vpop.f32.mrb[0].mxu0
      %v1041 = vadd.f32 0.0, %v1040
      %v1042 = vpop.f32.mrb[0].mxu0
      %1043 = vmatprep.mubr.bf16.mxu0 0
      %1044 = vmatmul.mubr.bf16.gmra.mrb[0].mxu0 %v903
      %v1045 = vpop.f32.mrb[0].mxu0
      %v1046 = vadd.f32 0.0, %v1045
      %v1047 = vpop.f32.mrb[0].mxu0
      %v1048 = vpop.f32.mrb[0].mxu0
      %v1049 = vadd.f32 0.0, %v1048
      %v1050 = vpop.f32.mrb[0].mxu0
      %1051 = vmatprep.mubr.bf16.mxu0 0
      %1052 = vmatmul.mubr.bf16.gmra.mrb[0].mxu0 %v904
      %v1053 = vpop.f32.mrb[0].mxu0
      %v1054 = vadd.f32 0.0, %v1053
      %v1055 = vpop.f32.mrb[0].mxu0
      %v1056 = vpop.f32.mrb[0].mxu0
      %v1057 = vadd.f32 0.0, %v1056
      %v1058 = vpop.f32.mrb[0].mxu0
      %1059 = vmatprep.mubr.bf16.mxu0 0
      %1060 = vmatmul.mubr.bf16.gmra.mrb[0].mxu0 %v905
      %v1061 = vpop.f32.mrb[0].mxu0
      %v1062 = vadd.f32 0.0, %v1061
      %v1063 = vpop.f32.mrb[0].mxu0
      %v1064 = vpop.f32.mrb[0].mxu0
      %v1065 = vadd.f32 0.0, %v1064
      %v1066 = vpop.f32.mrb[0].mxu0
      %1067 = vmatprep.mubr.bf16.mxu0 0
      %1068 = vmatmul.mubr.bf16.gmra.mrb[0].mxu0 %v906
      %v1069 = vpop.f32.mrb[0].mxu0
      %v1070 = vadd.f32 0.0, %v1069
      %v1071 = vpop.f32.mrb[0].mxu0
      %v1072 = vpop.f32.mrb[0].mxu0
      %v1073 = vadd.f32 0.0, %v1072
      %v1074 = vpop.f32.mrb[0].mxu0
      %1075 = vmatprep.mubr.bf16.mxu0 0
      %1076 = vmatmul.mubr.bf16.gmra.mrb[0].mxu0 %v907
      %v1077 = vpop.f32.mrb[0].mxu0
      %v1078 = vadd.f32 0.0, %v1077
      %v1079 = vpop.f32.mrb[0].mxu0
      %v1080 = vpop.f32.mrb[0].mxu0
      %v1081 = vadd.f32 0.0, %v1080
      %v1082 = vpop.f32.mrb[0].mxu0
      %1083 = vmatprep.mubr.bf16.mxu0 0
      %1084 = vmatmul.mubr.bf16.gmra.mrb[0].mxu0 %v908
      %v1085 = vpop.f32.mrb[0].mxu0
      %v1086 = vadd.f32 0.0, %v1085
      %v1087 = vpop.f32.mrb[0].mxu0
      %v1088 = vpop.f32.mrb[0].mxu0
      %v1089 = vadd.f32 0.0, %v1088
      %v1090 = vpop.f32.mrb[0].mxu0
      %1091 = vmatprep.mubr.bf16.mxu0 0
      %1092 = vmatmul.mubr.bf16.gmra.mrb[0].mxu0 %v909
      %v1093 = vpop.f32.mrb[0].mxu0
      %v1094 = vadd.f32 0.0, %v1093
      %v1095 = vpop.f32.mrb[0].mxu0
      %v1096 = vpop.f32.mrb[0].mxu0
      %v1097 = vadd.f32 0.0, %v1096
      %v1098 = vpop.f32.mrb[0].mxu0
      %1099 = vmatprep.mubr.bf16.mxu0 0
      %1100 = vmatmul.mubr.bf16.gmra.mrb[0].mxu0 %v910
      %v1101 = vpop.f32.mrb[0].mxu0
      %v1102 = vadd.f32 0.0, %v1101
      %v1103 = vpop.f32.mrb[0].mxu0
      %v1104 = vpop.f32.mrb[0].mxu0
      %v1105 = vadd.f32 0.0, %v1104
      %v1106 = vpop.f32.mrb[0].mxu0
      %1107 = vmatprep.mubr.bf16.mxu0 0
      %1108 = vmatmul.mubr.bf16.gmra.mrb[0].mxu0 %v911
      %v1109 = vpop.f32.mrb[0].mxu0
      %v1110 = vadd.f32 0.0, %v1109
      %v1111 = vpop.f32.mrb[0].mxu0
      %v1112 = vpop.f32.mrb[0].mxu0
      %v1113 = vadd.f32 0.0, %v1112
      %v1114 = vpop.f32.mrb[0].mxu0
      %1115 = vmatprep.mubr.bf16.mxu0 0
      %1116 = vmatmul.mubr.bf16.gmra.mrb[0].mxu0 %v912
      %v1117 = vpop.f32.mrb[0].mxu0
      %v1118 = vadd.f32 0.0, %v1117
      %v1119 = vpop.f32.mrb[0].mxu0
      %v1120 = vpop.f32.mrb[0].mxu0
      %v1121 = vadd.f32 0.0, %v1120
      %v1122 = vpop.f32.mrb[0].mxu0
      %1123 = vmatprep.mubr.bf16.mxu0 0
      %1124 = vmatmul.mubr.bf16.gmra.mrb[0].mxu0 %v913
      %v1125 = vpop.f32.mrb[0].mxu0
      %v1126 = vadd.f32 0.0, %v1125
      %v1127 = vpop.f32.mrb[0].mxu0
      %v1128 = vpop.f32.mrb[0].mxu0
      %v1129 = vadd.f32 0.0, %v1128
      %v1130 = vpop.f32.mrb[0].mxu0
      %1131 = vmatprep.mubr.bf16.mxu0 0
      %1132 = vmatmul.mubr.bf16.gmra.mrb[0].mxu0 %v914
      %v1133 = vpop.f32.mrb[0].mxu0
      %v1134 = vadd.f32 0.0, %v1133
      %v1135 = vpop.f32.mrb[0].mxu0
      %v1136 = vpop.f32.mrb[0].mxu0
      %v1137 = vadd.f32 0.0, %v1136
      %v1138 = vpop.f32.mrb[0].mxu0
      %1139 = vdwg.mxu0
      %v1140 = vadd.f32 %v660, %v1014
      %v1141 = vadd.f32 %v663, %v1017
      %v1142 = vadd.f32 %v668, %v1022
      %v1143 = vadd.f32 %v671, %v1025
      %v1144 = vadd.f32 %v676, %v1030
      %v1145 = vadd.f32 %v679, %v1033
      %v1146 = vadd.f32 %v684, %v1038
      %v1147 = vadd.f32 %v687, %v1041
      %v1148 = vadd.f32 %v692, %v1046
      %v1149 = vadd.f32 %v695, %v1049
      %v1150 = vadd.f32 %v700, %v1054
      %v1151 = vadd.f32 %v703, %v1057
      %v1152 = vadd.f32 %v708, %v1062
      %v1153 = vadd.f32 %v711, %v1065
      %v1154 = vadd.f32 %v716, %v1070
      %v1155 = vadd.f32 %v719, %v1073
      %v1156 = vadd.f32 %v724, %v1078
      %v1157 = vadd.f32 %v727, %v1081
      %v1158 = vadd.f32 %v732, %v1086
      %v1159 = vadd.f32 %v735, %v1089
      %v1160 = vadd.f32 %v740, %v1094
      %v1161 = vadd.f32 %v743, %v1097
      %v1162 = vadd.f32 %v748, %v1102
      %v1163 = vadd.f32 %v751, %v1105
      %v1164 = vadd.f32 %v756, %v1110
      %v1165 = vadd.f32 %v759, %v1113
      %v1166 = vadd.f32 %v764, %v1118
      %v1167 = vadd.f32 %v767, %v1121
      %v1168 = vadd.f32 %v772, %v1126
      %v1169 = vadd.f32 %v775, %v1129
      %v1170 = vadd.f32 %v780, %v1134
      %v1171 = vadd.f32 %v783, %v1137
      %v1172 = vld [vmem:[%s192 + $0x18] sm:$0xf]
      %v1173 = vld [vmem:[%s192 + $0x1c] sm:$0xf]
      %v1174 = vld [vmem:[%s192 + $0x20] sm:$0xf]
      %v1175 = vld [vmem:[%s192 + $0x24] sm:$0xf]
      %v1176 = vld [vmem:[%s192 + $0x28] sm:$0xf]
      %v1177 = vld [vmem:[%s192 + $0x2c] sm:$0xf]
      %v1178 = vld [vmem:[%s192 + $0x30] sm:$0xf]
      %v1179 = vld [vmem:[%s192 + $0x34] sm:$0xf]
      %v1180 = vld [vmem:[%s192 + $0x38] sm:$0xf]
      %v1181 = vld [vmem:[%s192 + $0x3c] sm:$0xf]
      %v1182 = vld [vmem:[%s192 + $0x40] sm:$0xf]
      %v1183 = vld [vmem:[%s192 + $0x44] sm:$0xf]
      %v1184 = vld [vmem:[%s192 + $0x48] sm:$0xf]
      %v1185 = vld [vmem:[%s192 + $0x4c] sm:$0xf]
      %v1186 = vld [vmem:[%s192 + $0x50] sm:$0xf]
      %v1187 = vld [vmem:[%s192 + $0x54] sm:$0xf]
      %v1188 = vld [vmem:[%s192 + $0x58] sm:$0xf]
      %v1189 = vld [vmem:[%s192 + $0x5c] sm:$0xf]
      %v1190 = vld [vmem:[%s192 + $0x60] sm:$0xf]
      %v1191 = vld [vmem:[%s192 + $0x64] sm:$0xf]
      %v1192 = vld [vmem:[%s192 + $0x68] sm:$0xf]
      %v1193 = vld [vmem:[%s192 + $0x6c] sm:$0xf]
      %v1194 = vld [vmem:[%s192 + $0x70] sm:$0xf]
      %v1195 = vld [vmem:[%s192 + $0x74] sm:$0xf]
      %v1196 = vld [vmem:[%s192 + $0x78] sm:$0xf]
      %v1197 = vld [vmem:[%s192 + $0x7c] sm:$0xf]
      %v1198 = vld [vmem:[%s192 + $0x80] sm:$0xf]
      %v1199 = vld [vmem:[%s192 + $0x84] sm:$0xf]
      %v1200 = vld [vmem:[%s192 + $0x88] sm:$0xf]
      %v1201 = vld [vmem:[%s192 + $0x8c] sm:$0xf]
      %v1202 = vld [vmem:[%s192 + $0x90] sm:$0xf]
      %v1203 = vld [vmem:[%s192 + $0x94] sm:$0xf]
      %s1204 = scalar_lea.vmem %s1, 192
      %v1205 = vld [vmem:[%s1204] sm:$0xf]
      %v1206 = vld [vmem:[%s1204 + $0x4] sm:$0xf]
      %v1207 = vld [vmem:[%s1204 + $0x8] sm:$0xf]
      %v1208 = vld [vmem:[%s1204 + $0xc] sm:$0xf]
      %v1209 = vld [vmem:[%s1204 + $0x10] sm:$0xf]
      %v1210 = vld [vmem:[%s1204 + $0x14] sm:$0xf]
      %v1211 = vld [vmem:[%s1204 + $0x18] sm:$0xf]
      %v1212 = vld [vmem:[%s1204 + $0x1c] sm:$0xf]
      %v1213 = vld [vmem:[%s1204 + $0x20] sm:$0xf]
      %v1214 = vld [vmem:[%s1204 + $0x24] sm:$0xf]
      %v1215 = vld [vmem:[%s1204 + $0x28] sm:$0xf]
      %v1216 = vld [vmem:[%s1204 + $0x2c] sm:$0xf]
      %v1217 = vld [vmem:[%s1204 + $0x30] sm:$0xf]
      %v1218 = vld [vmem:[%s1204 + $0x34] sm:$0xf]
      %v1219 = vld [vmem:[%s1204 + $0x38] sm:$0xf]
      %v1220 = vld [vmem:[%s1204 + $0x3c] sm:$0xf]
      %v1253 = vunpack.c.l.b16 %v1172
      %v1254 = vunpack.c.l.b16 %v1173
      %v1255 = vunpack.c.l.b16 %v1174
      %v1256 = vunpack.c.l.b16 %v1175
      %v1257 = vunpack.c.l.b16 %v1176
      %v1258 = vunpack.c.l.b16 %v1177
      %v1259 = vunpack.c.l.b16 %v1178
      %v1260 = vunpack.c.l.b16 %v1179
      %v1261 = vunpack.c.l.b16 %v1180
      %v1262 = vunpack.c.l.b16 %v1181
      %v1263 = vunpack.c.l.b16 %v1182
      %v1264 = vunpack.c.l.b16 %v1183
      %v1265 = vunpack.c.l.b16 %v1184
      %v1266 = vunpack.c.l.b16 %v1185
      %v1267 = vunpack.c.l.b16 %v1186
      %v1268 = vunpack.c.l.b16 %v1187
      %v1269 = vunpack.c.l.b16 %v1188
      %v1270 = vunpack.c.l.b16 %v1189
      %v1271 = vunpack.c.l.b16 %v1190
      %v1272 = vunpack.c.l.b16 %v1191
      %v1273 = vunpack.c.l.b16 %v1192
      %v1274 = vunpack.c.l.b16 %v1193
      %v1275 = vunpack.c.l.b16 %v1194
      %v1276 = vunpack.c.l.b16 %v1195
      %v1277 = vunpack.c.l.b16 %v1196
      %v1278 = vunpack.c.l.b16 %v1197
      %v1279 = vunpack.c.l.b16 %v1198
      %v1280 = vunpack.c.l.b16 %v1199
      %v1281 = vunpack.c.l.b16 %v1200
      %v1282 = vunpack.c.l.b16 %v1201
      %v1283 = vunpack.c.l.b16 %v1202
      %v1284 = vunpack.c.l.b16 %v1203
      %v1285 = vpack.c.b16 %v1254, %v1253
      %v1286 = vpack.c.b16 %v1256, %v1255
      %v1287 = vpack.c.b16 %v1258, %v1257
      %v1288 = vpack.c.b16 %v1260, %v1259
      %v1289 = vpack.c.b16 %v1262, %v1261
      %v1290 = vpack.c.b16 %v1264, %v1263
      %v1291 = vpack.c.b16 %v1266, %v1265
      %v1292 = vpack.c.b16 %v1268, %v1267
      %v1293 = vpack.c.b16 %v1270, %v1269
      %v1294 = vpack.c.b16 %v1272, %v1271
      %v1295 = vpack.c.b16 %v1274, %v1273
      %v1296 = vpack.c.b16 %v1276, %v1275
      %v1297 = vpack.c.b16 %v1278, %v1277
      %v1298 = vpack.c.b16 %v1280, %v1279
      %v1299 = vpack.c.b16 %v1282, %v1281
      %v1300 = vpack.c.b16 %v1284, %v1283
      %v1333 = vunpack.c.l.b16 %v1205
      %v1334 = vunpack.c.l.b16 %v1206
      %v1335 = vunpack.c.l.b16 %v1207
      %v1336 = vunpack.c.l.b16 %v1208
      %v1337 = vunpack.c.l.b16 %v1209
      %v1338 = vunpack.c.l.b16 %v1210
      %v1339 = vunpack.c.l.b16 %v1211
      %v1340 = vunpack.c.l.b16 %v1212
      %v1341 = vunpack.c.l.b16 %v1213
      %v1342 = vunpack.c.l.b16 %v1214
      %v1343 = vunpack.c.l.b16 %v1215
      %v1344 = vunpack.c.l.b16 %v1216
      %v1345 = vunpack.c.l.b16 %v1217
      %v1346 = vunpack.c.l.b16 %v1218
      %v1347 = vunpack.c.l.b16 %v1219
      %v1348 = vunpack.c.l.b16 %v1220
      %v1349 = vpack.c.b16 %v1334, %v1333
      %v1350 = vpack.c.b16 %v1336, %v1335
      %v1351 = vpack.c.b16 %v1338, %v1337
      %v1352 = vpack.c.b16 %v1340, %v1339
      %v1353 = vpack.c.b16 %v1342, %v1341
      %v1354 = vpack.c.b16 %v1344, %v1343
      %v1355 = vpack.c.b16 %v1346, %v1345
      %v1356 = vpack.c.b16 %v1348, %v1347
      %1365 = vmatprep.subr.bf16.mxu0 0
      %1366 = vmatpush1.bf16.msra.mxu0 %v1349
      %1367 = vmatprep.subr.bf16.mxu0 0
      %1368 = vmatpush1.bf16.msra.mxu0 %v1350
      %1369 = vmatprep.subr.bf16.mxu0 0
      %1370 = vmatpush1.bf16.msra.mxu0 %v1351
      %1371 = vmatprep.subr.bf16.mxu0 0
      %1372 = vmatpush1.bf16.msra.mxu0 %v1352
      %1373 = vmatprep.subr.bf16.mxu0 0
      %1374 = vmatpush1.bf16.msra.mxu0 %v1353
      %1375 = vmatprep.subr.bf16.mxu0 0
      %1376 = vmatpush1.bf16.msra.mxu0 %v1354
      %1377 = vmatprep.subr.bf16.mxu0 0
      %1378 = vmatpush1.bf16.msra.mxu0 %v1355
      %1379 = vmatprep.subr.bf16.mxu0 0
      %1380 = vmatpush1.bf16.msra.mxu0 %v1356
      %1381 = vmatprep.subr.bf16.mxu0 0
      %1382 = vmatpush1.bf16.msra.mxu0 0
      %1383 = vmatprep.subr.bf16.mxu0 0
      %1384 = vmatpush1.bf16.msra.mxu0 0
      %1385 = vmatprep.subr.bf16.mxu0 0
      %1386 = vmatpush1.bf16.msra.mxu0 0
      %1387 = vmatprep.subr.bf16.mxu0 0
      %1388 = vmatpush1.bf16.msra.mxu0 0
      %1389 = vmatprep.subr.bf16.mxu0 0
      %1390 = vmatpush1.bf16.msra.mxu0 0
      %1391 = vmatprep.subr.bf16.mxu0 0
      %1392 = vmatpush1.bf16.msra.mxu0 0
      %1393 = vmatprep.subr.bf16.mxu0 0
      %1394 = vmatpush1.bf16.msra.mxu0 0
      %1395 = vmatprep.subr.bf16.mxu0 0
      %1396 = vmatpush1.bf16.msra.mxu0 0
      %1397 = vmatprep.mubr.bf16.mxu0 0
      %1398 = vmatmul.mubr.bf16.gmra.mrb[0].mxu0 %v1285
      %v1399 = vpop.f32.mrb[0].mxu0
      %v1400 = vadd.f32 0.0, %v1399
      %v1401 = vpop.f32.mrb[0].mxu0
      %v1402 = vpop.f32.mrb[0].mxu0
      %v1403 = vadd.f32 0.0, %v1402
      %v1404 = vpop.f32.mrb[0].mxu0
      %1405 = vmatprep.mubr.bf16.mxu0 0
      %1406 = vmatmul.mubr.bf16.gmra.mrb[0].mxu0 %v1286
      %v1407 = vpop.f32.mrb[0].mxu0
      %v1408 = vadd.f32 0.0, %v1407
      %v1409 = vpop.f32.mrb[0].mxu0
      %v1410 = vpop.f32.mrb[0].mxu0
      %v1411 = vadd.f32 0.0, %v1410
      %v1412 = vpop.f32.mrb[0].mxu0
      %1413 = vmatprep.mubr.bf16.mxu0 0
      %1414 = vmatmul.mubr.bf16.gmra.mrb[0].mxu0 %v1287
      %v1415 = vpop.f32.mrb[0].mxu0
      %v1416 = vadd.f32 0.0, %v1415
      %v1417 = vpop.f32.mrb[0].mxu0
      %v1418 = vpop.f32.mrb[0].mxu0
      %v1419 = vadd.f32 0.0, %v1418
      %v1420 = vpop.f32.mrb[0].mxu0
      %1421 = vmatprep.mubr.bf16.mxu0 0
      %1422 = vmatmul.mubr.bf16.gmra.mrb[0].mxu0 %v1288
      %v1423 = vpop.f32.mrb[0].mxu0
      %v1424 = vadd.f32 0.0, %v1423
      %v1425 = vpop.f32.mrb[0].mxu0
      %v1426 = vpop.f32.mrb[0].mxu0
      %v1427 = vadd.f32 0.0, %v1426
      %v1428 = vpop.f32.mrb[0].mxu0
      %1429 = vmatprep.mubr.bf16.mxu0 0
      %1430 = vmatmul.mubr.bf16.gmra.mrb[0].mxu0 %v1289
      %v1431 = vpop.f32.mrb[0].mxu0
      %v1432 = vadd.f32 0.0, %v1431
      %v1433 = vpop.f32.mrb[0].mxu0
      %v1434 = vpop.f32.mrb[0].mxu0
      %v1435 = vadd.f32 0.0, %v1434
      %v1436 = vpop.f32.mrb[0].mxu0
      %1437 = vmatprep.mubr.bf16.mxu0 0
      %1438 = vmatmul.mubr.bf16.gmra.mrb[0].mxu0 %v1290
      %v1439 = vpop.f32.mrb[0].mxu0
      %v1440 = vadd.f32 0.0, %v1439
      %v1441 = vpop.f32.mrb[0].mxu0
      %v1442 = vpop.f32.mrb[0].mxu0
      %v1443 = vadd.f32 0.0, %v1442
      %v1444 = vpop.f32.mrb[0].mxu0
      %1445 = vmatprep.mubr.bf16.mxu0 0
      %1446 = vmatmul.mubr.bf16.gmra.mrb[0].mxu0 %v1291
      %v1447 = vpop.f32.mrb[0].mxu0
      %v1448 = vadd.f32 0.0, %v1447
      %v1449 = vpop.f32.mrb[0].mxu0
      %v1450 = vpop.f32.mrb[0].mxu0
      %v1451 = vadd.f32 0.0, %v1450
      %v1452 = vpop.f32.mrb[0].mxu0
      %1453 = vmatprep.mubr.bf16.mxu0 0
      %1454 = vmatmul.mubr.bf16.gmra.mrb[0].mxu0 %v1292
      %v1455 = vpop.f32.mrb[0].mxu0
      %v1456 = vadd.f32 0.0, %v1455
      %v1457 = vpop.f32.mrb[0].mxu0
      %v1458 = vpop.f32.mrb[0].mxu0
      %v1459 = vadd.f32 0.0, %v1458
      %v1460 = vpop.f32.mrb[0].mxu0
      %1461 = vmatprep.mubr.bf16.mxu0 0
      %1462 = vmatmul.mubr.bf16.gmra.mrb[0].mxu0 %v1293
      %v1463 = vpop.f32.mrb[0].mxu0
      %v1464 = vadd.f32 0.0, %v1463
      %v1465 = vpop.f32.mrb[0].mxu0
      %v1466 = vpop.f32.mrb[0].mxu0
      %v1467 = vadd.f32 0.0, %v1466
      %v1468 = vpop.f32.mrb[0].mxu0
      %1469 = vmatprep.mubr.bf16.mxu0 0
      %1470 = vmatmul.mubr.bf16.gmra.mrb[0].mxu0 %v1294
      %v1471 = vpop.f32.mrb[0].mxu0
      %v1472 = vadd.f32 0.0, %v1471
      %v1473 = vpop.f32.mrb[0].mxu0
      %v1474 = vpop.f32.mrb[0].mxu0
      %v1475 = vadd.f32 0.0, %v1474
      %v1476 = vpop.f32.mrb[0].mxu0
      %1477 = vmatprep.mubr.bf16.mxu0 0
      %1478 = vmatmul.mubr.bf16.gmra.mrb[0].mxu0 %v1295
      %v1479 = vpop.f32.mrb[0].mxu0
      %v1480 = vadd.f32 0.0, %v1479
      %v1481 = vpop.f32.mrb[0].mxu0
      %v1482 = vpop.f32.mrb[0].mxu0
      %v1483 = vadd.f32 0.0, %v1482
      %v1484 = vpop.f32.mrb[0].mxu0
      %1485 = vmatprep.mubr.bf16.mxu0 0
      %1486 = vmatmul.mubr.bf16.gmra.mrb[0].mxu0 %v1296
      %v1487 = vpop.f32.mrb[0].mxu0
      %v1488 = vadd.f32 0.0, %v1487
      %v1489 = vpop.f32.mrb[0].mxu0
      %v1490 = vpop.f32.mrb[0].mxu0
      %v1491 = vadd.f32 0.0, %v1490
      %v1492 = vpop.f32.mrb[0].mxu0
      %1493 = vmatprep.mubr.bf16.mxu0 0
      %1494 = vmatmul.mubr.bf16.gmra.mrb[0].mxu0 %v1297
      %v1495 = vpop.f32.mrb[0].mxu0
      %v1496 = vadd.f32 0.0, %v1495
      %v1497 = vpop.f32.mrb[0].mxu0
      %v1498 = vpop.f32.mrb[0].mxu0
      %v1499 = vadd.f32 0.0, %v1498
      %v1500 = vpop.f32.mrb[0].mxu0
      %1501 = vmatprep.mubr.bf16.mxu0 0
      %1502 = vmatmul.mubr.bf16.gmra.mrb[0].mxu0 %v1298
      %v1503 = vpop.f32.mrb[0].mxu0
      %v1504 = vadd.f32 0.0, %v1503
      %v1505 = vpop.f32.mrb[0].mxu0
      %v1506 = vpop.f32.mrb[0].mxu0
      %v1507 = vadd.f32 0.0, %v1506
      %v1508 = vpop.f32.mrb[0].mxu0
      %1509 = vmatprep.mubr.bf16.mxu0 0
      %1510 = vmatmul.mubr.bf16.gmra.mrb[0].mxu0 %v1299
      %v1511 = vpop.f32.mrb[0].mxu0
      %v1512 = vadd.f32 0.0, %v1511
      %v1513 = vpop.f32.mrb[0].mxu0
      %v1514 = vpop.f32.mrb[0].mxu0
      %v1515 = vadd.f32 0.0, %v1514
      %v1516 = vpop.f32.mrb[0].mxu0
      %1517 = vmatprep.mubr.bf16.mxu0 0
      %1518 = vmatmul.mubr.bf16.gmra.mrb[0].mxu0 %v1300
      %v1519 = vpop.f32.mrb[0].mxu0
      %v1520 = vadd.f32 0.0, %v1519
      %v1521 = vpop.f32.mrb[0].mxu0
      %v1522 = vpop.f32.mrb[0].mxu0
      %v1523 = vadd.f32 0.0, %v1522
      %v1524 = vpop.f32.mrb[0].mxu0
      %1525 = vdwg.mxu0
      %v1526 = vadd.f32 %v1140, %v1400
      %v1527 = vadd.f32 %v1141, %v1403
      %v1528 = vadd.f32 %v1142, %v1408
      %v1529 = vadd.f32 %v1143, %v1411
      %v1530 = vadd.f32 %v1144, %v1416
      %v1531 = vadd.f32 %v1145, %v1419
      %v1532 = vadd.f32 %v1146, %v1424
      %v1533 = vadd.f32 %v1147, %v1427
      %v1534 = vadd.f32 %v1148, %v1432
      %v1535 = vadd.f32 %v1149, %v1435
      %v1536 = vadd.f32 %v1150, %v1440
      %v1537 = vadd.f32 %v1151, %v1443
      %v1538 = vadd.f32 %v1152, %v1448
      %v1539 = vadd.f32 %v1153, %v1451
      %v1540 = vadd.f32 %v1154, %v1456
      %v1541 = vadd.f32 %v1155, %v1459
      %v1542 = vadd.f32 %v1156, %v1464
      %v1543 = vadd.f32 %v1157, %v1467
      %v1544 = vadd.f32 %v1158, %v1472
      %v1545 = vadd.f32 %v1159, %v1475
      %v1546 = vadd.f32 %v1160, %v1480
      %v1547 = vadd.f32 %v1161, %v1483
      %v1548 = vadd.f32 %v1162, %v1488
      %v1549 = vadd.f32 %v1163, %v1491
      %v1550 = vadd.f32 %v1164, %v1496
      %v1551 = vadd.f32 %v1165, %v1499
      %v1552 = vadd.f32 %v1166, %v1504
      %v1553 = vadd.f32 %v1167, %v1507
      %v1554 = vadd.f32 %v1168, %v1512
      %v1555 = vadd.f32 %v1169, %v1515
      %v1556 = vadd.f32 %v1170, %v1520
      %v1557 = vadd.f32 %v1171, %v1523
      %v1558 = vld [vmem:[%s2] sm:$0x1]
      %v1560 = vlaneseq
      %v1561 = vshrl.u32 %v1560, 7
      %v1562 = vsub.s32 0, %v1561
      %v1563 = vrot.slane %v1558, %v1562
      %v1565 = vadd.f32 %v1526, %v1563
      %v1566 = vadd.f32 %v1527, %v1563
      %v1567 = vadd.f32 %v1528, %v1563
      %v1568 = vadd.f32 %v1529, %v1563
      %v1569 = vadd.f32 %v1530, %v1563
      %v1570 = vadd.f32 %v1531, %v1563
      %v1571 = vadd.f32 %v1532, %v1563
      %v1572 = vadd.f32 %v1533, %v1563
      %v1573 = vadd.f32 %v1534, %v1563
      %v1574 = vadd.f32 %v1535, %v1563
      %v1575 = vadd.f32 %v1536, %v1563
      %v1576 = vadd.f32 %v1537, %v1563
      %v1577 = vadd.f32 %v1538, %v1563
      %v1578 = vadd.f32 %v1539, %v1563
      %v1579 = vadd.f32 %v1540, %v1563
      %v1580 = vadd.f32 %v1541, %v1563
      %v1581 = vadd.f32 %v1542, %v1563
      %v1582 = vadd.f32 %v1543, %v1563
      %v1583 = vadd.f32 %v1544, %v1563
      %v1584 = vadd.f32 %v1545, %v1563
      %v1585 = vadd.f32 %v1546, %v1563
      %v1586 = vadd.f32 %v1547, %v1563
      %v1587 = vadd.f32 %v1548, %v1563
      %v1588 = vadd.f32 %v1549, %v1563
      %v1589 = vadd.f32 %v1550, %v1563
      %v1590 = vadd.f32 %v1551, %v1563
      %v1591 = vadd.f32 %v1552, %v1563
      %v1592 = vadd.f32 %v1553, %v1563
      %v1593 = vadd.f32 %v1554, %v1563
      %v1594 = vadd.f32 %v1555, %v1563
      %v1595 = vadd.f32 %v1556, %v1563
      %v1596 = vadd.f32 %v1557, %v1563
      %v1597 = vld [vmem:[%s3] sm:$0x1]
      %v1599 = vlaneseq
      %v1600 = vshrl.u32 %v1599, 7
      %v1601 = vsub.s32 0, %v1600
      %v1602 = vrot.slane %v1597, %v1601
      %v1604 = vmul.f32 %v1565, %v1602
      %v1605 = vmul.f32 %v1566, %v1602
      %v1606 = vmul.f32 %v1567, %v1602
      %v1607 = vmul.f32 %v1568, %v1602
      %v1608 = vmul.f32 %v1569, %v1602
      %v1609 = vmul.f32 %v1570, %v1602
      %v1610 = vmul.f32 %v1571, %v1602
      %v1611 = vmul.f32 %v1572, %v1602
      %v1612 = vmul.f32 %v1573, %v1602
      %v1613 = vmul.f32 %v1574, %v1602
      %v1614 = vmul.f32 %v1575, %v1602
      %v1615 = vmul.f32 %v1576, %v1602
      %v1616 = vmul.f32 %v1577, %v1602
      %v1617 = vmul.f32 %v1578, %v1602
      %v1618 = vmul.f32 %v1579, %v1602
      %v1619 = vmul.f32 %v1580, %v1602
      %v1620 = vmul.f32 %v1581, %v1602
      %v1621 = vmul.f32 %v1582, %v1602
      %v1622 = vmul.f32 %v1583, %v1602
      %v1623 = vmul.f32 %v1584, %v1602
      %v1624 = vmul.f32 %v1585, %v1602
      %v1625 = vmul.f32 %v1586, %v1602
      %v1626 = vmul.f32 %v1587, %v1602
      %v1627 = vmul.f32 %v1588, %v1602
      %v1628 = vmul.f32 %v1589, %v1602
      %v1629 = vmul.f32 %v1590, %v1602
      %v1630 = vmul.f32 %v1591, %v1602
      %v1631 = vmul.f32 %v1592, %v1602
      %v1632 = vmul.f32 %v1593, %v1602
      %v1633 = vmul.f32 %v1594, %v1602
      %v1634 = vmul.f32 %v1595, %v1602
      %v1635 = vmul.f32 %v1596, %v1602
      %v1636 = vmax.f32 %v1604, 0.0
      %v1637 = vmax.f32 %v1605, 0.0
      %v1638 = vmax.f32 %v1606, 0.0
      %v1639 = vmax.f32 %v1607, 0.0
      %v1640 = vmax.f32 %v1608, 0.0
      %v1641 = vmax.f32 %v1609, 0.0
      %v1642 = vmax.f32 %v1610, 0.0
      %v1643 = vmax.f32 %v1611, 0.0
      %v1644 = vmax.f32 %v1612, 0.0
      %v1645 = vmax.f32 %v1613, 0.0
      %v1646 = vmax.f32 %v1614, 0.0
      %v1647 = vmax.f32 %v1615, 0.0
      %v1648 = vmax.f32 %v1616, 0.0
      %v1649 = vmax.f32 %v1617, 0.0
      %v1650 = vmax.f32 %v1618, 0.0
      %v1651 = vmax.f32 %v1619, 0.0
      %v1652 = vmax.f32 %v1620, 0.0
      %v1653 = vmax.f32 %v1621, 0.0
      %v1654 = vmax.f32 %v1622, 0.0
      %v1655 = vmax.f32 %v1623, 0.0
      %v1656 = vmax.f32 %v1624, 0.0
      %v1657 = vmax.f32 %v1625, 0.0
      %v1658 = vmax.f32 %v1626, 0.0
      %v1659 = vmax.f32 %v1627, 0.0
      %v1660 = vmax.f32 %v1628, 0.0
      %v1661 = vmax.f32 %v1629, 0.0
      %v1662 = vmax.f32 %v1630, 0.0
      %v1663 = vmax.f32 %v1631, 0.0
      %v1664 = vmax.f32 %v1632, 0.0
      %v1665 = vmax.f32 %v1633, 0.0
      %v1666 = vmax.f32 %v1634, 0.0
      %v1667 = vmax.f32 %v1635, 0.0
      %v1668 = vand.u32 2147483647, %v1604
      %v1669 = vand.u32 2147483647, %v1605
      %v1670 = vand.u32 2147483647, %v1606
      %v1671 = vand.u32 2147483647, %v1607
      %v1672 = vand.u32 2147483647, %v1608
      %v1673 = vand.u32 2147483647, %v1609
      %v1674 = vand.u32 2147483647, %v1610
      %v1675 = vand.u32 2147483647, %v1611
      %v1676 = vand.u32 2147483647, %v1612
      %v1677 = vand.u32 2147483647, %v1613
      %v1678 = vand.u32 2147483647, %v1614
      %v1679 = vand.u32 2147483647, %v1615
      %v1680 = vand.u32 2147483647, %v1616
      %v1681 = vand.u32 2147483647, %v1617
      %v1682 = vand.u32 2147483647, %v1618
      %v1683 = vand.u32 2147483647, %v1619
      %v1684 = vand.u32 2147483647, %v1620
      %v1685 = vand.u32 2147483647, %v1621
      %v1686 = vand.u32 2147483647, %v1622
      %v1687 = vand.u32 2147483647, %v1623
      %v1688 = vand.u32 2147483647, %v1624
      %v1689 = vand.u32 2147483647, %v1625
      %v1690 = vand.u32 2147483647, %v1626
      %v1691 = vand.u32 2147483647, %v1627
      %v1692 = vand.u32 2147483647, %v1628
      %v1693 = vand.u32 2147483647, %v1629
      %v1694 = vand.u32 2147483647, %v1630
      %v1695 = vand.u32 2147483647, %v1631
      %v1696 = vand.u32 2147483647, %v1632
      %v1697 = vand.u32 2147483647, %v1633
      %v1698 = vand.u32 2147483647, %v1634
      %v1699 = vand.u32 2147483647, %v1635
      %v1700 = vsub.f32 0.0, %v1668
      %v1701 = vsub.f32 0.0, %v1669
      %v1702 = vsub.f32 0.0, %v1670
      %v1703 = vsub.f32 0.0, %v1671
      %v1704 = vsub.f32 0.0, %v1672
      %v1705 = vsub.f32 0.0, %v1673
      %v1706 = vsub.f32 0.0, %v1674
      %v1707 = vsub.f32 0.0, %v1675
      %v1708 = vsub.f32 0.0, %v1676
      %v1709 = vsub.f32 0.0, %v1677
      %v1710 = vsub.f32 0.0, %v1678
      %v1711 = vsub.f32 0.0, %v1679
      %v1712 = vsub.f32 0.0, %v1680
      %v1713 = vsub.f32 0.0, %v1681
      %v1714 = vsub.f32 0.0, %v1682
      %v1715 = vsub.f32 0.0, %v1683
      %v1716 = vsub.f32 0.0, %v1684
      %v1717 = vsub.f32 0.0, %v1685
      %v1718 = vsub.f32 0.0, %v1686
      %v1719 = vsub.f32 0.0, %v1687
      %v1720 = vsub.f32 0.0, %v1688
      %v1721 = vsub.f32 0.0, %v1689
      %v1722 = vsub.f32 0.0, %v1690
      %v1723 = vsub.f32 0.0, %v1691
      %v1724 = vsub.f32 0.0, %v1692
      %v1725 = vsub.f32 0.0, %v1693
      %v1726 = vsub.f32 0.0, %v1694
      %v1727 = vsub.f32 0.0, %v1695
      %v1728 = vsub.f32 0.0, %v1696
      %v1729 = vsub.f32 0.0, %v1697
      %v1730 = vsub.f32 0.0, %v1698
      %v1731 = vsub.f32 0.0, %v1699
      %v1732 = vmul.f32 %v1700, 1.442695
      %v1733 = vpow.pop %v1732
      %v1734 = vmul.f32 %v1701, 1.442695
      %v1735 = vpow.pop %v1734
      %v1736 = vmul.f32 %v1702, 1.442695
      %v1737 = vpow.pop %v1736
      %v1738 = vmul.f32 %v1703, 1.442695
      %v1739 = vpow.pop %v1738
      %v1740 = vmul.f32 %v1704, 1.442695
      %v1741 = vpow.pop %v1740
      %v1742 = vmul.f32 %v1705, 1.442695
      %v1743 = vpow.pop %v1742
      %v1744 = vmul.f32 %v1706, 1.442695
      %v1745 = vpow.pop %v1744
      %v1746 = vmul.f32 %v1707, 1.442695
      %v1747 = vpow.pop %v1746
      %v1748 = vmul.f32 %v1708, 1.442695
      %v1749 = vpow.pop %v1748
      %v1750 = vmul.f32 %v1709, 1.442695
      %v1751 = vpow.pop %v1750
      %v1752 = vmul.f32 %v1710, 1.442695
      %v1753 = vpow.pop %v1752
      %v1754 = vmul.f32 %v1711, 1.442695
      %v1755 = vpow.pop %v1754
      %v1756 = vmul.f32 %v1712, 1.442695
      %v1757 = vpow.pop %v1756
      %v1758 = vmul.f32 %v1713, 1.442695
      %v1759 = vpow.pop %v1758
      %v1760 = vmul.f32 %v1714, 1.442695
      %v1761 = vpow.pop %v1760
      %v1762 = vmul.f32 %v1715, 1.442695
      %v1763 = vpow.pop %v1762
      %v1764 = vmul.f32 %v1716, 1.442695
      %v1765 = vpow.pop %v1764
      %v1766 = vmul.f32 %v1717, 1.442695
      %v1767 = vpow.pop %v1766
      %v1768 = vmul.f32 %v1718, 1.442695
      %v1769 = vpow.pop %v1768
      %v1770 = vmul.f32 %v1719, 1.442695
      %v1771 = vpow.pop %v1770
      %v1772 = vmul.f32 %v1720, 1.442695
      %v1773 = vpow.pop %v1772
      %v1774 = vmul.f32 %v1721, 1.442695
      %v1775 = vpow.pop %v1774
      %v1776 = vmul.f32 %v1722, 1.442695
      %v1777 = vpow.pop %v1776
      %v1778 = vmul.f32 %v1723, 1.442695
      %v1779 = vpow.pop %v1778
      %v1780 = vmul.f32 %v1724, 1.442695
      %v1781 = vpow.pop %v1780
      %v1782 = vmul.f32 %v1725, 1.442695
      %v1783 = vpow.pop %v1782
      %v1784 = vmul.f32 %v1726, 1.442695
      %v1785 = vpow.pop %v1784
      %v1786 = vmul.f32 %v1727, 1.442695
      %v1787 = vpow.pop %v1786
      %v1788 = vmul.f32 %v1728, 1.442695
      %v1789 = vpow.pop %v1788
      %v1790 = vmul.f32 %v1729, 1.442695
      %v1791 = vpow.pop %v1790
      %v1792 = vmul.f32 %v1730, 1.442695
      %v1793 = vpow.pop %v1792
      %v1794 = vmul.f32 %v1731, 1.442695
      %v1795 = vpow.pop %v1794
      %v1796 = vadd.f32 %v1733, 1.0
      %v1797 = vlog2.pop %v1796
      %v1798 = vmul.f32 %v1797, 0.6931472
      %v1799 = vmul.f32 -0.5, %v1733
      %v1800 = vadd.f32 %v1799, 1.0
      %v1801 = vmul.f32 %v1800, %v1733
      %v1802 = vand.u32 2147483647, %v1733
      %vm1803 = vcmp.lt.f32.partialorder %v1802, 0.0004427343
      %v1804 = vsel %vm1803, %v1801, %v1798
      %v1805 = vadd.f32 %v1735, 1.0
      %v1806 = vlog2.pop %v1805
      %v1807 = vmul.f32 %v1806, 0.6931472
      %v1808 = vmul.f32 -0.5, %v1735
      %v1809 = vadd.f32 %v1808, 1.0
      %v1810 = vmul.f32 %v1809, %v1735
      %v1811 = vand.u32 2147483647, %v1735
      %vm1812 = vcmp.lt.f32.partialorder %v1811, 0.0004427343
      %v1813 = vsel %vm1812, %v1810, %v1807
      %v1814 = vadd.f32 %v1737, 1.0
      %v1815 = vlog2.pop %v1814
      %v1816 = vmul.f32 %v1815, 0.6931472
      %v1817 = vmul.f32 -0.5, %v1737
      %v1818 = vadd.f32 %v1817, 1.0
      %v1819 = vmul.f32 %v1818, %v1737
      %v1820 = vand.u32 2147483647, %v1737
      %vm1821 = vcmp.lt.f32.partialorder %v1820, 0.0004427343
      %v1822 = vsel %vm1821, %v1819, %v1816
      %v1823 = vadd.f32 %v1739, 1.0
      %v1824 = vlog2.pop %v1823
      %v1825 = vmul.f32 %v1824, 0.6931472
      %v1826 = vmul.f32 -0.5, %v1739
      %v1827 = vadd.f32 %v1826, 1.0
      %v1828 = vmul.f32 %v1827, %v1739
      %v1829 = vand.u32 2147483647, %v1739
      %vm1830 = vcmp.lt.f32.partialorder %v1829, 0.0004427343
      %v1831 = vsel %vm1830, %v1828, %v1825
      %v1832 = vadd.f32 %v1741, 1.0
      %v1833 = vlog2.pop %v1832
      %v1834 = vmul.f32 %v1833, 0.6931472
      %v1835 = vmul.f32 -0.5, %v1741
      %v1836 = vadd.f32 %v1835, 1.0
      %v1837 = vmul.f32 %v1836, %v1741
      %v1838 = vand.u32 2147483647, %v1741
      %vm1839 = vcmp.lt.f32.partialorder %v1838, 0.0004427343
      %v1840 = vsel %vm1839, %v1837, %v1834
      %v1841 = vadd.f32 %v1743, 1.0
      %v1842 = vlog2.pop %v1841
      %v1843 = vmul.f32 %v1842, 0.6931472
      %v1844 = vmul.f32 -0.5, %v1743
      %v1845 = vadd.f32 %v1844, 1.0
      %v1846 = vmul.f32 %v1845, %v1743
      %v1847 = vand.u32 2147483647, %v1743
      %vm1848 = vcmp.lt.f32.partialorder %v1847, 0.0004427343
      %v1849 = vsel %vm1848, %v1846, %v1843
      %v1850 = vadd.f32 %v1745, 1.0
      %v1851 = vlog2.pop %v1850
      %v1852 = vmul.f32 %v1851, 0.6931472
      %v1853 = vmul.f32 -0.5, %v1745
      %v1854 = vadd.f32 %v1853, 1.0
      %v1855 = vmul.f32 %v1854, %v1745
      %v1856 = vand.u32 2147483647, %v1745
      %vm1857 = vcmp.lt.f32.partialorder %v1856, 0.0004427343
      %v1858 = vsel %vm1857, %v1855, %v1852
      %v1859 = vadd.f32 %v1747, 1.0
      %v1860 = vlog2.pop %v1859
      %v1861 = vmul.f32 %v1860, 0.6931472
      %v1862 = vmul.f32 -0.5, %v1747
      %v1863 = vadd.f32 %v1862, 1.0
      %v1864 = vmul.f32 %v1863, %v1747
      %v1865 = vand.u32 2147483647, %v1747
      %vm1866 = vcmp.lt.f32.partialorder %v1865, 0.0004427343
      %v1867 = vsel %vm1866, %v1864, %v1861
      %v1868 = vadd.f32 %v1749, 1.0
      %v1869 = vlog2.pop %v1868
      %v1870 = vmul.f32 %v1869, 0.6931472
      %v1871 = vmul.f32 -0.5, %v1749
      %v1872 = vadd.f32 %v1871, 1.0
      %v1873 = vmul.f32 %v1872, %v1749
      %v1874 = vand.u32 2147483647, %v1749
      %vm1875 = vcmp.lt.f32.partialorder %v1874, 0.0004427343
      %v1876 = vsel %vm1875, %v1873, %v1870
      %v1877 = vadd.f32 %v1751, 1.0
      %v1878 = vlog2.pop %v1877
      %v1879 = vmul.f32 %v1878, 0.6931472
      %v1880 = vmul.f32 -0.5, %v1751
      %v1881 = vadd.f32 %v1880, 1.0
      %v1882 = vmul.f32 %v1881, %v1751
      %v1883 = vand.u32 2147483647, %v1751
      %vm1884 = vcmp.lt.f32.partialorder %v1883, 0.0004427343
      %v1885 = vsel %vm1884, %v1882, %v1879
      %v1886 = vadd.f32 %v1753, 1.0
      %v1887 = vlog2.pop %v1886
      %v1888 = vmul.f32 %v1887, 0.6931472
      %v1889 = vmul.f32 -0.5, %v1753
      %v1890 = vadd.f32 %v1889, 1.0
      %v1891 = vmul.f32 %v1890, %v1753
      %v1892 = vand.u32 2147483647, %v1753
      %vm1893 = vcmp.lt.f32.partialorder %v1892, 0.0004427343
      %v1894 = vsel %vm1893, %v1891, %v1888
      %v1895 = vadd.f32 %v1755, 1.0
      %v1896 = vlog2.pop %v1895
      %v1897 = vmul.f32 %v1896, 0.6931472
      %v1898 = vmul.f32 -0.5, %v1755
      %v1899 = vadd.f32 %v1898, 1.0
      %v1900 = vmul.f32 %v1899, %v1755
      %v1901 = vand.u32 2147483647, %v1755
      %vm1902 = vcmp.lt.f32.partialorder %v1901, 0.0004427343
      %v1903 = vsel %vm1902, %v1900, %v1897
      %v1904 = vadd.f32 %v1757, 1.0
      %v1905 = vlog2.pop %v1904
      %v1906 = vmul.f32 %v1905, 0.6931472
      %v1907 = vmul.f32 -0.5, %v1757
      %v1908 = vadd.f32 %v1907, 1.0
      %v1909 = vmul.f32 %v1908, %v1757
      %v1910 = vand.u32 2147483647, %v1757
      %vm1911 = vcmp.lt.f32.partialorder %v1910, 0.0004427343
      %v1912 = vsel %vm1911, %v1909, %v1906
      %v1913 = vadd.f32 %v1759, 1.0
      %v1914 = vlog2.pop %v1913
      %v1915 = vmul.f32 %v1914, 0.6931472
      %v1916 = vmul.f32 -0.5, %v1759
      %v1917 = vadd.f32 %v1916, 1.0
      %v1918 = vmul.f32 %v1917, %v1759
      %v1919 = vand.u32 2147483647, %v1759
      %vm1920 = vcmp.lt.f32.partialorder %v1919, 0.0004427343
      %v1921 = vsel %vm1920, %v1918, %v1915
      %v1922 = vadd.f32 %v1761, 1.0
      %v1923 = vlog2.pop %v1922
      %v1924 = vmul.f32 %v1923, 0.6931472
      %v1925 = vmul.f32 -0.5, %v1761
      %v1926 = vadd.f32 %v1925, 1.0
      %v1927 = vmul.f32 %v1926, %v1761
      %v1928 = vand.u32 2147483647, %v1761
      %vm1929 = vcmp.lt.f32.partialorder %v1928, 0.0004427343
      %v1930 = vsel %vm1929, %v1927, %v1924
      %v1931 = vadd.f32 %v1763, 1.0
      %v1932 = vlog2.pop %v1931
      %v1933 = vmul.f32 %v1932, 0.6931472
      %v1934 = vmul.f32 -0.5, %v1763
      %v1935 = vadd.f32 %v1934, 1.0
      %v1936 = vmul.f32 %v1935, %v1763
      %v1937 = vand.u32 2147483647, %v1763
      %vm1938 = vcmp.lt.f32.partialorder %v1937, 0.0004427343
      %v1939 = vsel %vm1938, %v1936, %v1933
      %v1940 = vadd.f32 %v1765, 1.0
      %v1941 = vlog2.pop %v1940
      %v1942 = vmul.f32 %v1941, 0.6931472
      %v1943 = vmul.f32 -0.5, %v1765
      %v1944 = vadd.f32 %v1943, 1.0
      %v1945 = vmul.f32 %v1944, %v1765
      %v1946 = vand.u32 2147483647, %v1765
      %vm1947 = vcmp.lt.f32.partialorder %v1946, 0.0004427343
      %v1948 = vsel %vm1947, %v1945, %v1942
      %v1949 = vadd.f32 %v1767, 1.0
      %v1950 = vlog2.pop %v1949
      %v1951 = vmul.f32 %v1950, 0.6931472
      %v1952 = vmul.f32 -0.5, %v1767
      %v1953 = vadd.f32 %v1952, 1.0
      %v1954 = vmul.f32 %v1953, %v1767
      %v1955 = vand.u32 2147483647, %v1767
      %vm1956 = vcmp.lt.f32.partialorder %v1955, 0.0004427343
      %v1957 = vsel %vm1956, %v1954, %v1951
      %v1958 = vadd.f32 %v1769, 1.0
      %v1959 = vlog2.pop %v1958
      %v1960 = vmul.f32 %v1959, 0.6931472
      %v1961 = vmul.f32 -0.5, %v1769
      %v1962 = vadd.f32 %v1961, 1.0
      %v1963 = vmul.f32 %v1962, %v1769
      %v1964 = vand.u32 2147483647, %v1769
      %vm1965 = vcmp.lt.f32.partialorder %v1964, 0.0004427343
      %v1966 = vsel %vm1965, %v1963, %v1960
      %v1967 = vadd.f32 %v1771, 1.0
      %v1968 = vlog2.pop %v1967
      %v1969 = vmul.f32 %v1968, 0.6931472
      %v1970 = vmul.f32 -0.5, %v1771
      %v1971 = vadd.f32 %v1970, 1.0
      %v1972 = vmul.f32 %v1971, %v1771
      %v1973 = vand.u32 2147483647, %v1771
      %vm1974 = vcmp.lt.f32.partialorder %v1973, 0.0004427343
      %v1975 = vsel %vm1974, %v1972, %v1969
      %v1976 = vadd.f32 %v1773, 1.0
      %v1977 = vlog2.pop %v1976
      %v1978 = vmul.f32 %v1977, 0.6931472
      %v1979 = vmul.f32 -0.5, %v1773
      %v1980 = vadd.f32 %v1979, 1.0
      %v1981 = vmul.f32 %v1980, %v1773
      %v1982 = vand.u32 2147483647, %v1773
      %vm1983 = vcmp.lt.f32.partialorder %v1982, 0.0004427343
      %v1984 = vsel %vm1983, %v1981, %v1978
      %v1985 = vadd.f32 %v1775, 1.0
      %v1986 = vlog2.pop %v1985
      %v1987 = vmul.f32 %v1986, 0.6931472
      %v1988 = vmul.f32 -0.5, %v1775
      %v1989 = vadd.f32 %v1988, 1.0
      %v1990 = vmul.f32 %v1989, %v1775
      %v1991 = vand.u32 2147483647, %v1775
      %vm1992 = vcmp.lt.f32.partialorder %v1991, 0.0004427343
      %v1993 = vsel %vm1992, %v1990, %v1987
      %v1994 = vadd.f32 %v1777, 1.0
      %v1995 = vlog2.pop %v1994
      %v1996 = vmul.f32 %v1995, 0.6931472
      %v1997 = vmul.f32 -0.5, %v1777
      %v1998 = vadd.f32 %v1997, 1.0
      %v1999 = vmul.f32 %v1998, %v1777
      %v2000 = vand.u32 2147483647, %v1777
      %vm2001 = vcmp.lt.f32.partialorder %v2000, 0.0004427343
      %v2002 = vsel %vm2001, %v1999, %v1996
      %v2003 = vadd.f32 %v1779, 1.0
      %v2004 = vlog2.pop %v2003
      %v2005 = vmul.f32 %v2004, 0.6931472
      %v2006 = vmul.f32 -0.5, %v1779
      %v2007 = vadd.f32 %v2006, 1.0
      %v2008 = vmul.f32 %v2007, %v1779
      %v2009 = vand.u32 2147483647, %v1779
      %vm2010 = vcmp.lt.f32.partialorder %v2009, 0.0004427343
      %v2011 = vsel %vm2010, %v2008, %v2005
      %v2012 = vadd.f32 %v1781, 1.0
      %v2013 = vlog2.pop %v2012
      %v2014 = vmul.f32 %v2013, 0.6931472
      %v2015 = vmul.f32 -0.5, %v1781
      %v2016 = vadd.f32 %v2015, 1.0
      %v2017 = vmul.f32 %v2016, %v1781
      %v2018 = vand.u32 2147483647, %v1781
      %vm2019 = vcmp.lt.f32.partialorder %v2018, 0.0004427343
      %v2020 = vsel %vm2019, %v2017, %v2014
      %v2021 = vadd.f32 %v1783, 1.0
      %v2022 = vlog2.pop %v2021
      %v2023 = vmul.f32 %v2022, 0.6931472
      %v2024 = vmul.f32 -0.5, %v1783
      %v2025 = vadd.f32 %v2024, 1.0
      %v2026 = vmul.f32 %v2025, %v1783
      %v2027 = vand.u32 2147483647, %v1783
      %vm2028 = vcmp.lt.f32.partialorder %v2027, 0.0004427343
      %v2029 = vsel %vm2028, %v2026, %v2023
      %v2030 = vadd.f32 %v1785, 1.0
      %v2031 = vlog2.pop %v2030
      %v2032 = vmul.f32 %v2031, 0.6931472
      %v2033 = vmul.f32 -0.5, %v1785
      %v2034 = vadd.f32 %v2033, 1.0
      %v2035 = vmul.f32 %v2034, %v1785
      %v2036 = vand.u32 2147483647, %v1785
      %vm2037 = vcmp.lt.f32.partialorder %v2036, 0.0004427343
      %v2038 = vsel %vm2037, %v2035, %v2032
      %v2039 = vadd.f32 %v1787, 1.0
      %v2040 = vlog2.pop %v2039
      %v2041 = vmul.f32 %v2040, 0.6931472
      %v2042 = vmul.f32 -0.5, %v1787
      %v2043 = vadd.f32 %v2042, 1.0
      %v2044 = vmul.f32 %v2043, %v1787
      %v2045 = vand.u32 2147483647, %v1787
      %vm2046 = vcmp.lt.f32.partialorder %v2045, 0.0004427343
      %v2047 = vsel %vm2046, %v2044, %v2041
      %v2048 = vadd.f32 %v1789, 1.0
      %v2049 = vlog2.pop %v2048
      %v2050 = vmul.f32 %v2049, 0.6931472
      %v2051 = vmul.f32 -0.5, %v1789
      %v2052 = vadd.f32 %v2051, 1.0
      %v2053 = vmul.f32 %v2052, %v1789
      %v2054 = vand.u32 2147483647, %v1789
      %vm2055 = vcmp.lt.f32.partialorder %v2054, 0.0004427343
      %v2056 = vsel %vm2055, %v2053, %v2050
      %v2057 = vadd.f32 %v1791, 1.0
      %v2058 = vlog2.pop %v2057
      %v2059 = vmul.f32 %v2058, 0.6931472
      %v2060 = vmul.f32 -0.5, %v1791
      %v2061 = vadd.f32 %v2060, 1.0
      %v2062 = vmul.f32 %v2061, %v1791
      %v2063 = vand.u32 2147483647, %v1791
      %vm2064 = vcmp.lt.f32.partialorder %v2063, 0.0004427343
      %v2065 = vsel %vm2064, %v2062, %v2059
      %v2066 = vadd.f32 %v1793, 1.0
      %v2067 = vlog2.pop %v2066
      %v2068 = vmul.f32 %v2067, 0.6931472
      %v2069 = vmul.f32 -0.5, %v1793
      %v2070 = vadd.f32 %v2069, 1.0
      %v2071 = vmul.f32 %v2070, %v1793
      %v2072 = vand.u32 2147483647, %v1793
      %vm2073 = vcmp.lt.f32.partialorder %v2072, 0.0004427343
      %v2074 = vsel %vm2073, %v2071, %v2068
      %v2075 = vadd.f32 %v1795, 1.0
      %v2076 = vlog2.pop %v2075
      %v2077 = vmul.f32 %v2076, 0.6931472
      %v2078 = vmul.f32 -0.5, %v1795
      %v2079 = vadd.f32 %v2078, 1.0
      %v2080 = vmul.f32 %v2079, %v1795
      %v2081 = vand.u32 2147483647, %v1795
      %vm2082 = vcmp.lt.f32.partialorder %v2081, 0.0004427343
      %v2083 = vsel %vm2082, %v2080, %v2077
      %v2084 = vadd.f32 %v1636, %v1804
      %v2085 = vadd.f32 %v1637, %v1813
      %v2086 = vadd.f32 %v1638, %v1822
      %v2087 = vadd.f32 %v1639, %v1831
      %v2088 = vadd.f32 %v1640, %v1840
      %v2089 = vadd.f32 %v1641, %v1849
      %v2090 = vadd.f32 %v1642, %v1858
      %v2091 = vadd.f32 %v1643, %v1867
      %v2092 = vadd.f32 %v1644, %v1876
      %v2093 = vadd.f32 %v1645, %v1885
      %v2094 = vadd.f32 %v1646, %v1894
      %v2095 = vadd.f32 %v1647, %v1903
      %v2096 = vadd.f32 %v1648, %v1912
      %v2097 = vadd.f32 %v1649, %v1921
      %v2098 = vadd.f32 %v1650, %v1930
      %v2099 = vadd.f32 %v1651, %v1939
      %v2100 = vadd.f32 %v1652, %v1948
      %v2101 = vadd.f32 %v1653, %v1957
      %v2102 = vadd.f32 %v1654, %v1966
      %v2103 = vadd.f32 %v1655, %v1975
      %v2104 = vadd.f32 %v1656, %v1984
      %v2105 = vadd.f32 %v1657, %v1993
      %v2106 = vadd.f32 %v1658, %v2002
      %v2107 = vadd.f32 %v1659, %v2011
      %v2108 = vadd.f32 %v1660, %v2020
      %v2109 = vadd.f32 %v1661, %v2029
      %v2110 = vadd.f32 %v1662, %v2038
      %v2111 = vadd.f32 %v1663, %v2047
      %v2112 = vadd.f32 %v1664, %v2056
      %v2113 = vadd.f32 %v1665, %v2065
      %v2114 = vadd.f32 %v1666, %v2074
      %v2115 = vadd.f32 %v1667, %v2083
      %2116 = vst [vmem:[%s197] sm:$0xf] 0
      %2117 = vst [vmem:[%s197 + $0x4] sm:$0xf] 0
      %2118 = vst [vmem:[%s197 + $0x8] sm:$0xf] 0
      %2119 = vst [vmem:[%s197 + $0xc] sm:$0xf] 0
      %2120 = vst [vmem:[%s197 + $0x10] sm:$0xf] 0
      %2121 = vst [vmem:[%s197 + $0x14] sm:$0xf] 0
      %2122 = vst [vmem:[%s197 + $0x18] sm:$0xf] 0
      %2123 = vst [vmem:[%s197 + $0x1c] sm:$0xf] 0
      %2124 = vst [vmem:[%s197 + $0x20] sm:$0xf] 0
      %2125 = vst [vmem:[%s197 + $0x24] sm:$0xf] 0
      %2126 = vst [vmem:[%s197 + $0x28] sm:$0xf] 0
      %2127 = vst [vmem:[%s197 + $0x2c] sm:$0xf] 0
      %2128 = vst [vmem:[%s197 + $0x30] sm:$0xf] 0
      %2129 = vst [vmem:[%s197 + $0x34] sm:$0xf] 0
      %2130 = vst [vmem:[%s197 + $0x38] sm:$0xf] 0
      %2131 = vst [vmem:[%s197 + $0x3c] sm:$0xf] 0
      %2132 = vst [vmem:[%s197 + $0x40] sm:$0xf] 0
      %2133 = vst [vmem:[%s197 + $0x44] sm:$0xf] 0
      %2134 = vst [vmem:[%s197 + $0x48] sm:$0xf] 0
      %2135 = vst [vmem:[%s197 + $0x4c] sm:$0xf] 0
      %2136 = vst [vmem:[%s197 + $0x50] sm:$0xf] 0
      %2137 = vst [vmem:[%s197 + $0x54] sm:$0xf] 0
      %2138 = vst [vmem:[%s197 + $0x58] sm:$0xf] 0
      %2139 = vst [vmem:[%s197 + $0x5c] sm:$0xf] 0
      %2140 = vst [vmem:[%s197 + $0x60] sm:$0xf] 0
      %2141 = vst [vmem:[%s197 + $0x64] sm:$0xf] 0
      %2142 = vst [vmem:[%s197 + $0x68] sm:$0xf] 0
      %2143 = vst [vmem:[%s197 + $0x6c] sm:$0xf] 0
      %2144 = vst [vmem:[%s197 + $0x70] sm:$0xf] 0
      %2145 = vst [vmem:[%s197 + $0x74] sm:$0xf] 0
      %2146 = vst [vmem:[%s197 + $0x78] sm:$0xf] 0
      %2147 = vst [vmem:[%s197 + $0x7c] sm:$0xf] 0
      %2148 = vst [vmem:[%s197 + $0x80] sm:$0xf] 0
      %2149 = vst [vmem:[%s197 + $0x84] sm:$0xf] 0
      %2150 = vst [vmem:[%s197 + $0x88] sm:$0xf] 0
      %2151 = vst [vmem:[%s197 + $0x8c] sm:$0xf] 0
      %2152 = vst [vmem:[%s197 + $0x90] sm:$0xf] 0
      %2153 = vst [vmem:[%s197 + $0x94] sm:$0xf] 0
      %v2154 = vpack.c.bf16 %v2085, %v2084
      %v2155 = vpack.c.bf16 %v2087, %v2086
      %v2156 = vpack.c.bf16 %v2089, %v2088
      %v2157 = vpack.c.bf16 %v2091, %v2090
      %v2158 = vpack.c.bf16 %v2093, %v2092
      %v2159 = vpack.c.bf16 %v2095, %v2094
      %v2160 = vpack.c.bf16 %v2097, %v2096
      %v2161 = vpack.c.bf16 %v2099, %v2098
      %v2162 = vpack.c.bf16 %v2101, %v2100
      %v2163 = vpack.c.bf16 %v2103, %v2102
      %v2164 = vpack.c.bf16 %v2105, %v2104
      %v2165 = vpack.c.bf16 %v2107, %v2106
      %v2166 = vpack.c.bf16 %v2109, %v2108
      %v2167 = vpack.c.bf16 %v2111, %v2110
      %v2168 = vpack.c.bf16 %v2113, %v2112
      %v2169 = vpack.c.bf16 %v2115, %v2114
      %v2186 = vunpack.c.l.b16 %v2154
      %v2187 = vunpack.c.h.b16 %v2154
      %v2188 = vunpack.c.l.b16 %v2155
      %v2189 = vunpack.c.h.b16 %v2155
      %v2190 = vunpack.c.l.b16 %v2156
      %v2191 = vunpack.c.h.b16 %v2156
      %v2192 = vunpack.c.l.b16 %v2157
      %v2193 = vunpack.c.h.b16 %v2157
      %v2194 = vunpack.c.l.b16 %v2158
      %v2195 = vunpack.c.h.b16 %v2158
      %v2196 = vunpack.c.l.b16 %v2159
      %v2197 = vunpack.c.h.b16 %v2159
      %v2198 = vunpack.c.l.b16 %v2160
      %v2199 = vunpack.c.h.b16 %v2160
      %v2200 = vunpack.c.l.b16 %v2161
      %v2201 = vunpack.c.h.b16 %v2161
      %v2202 = vunpack.c.l.b16 %v2162
      %v2203 = vunpack.c.h.b16 %v2162
      %v2204 = vunpack.c.l.b16 %v2163
      %v2205 = vunpack.c.h.b16 %v2163
      %v2206 = vunpack.c.l.b16 %v2164
      %v2207 = vunpack.c.h.b16 %v2164
      %v2208 = vunpack.c.l.b16 %v2165
      %v2209 = vunpack.c.h.b16 %v2165
      %v2210 = vunpack.c.l.b16 %v2166
      %v2211 = vunpack.c.h.b16 %v2166
      %v2212 = vunpack.c.l.b16 %v2167
      %v2213 = vunpack.c.h.b16 %v2167
      %v2214 = vunpack.c.l.b16 %v2168
      %v2215 = vunpack.c.h.b16 %v2168
      %v2216 = vunpack.c.l.b16 %v2169
      %v2217 = vunpack.c.h.b16 %v2169
      %v2218 = vpack.c.b16 %v2186, %v2186
      %v2219 = vpack.c.b16 %v2187, %v2187
      %v2220 = vpack.c.b16 %v2188, %v2188
      %v2221 = vpack.c.b16 %v2189, %v2189
      %v2222 = vpack.c.b16 %v2190, %v2190
      %v2223 = vpack.c.b16 %v2191, %v2191
      %v2224 = vpack.c.b16 %v2192, %v2192
      %v2225 = vpack.c.b16 %v2193, %v2193
      %v2226 = vpack.c.b16 %v2194, %v2194
      %v2227 = vpack.c.b16 %v2195, %v2195
      %v2228 = vpack.c.b16 %v2196, %v2196
      %v2229 = vpack.c.b16 %v2197, %v2197
      %v2230 = vpack.c.b16 %v2198, %v2198
      %v2231 = vpack.c.b16 %v2199, %v2199
      %v2232 = vpack.c.b16 %v2200, %v2200
      %v2233 = vpack.c.b16 %v2201, %v2201
      %v2234 = vpack.c.b16 %v2202, %v2202
      %v2235 = vpack.c.b16 %v2203, %v2203
      %v2236 = vpack.c.b16 %v2204, %v2204
      %v2237 = vpack.c.b16 %v2205, %v2205
      %v2238 = vpack.c.b16 %v2206, %v2206
      %v2239 = vpack.c.b16 %v2207, %v2207
      %v2240 = vpack.c.b16 %v2208, %v2208
      %v2241 = vpack.c.b16 %v2209, %v2209
      %v2242 = vpack.c.b16 %v2210, %v2210
      %v2243 = vpack.c.b16 %v2211, %v2211
      %v2244 = vpack.c.b16 %v2212, %v2212
      %v2245 = vpack.c.b16 %v2213, %v2213
      %v2246 = vpack.c.b16 %v2214, %v2214
      %v2247 = vpack.c.b16 %v2215, %v2215
      %v2248 = vpack.c.b16 %v2216, %v2216
      %v2249 = vpack.c.b16 %v2217, %v2217
      %2282 = vst [vmem:[%s197 + $0x98] sm:$0xf] %v2218
      %2283 = vst [vmem:[%s197 + $0x9c] sm:$0xf] %v2219
      %2284 = vst [vmem:[%s197 + $0xa0] sm:$0xf] %v2220
      %2285 = vst [vmem:[%s197 + $0xa4] sm:$0xf] %v2221
      %2286 = vst [vmem:[%s197 + $0xa8] sm:$0xf] %v2222
      %2287 = vst [vmem:[%s197 + $0xac] sm:$0xf] %v2223
      %2288 = vst [vmem:[%s197 + $0xb0] sm:$0xf] %v2224
      %2289 = vst [vmem:[%s197 + $0xb4] sm:$0xf] %v2225
      %2290 = vst [vmem:[%s197 + $0xb8] sm:$0xf] %v2226
      %2291 = vst [vmem:[%s197 + $0xbc] sm:$0xf] %v2227
      %2292 = vst [vmem:[%s197 + $0xc0] sm:$0xf] %v2228
      %2293 = vst [vmem:[%s197 + $0xc4] sm:$0xf] %v2229
      %2294 = vst [vmem:[%s197 + $0xc8] sm:$0xf] %v2230
      %2295 = vst [vmem:[%s197 + $0xcc] sm:$0xf] %v2231
      %2296 = vst [vmem:[%s197 + $0xd0] sm:$0xf] %v2232
      %2297 = vst [vmem:[%s197 + $0xd4] sm:$0xf] %v2233
      %2298 = vst [vmem:[%s197 + $0xd8] sm:$0xf] %v2234
      %2299 = vst [vmem:[%s197 + $0xdc] sm:$0xf] %v2235
      %2300 = vst [vmem:[%s197 + $0xe0] sm:$0xf] %v2236
      %2301 = vst [vmem:[%s197 + $0xe4] sm:$0xf] %v2237
      %2302 = vst [vmem:[%s197 + $0xe8] sm:$0xf] %v2238
      %2303 = vst [vmem:[%s197 + $0xec] sm:$0xf] %v2239
      %2304 = vst [vmem:[%s197 + $0xf0] sm:$0xf] %v2240
      %2305 = vst [vmem:[%s197 + $0xf4] sm:$0xf] %v2241
      %2306 = vst [vmem:[%s197 + $0xf8] sm:$0xf] %v2242
      %2307 = vst [vmem:[%s197 + $0xfc] sm:$0xf] %v2243
      %2308 = vst [vmem:[%s197 + $0x100] sm:$0xf] %v2244
      %2309 = vst [vmem:[%s197 + $0x104] sm:$0xf] %v2245
      %2310 = vst [vmem:[%s197 + $0x108] sm:$0xf] %v2246
      %2311 = vst [vmem:[%s197 + $0x10c] sm:$0xf] %v2247
      %2312 = vst [vmem:[%s197 + $0x110] sm:$0xf] %v2248
      %2313 = vst [vmem:[%s197 + $0x114] sm:$0xf] %v2249
      %2314 = vst [vmem:[%s197 + $0x118] sm:$0xf] 0
      %2315 = vst [vmem:[%s197 + $0x11c] sm:$0xf] 0
      %2316 = vst [vmem:[%s197 + $0x120] sm:$0xf] 0
      %2317 = vst [vmem:[%s197 + $0x124] sm:$0xf] 0
      %2318 = vst [vmem:[%s197 + $0x128] sm:$0xf] 0
      %2319 = vst [vmem:[%s197 + $0x12c] sm:$0xf] 0
      %2320 = vst [vmem:[%s197 + $0x130] sm:$0xf] 0
      %2321 = vst [vmem:[%s197 + $0x134] sm:$0xf] 0
      %2322 = vst [vmem:[%s197 + $0x138] sm:$0xf] 0
      %2323 = vst [vmem:[%s197 + $0x13c] sm:$0xf] 0
      %2324 = vst [vmem:[%s197 + $0x140] sm:$0xf] 0
      %2325 = vst [vmem:[%s197 + $0x144] sm:$0xf] 0
      %2326 = vst [vmem:[%s197 + $0x148] sm:$0xf] 0
      %2327 = vst [vmem:[%s197 + $0x14c] sm:$0xf] 0
      %2328 = vst [vmem:[%s197 + $0x150] sm:$0xf] 0
      %2329 = vst [vmem:[%s197 + $0x154] sm:$0xf] 0
      %2330 = vst [vmem:[%s197 + $0x158] sm:$0xf] 0
      %2331 = vst [vmem:[%s197 + $0x15c] sm:$0xf] 0
      %2332 = vst [vmem:[%s197 + $0x160] sm:$0xf] 0
      %2333 = vst [vmem:[%s197 + $0x164] sm:$0xf] 0
      %2334 = vst [vmem:[%s197 + $0x168] sm:$0xf] 0
      %2335 = vst [vmem:[%s197 + $0x16c] sm:$0xf] 0
      %2336 = vst [vmem:[%s197 + $0x170] sm:$0xf] 0
      %2337 = vst [vmem:[%s197 + $0x174] sm:$0xf] 0
      %2338 = vst [vmem:[%s197 + $0x178] sm:$0xf] 0
      %2339 = vst [vmem:[%s197 + $0x17c] sm:$0xf] 0
      %2340 = vst [vmem:[%s197 + $0x180] sm:$0xf] 0
      %2341 = vst [vmem:[%s197 + $0x184] sm:$0xf] 0
      %2342 = vst [vmem:[%s197 + $0x188] sm:$0xf] 0
      %2343 = vst [vmem:[%s197 + $0x18c] sm:$0xf] 0
      %2344 = vst [vmem:[%s197 + $0x190] sm:$0xf] 0
      %2345 = vst [vmem:[%s197 + $0x194] sm:$0xf] 0
      %2346 = vst [vmem:[%s197 + $0x198] sm:$0xf] 0
      %2347 = vst [vmem:[%s197 + $0x19c] sm:$0xf] 0
      %2348 = vst [vmem:[%s197 + $0x1a0] sm:$0xf] 0
      %2349 = vst [vmem:[%s197 + $0x1a4] sm:$0xf] 0
      %2350 = vst [vmem:[%s197 + $0x1a8] sm:$0xf] 0
      %2351 = vst [vmem:[%s197 + $0x1ac] sm:$0xf] 0
      %2352 = vst [vmem:[%s197 + $0x1b0] sm:$0xf] 0
      %2353 = vst [vmem:[%s197 + $0x1b4] sm:$0xf] 0
      %p2354 = scmp.lt.s32.totalorder %s15, 1
      %s2355 = scalar_select %p2354, %s15, 1
      %s2356 = smul.addr %s2355, 110
      %s2357 = smul.addr %s2356, 4
      %s2358 = scalar_lea.vmem %s4, %s2357
      // Predicated region
      $region37: #{simplenet_forward.2} parent=35 // pred_check
        %p2359 = pneg %p122
      $region38: #{simplenet_forward.2} parent=35 // pred_check_branch
        %2361 = sbr.rel (%p2359) target = $region40
      $region39: #{simplenet_forward.2} parent=35 // pred_region
        _
      $region40: #{simplenet_forward.2} parent=35 // pred_fallthru
        _
    $region36: #{simplenet_forward.2} parent=5 // pred_fallthru
      _
    %p2362 = scmp.le.s32.totalorder 2, %s10
    // Predicated region
    $region41: #{simplenet_forward.2} parent=5 // pred_check
      %p2363 = pneg %p2362
    $region42: #{simplenet_forward.2} parent=5 // pred_check_branch
      %2365 = sbr.rel (%p2363) target = $region44
    $region43: #{simplenet_forward.2} parent=5 // pred_region
      %s2366 = ssub.s32 %s10, 2
      // Predicated region
      $region45: #{simplenet_forward.2} parent=43 // pred_check
        %p2367 = pneg %p128
      $region46: #{simplenet_forward.2} parent=43 // pred_check_branch
        %2369 = sbr.rel (%p2367) target = $region48
      $region47: #{simplenet_forward.2} parent=43 // pred_region
        %p2370 = scmp.lt.s32.totalorder %s16, 1
        %s2371 = scalar_select %p2370, %s16, 1
        %s2372 = smul.addr %s2371, 110
        %s2373 = smul.addr %s2372, 4
        %s2374 = scalar_lea.vmem %s4, %s2373
      $region48: #{simplenet_forward.2} parent=43 // pred_fallthru
        _
    $region44: #{simplenet_forward.2} parent=5 // pred_fallthru
      _
  $region6: #{simplenet_forward.2} parent=0 // loop_footer
    %s14 = sadd.s32 1, %s10
  $region7: #{simplenet_forward.2} parent=0 // loop_footer_branch
    %9 = sbr.rel target = $region3
  $region8: #{simplenet_forward.2} parent=0 // loop_exit
    _

// kernel: simplenet_forward.3
$region0: #{simplenet_forward.3}
  #allocation0 [shape = 'u32[]', space=smem, size = 0x4, offset = 0x4, fixed_abs, tag = 'smem constant byte address 0x4 - core index']
  #allocation1 [shape = 'u32[144,128]{1,0:T(1,128)}', space=vmem, size = 0x12000, scoped, tag = 'internal scratch']
  %s0 = inlined_call_operand.vmem [shape: bf16[2,880,128], index: 0, kind: input, shape index: {}]
  %s1 = inlined_call_operand.vmem [shape: bf16[26,128,240], index: 1, kind: input, shape index: {}]
  %s2 = inlined_call_operand.vmem [shape: f32[1,10], index: 2, kind: input, shape index: {}]
  %s3 = inlined_call_operand.vmem [shape: f32[2,256,10], index: 3, kind: output, shape index: {}]
  %s4 = sld [smem:[#allocation0]]
  $region52: #{simplenet_forward.3} parent=0
    _
  %s6 = ssub.s32 1, %s4
  %s7 = scalar_select 0, %s6, %s4
  loop: start=0, step=1, limit=4
  $region2: #{simplenet_forward.3} parent=0 // loop_pre_header
    _
  $region3: #{simplenet_forward.3} parent=0 // loop_header
    %s9 = sphi 0, %s13
    %p10 = scmp.ge.s32.totalorder %s9, 4
    %s16 = sphi 0, %s28
    %s17 = sphi 0, %s24
    %s18 = sphi 0, %s16
    %s19 = sphi 0, %s17
    %s20 = sphi 0, %s18
    %s21 = sphi 0, %s19
    %s31 = sphi 0, %s33
    %s34 = sphi 0, %s31
    %s35 = sphi 0, %s34
    %s51 = sphi 0, %s35
    %s55 = sphi 0, %s55
    %s57 = sphi 0, %s55
    %s58 = sphi 0, %s57
    %s72 = sphi 0, %s58
    %s76 = sphi 0, %s76
    %s78 = sphi 0, %s76
    %s79 = sphi 0, %s78
    %s93 = sphi 0, %s79
    %s101 = sphi 0, %s103
    %s104 = sphi 0, %s101
    %s105 = sphi 0, %s104
    %s121 = sphi 0, %s105
  $region4: #{simplenet_forward.3} parent=0 // loop_header_branch
    %12 = sbr.rel (%p10) target = $region8
  $region5: #{simplenet_forward.3} parent=0 // loop_body
    %s14 = ssub.s32 %s9, 1
    %s15 = ssub.s32 %s9, 2
    %s22 = sadd.s32 1, %s17
    %p23 = scmp.ge.s32.totalorder %s22, 1
    %s24 = scalar_select %p23, 0, %s22
    %s25 = sadd.s32 1, %s16
    %s26 = scalar_select %p23, %s25, %s16
    %p27 = scmp.ge.s32.totalorder %s26, 2
    %s28 = scalar_select %p27, 0, %s26
    %s29 = ssub.s32 %s16, %s28
    %p30 = scmp.eq.s32.totalorder %s29, 0
    %s32 = sadd.s32 %s31, 1
    %s33 = scalar_select %p30, %s31, %s32
    %p36 = pneg %p30
    %p37 = scmp.eq.s32.totalorder %s9, 1
    %p38 = por %p36, %p37
    %p39 = scmp.ne.s32.totalorder %s31, %s34
    %p40 = scmp.eq.s32.totalorder %s9, 0
    %p41 = por %p39, %p40
    %p42 = scmp.ne.s32.totalorder %s31, %s34
    %p43 = scmp.eq.s32.totalorder %s14, 1
    %p44 = por %p42, %p43
    %p45 = scmp.ne.s32.totalorder %s34, %s35
    %p46 = scmp.eq.s32.totalorder %s14, 0
    %p47 = por %p45, %p46
    %p48 = scmp.ne.s32.totalorder %s34, %s35
    %p49 = scmp.eq.s32.totalorder %s15, 1
    %p50 = por %p48, %p49
    %p52 = scmp.ne.s32.totalorder %s35, %s51
    %p53 = scmp.eq.s32.totalorder %s15, 0
    %p54 = por %p52, %p53
    %s56 = sadd.s32 %s55, 1
    %p59 = scmp.eq.s32.totalorder %s9, 1
    %p60 = scmp.ne.s32.totalorder %s55, %s57
    %p61 = scmp.eq.s32.totalorder %s9, 0
    %p62 = por %p60, %p61
    %p63 = scmp.ne.s32.totalorder %s55, %s57
    %p64 = scmp.eq.s32.totalorder %s14, 1
    %p65 = por %p63, %p64
    %p66 = scmp.ne.s32.totalorder %s57, %s58
    %p67 = scmp.eq.s32.totalorder %s14, 0
    %p68 = por %p66, %p67
    %p69 = scmp.ne.s32.totalorder %s57, %s58
    %p70 = scmp.eq.s32.totalorder %s15, 1
    %p71 = por %p69, %p70
    %p73 = scmp.ne.s32.totalorder %s58, %s72
    %p74 = scmp.eq.s32.totalorder %s15, 0
    %p75 = por %p73, %p74
    %s77 = sadd.s32 %s76, 1
    %p80 = scmp.eq.s32.totalorder %s9, 1
    %p81 = scmp.ne.s32.totalorder %s76, %s78
    %p82 = scmp.eq.s32.totalorder %s9, 0
    %p83 = por %p81, %p82
    %p84 = scmp.ne.s32.totalorder %s76, %s78
    %p85 = scmp.eq.s32.totalorder %s14, 1
    %p86 = por %p84, %p85
    %p87 = scmp.ne.s32.totalorder %s78, %s79
    %p88 = scmp.eq.s32.totalorder %s14, 0
    %p89 = por %p87, %p88
    %p90 = scmp.ne.s32.totalorder %s78, %s79
    %p91 = scmp.eq.s32.totalorder %s15, 1
    %p92 = por %p90, %p91
    %p94 = scmp.ne.s32.totalorder %s79, %s93
    %p95 = scmp.eq.s32.totalorder %s15, 0
    %p96 = por %p94, %p95
    %s97 = ssub.s32 %s16, %s28
    %s98 = ssub.s32 %s17, %s24
    %s99 = sor.u32 %s97, %s98
    %p100 = scmp.eq.s32.totalorder %s99, 0
    %s102 = sadd.s32 %s101, 1
    %s103 = scalar_select %p100, %s101, %s102
    %p106 = pneg %p100
    %p107 = scmp.eq.s32.totalorder %s9, 1
    %p108 = por %p106, %p107
    %p109 = scmp.ne.s32.totalorder %s101, %s104
    %p110 = scmp.eq.s32.totalorder %s9, 0
    %p111 = por %p109, %p110
    %p112 = scmp.ne.s32.totalorder %s101, %s104
    %p113 = scmp.eq.s32.totalorder %s14, 1
    %p114 = por %p112, %p113
    %p115 = scmp.ne.s32.totalorder %s104, %s105
    %p116 = scmp.eq.s32.totalorder %s14, 0
    %p117 = por %p115, %p116
    %p118 = scmp.ne.s32.totalorder %s104, %s105
    %p119 = scmp.eq.s32.totalorder %s15, 1
    %p120 = por %p118, %p119
    %p122 = scmp.ne.s32.totalorder %s105, %s121
    %p123 = scmp.eq.s32.totalorder %s15, 0
    %p124 = por %p122, %p123
    %p125 = scmp.le.s32.totalorder 1, %s9
    %p126 = scmp.lt.s32.totalorder %s9, 3
    %p127 = pnand %p125, %p126
    %p128 = pneg %p127
    // Predicated region
    $region9: #{simplenet_forward.3} parent=5 // pred_check
      _
    $region10: #{simplenet_forward.3} parent=5 // pred_check_branch
      %130 = sbr.rel (%p127) target = $region12
    $region11: #{simplenet_forward.3} parent=5 // pred_region
      %s131 = ssub.s32 %s9, 1
      // Predicated region
      $region13: #{simplenet_forward.3} parent=11 // pred_check
        %p132 = pneg %p68
      $region14: #{simplenet_forward.3} parent=11 // pred_check_branch
        %134 = sbr.rel (%p132) target = $region16
      $region15: #{simplenet_forward.3} parent=11 // pred_region
        _
      $region16: #{simplenet_forward.3} parent=11 // pred_fallthru
        _
      // Predicated region
      $region17: #{simplenet_forward.3} parent=11 // pred_check
        %p135 = pneg %p89
      $region18: #{simplenet_forward.3} parent=11 // pred_check_branch
        %137 = sbr.rel (%p135) target = $region20
      $region19: #{simplenet_forward.3} parent=11 // pred_region
        _
      $region20: #{simplenet_forward.3} parent=11 // pred_fallthru
        _
    $region12: #{simplenet_forward.3} parent=5 // pred_fallthru
      _
    %p138 = scmp.lt.s32.totalorder %s9, 2
    // Predicated region
    $region21: #{simplenet_forward.3} parent=5 // pred_check
      %p139 = pneg %p138
    $region22: #{simplenet_forward.3} parent=5 // pred_check_branch
      %141 = sbr.rel (%p139) target = $region24
    $region23: #{simplenet_forward.3} parent=5 // pred_region
      // Predicated region
      $region25: #{simplenet_forward.3} parent=23 // pred_check
        %p142 = pneg %p41
      $region26: #{simplenet_forward.3} parent=23 // pred_check_branch
        %144 = sbr.rel (%p142) target = $region28
      $region27: #{simplenet_forward.3} parent=23 // pred_region
        %p145 = scmp.lt.s32.totalorder %s16, 1
        %s146 = scalar_select %p145, %s16, 1
        %s147 = smul.addr %s146, 110
        %s148 = smul.addr %s147, 4
        %s149 = scalar_lea.vmem %s0, %s148
      $region28: #{simplenet_forward.3} parent=23 // pred_fallthru
        _
    $region24: #{simplenet_forward.3} parent=5 // pred_fallthru
      _
    %p150 = scmp.le.s32.totalorder 1, %s9
    %p151 = scmp.lt.s32.totalorder %s9, 3
    %p152 = pnand %p150, %p151
    %p153 = pneg %p152
    // Predicated region
    $region29: #{simplenet_forward.3} parent=5 // pred_check
      _
    $region30: #{simplenet_forward.3} parent=5 // pred_check_branch
      %155 = sbr.rel (%p152) target = $region32
    $region31: #{simplenet_forward.3} parent=5 // pred_region
      %s156 = ssub.s32 %s9, 1
      %p157 = scmp.lt.s32.totalorder %s18, 1
      %s158 = scalar_select %p157, %s18, 1
      %s159 = smul.addr %s158, 110
      %s160 = smul.addr %s159, 4
      %s161 = scalar_lea.vmem %s0, %s160
      %p162 = pneg %p47
      %p163 = pneg %p44
      %p164 = pneg %p68
      %p165 = pneg %p65
      %p166 = pneg %p89
      %p167 = pneg %p86
      %p168 = pneg %p117
      %p169 = pneg %p114
      %s170 = smul.u32 32, %s19
      %p171 = scmp.lt.s32.totalorder %s18, 1
      %s172 = scalar_select %p171, %s18, 1
      %p173 = scmp.lt.s32.totalorder %s170, 31
      %s174 = scalar_select %p173, %s170, 31
      %s175 = smul.addr %s172, 32
      %s176 = sadd.s32 %s174, %s175
      %s177 = smul.addr %s176, 8
      %s178 = scalar_lea.vmem %s3, %s177
      %p179 = scmp.lt.s32.totalorder %s18, 1
      %s180 = scalar_select %p179, %s18, 1
      %s181 = smul.addr %s180, 110
      %s182 = smul.addr %s181, 4
      %s183 = scalar_lea.vmem %s0, %s182
      %s184 = smul.u32 32, %s19
      %p185 = scmp.lt.s32.totalorder %s18, 1
      %s186 = scalar_select %p185, %s18, 1
      %p187 = scmp.lt.s32.totalorder %s184, 31
      %s188 = scalar_select %p187, %s184, 31
      %s189 = smul.addr %s186, 32
      %s190 = sadd.s32 %s188, %s189
      %s191 = smul.addr %s190, 8
      %s192 = scalar_lea.vmem %s3, %s191
      %s193 = smul.u32 32, %s19
      %s195 = smul.u32 %s19, 256
      loop: start=0, step=1, limit=26
      $region33: #{simplenet_forward.3} parent=31 // loop_pre_header
        _
      $region34: #{simplenet_forward.3} parent=31 // loop_header
        %s197 = sphi 0, %s201
        %p198 = scmp.ge.s32.totalorder %s197, 26
        %v202 = vphi 0.0, %v4731
        %v203 = vphi 0.0, %v4732
        %v204 = vphi 0.0, %v4733
        %v205 = vphi 0.0, %v4734
        %v206 = vphi 0.0, %v4735
        %v207 = vphi 0.0, %v4736
        %v208 = vphi 0.0, %v4737
        %v209 = vphi 0.0, %v4738
        %v210 = vphi 0.0, %v4739
        %v211 = vphi 0.0, %v4740
        %v212 = vphi 0.0, %v4741
        %v213 = vphi 0.0, %v4742
        %v214 = vphi 0.0, %v4743
        %v215 = vphi 0.0, %v4744
        %v216 = vphi 0.0, %v4745
        %v217 = vphi 0.0, %v4746
        %v218 = vphi 0.0, %v4747
        %v219 = vphi 0.0, %v4748
        %v220 = vphi 0.0, %v4749
        %v221 = vphi 0.0, %v4750
        %v222 = vphi 0.0, %v4751
        %v223 = vphi 0.0, %v4752
        %v224 = vphi 0.0, %v4753
        %v225 = vphi 0.0, %v4754
        %v226 = vphi 0.0, %v4755
        %v227 = vphi 0.0, %v4756
        %v228 = vphi 0.0, %v4757
        %v229 = vphi 0.0, %v4758
        %v230 = vphi 0.0, %v4759
        %v231 = vphi 0.0, %v4760
        %v232 = vphi 0.0, %v4761
        %v233 = vphi 0.0, %v4762
      $region35: #{simplenet_forward.3} parent=31 // loop_header_branch
        %200 = sbr.rel (%p198) target = $region39
      $region36: #{simplenet_forward.3} parent=31 // loop_body
        %s234 = smul.u32 %s197, 24
        %s235 = sadd.s32 %s195, %s234
        %s236 = sshra.s32 %s235, 3
        %s237 = sand.u32 %s235, 7
        %s238 = smul.addr %s236, 4
        %s239 = scalar_lea.vmem %s183, %s238
        %v240 = vld [vmem:[%s239] sm:$0xf]
        %v241 = vld [vmem:[%s239 + $0x4] sm:$0xf]
        %v242 = vld [vmem:[%s239 + $0x8] sm:$0xf]
        %v243 = vld [vmem:[%s239 + $0xc] sm:$0xf]
        %v244 = vld [vmem:[%s239 + $0x10] sm:$0xf]
        %v245 = vld [vmem:[%s239 + $0x14] sm:$0xf]
        %v246 = vld [vmem:[%s239 + $0x18] sm:$0xf]
        %v247 = vld [vmem:[%s239 + $0x1c] sm:$0xf]
        %v248 = vld [vmem:[%s239 + $0x20] sm:$0xf]
        %v249 = vld [vmem:[%s239 + $0x24] sm:$0xf]
        %v250 = vld [vmem:[%s239 + $0x28] sm:$0xf]
        %v251 = vld [vmem:[%s239 + $0x2c] sm:$0xf]
        %v252 = vld [vmem:[%s239 + $0x30] sm:$0xf]
        %v253 = vld [vmem:[%s239 + $0x34] sm:$0xf]
        %v254 = vld [vmem:[%s239 + $0x38] sm:$0xf]
        %v255 = vld [vmem:[%s239 + $0x3c] sm:$0xf]
        %v256 = vld [vmem:[%s239 + $0x40] sm:$0xf]
        %v257 = vld [vmem:[%s239 + $0x44] sm:$0xf]
        %v258 = vld [vmem:[%s239 + $0x48] sm:$0xf]
        %v259 = vld [vmem:[%s239 + $0x4c] sm:$0xf]
        %v260 = vld [vmem:[%s239 + $0x50] sm:$0xf]
        %v261 = vld [vmem:[%s239 + $0x54] sm:$0xf]
        %v262 = vld [vmem:[%s239 + $0x58] sm:$0xf]
        %v263 = vld [vmem:[%s239 + $0x5c] sm:$0xf]
        %v264 = vld [vmem:[%s239 + $0x60] sm:$0xf]
        %v265 = vld [vmem:[%s239 + $0x64] sm:$0xf]
        %v266 = vld [vmem:[%s239 + $0x68] sm:$0xf]
        %v267 = vld [vmem:[%s239 + $0x6c] sm:$0xf]
        %v268 = vld [vmem:[%s239 + $0x70] sm:$0xf]
        %v269 = vld [vmem:[%s239 + $0x74] sm:$0xf]
        %v270 = vld [vmem:[%s239 + $0x78] sm:$0xf]
        %v271 = vld [vmem:[%s239 + $0x7c] sm:$0xf]
        %v272 = vld [vmem:[%s239 + $0x80] sm:$0xf]
        %v273 = vld [vmem:[%s239 + $0x84] sm:$0xf]
        %v274 = vld [vmem:[%s239 + $0x88] sm:$0xf]
        %s275 = smul.u32 %s197, 32
        %s276 = smul.addr %s275, 4
        %s277 = scalar_lea.vmem %s1, %s276
        %v278 = vld [vmem:[%s277] sm:$0xff]
        %v279 = vld [vmem:[%s277 + $0x8] sm:$0xff]
        %v280 = vld [vmem:[%s277 + $0x10] sm:$0xff]
        %v281 = vld [vmem:[%s277 + $0x18] sm:$0xff]
        %v282 = vld [vmem:[%s277 + $0x20] sm:$0xff]
        %v283 = vld [vmem:[%s277 + $0x28] sm:$0xff]
        %v284 = vld [vmem:[%s277 + $0x30] sm:$0xff]
        %v285 = vld [vmem:[%s277 + $0x38] sm:$0xff]
        %v286 = vld [vmem:[%s277 + $0x40] sm:$0xff]
        %v287 = vld [vmem:[%s277 + $0x48] sm:$0xff]
        %v288 = vld [vmem:[%s277 + $0x50] sm:$0xff]
        %v289 = vld [vmem:[%s277 + $0x58] sm:$0xff]
        %v290 = vld [vmem:[%s277 + $0x60] sm:$0xff]
        %v291 = vld [vmem:[%s277 + $0x68] sm:$0xff]
        %v292 = vld [vmem:[%s277 + $0x70] sm:$0xff]
        %v293 = vld [vmem:[%s277 + $0x78] sm:$0xff]
        %v329 = vunpack.c.l.b16 %v240
        %v330 = vunpack.c.l.b16 %v241
        %v331 = vunpack.c.l.b16 %v242
        %v332 = vunpack.c.l.b16 %v243
        %v333 = vunpack.c.l.b16 %v244
        %v334 = vunpack.c.l.b16 %v245
        %v335 = vunpack.c.l.b16 %v246
        %v336 = vunpack.c.l.b16 %v247
        %v337 = vunpack.c.l.b16 %v248
        %v338 = vunpack.c.l.b16 %v249
        %v339 = vunpack.c.l.b16 %v250
        %v340 = vunpack.c.l.b16 %v251
        %v341 = vunpack.c.l.b16 %v252
        %v342 = vunpack.c.l.b16 %v253
        %v343 = vunpack.c.l.b16 %v254
        %v344 = vunpack.c.l.b16 %v255
        %v345 = vunpack.c.l.b16 %v256
        %v346 = vunpack.c.l.b16 %v257
        %v347 = vunpack.c.l.b16 %v258
        %v348 = vunpack.c.l.b16 %v259
        %v349 = vunpack.c.l.b16 %v260
        %v350 = vunpack.c.l.b16 %v261
        %v351 = vunpack.c.l.b16 %v262
        %v352 = vunpack.c.l.b16 %v263
        %v353 = vunpack.c.l.b16 %v264
        %v354 = vunpack.c.l.b16 %v265
        %v355 = vunpack.c.l.b16 %v266
        %v356 = vunpack.c.l.b16 %v267
        %v357 = vunpack.c.l.b16 %v268
        %v358 = vunpack.c.l.b16 %v269
        %v359 = vunpack.c.l.b16 %v270
        %v360 = vunpack.c.l.b16 %v271
        %v361 = vunpack.c.l.b16 %v272
        %v362 = vunpack.c.l.b16 %v273
        %v363 = vunpack.c.l.b16 %v274
        %v364 = vpack.c.b16 %v330, %v329
        %v365 = vpack.c.b16 %v332, %v331
        %v366 = vpack.c.b16 %v334, %v333
        %v367 = vpack.c.b16 %v336, %v335
        %v368 = vpack.c.b16 %v338, %v337
        %v369 = vpack.c.b16 %v340, %v339
        %v370 = vpack.c.b16 %v342, %v341
        %v371 = vpack.c.b16 %v344, %v343
        %v372 = vpack.c.b16 %v346, %v345
        %v373 = vpack.c.b16 %v348, %v347
        %v374 = vpack.c.b16 %v350, %v349
        %v375 = vpack.c.b16 %v352, %v351
        %v376 = vpack.c.b16 %v354, %v353
        %v377 = vpack.c.b16 %v356, %v355
        %v378 = vpack.c.b16 %v358, %v357
        %v379 = vpack.c.b16 %v360, %v359
        %v380 = vpack.c.b16 %v362, %v361
        %v381 = vpack.c.b16 %v363, %v363
        %v416 = vunpack.c.l.b16 %v278
        %v417 = vunpack.c.h.b16 %v278
        %v418 = vunpack.c.l.b16 %v279
        %v419 = vunpack.c.h.b16 %v279
        %v420 = vunpack.c.l.b16 %v280
        %v421 = vunpack.c.h.b16 %v280
        %v422 = vunpack.c.l.b16 %v281
        %v423 = vunpack.c.h.b16 %v281
        %v424 = vunpack.c.l.b16 %v282
        %v425 = vunpack.c.h.b16 %v282
        %v426 = vunpack.c.l.b16 %v283
        %v427 = vunpack.c.h.b16 %v283
        %v428 = vunpack.c.l.b16 %v284
        %v429 = vunpack.c.h.b16 %v284
        %v430 = vunpack.c.l.b16 %v285
        %v431 = vunpack.c.h.b16 %v285
        %v432 = vunpack.c.l.b16 %v286
        %v433 = vunpack.c.h.b16 %v286
        %v434 = vunpack.c.l.b16 %v287
        %v435 = vunpack.c.h.b16 %v287
        %v436 = vunpack.c.l.b16 %v288
        %v437 = vunpack.c.h.b16 %v288
        %v438 = vunpack.c.l.b16 %v289
        %v439 = vunpack.c.h.b16 %v289
        %v440 = vunpack.c.l.b16 %v290
        %v441 = vunpack.c.h.b16 %v290
        %v442 = vunpack.c.l.b16 %v291
        %v443 = vunpack.c.h.b16 %v291
        %v444 = vunpack.c.l.b16 %v292
        %v445 = vunpack.c.h.b16 %v292
        %v446 = vunpack.c.l.b16 %v293
        %v447 = vunpack.c.h.b16 %v293
        %v448 = vpack.c.b16 %v418, %v416
        %v449 = vpack.c.b16 %v419, %v417
        %v450 = vpack.c.b16 %v422, %v420
        %v451 = vpack.c.b16 %v423, %v421
        %v452 = vpack.c.b16 %v426, %v424
        %v453 = vpack.c.b16 %v427, %v425
        %v454 = vpack.c.b16 %v430, %v428
        %v455 = vpack.c.b16 %v431, %v429
        %v456 = vpack.c.b16 %v434, %v432
        %v457 = vpack.c.b16 %v435, %v433
        %v458 = vpack.c.b16 %v438, %v436
        %v459 = vpack.c.b16 %v439, %v437
        %v460 = vpack.c.b16 %v442, %v440
        %v461 = vpack.c.b16 %v443, %v441
        %v462 = vpack.c.b16 %v446, %v444
        %v463 = vpack.c.b16 %v447, %v445
        %480 = vmatprep.subr.bf16.mxu0 %v449
        %481 = vmatpush1.bf16.msra.mxu0 %v448
        %482 = vmatprep.subr.bf16.mxu0 %v451
        %483 = vmatpush1.bf16.msra.mxu0 %v450
        %484 = vmatprep.subr.bf16.mxu0 %v453
        %485 = vmatpush1.bf16.msra.mxu0 %v452
        %486 = vmatprep.subr.bf16.mxu0 %v455
        %487 = vmatpush1.bf16.msra.mxu0 %v454
        %488 = vmatprep.subr.bf16.mxu0 %v457
        %489 = vmatpush1.bf16.msra.mxu0 %v456
        %490 = vmatprep.subr.bf16.mxu0 %v459
        %491 = vmatpush1.bf16.msra.mxu0 %v458
        %492 = vmatprep.subr.bf16.mxu0 %v461
        %493 = vmatpush1.bf16.msra.mxu0 %v460
        %494 = vmatprep.subr.bf16.mxu0 %v463
        %495 = vmatpush1.bf16.msra.mxu0 %v462
        %496 = vmatprep.subr.bf16.mxu0 0
        %497 = vmatpush1.bf16.msra.mxu0 0
        %498 = vmatprep.subr.bf16.mxu0 0
        %499 = vmatpush1.bf16.msra.mxu0 0
        %500 = vmatprep.subr.bf16.mxu0 0
        %501 = vmatpush1.bf16.msra.mxu0 0
        %502 = vmatprep.subr.bf16.mxu0 0
        %503 = vmatpush1.bf16.msra.mxu0 0
        %504 = vmatprep.subr.bf16.mxu0 0
        %505 = vmatpush1.bf16.msra.mxu0 0
        %506 = vmatprep.subr.bf16.mxu0 0
        %507 = vmatpush1.bf16.msra.mxu0 0
        %508 = vmatprep.subr.bf16.mxu0 0
        %509 = vmatpush1.bf16.msra.mxu0 0
        %510 = vmatprep.subr.bf16.mxu0 0
        %511 = vmatpush1.bf16.msra.mxu0 0
        %512 = vmatprep.mubr.bf16.mxu0 0
        %513 = vmatmul.mubr.bf16.gmra.mrb[0].mxu0 %v364
        %v514 = vpop.f32.mrb[0].mxu0
        %v515 = vadd.f32 0.0, %v514
        %v516 = vpop.f32.mrb[0].mxu0
        %v517 = vpop.f32.mrb[0].mxu0
        %v518 = vadd.f32 0.0, %v517
        %v519 = vpop.f32.mrb[0].mxu0
        %v520 = vadd.f32 0.0, %v519
        %521 = vmatprep.mubr.bf16.mxu0 0
        %522 = vmatmul.mubr.bf16.gmra.mrb[0].mxu0 %v365
        %v523 = vpop.f32.mrb[0].mxu0
        %v524 = vadd.f32 0.0, %v523
        %v525 = vpop.f32.mrb[0].mxu0
        %v526 = vadd.f32 0.0, %v525
        %v527 = vpop.f32.mrb[0].mxu0
        %v528 = vadd.f32 0.0, %v527
        %v529 = vpop.f32.mrb[0].mxu0
        %v530 = vadd.f32 0.0, %v529
        %531 = vmatprep.mubr.bf16.mxu0 0
        %532 = vmatmul.mubr.bf16.gmra.mrb[0].mxu0 %v366
        %v533 = vpop.f32.mrb[0].mxu0
        %v534 = vadd.f32 0.0, %v533
        %v535 = vpop.f32.mrb[0].mxu0
        %v536 = vadd.f32 0.0, %v535
        %v537 = vpop.f32.mrb[0].mxu0
        %v538 = vadd.f32 0.0, %v537
        %v539 = vpop.f32.mrb[0].mxu0
        %v540 = vadd.f32 0.0, %v539
        %541 = vmatprep.mubr.bf16.mxu0 0
        %542 = vmatmul.mubr.bf16.gmra.mrb[0].mxu0 %v367
        %v543 = vpop.f32.mrb[0].mxu0
        %v544 = vadd.f32 0.0, %v543
        %v545 = vpop.f32.mrb[0].mxu0
        %v546 = vadd.f32 0.0, %v545
        %v547 = vpop.f32.mrb[0].mxu0
        %v548 = vadd.f32 0.0, %v547
        %v549 = vpop.f32.mrb[0].mxu0
        %v550 = vadd.f32 0.0, %v549
        %551 = vmatprep.mubr.bf16.mxu0 0
        %552 = vmatmul.mubr.bf16.gmra.mrb[0].mxu0 %v368
        %v553 = vpop.f32.mrb[0].mxu0
        %v554 = vadd.f32 0.0, %v553
        %v555 = vpop.f32.mrb[0].mxu0
        %v556 = vadd.f32 0.0, %v555
        %v557 = vpop.f32.mrb[0].mxu0
        %v558 = vadd.f32 0.0, %v557
        %v559 = vpop.f32.mrb[0].mxu0
        %v560 = vadd.f32 0.0, %v559
        %561 = vmatprep.mubr.bf16.mxu0 0
        %562 = vmatmul.mubr.bf16.gmra.mrb[0].mxu0 %v369
        %v563 = vpop.f32.mrb[0].mxu0
        %v564 = vadd.f32 0.0, %v563
        %v565 = vpop.f32.mrb[0].mxu0
        %v566 = vadd.f32 0.0, %v565
        %v567 = vpop.f32.mrb[0].mxu0
        %v568 = vadd.f32 0.0, %v567
        %v569 = vpop.f32.mrb[0].mxu0
        %v570 = vadd.f32 0.0, %v569
        %571 = vmatprep.mubr.bf16.mxu0 0
        %572 = vmatmul.mubr.bf16.gmra.mrb[0].mxu0 %v370
        %v573 = vpop.f32.mrb[0].mxu0
        %v574 = vadd.f32 0.0, %v573
        %v575 = vpop.f32.mrb[0].mxu0
        %v576 = vadd.f32 0.0, %v575
        %v577 = vpop.f32.mrb[0].mxu0
        %v578 = vadd.f32 0.0, %v577
        %v579 = vpop.f32.mrb[0].mxu0
        %v580 = vadd.f32 0.0, %v579
        %581 = vmatprep.mubr.bf16.mxu0 0
        %582 = vmatmul.mubr.bf16.gmra.mrb[0].mxu0 %v371
        %v583 = vpop.f32.mrb[0].mxu0
        %v584 = vadd.f32 0.0, %v583
        %v585 = vpop.f32.mrb[0].mxu0
        %v586 = vadd.f32 0.0, %v585
        %v587 = vpop.f32.mrb[0].mxu0
        %v588 = vadd.f32 0.0, %v587
        %v589 = vpop.f32.mrb[0].mxu0
        %v590 = vadd.f32 0.0, %v589
        %591 = vmatprep.mubr.bf16.mxu0 0
        %592 = vmatmul.mubr.bf16.gmra.mrb[0].mxu0 %v372
        %v593 = vpop.f32.mrb[0].mxu0
        %v594 = vadd.f32 0.0, %v593
        %v595 = vpop.f32.mrb[0].mxu0
        %v596 = vadd.f32 0.0, %v595
        %v597 = vpop.f32.mrb[0].mxu0
        %v598 = vadd.f32 0.0, %v597
        %v599 = vpop.f32.mrb[0].mxu0
        %v600 = vadd.f32 0.0, %v599
        %601 = vmatprep.mubr.bf16.mxu0 0
        %602 = vmatmul.mubr.bf16.gmra.mrb[0].mxu0 %v373
        %v603 = vpop.f32.mrb[0].mxu0
        %v604 = vadd.f32 0.0, %v603
        %v605 = vpop.f32.mrb[0].mxu0
        %v606 = vadd.f32 0.0, %v605
        %v607 = vpop.f32.mrb[0].mxu0
        %v608 = vadd.f32 0.0, %v607
        %v609 = vpop.f32.mrb[0].mxu0
        %v610 = vadd.f32 0.0, %v609
        %611 = vmatprep.mubr.bf16.mxu0 0
        %612 = vmatmul.mubr.bf16.gmra.mrb[0].mxu0 %v374
        %v613 = vpop.f32.mrb[0].mxu0
        %v614 = vadd.f32 0.0, %v613
        %v615 = vpop.f32.mrb[0].mxu0
        %v616 = vadd.f32 0.0, %v615
        %v617 = vpop.f32.mrb[0].mxu0
        %v618 = vadd.f32 0.0, %v617
        %v619 = vpop.f32.mrb[0].mxu0
        %v620 = vadd.f32 0.0, %v619
        %621 = vmatprep.mubr.bf16.mxu0 0
        %622 = vmatmul.mubr.bf16.gmra.mrb[0].mxu0 %v375
        %v623 = vpop.f32.mrb[0].mxu0
        %v624 = vadd.f32 0.0, %v623
        %v625 = vpop.f32.mrb[0].mxu0
        %v626 = vadd.f32 0.0, %v625
        %v627 = vpop.f32.mrb[0].mxu0
        %v628 = vadd.f32 0.0, %v627
        %v629 = vpop.f32.mrb[0].mxu0
        %v630 = vadd.f32 0.0, %v629
        %631 = vmatprep.mubr.bf16.mxu0 0
        %632 = vmatmul.mubr.bf16.gmra.mrb[0].mxu0 %v376
        %v633 = vpop.f32.mrb[0].mxu0
        %v634 = vadd.f32 0.0, %v633
        %v635 = vpop.f32.mrb[0].mxu0
        %v636 = vadd.f32 0.0, %v635
        %v637 = vpop.f32.mrb[0].mxu0
        %v638 = vadd.f32 0.0, %v637
        %v639 = vpop.f32.mrb[0].mxu0
        %v640 = vadd.f32 0.0, %v639
        %641 = vmatprep.mubr.bf16.mxu0 0
        %642 = vmatmul.mubr.bf16.gmra.mrb[0].mxu0 %v377
        %v643 = vpop.f32.mrb[0].mxu0
        %v644 = vadd.f32 0.0, %v643
        %v645 = vpop.f32.mrb[0].mxu0
        %v646 = vadd.f32 0.0, %v645
        %v647 = vpop.f32.mrb[0].mxu0
        %v648 = vadd.f32 0.0, %v647
        %v649 = vpop.f32.mrb[0].mxu0
        %v650 = vadd.f32 0.0, %v649
        %651 = vmatprep.mubr.bf16.mxu0 0
        %652 = vmatmul.mubr.bf16.gmra.mrb[0].mxu0 %v378
        %v653 = vpop.f32.mrb[0].mxu0
        %v654 = vadd.f32 0.0, %v653
        %v655 = vpop.f32.mrb[0].mxu0
        %v656 = vadd.f32 0.0, %v655
        %v657 = vpop.f32.mrb[0].mxu0
        %v658 = vadd.f32 0.0, %v657
        %v659 = vpop.f32.mrb[0].mxu0
        %v660 = vadd.f32 0.0, %v659
        %661 = vmatprep.mubr.bf16.mxu0 0
        %662 = vmatmul.mubr.bf16.gmra.mrb[0].mxu0 %v379
        %v663 = vpop.f32.mrb[0].mxu0
        %v664 = vadd.f32 0.0, %v663
        %v665 = vpop.f32.mrb[0].mxu0
        %v666 = vadd.f32 0.0, %v665
        %v667 = vpop.f32.mrb[0].mxu0
        %v668 = vadd.f32 0.0, %v667
        %v669 = vpop.f32.mrb[0].mxu0
        %v670 = vadd.f32 0.0, %v669
        %671 = vmatprep.mubr.bf16.mxu0 0
        %672 = vmatmul.mubr.bf16.gmra.mrb[0].mxu0 %v380
        %v673 = vpop.f32.mrb[0].mxu0
        %v674 = vadd.f32 0.0, %v673
        %v675 = vpop.f32.mrb[0].mxu0
        %v676 = vadd.f32 0.0, %v675
        %v677 = vpop.f32.mrb[0].mxu0
        %v678 = vadd.f32 0.0, %v677
        %v679 = vpop.f32.mrb[0].mxu0
        %v680 = vadd.f32 0.0, %v679
        %681 = vmatprep.mubr.bf16.mxu0 0
        %682 = vmatmul.mubr.bf16.gmra.mrb[0].mxu0 %v381
        %v683 = vpop.f32.mrb[0].mxu0
        %v684 = vpop.f32.mrb[0].mxu0
        %v685 = vadd.f32 0.0, %v684
        %v686 = vpop.f32.mrb[0].mxu0
        %v687 = vpop.f32.mrb[0].mxu0
        %688 = vdwg.mxu0
        %v689 = vadd.f32 %v202, %v515
        %v690 = vadd.f32 %v203, %v518
        %v691 = vadd.f32 %v204, %v524
        %v692 = vadd.f32 %v205, %v528
        %v693 = vadd.f32 %v206, %v534
        %v694 = vadd.f32 %v207, %v538
        %v695 = vadd.f32 %v208, %v544
        %v696 = vadd.f32 %v209, %v548
        %v697 = vadd.f32 %v210, %v554
        %v698 = vadd.f32 %v211, %v558
        %v699 = vadd.f32 %v212, %v564
        %v700 = vadd.f32 %v213, %v568
        %v701 = vadd.f32 %v214, %v574
        %v702 = vadd.f32 %v215, %v578
        %v703 = vadd.f32 %v216, %v584
        %v704 = vadd.f32 %v217, %v588
        %v705 = vadd.f32 %v218, %v594
        %v706 = vadd.f32 %v219, %v598
        %v707 = vadd.f32 %v220, %v604
        %v708 = vadd.f32 %v221, %v608
        %v709 = vadd.f32 %v222, %v614
        %v710 = vadd.f32 %v223, %v618
        %v711 = vadd.f32 %v224, %v624
        %v712 = vadd.f32 %v225, %v628
        %v713 = vadd.f32 %v226, %v634
        %v714 = vadd.f32 %v227, %v638
        %v715 = vadd.f32 %v228, %v644
        %v716 = vadd.f32 %v229, %v648
        %v717 = vadd.f32 %v230, %v654
        %v718 = vadd.f32 %v231, %v658
        %v719 = vadd.f32 %v232, %v664
        %v720 = vadd.f32 %v233, %v668
        %vm754 = vcmask 1046528
        %v755 = vrot.slane %v515, 1
        %v756 = vrot.slane %v518, 1
        %v757 = vsel %vm754, %v755, %v756
        %v758 = vrot.slane %v524, 1
        %v759 = vsel %vm754, %v756, %v758
        %v760 = vrot.slane %v528, 1
        %v761 = vsel %vm754, %v758, %v760
        %v762 = vrot.slane %v534, 1
        %v763 = vsel %vm754, %v760, %v762
        %v764 = vrot.slane %v538, 1
        %v765 = vsel %vm754, %v762, %v764
        %v766 = vrot.slane %v544, 1
        %v767 = vsel %vm754, %v764, %v766
        %v768 = vrot.slane %v548, 1
        %v769 = vsel %vm754, %v766, %v768
        %v770 = vrot.slane %v554, 1
        %v771 = vsel %vm754, %v768, %v770
        %v772 = vrot.slane %v558, 1
        %v773 = vsel %vm754, %v770, %v772
        %v774 = vrot.slane %v564, 1
        %v775 = vsel %vm754, %v772, %v774
        %v776 = vrot.slane %v568, 1
        %v777 = vsel %vm754, %v774, %v776
        %v778 = vrot.slane %v574, 1
        %v779 = vsel %vm754, %v776, %v778
        %v780 = vrot.slane %v578, 1
        %v781 = vsel %vm754, %v778, %v780
        %v782 = vrot.slane %v584, 1
        %v783 = vsel %vm754, %v780, %v782
        %v784 = vrot.slane %v588, 1
        %v785 = vsel %vm754, %v782, %v784
        %v786 = vrot.slane %v594, 1
        %v787 = vsel %vm754, %v784, %v786
        %v788 = vrot.slane %v598, 1
        %v789 = vsel %vm754, %v786, %v788
        %v790 = vrot.slane %v604, 1
        %v791 = vsel %vm754, %v788, %v790
        %v792 = vrot.slane %v608, 1
        %v793 = vsel %vm754, %v790, %v792
        %v794 = vrot.slane %v614, 1
        %v795 = vsel %vm754, %v792, %v794
        %v796 = vrot.slane %v618, 1
        %v797 = vsel %vm754, %v794, %v796
        %v798 = vrot.slane %v624, 1
        %v799 = vsel %vm754, %v796, %v798
        %v800 = vrot.slane %v628, 1
        %v801 = vsel %vm754, %v798, %v800
        %v802 = vrot.slane %v634, 1
        %v803 = vsel %vm754, %v800, %v802
        %v804 = vrot.slane %v638, 1
        %v805 = vsel %vm754, %v802, %v804
        %v806 = vrot.slane %v644, 1
        %v807 = vsel %vm754, %v804, %v806
        %v808 = vrot.slane %v648, 1
        %v809 = vsel %vm754, %v806, %v808
        %v810 = vrot.slane %v654, 1
        %v811 = vsel %vm754, %v808, %v810
        %v812 = vrot.slane %v658, 1
        %v813 = vsel %vm754, %v810, %v812
        %v814 = vrot.slane %v664, 1
        %v815 = vsel %vm754, %v812, %v814
        %v816 = vrot.slane %v668, 1
        %v817 = vsel %vm754, %v814, %v816
        %v818 = vrot.slane %v674, 1
        %v819 = vsel %vm754, %v816, %v818
        %820 = vrot.lane.b32.xlu0 %v757, 118
        %v821 = vpop.permute.xlu0 %820
        %822 = vrot.lane.b32.xlu0 %v759, 118
        %v823 = vpop.permute.xlu0 %822
        %824 = vrot.lane.b32.xlu0 %v761, 118
        %v825 = vpop.permute.xlu0 %824
        %826 = vrot.lane.b32.xlu0 %v763, 118
        %v827 = vpop.permute.xlu0 %826
        %828 = vrot.lane.b32.xlu0 %v765, 118
        %v829 = vpop.permute.xlu0 %828
        %830 = vrot.lane.b32.xlu0 %v767, 118
        %v831 = vpop.permute.xlu0 %830
        %832 = vrot.lane.b32.xlu0 %v769, 118
        %v833 = vpop.permute.xlu0 %832
        %834 = vrot.lane.b32.xlu0 %v771, 118
        %v835 = vpop.permute.xlu0 %834
        %836 = vrot.lane.b32.xlu0 %v773, 118
        %v837 = vpop.permute.xlu0 %836
        %838 = vrot.lane.b32.xlu0 %v775, 118
        %v839 = vpop.permute.xlu0 %838
        %840 = vrot.lane.b32.xlu0 %v777, 118
        %v841 = vpop.permute.xlu0 %840
        %842 = vrot.lane.b32.xlu0 %v779, 118
        %v843 = vpop.permute.xlu0 %842
        %844 = vrot.lane.b32.xlu0 %v781, 118
        %v845 = vpop.permute.xlu0 %844
        %846 = vrot.lane.b32.xlu0 %v783, 118
        %v847 = vpop.permute.xlu0 %846
        %848 = vrot.lane.b32.xlu0 %v785, 118
        %v849 = vpop.permute.xlu0 %848
        %850 = vrot.lane.b32.xlu0 %v787, 118
        %v851 = vpop.permute.xlu0 %850
        %852 = vrot.lane.b32.xlu0 %v789, 118
        %v853 = vpop.permute.xlu0 %852
        %854 = vrot.lane.b32.xlu0 %v791, 118
        %v855 = vpop.permute.xlu0 %854
        %856 = vrot.lane.b32.xlu0 %v793, 118
        %v857 = vpop.permute.xlu0 %856
        %858 = vrot.lane.b32.xlu0 %v795, 118
        %v859 = vpop.permute.xlu0 %858
        %860 = vrot.lane.b32.xlu0 %v797, 118
        %v861 = vpop.permute.xlu0 %860
        %862 = vrot.lane.b32.xlu0 %v799, 118
        %v863 = vpop.permute.xlu0 %862
        %864 = vrot.lane.b32.xlu0 %v801, 118
        %v865 = vpop.permute.xlu0 %864
        %866 = vrot.lane.b32.xlu0 %v803, 118
        %v867 = vpop.permute.xlu0 %866
        %868 = vrot.lane.b32.xlu0 %v805, 118
        %v869 = vpop.permute.xlu0 %868
        %870 = vrot.lane.b32.xlu0 %v807, 118
        %v871 = vpop.permute.xlu0 %870
        %872 = vrot.lane.b32.xlu0 %v809, 118
        %v873 = vpop.permute.xlu0 %872
        %874 = vrot.lane.b32.xlu0 %v811, 118
        %v875 = vpop.permute.xlu0 %874
        %876 = vrot.lane.b32.xlu0 %v813, 118
        %v877 = vpop.permute.xlu0 %876
        %878 = vrot.lane.b32.xlu0 %v815, 118
        %v879 = vpop.permute.xlu0 %878
        %880 = vrot.lane.b32.xlu0 %v817, 118
        %v881 = vpop.permute.xlu0 %880
        %882 = vrot.lane.b32.xlu0 %v819, 118
        %v883 = vpop.permute.xlu0 %882
        %v916 = vadd.f32 %v689, %v821
        %v917 = vadd.f32 %v690, %v823
        %v918 = vadd.f32 %v691, %v825
        %v919 = vadd.f32 %v692, %v827
        %v920 = vadd.f32 %v693, %v829
        %v921 = vadd.f32 %v694, %v831
        %v922 = vadd.f32 %v695, %v833
        %v923 = vadd.f32 %v696, %v835
        %v924 = vadd.f32 %v697, %v837
        %v925 = vadd.f32 %v698, %v839
        %v926 = vadd.f32 %v699, %v841
        %v927 = vadd.f32 %v700, %v843
        %v928 = vadd.f32 %v701, %v845
        %v929 = vadd.f32 %v702, %v847
        %v930 = vadd.f32 %v703, %v849
        %v931 = vadd.f32 %v704, %v851
        %v932 = vadd.f32 %v705, %v853
        %v933 = vadd.f32 %v706, %v855
        %v934 = vadd.f32 %v707, %v857
        %v935 = vadd.f32 %v708, %v859
        %v936 = vadd.f32 %v709, %v861
        %v937 = vadd.f32 %v710, %v863
        %v938 = vadd.f32 %v711, %v865
        %v939 = vadd.f32 %v712, %v867
        %v940 = vadd.f32 %v713, %v869
        %v941 = vadd.f32 %v714, %v871
        %v942 = vadd.f32 %v715, %v873
        %v943 = vadd.f32 %v716, %v875
        %v944 = vadd.f32 %v717, %v877
        %v945 = vadd.f32 %v718, %v879
        %v946 = vadd.f32 %v719, %v881
        %v947 = vadd.f32 %v720, %v883
        %vm948 = vcmask 1045504
        %v949 = vrot.slane %v515, 2
        %v950 = vrot.slane %v518, 2
        %v951 = vsel %vm948, %v949, %v950
        %v952 = vrot.slane %v524, 2
        %v953 = vsel %vm948, %v950, %v952
        %v954 = vrot.slane %v528, 2
        %v955 = vsel %vm948, %v952, %v954
        %v956 = vrot.slane %v534, 2
        %v957 = vsel %vm948, %v954, %v956
        %v958 = vrot.slane %v538, 2
        %v959 = vsel %vm948, %v956, %v958
        %v960 = vrot.slane %v544, 2
        %v961 = vsel %vm948, %v958, %v960
        %v962 = vrot.slane %v548, 2
        %v963 = vsel %vm948, %v960, %v962
        %v964 = vrot.slane %v554, 2
        %v965 = vsel %vm948, %v962, %v964
        %v966 = vrot.slane %v558, 2
        %v967 = vsel %vm948, %v964, %v966
        %v968 = vrot.slane %v564, 2
        %v969 = vsel %vm948, %v966, %v968
        %v970 = vrot.slane %v568, 2
        %v971 = vsel %vm948, %v968, %v970
        %v972 = vrot.slane %v574, 2
        %v973 = vsel %vm948, %v970, %v972
        %v974 = vrot.slane %v578, 2
        %v975 = vsel %vm948, %v972, %v974
        %v976 = vrot.slane %v584, 2
        %v977 = vsel %vm948, %v974, %v976
        %v978 = vrot.slane %v588, 2
        %v979 = vsel %vm948, %v976, %v978
        %v980 = vrot.slane %v594, 2
        %v981 = vsel %vm948, %v978, %v980
        %v982 = vrot.slane %v598, 2
        %v983 = vsel %vm948, %v980, %v982
        %v984 = vrot.slane %v604, 2
        %v985 = vsel %vm948, %v982, %v984
        %v986 = vrot.slane %v608, 2
        %v987 = vsel %vm948, %v984, %v986
        %v988 = vrot.slane %v614, 2
        %v989 = vsel %vm948, %v986, %v988
        %v990 = vrot.slane %v618, 2
        %v991 = vsel %vm948, %v988, %v990
        %v992 = vrot.slane %v624, 2
        %v993 = vsel %vm948, %v990, %v992
        %v994 = vrot.slane %v628, 2
        %v995 = vsel %vm948, %v992, %v994
        %v996 = vrot.slane %v634, 2
        %v997 = vsel %vm948, %v994, %v996
        %v998 = vrot.slane %v638, 2
        %v999 = vsel %vm948, %v996, %v998
        %v1000 = vrot.slane %v644, 2
        %v1001 = vsel %vm948, %v998, %v1000
        %v1002 = vrot.slane %v648, 2
        %v1003 = vsel %vm948, %v1000, %v1002
        %v1004 = vrot.slane %v654, 2
        %v1005 = vsel %vm948, %v1002, %v1004
        %v1006 = vrot.slane %v658, 2
        %v1007 = vsel %vm948, %v1004, %v1006
        %v1008 = vrot.slane %v664, 2
        %v1009 = vsel %vm948, %v1006, %v1008
        %v1010 = vrot.slane %v668, 2
        %v1011 = vsel %vm948, %v1008, %v1010
        %v1012 = vrot.slane %v674, 2
        %v1013 = vsel %vm948, %v1010, %v1012
        %1014 = vrot.lane.b32.xlu0 %v951, 108
        %v1015 = vpop.permute.xlu0 %1014
        %1016 = vrot.lane.b32.xlu0 %v953, 108
        %v1017 = vpop.permute.xlu0 %1016
        %1018 = vrot.lane.b32.xlu0 %v955, 108
        %v1019 = vpop.permute.xlu0 %1018
        %1020 = vrot.lane.b32.xlu0 %v957, 108
        %v1021 = vpop.permute.xlu0 %1020
        %1022 = vrot.lane.b32.xlu0 %v959, 108
        %v1023 = vpop.permute.xlu0 %1022
        %1024 = vrot.lane.b32.xlu0 %v961, 108
        %v1025 = vpop.permute.xlu0 %1024
        %1026 = vrot.lane.b32.xlu0 %v963, 108
        %v1027 = vpop.permute.xlu0 %1026
        %1028 = vrot.lane.b32.xlu0 %v965, 108
        %v1029 = vpop.permute.xlu0 %1028
        %1030 = vrot.lane.b32.xlu0 %v967, 108
        %v1031 = vpop.permute.xlu0 %1030
        %1032 = vrot.lane.b32.xlu0 %v969, 108
        %v1033 = vpop.permute.xlu0 %1032
        %1034 = vrot.lane.b32.xlu0 %v971, 108
        %v1035 = vpop.permute.xlu0 %1034
        %1036 = vrot.lane.b32.xlu0 %v973, 108
        %v1037 = vpop.permute.xlu0 %1036
        %1038 = vrot.lane.b32.xlu0 %v975, 108
        %v1039 = vpop.permute.xlu0 %1038
        %1040 = vrot.lane.b32.xlu0 %v977, 108
        %v1041 = vpop.permute.xlu0 %1040
        %1042 = vrot.lane.b32.xlu0 %v979, 108
        %v1043 = vpop.permute.xlu0 %1042
        %1044 = vrot.lane.b32.xlu0 %v981, 108
        %v1045 = vpop.permute.xlu0 %1044
        %1046 = vrot.lane.b32.xlu0 %v983, 108
        %v1047 = vpop.permute.xlu0 %1046
        %1048 = vrot.lane.b32.xlu0 %v985, 108
        %v1049 = vpop.permute.xlu0 %1048
        %1050 = vrot.lane.b32.xlu0 %v987, 108
        %v1051 = vpop.permute.xlu0 %1050
        %1052 = vrot.lane.b32.xlu0 %v989, 108
        %v1053 = vpop.permute.xlu0 %1052
        %1054 = vrot.lane.b32.xlu0 %v991, 108
        %v1055 = vpop.permute.xlu0 %1054
        %1056 = vrot.lane.b32.xlu0 %v993, 108
        %v1057 = vpop.permute.xlu0 %1056
        %1058 = vrot.lane.b32.xlu0 %v995, 108
        %v1059 = vpop.permute.xlu0 %1058
        %1060 = vrot.lane.b32.xlu0 %v997, 108
        %v1061 = vpop.permute.xlu0 %1060
        %1062 = vrot.lane.b32.xlu0 %v999, 108
        %v1063 = vpop.permute.xlu0 %1062
        %1064 = vrot.lane.b32.xlu0 %v1001, 108
        %v1065 = vpop.permute.xlu0 %1064
        %1066 = vrot.lane.b32.xlu0 %v1003, 108
        %v1067 = vpop.permute.xlu0 %1066
        %1068 = vrot.lane.b32.xlu0 %v1005, 108
        %v1069 = vpop.permute.xlu0 %1068
        %1070 = vrot.lane.b32.xlu0 %v1007, 108
        %v1071 = vpop.permute.xlu0 %1070
        %1072 = vrot.lane.b32.xlu0 %v1009, 108
        %v1073 = vpop.permute.xlu0 %1072
        %1074 = vrot.lane.b32.xlu0 %v1011, 108
        %v1075 = vpop.permute.xlu0 %1074
        %1076 = vrot.lane.b32.xlu0 %v1013, 108
        %v1077 = vpop.permute.xlu0 %1076
        %v1110 = vadd.f32 %v916, %v1015
        %v1111 = vadd.f32 %v917, %v1017
        %v1112 = vadd.f32 %v918, %v1019
        %v1113 = vadd.f32 %v919, %v1021
        %v1114 = vadd.f32 %v920, %v1023
        %v1115 = vadd.f32 %v921, %v1025
        %v1116 = vadd.f32 %v922, %v1027
        %v1117 = vadd.f32 %v923, %v1029
        %v1118 = vadd.f32 %v924, %v1031
        %v1119 = vadd.f32 %v925, %v1033
        %v1120 = vadd.f32 %v926, %v1035
        %v1121 = vadd.f32 %v927, %v1037
        %v1122 = vadd.f32 %v928, %v1039
        %v1123 = vadd.f32 %v929, %v1041
        %v1124 = vadd.f32 %v930, %v1043
        %v1125 = vadd.f32 %v931, %v1045
        %v1126 = vadd.f32 %v932, %v1047
        %v1127 = vadd.f32 %v933, %v1049
        %v1128 = vadd.f32 %v934, %v1051
        %v1129 = vadd.f32 %v935, %v1053
        %v1130 = vadd.f32 %v936, %v1055
        %v1131 = vadd.f32 %v937, %v1057
        %v1132 = vadd.f32 %v938, %v1059
        %v1133 = vadd.f32 %v939, %v1061
        %v1134 = vadd.f32 %v940, %v1063
        %v1135 = vadd.f32 %v941, %v1065
        %v1136 = vadd.f32 %v942, %v1067
        %v1137 = vadd.f32 %v943, %v1069
        %v1138 = vadd.f32 %v944, %v1071
        %v1139 = vadd.f32 %v945, %v1073
        %v1140 = vadd.f32 %v946, %v1075
        %v1141 = vadd.f32 %v947, %v1077
        %vm1142 = vcmask 1044480
        %v1143 = vrot.slane %v515, 3
        %v1144 = vrot.slane %v518, 3
        %v1145 = vsel %vm1142, %v1143, %v1144
        %v1146 = vrot.slane %v524, 3
        %v1147 = vsel %vm1142, %v1144, %v1146
        %v1148 = vrot.slane %v528, 3
        %v1149 = vsel %vm1142, %v1146, %v1148
        %v1150 = vrot.slane %v534, 3
        %v1151 = vsel %vm1142, %v1148, %v1150
        %v1152 = vrot.slane %v538, 3
        %v1153 = vsel %vm1142, %v1150, %v1152
        %v1154 = vrot.slane %v544, 3
        %v1155 = vsel %vm1142, %v1152, %v1154
        %v1156 = vrot.slane %v548, 3
        %v1157 = vsel %vm1142, %v1154, %v1156
        %v1158 = vrot.slane %v554, 3
        %v1159 = vsel %vm1142, %v1156, %v1158
        %v1160 = vrot.slane %v558, 3
        %v1161 = vsel %vm1142, %v1158, %v1160
        %v1162 = vrot.slane %v564, 3
        %v1163 = vsel %vm1142, %v1160, %v1162
        %v1164 = vrot.slane %v568, 3
        %v1165 = vsel %vm1142, %v1162, %v1164
        %v1166 = vrot.slane %v574, 3
        %v1167 = vsel %vm1142, %v1164, %v1166
        %v1168 = vrot.slane %v578, 3
        %v1169 = vsel %vm1142, %v1166, %v1168
        %v1170 = vrot.slane %v584, 3
        %v1171 = vsel %vm1142, %v1168, %v1170
        %v1172 = vrot.slane %v588, 3
        %v1173 = vsel %vm1142, %v1170, %v1172
        %v1174 = vrot.slane %v594, 3
        %v1175 = vsel %vm1142, %v1172, %v1174
        %v1176 = vrot.slane %v598, 3
        %v1177 = vsel %vm1142, %v1174, %v1176
        %v1178 = vrot.slane %v604, 3
        %v1179 = vsel %vm1142, %v1176, %v1178
        %v1180 = vrot.slane %v608, 3
        %v1181 = vsel %vm1142, %v1178, %v1180
        %v1182 = vrot.slane %v614, 3
        %v1183 = vsel %vm1142, %v1180, %v1182
        %v1184 = vrot.slane %v618, 3
        %v1185 = vsel %vm1142, %v1182, %v1184
        %v1186 = vrot.slane %v624, 3
        %v1187 = vsel %vm1142, %v1184, %v1186
        %v1188 = vrot.slane %v628, 3
        %v1189 = vsel %vm1142, %v1186, %v1188
        %v1190 = vrot.slane %v634, 3
        %v1191 = vsel %vm1142, %v1188, %v1190
        %v1192 = vrot.slane %v638, 3
        %v1193 = vsel %vm1142, %v1190, %v1192
        %v1194 = vrot.slane %v644, 3
        %v1195 = vsel %vm1142, %v1192, %v1194
        %v1196 = vrot.slane %v648, 3
        %v1197 = vsel %vm1142, %v1194, %v1196
        %v1198 = vrot.slane %v654, 3
        %v1199 = vsel %vm1142, %v1196, %v1198
        %v1200 = vrot.slane %v658, 3
        %v1201 = vsel %vm1142, %v1198, %v1200
        %v1202 = vrot.slane %v664, 3
        %v1203 = vsel %vm1142, %v1200, %v1202
        %v1204 = vrot.slane %v668, 3
        %v1205 = vsel %vm1142, %v1202, %v1204
        %v1206 = vrot.slane %v674, 3
        %v1207 = vsel %vm1142, %v1204, %v1206
        %1208 = vrot.lane.b32.xlu0 %v1145, 98
        %v1209 = vpop.permute.xlu0 %1208
        %1210 = vrot.lane.b32.xlu0 %v1147, 98
        %v1211 = vpop.permute.xlu0 %1210
        %1212 = vrot.lane.b32.xlu0 %v1149, 98
        %v1213 = vpop.permute.xlu0 %1212
        %1214 = vrot.lane.b32.xlu0 %v1151, 98
        %v1215 = vpop.permute.xlu0 %1214
        %1216 = vrot.lane.b32.xlu0 %v1153, 98
        %v1217 = vpop.permute.xlu0 %1216
        %1218 = vrot.lane.b32.xlu0 %v1155, 98
        %v1219 = vpop.permute.xlu0 %1218
        %1220 = vrot.lane.b32.xlu0 %v1157, 98
        %v1221 = vpop.permute.xlu0 %1220
        %1222 = vrot.lane.b32.xlu0 %v1159, 98
        %v1223 = vpop.permute.xlu0 %1222
        %1224 = vrot.lane.b32.xlu0 %v1161, 98
        %v1225 = vpop.permute.xlu0 %1224
        %1226 = vrot.lane.b32.xlu0 %v1163, 98
        %v1227 = vpop.permute.xlu0 %1226
        %1228 = vrot.lane.b32.xlu0 %v1165, 98
        %v1229 = vpop.permute.xlu0 %1228
        %1230 = vrot.lane.b32.xlu0 %v1167, 98
        %v1231 = vpop.permute.xlu0 %1230
        %1232 = vrot.lane.b32.xlu0 %v1169, 98
        %v1233 = vpop.permute.xlu0 %1232
        %1234 = vrot.lane.b32.xlu0 %v1171, 98
        %v1235 = vpop.permute.xlu0 %1234
        %1236 = vrot.lane.b32.xlu0 %v1173, 98
        %v1237 = vpop.permute.xlu0 %1236
        %1238 = vrot.lane.b32.xlu0 %v1175, 98
        %v1239 = vpop.permute.xlu0 %1238
        %1240 = vrot.lane.b32.xlu0 %v1177, 98
        %v1241 = vpop.permute.xlu0 %1240
        %1242 = vrot.lane.b32.xlu0 %v1179, 98
        %v1243 = vpop.permute.xlu0 %1242
        %1244 = vrot.lane.b32.xlu0 %v1181, 98
        %v1245 = vpop.permute.xlu0 %1244
        %1246 = vrot.lane.b32.xlu0 %v1183, 98
        %v1247 = vpop.permute.xlu0 %1246
        %1248 = vrot.lane.b32.xlu0 %v1185, 98
        %v1249 = vpop.permute.xlu0 %1248
        %1250 = vrot.lane.b32.xlu0 %v1187, 98
        %v1251 = vpop.permute.xlu0 %1250
        %1252 = vrot.lane.b32.xlu0 %v1189, 98
        %v1253 = vpop.permute.xlu0 %1252
        %1254 = vrot.lane.b32.xlu0 %v1191, 98
        %v1255 = vpop.permute.xlu0 %1254
        %1256 = vrot.lane.b32.xlu0 %v1193, 98
        %v1257 = vpop.permute.xlu0 %1256
        %1258 = vrot.lane.b32.xlu0 %v1195, 98
        %v1259 = vpop.permute.xlu0 %1258
        %1260 = vrot.lane.b32.xlu0 %v1197, 98
        %v1261 = vpop.permute.xlu0 %1260
        %1262 = vrot.lane.b32.xlu0 %v1199, 98
        %v1263 = vpop.permute.xlu0 %1262
        %1264 = vrot.lane.b32.xlu0 %v1201, 98
        %v1265 = vpop.permute.xlu0 %1264
        %1266 = vrot.lane.b32.xlu0 %v1203, 98
        %v1267 = vpop.permute.xlu0 %1266
        %1268 = vrot.lane.b32.xlu0 %v1205, 98
        %v1269 = vpop.permute.xlu0 %1268
        %1270 = vrot.lane.b32.xlu0 %v1207, 98
        %v1271 = vpop.permute.xlu0 %1270
        %v1304 = vadd.f32 %v1110, %v1209
        %v1305 = vadd.f32 %v1111, %v1211
        %v1306 = vadd.f32 %v1112, %v1213
        %v1307 = vadd.f32 %v1113, %v1215
        %v1308 = vadd.f32 %v1114, %v1217
        %v1309 = vadd.f32 %v1115, %v1219
        %v1310 = vadd.f32 %v1116, %v1221
        %v1311 = vadd.f32 %v1117, %v1223
        %v1312 = vadd.f32 %v1118, %v1225
        %v1313 = vadd.f32 %v1119, %v1227
        %v1314 = vadd.f32 %v1120, %v1229
        %v1315 = vadd.f32 %v1121, %v1231
        %v1316 = vadd.f32 %v1122, %v1233
        %v1317 = vadd.f32 %v1123, %v1235
        %v1318 = vadd.f32 %v1124, %v1237
        %v1319 = vadd.f32 %v1125, %v1239
        %v1320 = vadd.f32 %v1126, %v1241
        %v1321 = vadd.f32 %v1127, %v1243
        %v1322 = vadd.f32 %v1128, %v1245
        %v1323 = vadd.f32 %v1129, %v1247
        %v1324 = vadd.f32 %v1130, %v1249
        %v1325 = vadd.f32 %v1131, %v1251
        %v1326 = vadd.f32 %v1132, %v1253
        %v1327 = vadd.f32 %v1133, %v1255
        %v1328 = vadd.f32 %v1134, %v1257
        %v1329 = vadd.f32 %v1135, %v1259
        %v1330 = vadd.f32 %v1136, %v1261
        %v1331 = vadd.f32 %v1137, %v1263
        %v1332 = vadd.f32 %v1138, %v1265
        %v1333 = vadd.f32 %v1139, %v1267
        %v1334 = vadd.f32 %v1140, %v1269
        %v1335 = vadd.f32 %v1141, %v1271
        %vm1336 = vcmask 1043456
        %v1337 = vrot.slane %v515, 4
        %v1338 = vrot.slane %v518, 4
        %v1339 = vsel %vm1336, %v1337, %v1338
        %v1340 = vrot.slane %v524, 4
        %v1341 = vsel %vm1336, %v1338, %v1340
        %v1342 = vrot.slane %v528, 4
        %v1343 = vsel %vm1336, %v1340, %v1342
        %v1344 = vrot.slane %v534, 4
        %v1345 = vsel %vm1336, %v1342, %v1344
        %v1346 = vrot.slane %v538, 4
        %v1347 = vsel %vm1336, %v1344, %v1346
        %v1348 = vrot.slane %v544, 4
        %v1349 = vsel %vm1336, %v1346, %v1348
        %v1350 = vrot.slane %v548, 4
        %v1351 = vsel %vm1336, %v1348, %v1350
        %v1352 = vrot.slane %v554, 4
        %v1353 = vsel %vm1336, %v1350, %v1352
        %v1354 = vrot.slane %v558, 4
        %v1355 = vsel %vm1336, %v1352, %v1354
        %v1356 = vrot.slane %v564, 4
        %v1357 = vsel %vm1336, %v1354, %v1356
        %v1358 = vrot.slane %v568, 4
        %v1359 = vsel %vm1336, %v1356, %v1358
        %v1360 = vrot.slane %v574, 4
        %v1361 = vsel %vm1336, %v1358, %v1360
        %v1362 = vrot.slane %v578, 4
        %v1363 = vsel %vm1336, %v1360, %v1362
        %v1364 = vrot.slane %v584, 4
        %v1365 = vsel %vm1336, %v1362, %v1364
        %v1366 = vrot.slane %v588, 4
        %v1367 = vsel %vm1336, %v1364, %v1366
        %v1368 = vrot.slane %v594, 4
        %v1369 = vsel %vm1336, %v1366, %v1368
        %v1370 = vrot.slane %v598, 4
        %v1371 = vsel %vm1336, %v1368, %v1370
        %v1372 = vrot.slane %v604, 4
        %v1373 = vsel %vm1336, %v1370, %v1372
        %v1374 = vrot.slane %v608, 4
        %v1375 = vsel %vm1336, %v1372, %v1374
        %v1376 = vrot.slane %v614, 4
        %v1377 = vsel %vm1336, %v1374, %v1376
        %v1378 = vrot.slane %v618, 4
        %v1379 = vsel %vm1336, %v1376, %v1378
        %v1380 = vrot.slane %v624, 4
        %v1381 = vsel %vm1336, %v1378, %v1380
        %v1382 = vrot.slane %v628, 4
        %v1383 = vsel %vm1336, %v1380, %v1382
        %v1384 = vrot.slane %v634, 4
        %v1385 = vsel %vm1336, %v1382, %v1384
        %v1386 = vrot.slane %v638, 4
        %v1387 = vsel %vm1336, %v1384, %v1386
        %v1388 = vrot.slane %v644, 4
        %v1389 = vsel %vm1336, %v1386, %v1388
        %v1390 = vrot.slane %v648, 4
        %v1391 = vsel %vm1336, %v1388, %v1390
        %v1392 = vrot.slane %v654, 4
        %v1393 = vsel %vm1336, %v1390, %v1392
        %v1394 = vrot.slane %v658, 4
        %v1395 = vsel %vm1336, %v1392, %v1394
        %v1396 = vrot.slane %v664, 4
        %v1397 = vsel %vm1336, %v1394, %v1396
        %v1398 = vrot.slane %v668, 4
        %v1399 = vsel %vm1336, %v1396, %v1398
        %v1400 = vrot.slane %v674, 4
        %v1401 = vsel %vm1336, %v1398, %v1400
        %1402 = vrot.lane.b32.xlu0 %v1339, 88
        %v1403 = vpop.permute.xlu0 %1402
        %1404 = vrot.lane.b32.xlu0 %v1341, 88
        %v1405 = vpop.permute.xlu0 %1404
        %1406 = vrot.lane.b32.xlu0 %v1343, 88
        %v1407 = vpop.permute.xlu0 %1406
        %1408 = vrot.lane.b32.xlu0 %v1345, 88
        %v1409 = vpop.permute.xlu0 %1408
        %1410 = vrot.lane.b32.xlu0 %v1347, 88
        %v1411 = vpop.permute.xlu0 %1410
        %1412 = vrot.lane.b32.xlu0 %v1349, 88
        %v1413 = vpop.permute.xlu0 %1412
        %1414 = vrot.lane.b32.xlu0 %v1351, 88
        %v1415 = vpop.permute.xlu0 %1414
        %1416 = vrot.lane.b32.xlu0 %v1353, 88
        %v1417 = vpop.permute.xlu0 %1416
        %1418 = vrot.lane.b32.xlu0 %v1355, 88
        %v1419 = vpop.permute.xlu0 %1418
        %1420 = vrot.lane.b32.xlu0 %v1357, 88
        %v1421 = vpop.permute.xlu0 %1420
        %1422 = vrot.lane.b32.xlu0 %v1359, 88
        %v1423 = vpop.permute.xlu0 %1422
        %1424 = vrot.lane.b32.xlu0 %v1361, 88
        %v1425 = vpop.permute.xlu0 %1424
        %1426 = vrot.lane.b32.xlu0 %v1363, 88
        %v1427 = vpop.permute.xlu0 %1426
        %1428 = vrot.lane.b32.xlu0 %v1365, 88
        %v1429 = vpop.permute.xlu0 %1428
        %1430 = vrot.lane.b32.xlu0 %v1367, 88
        %v1431 = vpop.permute.xlu0 %1430
        %1432 = vrot.lane.b32.xlu0 %v1369, 88
        %v1433 = vpop.permute.xlu0 %1432
        %1434 = vrot.lane.b32.xlu0 %v1371, 88
        %v1435 = vpop.permute.xlu0 %1434
        %1436 = vrot.lane.b32.xlu0 %v1373, 88
        %v1437 = vpop.permute.xlu0 %1436
        %1438 = vrot.lane.b32.xlu0 %v1375, 88
        %v1439 = vpop.permute.xlu0 %1438
        %1440 = vrot.lane.b32.xlu0 %v1377, 88
        %v1441 = vpop.permute.xlu0 %1440
        %1442 = vrot.lane.b32.xlu0 %v1379, 88
        %v1443 = vpop.permute.xlu0 %1442
        %1444 = vrot.lane.b32.xlu0 %v1381, 88
        %v1445 = vpop.permute.xlu0 %1444
        %1446 = vrot.lane.b32.xlu0 %v1383, 88
        %v1447 = vpop.permute.xlu0 %1446
        %1448 = vrot.lane.b32.xlu0 %v1385, 88
        %v1449 = vpop.permute.xlu0 %1448
        %1450 = vrot.lane.b32.xlu0 %v1387, 88
        %v1451 = vpop.permute.xlu0 %1450
        %1452 = vrot.lane.b32.xlu0 %v1389, 88
        %v1453 = vpop.permute.xlu0 %1452
        %1454 = vrot.lane.b32.xlu0 %v1391, 88
        %v1455 = vpop.permute.xlu0 %1454
        %1456 = vrot.lane.b32.xlu0 %v1393, 88
        %v1457 = vpop.permute.xlu0 %1456
        %1458 = vrot.lane.b32.xlu0 %v1395, 88
        %v1459 = vpop.permute.xlu0 %1458
        %1460 = vrot.lane.b32.xlu0 %v1397, 88
        %v1461 = vpop.permute.xlu0 %1460
        %1462 = vrot.lane.b32.xlu0 %v1399, 88
        %v1463 = vpop.permute.xlu0 %1462
        %1464 = vrot.lane.b32.xlu0 %v1401, 88
        %v1465 = vpop.permute.xlu0 %1464
        %v1498 = vadd.f32 %v1304, %v1403
        %v1499 = vadd.f32 %v1305, %v1405
        %v1500 = vadd.f32 %v1306, %v1407
        %v1501 = vadd.f32 %v1307, %v1409
        %v1502 = vadd.f32 %v1308, %v1411
        %v1503 = vadd.f32 %v1309, %v1413
        %v1504 = vadd.f32 %v1310, %v1415
        %v1505 = vadd.f32 %v1311, %v1417
        %v1506 = vadd.f32 %v1312, %v1419
        %v1507 = vadd.f32 %v1313, %v1421
        %v1508 = vadd.f32 %v1314, %v1423
        %v1509 = vadd.f32 %v1315, %v1425
        %v1510 = vadd.f32 %v1316, %v1427
        %v1511 = vadd.f32 %v1317, %v1429
        %v1512 = vadd.f32 %v1318, %v1431
        %v1513 = vadd.f32 %v1319, %v1433
        %v1514 = vadd.f32 %v1320, %v1435
        %v1515 = vadd.f32 %v1321, %v1437
        %v1516 = vadd.f32 %v1322, %v1439
        %v1517 = vadd.f32 %v1323, %v1441
        %v1518 = vadd.f32 %v1324, %v1443
        %v1519 = vadd.f32 %v1325, %v1445
        %v1520 = vadd.f32 %v1326, %v1447
        %v1521 = vadd.f32 %v1327, %v1449
        %v1522 = vadd.f32 %v1328, %v1451
        %v1523 = vadd.f32 %v1329, %v1453
        %v1524 = vadd.f32 %v1330, %v1455
        %v1525 = vadd.f32 %v1331, %v1457
        %v1526 = vadd.f32 %v1332, %v1459
        %v1527 = vadd.f32 %v1333, %v1461
        %v1528 = vadd.f32 %v1334, %v1463
        %v1529 = vadd.f32 %v1335, %v1465
        %vm1530 = vcmask 1042432
        %v1531 = vrot.slane %v515, 5
        %v1532 = vrot.slane %v518, 5
        %v1533 = vsel %vm1530, %v1531, %v1532
        %v1534 = vrot.slane %v524, 5
        %v1535 = vsel %vm1530, %v1532, %v1534
        %v1536 = vrot.slane %v528, 5
        %v1537 = vsel %vm1530, %v1534, %v1536
        %v1538 = vrot.slane %v534, 5
        %v1539 = vsel %vm1530, %v1536, %v1538
        %v1540 = vrot.slane %v538, 5
        %v1541 = vsel %vm1530, %v1538, %v1540
        %v1542 = vrot.slane %v544, 5
        %v1543 = vsel %vm1530, %v1540, %v1542
        %v1544 = vrot.slane %v548, 5
        %v1545 = vsel %vm1530, %v1542, %v1544
        %v1546 = vrot.slane %v554, 5
        %v1547 = vsel %vm1530, %v1544, %v1546
        %v1548 = vrot.slane %v558, 5
        %v1549 = vsel %vm1530, %v1546, %v1548
        %v1550 = vrot.slane %v564, 5
        %v1551 = vsel %vm1530, %v1548, %v1550
        %v1552 = vrot.slane %v568, 5
        %v1553 = vsel %vm1530, %v1550, %v1552
        %v1554 = vrot.slane %v574, 5
        %v1555 = vsel %vm1530, %v1552, %v1554
        %v1556 = vrot.slane %v578, 5
        %v1557 = vsel %vm1530, %v1554, %v1556
        %v1558 = vrot.slane %v584, 5
        %v1559 = vsel %vm1530, %v1556, %v1558
        %v1560 = vrot.slane %v588, 5
        %v1561 = vsel %vm1530, %v1558, %v1560
        %v1562 = vrot.slane %v594, 5
        %v1563 = vsel %vm1530, %v1560, %v1562
        %v1564 = vrot.slane %v598, 5
        %v1565 = vsel %vm1530, %v1562, %v1564
        %v1566 = vrot.slane %v604, 5
        %v1567 = vsel %vm1530, %v1564, %v1566
        %v1568 = vrot.slane %v608, 5
        %v1569 = vsel %vm1530, %v1566, %v1568
        %v1570 = vrot.slane %v614, 5
        %v1571 = vsel %vm1530, %v1568, %v1570
        %v1572 = vrot.slane %v618, 5
        %v1573 = vsel %vm1530, %v1570, %v1572
        %v1574 = vrot.slane %v624, 5
        %v1575 = vsel %vm1530, %v1572, %v1574
        %v1576 = vrot.slane %v628, 5
        %v1577 = vsel %vm1530, %v1574, %v1576
        %v1578 = vrot.slane %v634, 5
        %v1579 = vsel %vm1530, %v1576, %v1578
        %v1580 = vrot.slane %v638, 5
        %v1581 = vsel %vm1530, %v1578, %v1580
        %v1582 = vrot.slane %v644, 5
        %v1583 = vsel %vm1530, %v1580, %v1582
        %v1584 = vrot.slane %v648, 5
        %v1585 = vsel %vm1530, %v1582, %v1584
        %v1586 = vrot.slane %v654, 5
        %v1587 = vsel %vm1530, %v1584, %v1586
        %v1588 = vrot.slane %v658, 5
        %v1589 = vsel %vm1530, %v1586, %v1588
        %v1590 = vrot.slane %v664, 5
        %v1591 = vsel %vm1530, %v1588, %v1590
        %v1592 = vrot.slane %v668, 5
        %v1593 = vsel %vm1530, %v1590, %v1592
        %v1594 = vrot.slane %v674, 5
        %v1595 = vsel %vm1530, %v1592, %v1594
        %1596 = vrot.lane.b32.xlu0 %v1533, 78
        %v1597 = vpop.permute.xlu0 %1596
        %1598 = vrot.lane.b32.xlu0 %v1535, 78
        %v1599 = vpop.permute.xlu0 %1598
        %1600 = vrot.lane.b32.xlu0 %v1537, 78
        %v1601 = vpop.permute.xlu0 %1600
        %1602 = vrot.lane.b32.xlu0 %v1539, 78
        %v1603 = vpop.permute.xlu0 %1602
        %1604 = vrot.lane.b32.xlu0 %v1541, 78
        %v1605 = vpop.permute.xlu0 %1604
        %1606 = vrot.lane.b32.xlu0 %v1543, 78
        %v1607 = vpop.permute.xlu0 %1606
        %1608 = vrot.lane.b32.xlu0 %v1545, 78
        %v1609 = vpop.permute.xlu0 %1608
        %1610 = vrot.lane.b32.xlu0 %v1547, 78
        %v1611 = vpop.permute.xlu0 %1610
        %1612 = vrot.lane.b32.xlu0 %v1549, 78
        %v1613 = vpop.permute.xlu0 %1612
        %1614 = vrot.lane.b32.xlu0 %v1551, 78
        %v1615 = vpop.permute.xlu0 %1614
        %1616 = vrot.lane.b32.xlu0 %v1553, 78
        %v1617 = vpop.permute.xlu0 %1616
        %1618 = vrot.lane.b32.xlu0 %v1555, 78
        %v1619 = vpop.permute.xlu0 %1618
        %1620 = vrot.lane.b32.xlu0 %v1557, 78
        %v1621 = vpop.permute.xlu0 %1620
        %1622 = vrot.lane.b32.xlu0 %v1559, 78
        %v1623 = vpop.permute.xlu0 %1622
        %1624 = vrot.lane.b32.xlu0 %v1561, 78
        %v1625 = vpop.permute.xlu0 %1624
        %1626 = vrot.lane.b32.xlu0 %v1563, 78
        %v1627 = vpop.permute.xlu0 %1626
        %1628 = vrot.lane.b32.xlu0 %v1565, 78
        %v1629 = vpop.permute.xlu0 %1628
        %1630 = vrot.lane.b32.xlu0 %v1567, 78
        %v1631 = vpop.permute.xlu0 %1630
        %1632 = vrot.lane.b32.xlu0 %v1569, 78
        %v1633 = vpop.permute.xlu0 %1632
        %1634 = vrot.lane.b32.xlu0 %v1571, 78
        %v1635 = vpop.permute.xlu0 %1634
        %1636 = vrot.lane.b32.xlu0 %v1573, 78
        %v1637 = vpop.permute.xlu0 %1636
        %1638 = vrot.lane.b32.xlu0 %v1575, 78
        %v1639 = vpop.permute.xlu0 %1638
        %1640 = vrot.lane.b32.xlu0 %v1577, 78
        %v1641 = vpop.permute.xlu0 %1640
        %1642 = vrot.lane.b32.xlu0 %v1579, 78
        %v1643 = vpop.permute.xlu0 %1642
        %1644 = vrot.lane.b32.xlu0 %v1581, 78
        %v1645 = vpop.permute.xlu0 %1644
        %1646 = vrot.lane.b32.xlu0 %v1583, 78
        %v1647 = vpop.permute.xlu0 %1646
        %1648 = vrot.lane.b32.xlu0 %v1585, 78
        %v1649 = vpop.permute.xlu0 %1648
        %1650 = vrot.lane.b32.xlu0 %v1587, 78
        %v1651 = vpop.permute.xlu0 %1650
        %1652 = vrot.lane.b32.xlu0 %v1589, 78
        %v1653 = vpop.permute.xlu0 %1652
        %1654 = vrot.lane.b32.xlu0 %v1591, 78
        %v1655 = vpop.permute.xlu0 %1654
        %1656 = vrot.lane.b32.xlu0 %v1593, 78
        %v1657 = vpop.permute.xlu0 %1656
        %1658 = vrot.lane.b32.xlu0 %v1595, 78
        %v1659 = vpop.permute.xlu0 %1658
        %v1692 = vadd.f32 %v1498, %v1597
        %v1693 = vadd.f32 %v1499, %v1599
        %v1694 = vadd.f32 %v1500, %v1601
        %v1695 = vadd.f32 %v1501, %v1603
        %v1696 = vadd.f32 %v1502, %v1605
        %v1697 = vadd.f32 %v1503, %v1607
        %v1698 = vadd.f32 %v1504, %v1609
        %v1699 = vadd.f32 %v1505, %v1611
        %v1700 = vadd.f32 %v1506, %v1613
        %v1701 = vadd.f32 %v1507, %v1615
        %v1702 = vadd.f32 %v1508, %v1617
        %v1703 = vadd.f32 %v1509, %v1619
        %v1704 = vadd.f32 %v1510, %v1621
        %v1705 = vadd.f32 %v1511, %v1623
        %v1706 = vadd.f32 %v1512, %v1625
        %v1707 = vadd.f32 %v1513, %v1627
        %v1708 = vadd.f32 %v1514, %v1629
        %v1709 = vadd.f32 %v1515, %v1631
        %v1710 = vadd.f32 %v1516, %v1633
        %v1711 = vadd.f32 %v1517, %v1635
        %v1712 = vadd.f32 %v1518, %v1637
        %v1713 = vadd.f32 %v1519, %v1639
        %v1714 = vadd.f32 %v1520, %v1641
        %v1715 = vadd.f32 %v1521, %v1643
        %v1716 = vadd.f32 %v1522, %v1645
        %v1717 = vadd.f32 %v1523, %v1647
        %v1718 = vadd.f32 %v1524, %v1649
        %v1719 = vadd.f32 %v1525, %v1651
        %v1720 = vadd.f32 %v1526, %v1653
        %v1721 = vadd.f32 %v1527, %v1655
        %v1722 = vadd.f32 %v1528, %v1657
        %v1723 = vadd.f32 %v1529, %v1659
        %vm1724 = vcmask 1041408
        %v1725 = vrot.slane %v515, 6
        %v1726 = vrot.slane %v518, 6
        %v1727 = vsel %vm1724, %v1725, %v1726
        %v1728 = vrot.slane %v524, 6
        %v1729 = vsel %vm1724, %v1726, %v1728
        %v1730 = vrot.slane %v528, 6
        %v1731 = vsel %vm1724, %v1728, %v1730
        %v1732 = vrot.slane %v534, 6
        %v1733 = vsel %vm1724, %v1730, %v1732
        %v1734 = vrot.slane %v538, 6
        %v1735 = vsel %vm1724, %v1732, %v1734
        %v1736 = vrot.slane %v544, 6
        %v1737 = vsel %vm1724, %v1734, %v1736
        %v1738 = vrot.slane %v548, 6
        %v1739 = vsel %vm1724, %v1736, %v1738
        %v1740 = vrot.slane %v554, 6
        %v1741 = vsel %vm1724, %v1738, %v1740
        %v1742 = vrot.slane %v558, 6
        %v1743 = vsel %vm1724, %v1740, %v1742
        %v1744 = vrot.slane %v564, 6
        %v1745 = vsel %vm1724, %v1742, %v1744
        %v1746 = vrot.slane %v568, 6
        %v1747 = vsel %vm1724, %v1744, %v1746
        %v1748 = vrot.slane %v574, 6
        %v1749 = vsel %vm1724, %v1746, %v1748
        %v1750 = vrot.slane %v578, 6
        %v1751 = vsel %vm1724, %v1748, %v1750
        %v1752 = vrot.slane %v584, 6
        %v1753 = vsel %vm1724, %v1750, %v1752
        %v1754 = vrot.slane %v588, 6
        %v1755 = vsel %vm1724, %v1752, %v1754
        %v1756 = vrot.slane %v594, 6
        %v1757 = vsel %vm1724, %v1754, %v1756
        %v1758 = vrot.slane %v598, 6
        %v1759 = vsel %vm1724, %v1756, %v1758
        %v1760 = vrot.slane %v604, 6
        %v1761 = vsel %vm1724, %v1758, %v1760
        %v1762 = vrot.slane %v608, 6
        %v1763 = vsel %vm1724, %v1760, %v1762
        %v1764 = vrot.slane %v614, 6
        %v1765 = vsel %vm1724, %v1762, %v1764
        %v1766 = vrot.slane %v618, 6
        %v1767 = vsel %vm1724, %v1764, %v1766
        %v1768 = vrot.slane %v624, 6
        %v1769 = vsel %vm1724, %v1766, %v1768
        %v1770 = vrot.slane %v628, 6
        %v1771 = vsel %vm1724, %v1768, %v1770
        %v1772 = vrot.slane %v634, 6
        %v1773 = vsel %vm1724, %v1770, %v1772
        %v1774 = vrot.slane %v638, 6
        %v1775 = vsel %vm1724, %v1772, %v1774
        %v1776 = vrot.slane %v644, 6
        %v1777 = vsel %vm1724, %v1774, %v1776
        %v1778 = vrot.slane %v648, 6
        %v1779 = vsel %vm1724, %v1776, %v1778
        %v1780 = vrot.slane %v654, 6
        %v1781 = vsel %vm1724, %v1778, %v1780
        %v1782 = vrot.slane %v658, 6
        %v1783 = vsel %vm1724, %v1780, %v1782
        %v1784 = vrot.slane %v664, 6
        %v1785 = vsel %vm1724, %v1782, %v1784
        %v1786 = vrot.slane %v668, 6
        %v1787 = vsel %vm1724, %v1784, %v1786
        %v1788 = vrot.slane %v674, 6
        %v1789 = vsel %vm1724, %v1786, %v1788
        %1790 = vrot.lane.b32.xlu0 %v1727, 68
        %v1791 = vpop.permute.xlu0 %1790
        %1792 = vrot.lane.b32.xlu0 %v1729, 68
        %v1793 = vpop.permute.xlu0 %1792
        %1794 = vrot.lane.b32.xlu0 %v1731, 68
        %v1795 = vpop.permute.xlu0 %1794
        %1796 = vrot.lane.b32.xlu0 %v1733, 68
        %v1797 = vpop.permute.xlu0 %1796
        %1798 = vrot.lane.b32.xlu0 %v1735, 68
        %v1799 = vpop.permute.xlu0 %1798
        %1800 = vrot.lane.b32.xlu0 %v1737, 68
        %v1801 = vpop.permute.xlu0 %1800
        %1802 = vrot.lane.b32.xlu0 %v1739, 68
        %v1803 = vpop.permute.xlu0 %1802
        %1804 = vrot.lane.b32.xlu0 %v1741, 68
        %v1805 = vpop.permute.xlu0 %1804
        %1806 = vrot.lane.b32.xlu0 %v1743, 68
        %v1807 = vpop.permute.xlu0 %1806
        %1808 = vrot.lane.b32.xlu0 %v1745, 68
        %v1809 = vpop.permute.xlu0 %1808
        %1810 = vrot.lane.b32.xlu0 %v1747, 68
        %v1811 = vpop.permute.xlu0 %1810
        %1812 = vrot.lane.b32.xlu0 %v1749, 68
        %v1813 = vpop.permute.xlu0 %1812
        %1814 = vrot.lane.b32.xlu0 %v1751, 68
        %v1815 = vpop.permute.xlu0 %1814
        %1816 = vrot.lane.b32.xlu0 %v1753, 68
        %v1817 = vpop.permute.xlu0 %1816
        %1818 = vrot.lane.b32.xlu0 %v1755, 68
        %v1819 = vpop.permute.xlu0 %1818
        %1820 = vrot.lane.b32.xlu0 %v1757, 68
        %v1821 = vpop.permute.xlu0 %1820
        %1822 = vrot.lane.b32.xlu0 %v1759, 68
        %v1823 = vpop.permute.xlu0 %1822
        %1824 = vrot.lane.b32.xlu0 %v1761, 68
        %v1825 = vpop.permute.xlu0 %1824
        %1826 = vrot.lane.b32.xlu0 %v1763, 68
        %v1827 = vpop.permute.xlu0 %1826
        %1828 = vrot.lane.b32.xlu0 %v1765, 68
        %v1829 = vpop.permute.xlu0 %1828
        %1830 = vrot.lane.b32.xlu0 %v1767, 68
        %v1831 = vpop.permute.xlu0 %1830
        %1832 = vrot.lane.b32.xlu0 %v1769, 68
        %v1833 = vpop.permute.xlu0 %1832
        %1834 = vrot.lane.b32.xlu0 %v1771, 68
        %v1835 = vpop.permute.xlu0 %1834
        %1836 = vrot.lane.b32.xlu0 %v1773, 68
        %v1837 = vpop.permute.xlu0 %1836
        %1838 = vrot.lane.b32.xlu0 %v1775, 68
        %v1839 = vpop.permute.xlu0 %1838
        %1840 = vrot.lane.b32.xlu0 %v1777, 68
        %v1841 = vpop.permute.xlu0 %1840
        %1842 = vrot.lane.b32.xlu0 %v1779, 68
        %v1843 = vpop.permute.xlu0 %1842
        %1844 = vrot.lane.b32.xlu0 %v1781, 68
        %v1845 = vpop.permute.xlu0 %1844
        %1846 = vrot.lane.b32.xlu0 %v1783, 68
        %v1847 = vpop.permute.xlu0 %1846
        %1848 = vrot.lane.b32.xlu0 %v1785, 68
        %v1849 = vpop.permute.xlu0 %1848
        %1850 = vrot.lane.b32.xlu0 %v1787, 68
        %v1851 = vpop.permute.xlu0 %1850
        %1852 = vrot.lane.b32.xlu0 %v1789, 68
        %v1853 = vpop.permute.xlu0 %1852
        %v1886 = vadd.f32 %v1692, %v1791
        %v1887 = vadd.f32 %v1693, %v1793
        %v1888 = vadd.f32 %v1694, %v1795
        %v1889 = vadd.f32 %v1695, %v1797
        %v1890 = vadd.f32 %v1696, %v1799
        %v1891 = vadd.f32 %v1697, %v1801
        %v1892 = vadd.f32 %v1698, %v1803
        %v1893 = vadd.f32 %v1699, %v1805
        %v1894 = vadd.f32 %v1700, %v1807
        %v1895 = vadd.f32 %v1701, %v1809
        %v1896 = vadd.f32 %v1702, %v1811
        %v1897 = vadd.f32 %v1703, %v1813
        %v1898 = vadd.f32 %v1704, %v1815
        %v1899 = vadd.f32 %v1705, %v1817
        %v1900 = vadd.f32 %v1706, %v1819
        %v1901 = vadd.f32 %v1707, %v1821
        %v1902 = vadd.f32 %v1708, %v1823
        %v1903 = vadd.f32 %v1709, %v1825
        %v1904 = vadd.f32 %v1710, %v1827
        %v1905 = vadd.f32 %v1711, %v1829
        %v1906 = vadd.f32 %v1712, %v1831
        %v1907 = vadd.f32 %v1713, %v1833
        %v1908 = vadd.f32 %v1714, %v1835
        %v1909 = vadd.f32 %v1715, %v1837
        %v1910 = vadd.f32 %v1716, %v1839
        %v1911 = vadd.f32 %v1717, %v1841
        %v1912 = vadd.f32 %v1718, %v1843
        %v1913 = vadd.f32 %v1719, %v1845
        %v1914 = vadd.f32 %v1720, %v1847
        %v1915 = vadd.f32 %v1721, %v1849
        %v1916 = vadd.f32 %v1722, %v1851
        %v1917 = vadd.f32 %v1723, %v1853
        %vm1918 = vcmask 1040384
        %v1919 = vrot.slane %v515, 7
        %v1920 = vrot.slane %v518, 7
        %v1921 = vsel %vm1918, %v1919, %v1920
        %v1922 = vrot.slane %v524, 7
        %v1923 = vsel %vm1918, %v1920, %v1922
        %v1924 = vrot.slane %v528, 7
        %v1925 = vsel %vm1918, %v1922, %v1924
        %v1926 = vrot.slane %v534, 7
        %v1927 = vsel %vm1918, %v1924, %v1926
        %v1928 = vrot.slane %v538, 7
        %v1929 = vsel %vm1918, %v1926, %v1928
        %v1930 = vrot.slane %v544, 7
        %v1931 = vsel %vm1918, %v1928, %v1930
        %v1932 = vrot.slane %v548, 7
        %v1933 = vsel %vm1918, %v1930, %v1932
        %v1934 = vrot.slane %v554, 7
        %v1935 = vsel %vm1918, %v1932, %v1934
        %v1936 = vrot.slane %v558, 7
        %v1937 = vsel %vm1918, %v1934, %v1936
        %v1938 = vrot.slane %v564, 7
        %v1939 = vsel %vm1918, %v1936, %v1938
        %v1940 = vrot.slane %v568, 7
        %v1941 = vsel %vm1918, %v1938, %v1940
        %v1942 = vrot.slane %v574, 7
        %v1943 = vsel %vm1918, %v1940, %v1942
        %v1944 = vrot.slane %v578, 7
        %v1945 = vsel %vm1918, %v1942, %v1944
        %v1946 = vrot.slane %v584, 7
        %v1947 = vsel %vm1918, %v1944, %v1946
        %v1948 = vrot.slane %v588, 7
        %v1949 = vsel %vm1918, %v1946, %v1948
        %v1950 = vrot.slane %v594, 7
        %v1951 = vsel %vm1918, %v1948, %v1950
        %v1952 = vrot.slane %v598, 7
        %v1953 = vsel %vm1918, %v1950, %v1952
        %v1954 = vrot.slane %v604, 7
        %v1955 = vsel %vm1918, %v1952, %v1954
        %v1956 = vrot.slane %v608, 7
        %v1957 = vsel %vm1918, %v1954, %v1956
        %v1958 = vrot.slane %v614, 7
        %v1959 = vsel %vm1918, %v1956, %v1958
        %v1960 = vrot.slane %v618, 7
        %v1961 = vsel %vm1918, %v1958, %v1960
        %v1962 = vrot.slane %v624, 7
        %v1963 = vsel %vm1918, %v1960, %v1962
        %v1964 = vrot.slane %v628, 7
        %v1965 = vsel %vm1918, %v1962, %v1964
        %v1966 = vrot.slane %v634, 7
        %v1967 = vsel %vm1918, %v1964, %v1966
        %v1968 = vrot.slane %v638, 7
        %v1969 = vsel %vm1918, %v1966, %v1968
        %v1970 = vrot.slane %v644, 7
        %v1971 = vsel %vm1918, %v1968, %v1970
        %v1972 = vrot.slane %v648, 7
        %v1973 = vsel %vm1918, %v1970, %v1972
        %v1974 = vrot.slane %v654, 7
        %v1975 = vsel %vm1918, %v1972, %v1974
        %v1976 = vrot.slane %v658, 7
        %v1977 = vsel %vm1918, %v1974, %v1976
        %v1978 = vrot.slane %v664, 7
        %v1979 = vsel %vm1918, %v1976, %v1978
        %v1980 = vrot.slane %v668, 7
        %v1981 = vsel %vm1918, %v1978, %v1980
        %v1982 = vrot.slane %v674, 7
        %v1983 = vsel %vm1918, %v1980, %v1982
        %1984 = vrot.lane.b32.xlu0 %v1921, 58
        %v1985 = vpop.permute.xlu0 %1984
        %1986 = vrot.lane.b32.xlu0 %v1923, 58
        %v1987 = vpop.permute.xlu0 %1986
        %1988 = vrot.lane.b32.xlu0 %v1925, 58
        %v1989 = vpop.permute.xlu0 %1988
        %1990 = vrot.lane.b32.xlu0 %v1927, 58
        %v1991 = vpop.permute.xlu0 %1990
        %1992 = vrot.lane.b32.xlu0 %v1929, 58
        %v1993 = vpop.permute.xlu0 %1992
        %1994 = vrot.lane.b32.xlu0 %v1931, 58
        %v1995 = vpop.permute.xlu0 %1994
        %1996 = vrot.lane.b32.xlu0 %v1933, 58
        %v1997 = vpop.permute.xlu0 %1996
        %1998 = vrot.lane.b32.xlu0 %v1935, 58
        %v1999 = vpop.permute.xlu0 %1998
        %2000 = vrot.lane.b32.xlu0 %v1937, 58
        %v2001 = vpop.permute.xlu0 %2000
        %2002 = vrot.lane.b32.xlu0 %v1939, 58
        %v2003 = vpop.permute.xlu0 %2002
        %2004 = vrot.lane.b32.xlu0 %v1941, 58
        %v2005 = vpop.permute.xlu0 %2004
        %2006 = vrot.lane.b32.xlu0 %v1943, 58
        %v2007 = vpop.permute.xlu0 %2006
        %2008 = vrot.lane.b32.xlu0 %v1945, 58
        %v2009 = vpop.permute.xlu0 %2008
        %2010 = vrot.lane.b32.xlu0 %v1947, 58
        %v2011 = vpop.permute.xlu0 %2010
        %2012 = vrot.lane.b32.xlu0 %v1949, 58
        %v2013 = vpop.permute.xlu0 %2012
        %2014 = vrot.lane.b32.xlu0 %v1951, 58
        %v2015 = vpop.permute.xlu0 %2014
        %2016 = vrot.lane.b32.xlu0 %v1953, 58
        %v2017 = vpop.permute.xlu0 %2016
        %2018 = vrot.lane.b32.xlu0 %v1955, 58
        %v2019 = vpop.permute.xlu0 %2018
        %2020 = vrot.lane.b32.xlu0 %v1957, 58
        %v2021 = vpop.permute.xlu0 %2020
        %2022 = vrot.lane.b32.xlu0 %v1959, 58
        %v2023 = vpop.permute.xlu0 %2022
        %2024 = vrot.lane.b32.xlu0 %v1961, 58
        %v2025 = vpop.permute.xlu0 %2024
        %2026 = vrot.lane.b32.xlu0 %v1963, 58
        %v2027 = vpop.permute.xlu0 %2026
        %2028 = vrot.lane.b32.xlu0 %v1965, 58
        %v2029 = vpop.permute.xlu0 %2028
        %2030 = vrot.lane.b32.xlu0 %v1967, 58
        %v2031 = vpop.permute.xlu0 %2030
        %2032 = vrot.lane.b32.xlu0 %v1969, 58
        %v2033 = vpop.permute.xlu0 %2032
        %2034 = vrot.lane.b32.xlu0 %v1971, 58
        %v2035 = vpop.permute.xlu0 %2034
        %2036 = vrot.lane.b32.xlu0 %v1973, 58
        %v2037 = vpop.permute.xlu0 %2036
        %2038 = vrot.lane.b32.xlu0 %v1975, 58
        %v2039 = vpop.permute.xlu0 %2038
        %2040 = vrot.lane.b32.xlu0 %v1977, 58
        %v2041 = vpop.permute.xlu0 %2040
        %2042 = vrot.lane.b32.xlu0 %v1979, 58
        %v2043 = vpop.permute.xlu0 %2042
        %2044 = vrot.lane.b32.xlu0 %v1981, 58
        %v2045 = vpop.permute.xlu0 %2044
        %2046 = vrot.lane.b32.xlu0 %v1983, 58
        %v2047 = vpop.permute.xlu0 %2046
        %v2080 = vadd.f32 %v1886, %v1985
        %v2081 = vadd.f32 %v1887, %v1987
        %v2082 = vadd.f32 %v1888, %v1989
        %v2083 = vadd.f32 %v1889, %v1991
        %v2084 = vadd.f32 %v1890, %v1993
        %v2085 = vadd.f32 %v1891, %v1995
        %v2086 = vadd.f32 %v1892, %v1997
        %v2087 = vadd.f32 %v1893, %v1999
        %v2088 = vadd.f32 %v1894, %v2001
        %v2089 = vadd.f32 %v1895, %v2003
        %v2090 = vadd.f32 %v1896, %v2005
        %v2091 = vadd.f32 %v1897, %v2007
        %v2092 = vadd.f32 %v1898, %v2009
        %v2093 = vadd.f32 %v1899, %v2011
        %v2094 = vadd.f32 %v1900, %v2013
        %v2095 = vadd.f32 %v1901, %v2015
        %v2096 = vadd.f32 %v1902, %v2017
        %v2097 = vadd.f32 %v1903, %v2019
        %v2098 = vadd.f32 %v1904, %v2021
        %v2099 = vadd.f32 %v1905, %v2023
        %v2100 = vadd.f32 %v1906, %v2025
        %v2101 = vadd.f32 %v1907, %v2027
        %v2102 = vadd.f32 %v1908, %v2029
        %v2103 = vadd.f32 %v1909, %v2031
        %v2104 = vadd.f32 %v1910, %v2033
        %v2105 = vadd.f32 %v1911, %v2035
        %v2106 = vadd.f32 %v1912, %v2037
        %v2107 = vadd.f32 %v1913, %v2039
        %v2108 = vadd.f32 %v1914, %v2041
        %v2109 = vadd.f32 %v1915, %v2043
        %v2110 = vadd.f32 %v1916, %v2045
        %v2111 = vadd.f32 %v1917, %v2047
        %2112 = vrot.lane.b32.xlu0 %v518, 48
        %v2113 = vpop.permute.xlu0 %2112
        %2114 = vrot.lane.b32.xlu0 %v524, 48
        %v2115 = vpop.permute.xlu0 %2114
        %2116 = vrot.lane.b32.xlu0 %v528, 48
        %v2117 = vpop.permute.xlu0 %2116
        %2118 = vrot.lane.b32.xlu0 %v534, 48
        %v2119 = vpop.permute.xlu0 %2118
        %2120 = vrot.lane.b32.xlu0 %v538, 48
        %v2121 = vpop.permute.xlu0 %2120
        %2122 = vrot.lane.b32.xlu0 %v544, 48
        %v2123 = vpop.permute.xlu0 %2122
        %2124 = vrot.lane.b32.xlu0 %v548, 48
        %v2125 = vpop.permute.xlu0 %2124
        %2126 = vrot.lane.b32.xlu0 %v554, 48
        %v2127 = vpop.permute.xlu0 %2126
        %2128 = vrot.lane.b32.xlu0 %v558, 48
        %v2129 = vpop.permute.xlu0 %2128
        %2130 = vrot.lane.b32.xlu0 %v564, 48
        %v2131 = vpop.permute.xlu0 %2130
        %2132 = vrot.lane.b32.xlu0 %v568, 48
        %v2133 = vpop.permute.xlu0 %2132
        %2134 = vrot.lane.b32.xlu0 %v574, 48
        %v2135 = vpop.permute.xlu0 %2134
        %2136 = vrot.lane.b32.xlu0 %v578, 48
        %v2137 = vpop.permute.xlu0 %2136
        %2138 = vrot.lane.b32.xlu0 %v584, 48
        %v2139 = vpop.permute.xlu0 %2138
        %2140 = vrot.lane.b32.xlu0 %v588, 48
        %v2141 = vpop.permute.xlu0 %2140
        %2142 = vrot.lane.b32.xlu0 %v594, 48
        %v2143 = vpop.permute.xlu0 %2142
        %2144 = vrot.lane.b32.xlu0 %v598, 48
        %v2145 = vpop.permute.xlu0 %2144
        %2146 = vrot.lane.b32.xlu0 %v604, 48
        %v2147 = vpop.permute.xlu0 %2146
        %2148 = vrot.lane.b32.xlu0 %v608, 48
        %v2149 = vpop.permute.xlu0 %2148
        %2150 = vrot.lane.b32.xlu0 %v614, 48
        %v2151 = vpop.permute.xlu0 %2150
        %2152 = vrot.lane.b32.xlu0 %v618, 48
        %v2153 = vpop.permute.xlu0 %2152
        %2154 = vrot.lane.b32.xlu0 %v624, 48
        %v2155 = vpop.permute.xlu0 %2154
        %2156 = vrot.lane.b32.xlu0 %v628, 48
        %v2157 = vpop.permute.xlu0 %2156
        %2158 = vrot.lane.b32.xlu0 %v634, 48
        %v2159 = vpop.permute.xlu0 %2158
        %2160 = vrot.lane.b32.xlu0 %v638, 48
        %v2161 = vpop.permute.xlu0 %2160
        %2162 = vrot.lane.b32.xlu0 %v644, 48
        %v2163 = vpop.permute.xlu0 %2162
        %2164 = vrot.lane.b32.xlu0 %v648, 48
        %v2165 = vpop.permute.xlu0 %2164
        %2166 = vrot.lane.b32.xlu0 %v654, 48
        %v2167 = vpop.permute.xlu0 %2166
        %2168 = vrot.lane.b32.xlu0 %v658, 48
        %v2169 = vpop.permute.xlu0 %2168
        %2170 = vrot.lane.b32.xlu0 %v664, 48
        %v2171 = vpop.permute.xlu0 %2170
        %2172 = vrot.lane.b32.xlu0 %v668, 48
        %v2173 = vpop.permute.xlu0 %2172
        %2174 = vrot.lane.b32.xlu0 %v674, 48
        %v2175 = vpop.permute.xlu0 %2174
        %v2208 = vadd.f32 %v2080, %v2113
        %v2209 = vadd.f32 %v2081, %v2115
        %v2210 = vadd.f32 %v2082, %v2117
        %v2211 = vadd.f32 %v2083, %v2119
        %v2212 = vadd.f32 %v2084, %v2121
        %v2213 = vadd.f32 %v2085, %v2123
        %v2214 = vadd.f32 %v2086, %v2125
        %v2215 = vadd.f32 %v2087, %v2127
        %v2216 = vadd.f32 %v2088, %v2129
        %v2217 = vadd.f32 %v2089, %v2131
        %v2218 = vadd.f32 %v2090, %v2133
        %v2219 = vadd.f32 %v2091, %v2135
        %v2220 = vadd.f32 %v2092, %v2137
        %v2221 = vadd.f32 %v2093, %v2139
        %v2222 = vadd.f32 %v2094, %v2141
        %v2223 = vadd.f32 %v2095, %v2143
        %v2224 = vadd.f32 %v2096, %v2145
        %v2225 = vadd.f32 %v2097, %v2147
        %v2226 = vadd.f32 %v2098, %v2149
        %v2227 = vadd.f32 %v2099, %v2151
        %v2228 = vadd.f32 %v2100, %v2153
        %v2229 = vadd.f32 %v2101, %v2155
        %v2230 = vadd.f32 %v2102, %v2157
        %v2231 = vadd.f32 %v2103, %v2159
        %v2232 = vadd.f32 %v2104, %v2161
        %v2233 = vadd.f32 %v2105, %v2163
        %v2234 = vadd.f32 %v2106, %v2165
        %v2235 = vadd.f32 %v2107, %v2167
        %v2236 = vadd.f32 %v2108, %v2169
        %v2237 = vadd.f32 %v2109, %v2171
        %v2238 = vadd.f32 %v2110, %v2173
        %v2239 = vadd.f32 %v2111, %v2175
        %v2241 = vrot.slane %v678, 1
        %v2242 = vsel %vm754, %v818, %v2241
        %2243 = vrot.lane.b32.xlu0 %v759, 38
        %v2244 = vpop.permute.xlu0 %2243
        %2245 = vrot.lane.b32.xlu0 %v761, 38
        %v2246 = vpop.permute.xlu0 %2245
        %2247 = vrot.lane.b32.xlu0 %v763, 38
        %v2248 = vpop.permute.xlu0 %2247
        %2249 = vrot.lane.b32.xlu0 %v765, 38
        %v2250 = vpop.permute.xlu0 %2249
        %2251 = vrot.lane.b32.xlu0 %v767, 38
        %v2252 = vpop.permute.xlu0 %2251
        %2253 = vrot.lane.b32.xlu0 %v769, 38
        %v2254 = vpop.permute.xlu0 %2253
        %2255 = vrot.lane.b32.xlu0 %v771, 38
        %v2256 = vpop.permute.xlu0 %2255
        %2257 = vrot.lane.b32.xlu0 %v773, 38
        %v2258 = vpop.permute.xlu0 %2257
        %2259 = vrot.lane.b32.xlu0 %v775, 38
        %v2260 = vpop.permute.xlu0 %2259
        %2261 = vrot.lane.b32.xlu0 %v777, 38
        %v2262 = vpop.permute.xlu0 %2261
        %2263 = vrot.lane.b32.xlu0 %v779, 38
        %v2264 = vpop.permute.xlu0 %2263
        %2265 = vrot.lane.b32.xlu0 %v781, 38
        %v2266 = vpop.permute.xlu0 %2265
        %2267 = vrot.lane.b32.xlu0 %v783, 38
        %v2268 = vpop.permute.xlu0 %2267
        %2269 = vrot.lane.b32.xlu0 %v785, 38
        %v2270 = vpop.permute.xlu0 %2269
        %2271 = vrot.lane.b32.xlu0 %v787, 38
        %v2272 = vpop.permute.xlu0 %2271
        %2273 = vrot.lane.b32.xlu0 %v789, 38
        %v2274 = vpop.permute.xlu0 %2273
        %2275 = vrot.lane.b32.xlu0 %v791, 38
        %v2276 = vpop.permute.xlu0 %2275
        %2277 = vrot.lane.b32.xlu0 %v793, 38
        %v2278 = vpop.permute.xlu0 %2277
        %2279 = vrot.lane.b32.xlu0 %v795, 38
        %v2280 = vpop.permute.xlu0 %2279
        %2281 = vrot.lane.b32.xlu0 %v797, 38
        %v2282 = vpop.permute.xlu0 %2281
        %2283 = vrot.lane.b32.xlu0 %v799, 38
        %v2284 = vpop.permute.xlu0 %2283
        %2285 = vrot.lane.b32.xlu0 %v801, 38
        %v2286 = vpop.permute.xlu0 %2285
        %2287 = vrot.lane.b32.xlu0 %v803, 38
        %v2288 = vpop.permute.xlu0 %2287
        %2289 = vrot.lane.b32.xlu0 %v805, 38
        %v2290 = vpop.permute.xlu0 %2289
        %2291 = vrot.lane.b32.xlu0 %v807, 38
        %v2292 = vpop.permute.xlu0 %2291
        %2293 = vrot.lane.b32.xlu0 %v809, 38
        %v2294 = vpop.permute.xlu0 %2293
        %2295 = vrot.lane.b32.xlu0 %v811, 38
        %v2296 = vpop.permute.xlu0 %2295
        %2297 = vrot.lane.b32.xlu0 %v813, 38
        %v2298 = vpop.permute.xlu0 %2297
        %2299 = vrot.lane.b32.xlu0 %v815, 38
        %v2300 = vpop.permute.xlu0 %2299
        %2301 = vrot.lane.b32.xlu0 %v817, 38
        %v2302 = vpop.permute.xlu0 %2301
        %2303 = vrot.lane.b32.xlu0 %v819, 38
        %v2304 = vpop.permute.xlu0 %2303
        %2305 = vrot.lane.b32.xlu0 %v2242, 38
        %v2306 = vpop.permute.xlu0 %2305
        %v2339 = vadd.f32 %v2208, %v2244
        %v2340 = vadd.f32 %v2209, %v2246
        %v2341 = vadd.f32 %v2210, %v2248
        %v2342 = vadd.f32 %v2211, %v2250
        %v2343 = vadd.f32 %v2212, %v2252
        %v2344 = vadd.f32 %v2213, %v2254
        %v2345 = vadd.f32 %v2214, %v2256
        %v2346 = vadd.f32 %v2215, %v2258
        %v2347 = vadd.f32 %v2216, %v2260
        %v2348 = vadd.f32 %v2217, %v2262
        %v2349 = vadd.f32 %v2218, %v2264
        %v2350 = vadd.f32 %v2219, %v2266
        %v2351 = vadd.f32 %v2220, %v2268
        %v2352 = vadd.f32 %v2221, %v2270
        %v2353 = vadd.f32 %v2222, %v2272
        %v2354 = vadd.f32 %v2223, %v2274
        %v2355 = vadd.f32 %v2224, %v2276
        %v2356 = vadd.f32 %v2225, %v2278
        %v2357 = vadd.f32 %v2226, %v2280
        %v2358 = vadd.f32 %v2227, %v2282
        %v2359 = vadd.f32 %v2228, %v2284
        %v2360 = vadd.f32 %v2229, %v2286
        %v2361 = vadd.f32 %v2230, %v2288
        %v2362 = vadd.f32 %v2231, %v2290
        %v2363 = vadd.f32 %v2232, %v2292
        %v2364 = vadd.f32 %v2233, %v2294
        %v2365 = vadd.f32 %v2234, %v2296
        %v2366 = vadd.f32 %v2235, %v2298
        %v2367 = vadd.f32 %v2236, %v2300
        %v2368 = vadd.f32 %v2237, %v2302
        %v2369 = vadd.f32 %v2238, %v2304
        %v2370 = vadd.f32 %v2239, %v2306
        %v2371 = vrot.slane %v678, 2
        %v2372 = vsel %vm948, %v1012, %v2371
        %2373 = vrot.lane.b32.xlu0 %v953, 28
        %v2374 = vpop.permute.xlu0 %2373
        %2375 = vrot.lane.b32.xlu0 %v955, 28
        %v2376 = vpop.permute.xlu0 %2375
        %2377 = vrot.lane.b32.xlu0 %v957, 28
        %v2378 = vpop.permute.xlu0 %2377
        %2379 = vrot.lane.b32.xlu0 %v959, 28
        %v2380 = vpop.permute.xlu0 %2379
        %2381 = vrot.lane.b32.xlu0 %v961, 28
        %v2382 = vpop.permute.xlu0 %2381
        %2383 = vrot.lane.b32.xlu0 %v963, 28
        %v2384 = vpop.permute.xlu0 %2383
        %2385 = vrot.lane.b32.xlu0 %v965, 28
        %v2386 = vpop.permute.xlu0 %2385
        %2387 = vrot.lane.b32.xlu0 %v967, 28
        %v2388 = vpop.permute.xlu0 %2387
        %2389 = vrot.lane.b32.xlu0 %v969, 28
        %v2390 = vpop.permute.xlu0 %2389
        %2391 = vrot.lane.b32.xlu0 %v971, 28
        %v2392 = vpop.permute.xlu0 %2391
        %2393 = vrot.lane.b32.xlu0 %v973, 28
        %v2394 = vpop.permute.xlu0 %2393
        %2395 = vrot.lane.b32.xlu0 %v975, 28
        %v2396 = vpop.permute.xlu0 %2395
        %2397 = vrot.lane.b32.xlu0 %v977, 28
        %v2398 = vpop.permute.xlu0 %2397
        %2399 = vrot.lane.b32.xlu0 %v979, 28
        %v2400 = vpop.permute.xlu0 %2399
        %2401 = vrot.lane.b32.xlu0 %v981, 28
        %v2402 = vpop.permute.xlu0 %2401
        %2403 = vrot.lane.b32.xlu0 %v983, 28
        %v2404 = vpop.permute.xlu0 %2403
        %2405 = vrot.lane.b32.xlu0 %v985, 28
        %v2406 = vpop.permute.xlu0 %2405
        %2407 = vrot.lane.b32.xlu0 %v987, 28
        %v2408 = vpop.permute.xlu0 %2407
        %2409 = vrot.lane.b32.xlu0 %v989, 28
        %v2410 = vpop.permute.xlu0 %2409
        %2411 = vrot.lane.b32.xlu0 %v991, 28
        %v2412 = vpop.permute.xlu0 %2411
        %2413 = vrot.lane.b32.xlu0 %v993, 28
        %v2414 = vpop.permute.xlu0 %2413
        %2415 = vrot.lane.b32.xlu0 %v995, 28
        %v2416 = vpop.permute.xlu0 %2415
        %2417 = vrot.lane.b32.xlu0 %v997, 28
        %v2418 = vpop.permute.xlu0 %2417
        %2419 = vrot.lane.b32.xlu0 %v999, 28
        %v2420 = vpop.permute.xlu0 %2419
        %2421 = vrot.lane.b32.xlu0 %v1001, 28
        %v2422 = vpop.permute.xlu0 %2421
        %2423 = vrot.lane.b32.xlu0 %v1003, 28
        %v2424 = vpop.permute.xlu0 %2423
        %2425 = vrot.lane.b32.xlu0 %v1005, 28
        %v2426 = vpop.permute.xlu0 %2425
        %2427 = vrot.lane.b32.xlu0 %v1007, 28
        %v2428 = vpop.permute.xlu0 %2427
        %2429 = vrot.lane.b32.xlu0 %v1009, 28
        %v2430 = vpop.permute.xlu0 %2429
        %2431 = vrot.lane.b32.xlu0 %v1011, 28
        %v2432 = vpop.permute.xlu0 %2431
        %2433 = vrot.lane.b32.xlu0 %v1013, 28
        %v2434 = vpop.permute.xlu0 %2433
        %2435 = vrot.lane.b32.xlu0 %v2372, 28
        %v2436 = vpop.permute.xlu0 %2435
        %v2469 = vadd.f32 %v2339, %v2374
        %v2470 = vadd.f32 %v2340, %v2376
        %v2471 = vadd.f32 %v2341, %v2378
        %v2472 = vadd.f32 %v2342, %v2380
        %v2473 = vadd.f32 %v2343, %v2382
        %v2474 = vadd.f32 %v2344, %v2384
        %v2475 = vadd.f32 %v2345, %v2386
        %v2476 = vadd.f32 %v2346, %v2388
        %v2477 = vadd.f32 %v2347, %v2390
        %v2478 = vadd.f32 %v2348, %v2392
        %v2479 = vadd.f32 %v2349, %v2394
        %v2480 = vadd.f32 %v2350, %v2396
        %v2481 = vadd.f32 %v2351, %v2398
        %v2482 = vadd.f32 %v2352, %v2400
        %v2483 = vadd.f32 %v2353, %v2402
        %v2484 = vadd.f32 %v2354, %v2404
        %v2485 = vadd.f32 %v2355, %v2406
        %v2486 = vadd.f32 %v2356, %v2408
        %v2487 = vadd.f32 %v2357, %v2410
        %v2488 = vadd.f32 %v2358, %v2412
        %v2489 = vadd.f32 %v2359, %v2414
        %v2490 = vadd.f32 %v2360, %v2416
        %v2491 = vadd.f32 %v2361, %v2418
        %v2492 = vadd.f32 %v2362, %v2420
        %v2493 = vadd.f32 %v2363, %v2422
        %v2494 = vadd.f32 %v2364, %v2424
        %v2495 = vadd.f32 %v2365, %v2426
        %v2496 = vadd.f32 %v2366, %v2428
        %v2497 = vadd.f32 %v2367, %v2430
        %v2498 = vadd.f32 %v2368, %v2432
        %v2499 = vadd.f32 %v2369, %v2434
        %v2500 = vadd.f32 %v2370, %v2436
        %v2501 = vrot.slane %v678, 3
        %v2502 = vsel %vm1142, %v1206, %v2501
        %2503 = vrot.lane.b32.xlu0 %v1147, 18
        %v2504 = vpop.permute.xlu0 %2503
        %2505 = vrot.lane.b32.xlu0 %v1149, 18
        %v2506 = vpop.permute.xlu0 %2505
        %2507 = vrot.lane.b32.xlu0 %v1151, 18
        %v2508 = vpop.permute.xlu0 %2507
        %2509 = vrot.lane.b32.xlu0 %v1153, 18
        %v2510 = vpop.permute.xlu0 %2509
        %2511 = vrot.lane.b32.xlu0 %v1155, 18
        %v2512 = vpop.permute.xlu0 %2511
        %2513 = vrot.lane.b32.xlu0 %v1157, 18
        %v2514 = vpop.permute.xlu0 %2513
        %2515 = vrot.lane.b32.xlu0 %v1159, 18
        %v2516 = vpop.permute.xlu0 %2515
        %2517 = vrot.lane.b32.xlu0 %v1161, 18
        %v2518 = vpop.permute.xlu0 %2517
        %2519 = vrot.lane.b32.xlu0 %v1163, 18
        %v2520 = vpop.permute.xlu0 %2519
        %2521 = vrot.lane.b32.xlu0 %v1165, 18
        %v2522 = vpop.permute.xlu0 %2521
        %2523 = vrot.lane.b32.xlu0 %v1167, 18
        %v2524 = vpop.permute.xlu0 %2523
        %2525 = vrot.lane.b32.xlu0 %v1169, 18
        %v2526 = vpop.permute.xlu0 %2525
        %2527 = vrot.lane.b32.xlu0 %v1171, 18
        %v2528 = vpop.permute.xlu0 %2527
        %2529 = vrot.lane.b32.xlu0 %v1173, 18
        %v2530 = vpop.permute.xlu0 %2529
        %2531 = vrot.lane.b32.xlu0 %v1175, 18
        %v2532 = vpop.permute.xlu0 %2531
        %2533 = vrot.lane.b32.xlu0 %v1177, 18
        %v2534 = vpop.permute.xlu0 %2533
        %2535 = vrot.lane.b32.xlu0 %v1179, 18
        %v2536 = vpop.permute.xlu0 %2535
        %2537 = vrot.lane.b32.xlu0 %v1181, 18
        %v2538 = vpop.permute.xlu0 %2537
        %2539 = vrot.lane.b32.xlu0 %v1183, 18
        %v2540 = vpop.permute.xlu0 %2539
        %2541 = vrot.lane.b32.xlu0 %v1185, 18
        %v2542 = vpop.permute.xlu0 %2541
        %2543 = vrot.lane.b32.xlu0 %v1187, 18
        %v2544 = vpop.permute.xlu0 %2543
        %2545 = vrot.lane.b32.xlu0 %v1189, 18
        %v2546 = vpop.permute.xlu0 %2545
        %2547 = vrot.lane.b32.xlu0 %v1191, 18
        %v2548 = vpop.permute.xlu0 %2547
        %2549 = vrot.lane.b32.xlu0 %v1193, 18
        %v2550 = vpop.permute.xlu0 %2549
        %2551 = vrot.lane.b32.xlu0 %v1195, 18
        %v2552 = vpop.permute.xlu0 %2551
        %2553 = vrot.lane.b32.xlu0 %v1197, 18
        %v2554 = vpop.permute.xlu0 %2553
        %2555 = vrot.lane.b32.xlu0 %v1199, 18
        %v2556 = vpop.permute.xlu0 %2555
        %2557 = vrot.lane.b32.xlu0 %v1201, 18
        %v2558 = vpop.permute.xlu0 %2557
        %2559 = vrot.lane.b32.xlu0 %v1203, 18
        %v2560 = vpop.permute.xlu0 %2559
        %2561 = vrot.lane.b32.xlu0 %v1205, 18
        %v2562 = vpop.permute.xlu0 %2561
        %2563 = vrot.lane.b32.xlu0 %v1207, 18
        %v2564 = vpop.permute.xlu0 %2563
        %2565 = vrot.lane.b32.xlu0 %v2502, 18
        %v2566 = vpop.permute.xlu0 %2565
        %v2599 = vadd.f32 %v2469, %v2504
        %v2600 = vadd.f32 %v2470, %v2506
        %v2601 = vadd.f32 %v2471, %v2508
        %v2602 = vadd.f32 %v2472, %v2510
        %v2603 = vadd.f32 %v2473, %v2512
        %v2604 = vadd.f32 %v2474, %v2514
        %v2605 = vadd.f32 %v2475, %v2516
        %v2606 = vadd.f32 %v2476, %v2518
        %v2607 = vadd.f32 %v2477, %v2520
        %v2608 = vadd.f32 %v2478, %v2522
        %v2609 = vadd.f32 %v2479, %v2524
        %v2610 = vadd.f32 %v2480, %v2526
        %v2611 = vadd.f32 %v2481, %v2528
        %v2612 = vadd.f32 %v2482, %v2530
        %v2613 = vadd.f32 %v2483, %v2532
        %v2614 = vadd.f32 %v2484, %v2534
        %v2615 = vadd.f32 %v2485, %v2536
        %v2616 = vadd.f32 %v2486, %v2538
        %v2617 = vadd.f32 %v2487, %v2540
        %v2618 = vadd.f32 %v2488, %v2542
        %v2619 = vadd.f32 %v2489, %v2544
        %v2620 = vadd.f32 %v2490, %v2546
        %v2621 = vadd.f32 %v2491, %v2548
        %v2622 = vadd.f32 %v2492, %v2550
        %v2623 = vadd.f32 %v2493, %v2552
        %v2624 = vadd.f32 %v2494, %v2554
        %v2625 = vadd.f32 %v2495, %v2556
        %v2626 = vadd.f32 %v2496, %v2558
        %v2627 = vadd.f32 %v2497, %v2560
        %v2628 = vadd.f32 %v2498, %v2562
        %v2629 = vadd.f32 %v2499, %v2564
        %v2630 = vadd.f32 %v2500, %v2566
        %v2664 = vrot.slane %v520, 4
        %v2665 = vrot.slane %v526, 4
        %v2666 = vsel %vm1336, %v2664, %v2665
        %v2667 = vrot.slane %v530, 4
        %v2668 = vsel %vm1336, %v2665, %v2667
        %v2669 = vrot.slane %v536, 4
        %v2670 = vsel %vm1336, %v2667, %v2669
        %v2671 = vrot.slane %v540, 4
        %v2672 = vsel %vm1336, %v2669, %v2671
        %v2673 = vrot.slane %v546, 4
        %v2674 = vsel %vm1336, %v2671, %v2673
        %v2675 = vrot.slane %v550, 4
        %v2676 = vsel %vm1336, %v2673, %v2675
        %v2677 = vrot.slane %v556, 4
        %v2678 = vsel %vm1336, %v2675, %v2677
        %v2679 = vrot.slane %v560, 4
        %v2680 = vsel %vm1336, %v2677, %v2679
        %v2681 = vrot.slane %v566, 4
        %v2682 = vsel %vm1336, %v2679, %v2681
        %v2683 = vrot.slane %v570, 4
        %v2684 = vsel %vm1336, %v2681, %v2683
        %v2685 = vrot.slane %v576, 4
        %v2686 = vsel %vm1336, %v2683, %v2685
        %v2687 = vrot.slane %v580, 4
        %v2688 = vsel %vm1336, %v2685, %v2687
        %v2689 = vrot.slane %v586, 4
        %v2690 = vsel %vm1336, %v2687, %v2689
        %v2691 = vrot.slane %v590, 4
        %v2692 = vsel %vm1336, %v2689, %v2691
        %v2693 = vrot.slane %v596, 4
        %v2694 = vsel %vm1336, %v2691, %v2693
        %v2695 = vrot.slane %v600, 4
        %v2696 = vsel %vm1336, %v2693, %v2695
        %v2697 = vrot.slane %v606, 4
        %v2698 = vsel %vm1336, %v2695, %v2697
        %v2699 = vrot.slane %v610, 4
        %v2700 = vsel %vm1336, %v2697, %v2699
        %v2701 = vrot.slane %v616, 4
        %v2702 = vsel %vm1336, %v2699, %v2701
        %v2703 = vrot.slane %v620, 4
        %v2704 = vsel %vm1336, %v2701, %v2703
        %v2705 = vrot.slane %v626, 4
        %v2706 = vsel %vm1336, %v2703, %v2705
        %v2707 = vrot.slane %v630, 4
        %v2708 = vsel %vm1336, %v2705, %v2707
        %v2709 = vrot.slane %v636, 4
        %v2710 = vsel %vm1336, %v2707, %v2709
        %v2711 = vrot.slane %v640, 4
        %v2712 = vsel %vm1336, %v2709, %v2711
        %v2713 = vrot.slane %v646, 4
        %v2714 = vsel %vm1336, %v2711, %v2713
        %v2715 = vrot.slane %v650, 4
        %v2716 = vsel %vm1336, %v2713, %v2715
        %v2717 = vrot.slane %v656, 4
        %v2718 = vsel %vm1336, %v2715, %v2717
        %v2719 = vrot.slane %v660, 4
        %v2720 = vsel %vm1336, %v2717, %v2719
        %v2721 = vrot.slane %v666, 4
        %v2722 = vsel %vm1336, %v2719, %v2721
        %v2723 = vrot.slane %v670, 4
        %v2724 = vsel %vm1336, %v2721, %v2723
        %v2725 = vrot.slane %v676, 4
        %v2726 = vsel %vm1336, %v2723, %v2725
        %v2727 = vrot.slane %v678, 4
        %v2728 = vsel %vm1336, %v1400, %v2727
        %v2729 = vrot.slane %v680, 4
        %v2730 = vsel %vm1336, %v2725, %v2729
        %2731 = vrot.lane.b32.xlu0 %v1341, 8
        %v2732 = vpop.permute.xlu0 %2731
        %2733 = vrot.lane.b32.xlu0 %v2666, 8
        %v2734 = vpop.permute.xlu0 %2733
        %2735 = vrot.lane.b32.xlu0 %v1343, 8
        %v2736 = vpop.permute.xlu0 %2735
        %2737 = vrot.lane.b32.xlu0 %v2668, 8
        %v2738 = vpop.permute.xlu0 %2737
        %2739 = vrot.lane.b32.xlu0 %v1345, 8
        %v2740 = vpop.permute.xlu0 %2739
        %2741 = vrot.lane.b32.xlu0 %v2670, 8
        %v2742 = vpop.permute.xlu0 %2741
        %2743 = vrot.lane.b32.xlu0 %v1347, 8
        %v2744 = vpop.permute.xlu0 %2743
        %2745 = vrot.lane.b32.xlu0 %v2672, 8
        %v2746 = vpop.permute.xlu0 %2745
        %2747 = vrot.lane.b32.xlu0 %v1349, 8
        %v2748 = vpop.permute.xlu0 %2747
        %2749 = vrot.lane.b32.xlu0 %v2674, 8
        %v2750 = vpop.permute.xlu0 %2749
        %2751 = vrot.lane.b32.xlu0 %v1351, 8
        %v2752 = vpop.permute.xlu0 %2751
        %2753 = vrot.lane.b32.xlu0 %v2676, 8
        %v2754 = vpop.permute.xlu0 %2753
        %2755 = vrot.lane.b32.xlu0 %v1353, 8
        %v2756 = vpop.permute.xlu0 %2755
        %2757 = vrot.lane.b32.xlu0 %v2678, 8
        %v2758 = vpop.permute.xlu0 %2757
        %2759 = vrot.lane.b32.xlu0 %v1355, 8
        %v2760 = vpop.permute.xlu0 %2759
        %2761 = vrot.lane.b32.xlu0 %v2680, 8
        %v2762 = vpop.permute.xlu0 %2761
        %2763 = vrot.lane.b32.xlu0 %v1357, 8
        %v2764 = vpop.permute.xlu0 %2763
        %2765 = vrot.lane.b32.xlu0 %v2682, 8
        %v2766 = vpop.permute.xlu0 %2765
        %2767 = vrot.lane.b32.xlu0 %v1359, 8
        %v2768 = vpop.permute.xlu0 %2767
        %2769 = vrot.lane.b32.xlu0 %v2684, 8
        %v2770 = vpop.permute.xlu0 %2769
        %2771 = vrot.lane.b32.xlu0 %v1361, 8
        %v2772 = vpop.permute.xlu0 %2771
        %2773 = vrot.lane.b32.xlu0 %v2686, 8
        %v2774 = vpop.permute.xlu0 %2773
        %2775 = vrot.lane.b32.xlu0 %v1363, 8
        %v2776 = vpop.permute.xlu0 %2775
        %2777 = vrot.lane.b32.xlu0 %v2688, 8
        %v2778 = vpop.permute.xlu0 %2777
        %2779 = vrot.lane.b32.xlu0 %v1365, 8
        %v2780 = vpop.permute.xlu0 %2779
        %2781 = vrot.lane.b32.xlu0 %v2690, 8
        %v2782 = vpop.permute.xlu0 %2781
        %2783 = vrot.lane.b32.xlu0 %v1367, 8
        %v2784 = vpop.permute.xlu0 %2783
        %2785 = vrot.lane.b32.xlu0 %v2692, 8
        %v2786 = vpop.permute.xlu0 %2785
        %2787 = vrot.lane.b32.xlu0 %v1369, 8
        %v2788 = vpop.permute.xlu0 %2787
        %2789 = vrot.lane.b32.xlu0 %v2694, 8
        %v2790 = vpop.permute.xlu0 %2789
        %2791 = vrot.lane.b32.xlu0 %v1371, 8
        %v2792 = vpop.permute.xlu0 %2791
        %2793 = vrot.lane.b32.xlu0 %v2696, 8
        %v2794 = vpop.permute.xlu0 %2793
        %2795 = vrot.lane.b32.xlu0 %v1373, 8
        %v2796 = vpop.permute.xlu0 %2795
        %2797 = vrot.lane.b32.xlu0 %v2698, 8
        %v2798 = vpop.permute.xlu0 %2797
        %2799 = vrot.lane.b32.xlu0 %v1375, 8
        %v2800 = vpop.permute.xlu0 %2799
        %2801 = vrot.lane.b32.xlu0 %v2700, 8
        %v2802 = vpop.permute.xlu0 %2801
        %2803 = vrot.lane.b32.xlu0 %v1377, 8
        %v2804 = vpop.permute.xlu0 %2803
        %2805 = vrot.lane.b32.xlu0 %v2702, 8
        %v2806 = vpop.permute.xlu0 %2805
        %2807 = vrot.lane.b32.xlu0 %v1379, 8
        %v2808 = vpop.permute.xlu0 %2807
        %2809 = vrot.lane.b32.xlu0 %v2704, 8
        %v2810 = vpop.permute.xlu0 %2809
        %2811 = vrot.lane.b32.xlu0 %v1381, 8
        %v2812 = vpop.permute.xlu0 %2811
        %2813 = vrot.lane.b32.xlu0 %v2706, 8
        %v2814 = vpop.permute.xlu0 %2813
        %2815 = vrot.lane.b32.xlu0 %v1383, 8
        %v2816 = vpop.permute.xlu0 %2815
        %2817 = vrot.lane.b32.xlu0 %v2708, 8
        %v2818 = vpop.permute.xlu0 %2817
        %2819 = vrot.lane.b32.xlu0 %v1385, 8
        %v2820 = vpop.permute.xlu0 %2819
        %2821 = vrot.lane.b32.xlu0 %v2710, 8
        %v2822 = vpop.permute.xlu0 %2821
        %2823 = vrot.lane.b32.xlu0 %v1387, 8
        %v2824 = vpop.permute.xlu0 %2823
        %2825 = vrot.lane.b32.xlu0 %v2712, 8
        %v2826 = vpop.permute.xlu0 %2825
        %2827 = vrot.lane.b32.xlu0 %v1389, 8
        %v2828 = vpop.permute.xlu0 %2827
        %2829 = vrot.lane.b32.xlu0 %v2714, 8
        %v2830 = vpop.permute.xlu0 %2829
        %2831 = vrot.lane.b32.xlu0 %v1391, 8
        %v2832 = vpop.permute.xlu0 %2831
        %2833 = vrot.lane.b32.xlu0 %v2716, 8
        %v2834 = vpop.permute.xlu0 %2833
        %2835 = vrot.lane.b32.xlu0 %v1393, 8
        %v2836 = vpop.permute.xlu0 %2835
        %2837 = vrot.lane.b32.xlu0 %v2718, 8
        %v2838 = vpop.permute.xlu0 %2837
        %2839 = vrot.lane.b32.xlu0 %v1395, 8
        %v2840 = vpop.permute.xlu0 %2839
        %2841 = vrot.lane.b32.xlu0 %v2720, 8
        %v2842 = vpop.permute.xlu0 %2841
        %2843 = vrot.lane.b32.xlu0 %v1397, 8
        %v2844 = vpop.permute.xlu0 %2843
        %2845 = vrot.lane.b32.xlu0 %v2722, 8
        %v2846 = vpop.permute.xlu0 %2845
        %2847 = vrot.lane.b32.xlu0 %v1399, 8
        %v2848 = vpop.permute.xlu0 %2847
        %2849 = vrot.lane.b32.xlu0 %v2724, 8
        %v2850 = vpop.permute.xlu0 %2849
        %2851 = vrot.lane.b32.xlu0 %v1401, 8
        %v2852 = vpop.permute.xlu0 %2851
        %2853 = vrot.lane.b32.xlu0 %v2726, 8
        %v2854 = vpop.permute.xlu0 %2853
        %2855 = vrot.lane.b32.xlu0 %v2728, 8
        %v2856 = vpop.permute.xlu0 %2855
        %2857 = vrot.lane.b32.xlu0 %v2730, 8
        %v2858 = vpop.permute.xlu0 %2857
        %vm2859 = vcmask 64512
        %v2860 = vsel %vm2859, %v2732, %v2734
        %v2861 = vsel %vm2859, %v2736, %v2738
        %v2862 = vsel %vm2859, %v2740, %v2742
        %v2863 = vsel %vm2859, %v2744, %v2746
        %v2864 = vsel %vm2859, %v2748, %v2750
        %v2865 = vsel %vm2859, %v2752, %v2754
        %v2866 = vsel %vm2859, %v2756, %v2758
        %v2867 = vsel %vm2859, %v2760, %v2762
        %v2868 = vsel %vm2859, %v2764, %v2766
        %v2869 = vsel %vm2859, %v2768, %v2770
        %v2870 = vsel %vm2859, %v2772, %v2774
        %v2871 = vsel %vm2859, %v2776, %v2778
        %v2872 = vsel %vm2859, %v2780, %v2782
        %v2873 = vsel %vm2859, %v2784, %v2786
        %v2874 = vsel %vm2859, %v2788, %v2790
        %v2875 = vsel %vm2859, %v2792, %v2794
        %v2876 = vsel %vm2859, %v2796, %v2798
        %v2877 = vsel %vm2859, %v2800, %v2802
        %v2878 = vsel %vm2859, %v2804, %v2806
        %v2879 = vsel %vm2859, %v2808, %v2810
        %v2880 = vsel %vm2859, %v2812, %v2814
        %v2881 = vsel %vm2859, %v2816, %v2818
        %v2882 = vsel %vm2859, %v2820, %v2822
        %v2883 = vsel %vm2859, %v2824, %v2826
        %v2884 = vsel %vm2859, %v2828, %v2830
        %v2885 = vsel %vm2859, %v2832, %v2834
        %v2886 = vsel %vm2859, %v2836, %v2838
        %v2887 = vsel %vm2859, %v2840, %v2842
        %v2888 = vsel %vm2859, %v2844, %v2846
        %v2889 = vsel %vm2859, %v2848, %v2850
        %v2890 = vsel %vm2859, %v2852, %v2854
        %v2891 = vsel %vm2859, %v2856, %v2858
        %v2924 = vadd.f32 %v2599, %v2860
        %v2925 = vadd.f32 %v2600, %v2861
        %v2926 = vadd.f32 %v2601, %v2862
        %v2927 = vadd.f32 %v2602, %v2863
        %v2928 = vadd.f32 %v2603, %v2864
        %v2929 = vadd.f32 %v2604, %v2865
        %v2930 = vadd.f32 %v2605, %v2866
        %v2931 = vadd.f32 %v2606, %v2867
        %v2932 = vadd.f32 %v2607, %v2868
        %v2933 = vadd.f32 %v2608, %v2869
        %v2934 = vadd.f32 %v2609, %v2870
        %v2935 = vadd.f32 %v2610, %v2871
        %v2936 = vadd.f32 %v2611, %v2872
        %v2937 = vadd.f32 %v2612, %v2873
        %v2938 = vadd.f32 %v2613, %v2874
        %v2939 = vadd.f32 %v2614, %v2875
        %v2940 = vadd.f32 %v2615, %v2876
        %v2941 = vadd.f32 %v2616, %v2877
        %v2942 = vadd.f32 %v2617, %v2878
        %v2943 = vadd.f32 %v2618, %v2879
        %v2944 = vadd.f32 %v2619, %v2880
        %v2945 = vadd.f32 %v2620, %v2881
        %v2946 = vadd.f32 %v2621, %v2882
        %v2947 = vadd.f32 %v2622, %v2883
        %v2948 = vadd.f32 %v2623, %v2884
        %v2949 = vadd.f32 %v2624, %v2885
        %v2950 = vadd.f32 %v2625, %v2886
        %v2951 = vadd.f32 %v2626, %v2887
        %v2952 = vadd.f32 %v2627, %v2888
        %v2953 = vadd.f32 %v2628, %v2889
        %v2954 = vadd.f32 %v2629, %v2890
        %v2955 = vadd.f32 %v2630, %v2891
        %v2956 = vrot.slane %v520, 5
        %v2957 = vrot.slane %v526, 5
        %v2958 = vsel %vm1530, %v2956, %v2957
        %v2959 = vrot.slane %v530, 5
        %v2960 = vsel %vm1530, %v2957, %v2959
        %v2961 = vrot.slane %v536, 5
        %v2962 = vsel %vm1530, %v2959, %v2961
        %v2963 = vrot.slane %v540, 5
        %v2964 = vsel %vm1530, %v2961, %v2963
        %v2965 = vrot.slane %v546, 5
        %v2966 = vsel %vm1530, %v2963, %v2965
        %v2967 = vrot.slane %v550, 5
        %v2968 = vsel %vm1530, %v2965, %v2967
        %v2969 = vrot.slane %v556, 5
        %v2970 = vsel %vm1530, %v2967, %v2969
        %v2971 = vrot.slane %v560, 5
        %v2972 = vsel %vm1530, %v2969, %v2971
        %v2973 = vrot.slane %v566, 5
        %v2974 = vsel %vm1530, %v2971, %v2973
        %v2975 = vrot.slane %v570, 5
        %v2976 = vsel %vm1530, %v2973, %v2975
        %v2977 = vrot.slane %v576, 5
        %v2978 = vsel %vm1530, %v2975, %v2977
        %v2979 = vrot.slane %v580, 5
        %v2980 = vsel %vm1530, %v2977, %v2979
        %v2981 = vrot.slane %v586, 5
        %v2982 = vsel %vm1530, %v2979, %v2981
        %v2983 = vrot.slane %v590, 5
        %v2984 = vsel %vm1530, %v2981, %v2983
        %v2985 = vrot.slane %v596, 5
        %v2986 = vsel %vm1530, %v2983, %v2985
        %v2987 = vrot.slane %v600, 5
        %v2988 = vsel %vm1530, %v2985, %v2987
        %v2989 = vrot.slane %v606, 5
        %v2990 = vsel %vm1530, %v2987, %v2989
        %v2991 = vrot.slane %v610, 5
        %v2992 = vsel %vm1530, %v2989, %v2991
        %v2993 = vrot.slane %v616, 5
        %v2994 = vsel %vm1530, %v2991, %v2993
        %v2995 = vrot.slane %v620, 5
        %v2996 = vsel %vm1530, %v2993, %v2995
        %v2997 = vrot.slane %v626, 5
        %v2998 = vsel %vm1530, %v2995, %v2997
        %v2999 = vrot.slane %v630, 5
        %v3000 = vsel %vm1530, %v2997, %v2999
        %v3001 = vrot.slane %v636, 5
        %v3002 = vsel %vm1530, %v2999, %v3001
        %v3003 = vrot.slane %v640, 5
        %v3004 = vsel %vm1530, %v3001, %v3003
        %v3005 = vrot.slane %v646, 5
        %v3006 = vsel %vm1530, %v3003, %v3005
        %v3007 = vrot.slane %v650, 5
        %v3008 = vsel %vm1530, %v3005, %v3007
        %v3009 = vrot.slane %v656, 5
        %v3010 = vsel %vm1530, %v3007, %v3009
        %v3011 = vrot.slane %v660, 5
        %v3012 = vsel %vm1530, %v3009, %v3011
        %v3013 = vrot.slane %v666, 5
        %v3014 = vsel %vm1530, %v3011, %v3013
        %v3015 = vrot.slane %v670, 5
        %v3016 = vsel %vm1530, %v3013, %v3015
        %v3017 = vrot.slane %v676, 5
        %v3018 = vsel %vm1530, %v3015, %v3017
        %v3019 = vrot.slane %v680, 5
        %v3020 = vsel %vm1530, %v3017, %v3019
        %3021 = vrot.lane.b32.xlu0 %v2958, 126
        %v3022 = vpop.permute.xlu0 %3021
        %3023 = vrot.lane.b32.xlu0 %v2960, 126
        %v3024 = vpop.permute.xlu0 %3023
        %3025 = vrot.lane.b32.xlu0 %v2962, 126
        %v3026 = vpop.permute.xlu0 %3025
        %3027 = vrot.lane.b32.xlu0 %v2964, 126
        %v3028 = vpop.permute.xlu0 %3027
        %3029 = vrot.lane.b32.xlu0 %v2966, 126
        %v3030 = vpop.permute.xlu0 %3029
        %3031 = vrot.lane.b32.xlu0 %v2968, 126
        %v3032 = vpop.permute.xlu0 %3031
        %3033 = vrot.lane.b32.xlu0 %v2970, 126
        %v3034 = vpop.permute.xlu0 %3033
        %3035 = vrot.lane.b32.xlu0 %v2972, 126
        %v3036 = vpop.permute.xlu0 %3035
        %3037 = vrot.lane.b32.xlu0 %v2974, 126
        %v3038 = vpop.permute.xlu0 %3037
        %3039 = vrot.lane.b32.xlu0 %v2976, 126
        %v3040 = vpop.permute.xlu0 %3039
        %3041 = vrot.lane.b32.xlu0 %v2978, 126
        %v3042 = vpop.permute.xlu0 %3041
        %3043 = vrot.lane.b32.xlu0 %v2980, 126
        %v3044 = vpop.permute.xlu0 %3043
        %3045 = vrot.lane.b32.xlu0 %v2982, 126
        %v3046 = vpop.permute.xlu0 %3045
        %3047 = vrot.lane.b32.xlu0 %v2984, 126
        %v3048 = vpop.permute.xlu0 %3047
        %3049 = vrot.lane.b32.xlu0 %v2986, 126
        %v3050 = vpop.permute.xlu0 %3049
        %3051 = vrot.lane.b32.xlu0 %v2988, 126
        %v3052 = vpop.permute.xlu0 %3051
        %3053 = vrot.lane.b32.xlu0 %v2990, 126
        %v3054 = vpop.permute.xlu0 %3053
        %3055 = vrot.lane.b32.xlu0 %v2992, 126
        %v3056 = vpop.permute.xlu0 %3055
        %3057 = vrot.lane.b32.xlu0 %v2994, 126
        %v3058 = vpop.permute.xlu0 %3057
        %3059 = vrot.lane.b32.xlu0 %v2996, 126
        %v3060 = vpop.permute.xlu0 %3059
        %3061 = vrot.lane.b32.xlu0 %v2998, 126
        %v3062 = vpop.permute.xlu0 %3061
        %3063 = vrot.lane.b32.xlu0 %v3000, 126
        %v3064 = vpop.permute.xlu0 %3063
        %3065 = vrot.lane.b32.xlu0 %v3002, 126
        %v3066 = vpop.permute.xlu0 %3065
        %3067 = vrot.lane.b32.xlu0 %v3004, 126
        %v3068 = vpop.permute.xlu0 %3067
        %3069 = vrot.lane.b32.xlu0 %v3006, 126
        %v3070 = vpop.permute.xlu0 %3069
        %3071 = vrot.lane.b32.xlu0 %v3008, 126
        %v3072 = vpop.permute.xlu0 %3071
        %3073 = vrot.lane.b32.xlu0 %v3010, 126
        %v3074 = vpop.permute.xlu0 %3073
        %3075 = vrot.lane.b32.xlu0 %v3012, 126
        %v3076 = vpop.permute.xlu0 %3075
        %3077 = vrot.lane.b32.xlu0 %v3014, 126
        %v3078 = vpop.permute.xlu0 %3077
        %3079 = vrot.lane.b32.xlu0 %v3016, 126
        %v3080 = vpop.permute.xlu0 %3079
        %3081 = vrot.lane.b32.xlu0 %v3018, 126
        %v3082 = vpop.permute.xlu0 %3081
        %3083 = vrot.lane.b32.xlu0 %v3020, 126
        %v3084 = vpop.permute.xlu0 %3083
        %v3117 = vadd.f32 %v2924, %v3022
        %v3118 = vadd.f32 %v2925, %v3024
        %v3119 = vadd.f32 %v2926, %v3026
        %v3120 = vadd.f32 %v2927, %v3028
        %v3121 = vadd.f32 %v2928, %v3030
        %v3122 = vadd.f32 %v2929, %v3032
        %v3123 = vadd.f32 %v2930, %v3034
        %v3124 = vadd.f32 %v2931, %v3036
        %v3125 = vadd.f32 %v2932, %v3038
        %v3126 = vadd.f32 %v2933, %v3040
        %v3127 = vadd.f32 %v2934, %v3042
        %v3128 = vadd.f32 %v2935, %v3044
        %v3129 = vadd.f32 %v2936, %v3046
        %v3130 = vadd.f32 %v2937, %v3048
        %v3131 = vadd.f32 %v2938, %v3050
        %v3132 = vadd.f32 %v2939, %v3052
        %v3133 = vadd.f32 %v2940, %v3054
        %v3134 = vadd.f32 %v2941, %v3056
        %v3135 = vadd.f32 %v2942, %v3058
        %v3136 = vadd.f32 %v2943, %v3060
        %v3137 = vadd.f32 %v2944, %v3062
        %v3138 = vadd.f32 %v2945, %v3064
        %v3139 = vadd.f32 %v2946, %v3066
        %v3140 = vadd.f32 %v2947, %v3068
        %v3141 = vadd.f32 %v2948, %v3070
        %v3142 = vadd.f32 %v2949, %v3072
        %v3143 = vadd.f32 %v2950, %v3074
        %v3144 = vadd.f32 %v2951, %v3076
        %v3145 = vadd.f32 %v2952, %v3078
        %v3146 = vadd.f32 %v2953, %v3080
        %v3147 = vadd.f32 %v2954, %v3082
        %v3148 = vadd.f32 %v2955, %v3084
        %v3149 = vrot.slane %v520, 6
        %v3150 = vrot.slane %v526, 6
        %v3151 = vsel %vm1724, %v3149, %v3150
        %v3152 = vrot.slane %v530, 6
        %v3153 = vsel %vm1724, %v3150, %v3152
        %v3154 = vrot.slane %v536, 6
        %v3155 = vsel %vm1724, %v3152, %v3154
        %v3156 = vrot.slane %v540, 6
        %v3157 = vsel %vm1724, %v3154, %v3156
        %v3158 = vrot.slane %v546, 6
        %v3159 = vsel %vm1724, %v3156, %v3158
        %v3160 = vrot.slane %v550, 6
        %v3161 = vsel %vm1724, %v3158, %v3160
        %v3162 = vrot.slane %v556, 6
        %v3163 = vsel %vm1724, %v3160, %v3162
        %v3164 = vrot.slane %v560, 6
        %v3165 = vsel %vm1724, %v3162, %v3164
        %v3166 = vrot.slane %v566, 6
        %v3167 = vsel %vm1724, %v3164, %v3166
        %v3168 = vrot.slane %v570, 6
        %v3169 = vsel %vm1724, %v3166, %v3168
        %v3170 = vrot.slane %v576, 6
        %v3171 = vsel %vm1724, %v3168, %v3170
        %v3172 = vrot.slane %v580, 6
        %v3173 = vsel %vm1724, %v3170, %v3172
        %v3174 = vrot.slane %v586, 6
        %v3175 = vsel %vm1724, %v3172, %v3174
        %v3176 = vrot.slane %v590, 6
        %v3177 = vsel %vm1724, %v3174, %v3176
        %v3178 = vrot.slane %v596, 6
        %v3179 = vsel %vm1724, %v3176, %v3178
        %v3180 = vrot.slane %v600, 6
        %v3181 = vsel %vm1724, %v3178, %v3180
        %v3182 = vrot.slane %v606, 6
        %v3183 = vsel %vm1724, %v3180, %v3182
        %v3184 = vrot.slane %v610, 6
        %v3185 = vsel %vm1724, %v3182, %v3184
        %v3186 = vrot.slane %v616, 6
        %v3187 = vsel %vm1724, %v3184, %v3186
        %v3188 = vrot.slane %v620, 6
        %v3189 = vsel %vm1724, %v3186, %v3188
        %v3190 = vrot.slane %v626, 6
        %v3191 = vsel %vm1724, %v3188, %v3190
        %v3192 = vrot.slane %v630, 6
        %v3193 = vsel %vm1724, %v3190, %v3192
        %v3194 = vrot.slane %v636, 6
        %v3195 = vsel %vm1724, %v3192, %v3194
        %v3196 = vrot.slane %v640, 6
        %v3197 = vsel %vm1724, %v3194, %v3196
        %v3198 = vrot.slane %v646, 6
        %v3199 = vsel %vm1724, %v3196, %v3198
        %v3200 = vrot.slane %v650, 6
        %v3201 = vsel %vm1724, %v3198, %v3200
        %v3202 = vrot.slane %v656, 6
        %v3203 = vsel %vm1724, %v3200, %v3202
        %v3204 = vrot.slane %v660, 6
        %v3205 = vsel %vm1724, %v3202, %v3204
        %v3206 = vrot.slane %v666, 6
        %v3207 = vsel %vm1724, %v3204, %v3206
        %v3208 = vrot.slane %v670, 6
        %v3209 = vsel %vm1724, %v3206, %v3208
        %v3210 = vrot.slane %v676, 6
        %v3211 = vsel %vm1724, %v3208, %v3210
        %v3212 = vrot.slane %v680, 6
        %v3213 = vsel %vm1724, %v3210, %v3212
        %3214 = vrot.lane.b32.xlu0 %v3151, 116
        %v3215 = vpop.permute.xlu0 %3214
        %3216 = vrot.lane.b32.xlu0 %v3153, 116
        %v3217 = vpop.permute.xlu0 %3216
        %3218 = vrot.lane.b32.xlu0 %v3155, 116
        %v3219 = vpop.permute.xlu0 %3218
        %3220 = vrot.lane.b32.xlu0 %v3157, 116
        %v3221 = vpop.permute.xlu0 %3220
        %3222 = vrot.lane.b32.xlu0 %v3159, 116
        %v3223 = vpop.permute.xlu0 %3222
        %3224 = vrot.lane.b32.xlu0 %v3161, 116
        %v3225 = vpop.permute.xlu0 %3224
        %3226 = vrot.lane.b32.xlu0 %v3163, 116
        %v3227 = vpop.permute.xlu0 %3226
        %3228 = vrot.lane.b32.xlu0 %v3165, 116
        %v3229 = vpop.permute.xlu0 %3228
        %3230 = vrot.lane.b32.xlu0 %v3167, 116
        %v3231 = vpop.permute.xlu0 %3230
        %3232 = vrot.lane.b32.xlu0 %v3169, 116
        %v3233 = vpop.permute.xlu0 %3232
        %3234 = vrot.lane.b32.xlu0 %v3171, 116
        %v3235 = vpop.permute.xlu0 %3234
        %3236 = vrot.lane.b32.xlu0 %v3173, 116
        %v3237 = vpop.permute.xlu0 %3236
        %3238 = vrot.lane.b32.xlu0 %v3175, 116
        %v3239 = vpop.permute.xlu0 %3238
        %3240 = vrot.lane.b32.xlu0 %v3177, 116
        %v3241 = vpop.permute.xlu0 %3240
        %3242 = vrot.lane.b32.xlu0 %v3179, 116
        %v3243 = vpop.permute.xlu0 %3242
        %3244 = vrot.lane.b32.xlu0 %v3181, 116
        %v3245 = vpop.permute.xlu0 %3244
        %3246 = vrot.lane.b32.xlu0 %v3183, 116
        %v3247 = vpop.permute.xlu0 %3246
        %3248 = vrot.lane.b32.xlu0 %v3185, 116
        %v3249 = vpop.permute.xlu0 %3248
        %3250 = vrot.lane.b32.xlu0 %v3187, 116
        %v3251 = vpop.permute.xlu0 %3250
        %3252 = vrot.lane.b32.xlu0 %v3189, 116
        %v3253 = vpop.permute.xlu0 %3252
        %3254 = vrot.lane.b32.xlu0 %v3191, 116
        %v3255 = vpop.permute.xlu0 %3254
        %3256 = vrot.lane.b32.xlu0 %v3193, 116
        %v3257 = vpop.permute.xlu0 %3256
        %3258 = vrot.lane.b32.xlu0 %v3195, 116
        %v3259 = vpop.permute.xlu0 %3258
        %3260 = vrot.lane.b32.xlu0 %v3197, 116
        %v3261 = vpop.permute.xlu0 %3260
        %3262 = vrot.lane.b32.xlu0 %v3199, 116
        %v3263 = vpop.permute.xlu0 %3262
        %3264 = vrot.lane.b32.xlu0 %v3201, 116
        %v3265 = vpop.permute.xlu0 %3264
        %3266 = vrot.lane.b32.xlu0 %v3203, 116
        %v3267 = vpop.permute.xlu0 %3266
        %3268 = vrot.lane.b32.xlu0 %v3205, 116
        %v3269 = vpop.permute.xlu0 %3268
        %3270 = vrot.lane.b32.xlu0 %v3207, 116
        %v3271 = vpop.permute.xlu0 %3270
        %3272 = vrot.lane.b32.xlu0 %v3209, 116
        %v3273 = vpop.permute.xlu0 %3272
        %3274 = vrot.lane.b32.xlu0 %v3211, 116
        %v3275 = vpop.permute.xlu0 %3274
        %3276 = vrot.lane.b32.xlu0 %v3213, 116
        %v3277 = vpop.permute.xlu0 %3276
        %v3310 = vadd.f32 %v3117, %v3215
        %v3311 = vadd.f32 %v3118, %v3217
        %v3312 = vadd.f32 %v3119, %v3219
        %v3313 = vadd.f32 %v3120, %v3221
        %v3314 = vadd.f32 %v3121, %v3223
        %v3315 = vadd.f32 %v3122, %v3225
        %v3316 = vadd.f32 %v3123, %v3227
        %v3317 = vadd.f32 %v3124, %v3229
        %v3318 = vadd.f32 %v3125, %v3231
        %v3319 = vadd.f32 %v3126, %v3233
        %v3320 = vadd.f32 %v3127, %v3235
        %v3321 = vadd.f32 %v3128, %v3237
        %v3322 = vadd.f32 %v3129, %v3239
        %v3323 = vadd.f32 %v3130, %v3241
        %v3324 = vadd.f32 %v3131, %v3243
        %v3325 = vadd.f32 %v3132, %v3245
        %v3326 = vadd.f32 %v3133, %v3247
        %v3327 = vadd.f32 %v3134, %v3249
        %v3328 = vadd.f32 %v3135, %v3251
        %v3329 = vadd.f32 %v3136, %v3253
        %v3330 = vadd.f32 %v3137, %v3255
        %v3331 = vadd.f32 %v3138, %v3257
        %v3332 = vadd.f32 %v3139, %v3259
        %v3333 = vadd.f32 %v3140, %v3261
        %v3334 = vadd.f32 %v3141, %v3263
        %v3335 = vadd.f32 %v3142, %v3265
        %v3336 = vadd.f32 %v3143, %v3267
        %v3337 = vadd.f32 %v3144, %v3269
        %v3338 = vadd.f32 %v3145, %v3271
        %v3339 = vadd.f32 %v3146, %v3273
        %v3340 = vadd.f32 %v3147, %v3275
        %v3341 = vadd.f32 %v3148, %v3277
        %v3342 = vrot.slane %v520, 7
        %v3343 = vrot.slane %v526, 7
        %v3344 = vsel %vm1918, %v3342, %v3343
        %v3345 = vrot.slane %v530, 7
        %v3346 = vsel %vm1918, %v3343, %v3345
        %v3347 = vrot.slane %v536, 7
        %v3348 = vsel %vm1918, %v3345, %v3347
        %v3349 = vrot.slane %v540, 7
        %v3350 = vsel %vm1918, %v3347, %v3349
        %v3351 = vrot.slane %v546, 7
        %v3352 = vsel %vm1918, %v3349, %v3351
        %v3353 = vrot.slane %v550, 7
        %v3354 = vsel %vm1918, %v3351, %v3353
        %v3355 = vrot.slane %v556, 7
        %v3356 = vsel %vm1918, %v3353, %v3355
        %v3357 = vrot.slane %v560, 7
        %v3358 = vsel %vm1918, %v3355, %v3357
        %v3359 = vrot.slane %v566, 7
        %v3360 = vsel %vm1918, %v3357, %v3359
        %v3361 = vrot.slane %v570, 7
        %v3362 = vsel %vm1918, %v3359, %v3361
        %v3363 = vrot.slane %v576, 7
        %v3364 = vsel %vm1918, %v3361, %v3363
        %v3365 = vrot.slane %v580, 7
        %v3366 = vsel %vm1918, %v3363, %v3365
        %v3367 = vrot.slane %v586, 7
        %v3368 = vsel %vm1918, %v3365, %v3367
        %v3369 = vrot.slane %v590, 7
        %v3370 = vsel %vm1918, %v3367, %v3369
        %v3371 = vrot.slane %v596, 7
        %v3372 = vsel %vm1918, %v3369, %v3371
        %v3373 = vrot.slane %v600, 7
        %v3374 = vsel %vm1918, %v3371, %v3373
        %v3375 = vrot.slane %v606, 7
        %v3376 = vsel %vm1918, %v3373, %v3375
        %v3377 = vrot.slane %v610, 7
        %v3378 = vsel %vm1918, %v3375, %v3377
        %v3379 = vrot.slane %v616, 7
        %v3380 = vsel %vm1918, %v3377, %v3379
        %v3381 = vrot.slane %v620, 7
        %v3382 = vsel %vm1918, %v3379, %v3381
        %v3383 = vrot.slane %v626, 7
        %v3384 = vsel %vm1918, %v3381, %v3383
        %v3385 = vrot.slane %v630, 7
        %v3386 = vsel %vm1918, %v3383, %v3385
        %v3387 = vrot.slane %v636, 7
        %v3388 = vsel %vm1918, %v3385, %v3387
        %v3389 = vrot.slane %v640, 7
        %v3390 = vsel %vm1918, %v3387, %v3389
        %v3391 = vrot.slane %v646, 7
        %v3392 = vsel %vm1918, %v3389, %v3391
        %v3393 = vrot.slane %v650, 7
        %v3394 = vsel %vm1918, %v3391, %v3393
        %v3395 = vrot.slane %v656, 7
        %v3396 = vsel %vm1918, %v3393, %v3395
        %v3397 = vrot.slane %v660, 7
        %v3398 = vsel %vm1918, %v3395, %v3397
        %v3399 = vrot.slane %v666, 7
        %v3400 = vsel %vm1918, %v3397, %v3399
        %v3401 = vrot.slane %v670, 7
        %v3402 = vsel %vm1918, %v3399, %v3401
        %v3403 = vrot.slane %v676, 7
        %v3404 = vsel %vm1918, %v3401, %v3403
        %v3405 = vrot.slane %v680, 7
        %v3406 = vsel %vm1918, %v3403, %v3405
        %3407 = vrot.lane.b32.xlu0 %v3344, 106
        %v3408 = vpop.permute.xlu0 %3407
        %3409 = vrot.lane.b32.xlu0 %v3346, 106
        %v3410 = vpop.permute.xlu0 %3409
        %3411 = vrot.lane.b32.xlu0 %v3348, 106
        %v3412 = vpop.permute.xlu0 %3411
        %3413 = vrot.lane.b32.xlu0 %v3350, 106
        %v3414 = vpop.permute.xlu0 %3413
        %3415 = vrot.lane.b32.xlu0 %v3352, 106
        %v3416 = vpop.permute.xlu0 %3415
        %3417 = vrot.lane.b32.xlu0 %v3354, 106
        %v3418 = vpop.permute.xlu0 %3417
        %3419 = vrot.lane.b32.xlu0 %v3356, 106
        %v3420 = vpop.permute.xlu0 %3419
        %3421 = vrot.lane.b32.xlu0 %v3358, 106
        %v3422 = vpop.permute.xlu0 %3421
        %3423 = vrot.lane.b32.xlu0 %v3360, 106
        %v3424 = vpop.permute.xlu0 %3423
        %3425 = vrot.lane.b32.xlu0 %v3362, 106
        %v3426 = vpop.permute.xlu0 %3425
        %3427 = vrot.lane.b32.xlu0 %v3364, 106
        %v3428 = vpop.permute.xlu0 %3427
        %3429 = vrot.lane.b32.xlu0 %v3366, 106
        %v3430 = vpop.permute.xlu0 %3429
        %3431 = vrot.lane.b32.xlu0 %v3368, 106
        %v3432 = vpop.permute.xlu0 %3431
        %3433 = vrot.lane.b32.xlu0 %v3370, 106
        %v3434 = vpop.permute.xlu0 %3433
        %3435 = vrot.lane.b32.xlu0 %v3372, 106
        %v3436 = vpop.permute.xlu0 %3435
        %3437 = vrot.lane.b32.xlu0 %v3374, 106
        %v3438 = vpop.permute.xlu0 %3437
        %3439 = vrot.lane.b32.xlu0 %v3376, 106
        %v3440 = vpop.permute.xlu0 %3439
        %3441 = vrot.lane.b32.xlu0 %v3378, 106
        %v3442 = vpop.permute.xlu0 %3441
        %3443 = vrot.lane.b32.xlu0 %v3380, 106
        %v3444 = vpop.permute.xlu0 %3443
        %3445 = vrot.lane.b32.xlu0 %v3382, 106
        %v3446 = vpop.permute.xlu0 %3445
        %3447 = vrot.lane.b32.xlu0 %v3384, 106
        %v3448 = vpop.permute.xlu0 %3447
        %3449 = vrot.lane.b32.xlu0 %v3386, 106
        %v3450 = vpop.permute.xlu0 %3449
        %3451 = vrot.lane.b32.xlu0 %v3388, 106
        %v3452 = vpop.permute.xlu0 %3451
        %3453 = vrot.lane.b32.xlu0 %v3390, 106
        %v3454 = vpop.permute.xlu0 %3453
        %3455 = vrot.lane.b32.xlu0 %v3392, 106
        %v3456 = vpop.permute.xlu0 %3455
        %3457 = vrot.lane.b32.xlu0 %v3394, 106
        %v3458 = vpop.permute.xlu0 %3457
        %3459 = vrot.lane.b32.xlu0 %v3396, 106
        %v3460 = vpop.permute.xlu0 %3459
        %3461 = vrot.lane.b32.xlu0 %v3398, 106
        %v3462 = vpop.permute.xlu0 %3461
        %3463 = vrot.lane.b32.xlu0 %v3400, 106
        %v3464 = vpop.permute.xlu0 %3463
        %3465 = vrot.lane.b32.xlu0 %v3402, 106
        %v3466 = vpop.permute.xlu0 %3465
        %3467 = vrot.lane.b32.xlu0 %v3404, 106
        %v3468 = vpop.permute.xlu0 %3467
        %3469 = vrot.lane.b32.xlu0 %v3406, 106
        %v3470 = vpop.permute.xlu0 %3469
        %v3503 = vadd.f32 %v3310, %v3408
        %v3504 = vadd.f32 %v3311, %v3410
        %v3505 = vadd.f32 %v3312, %v3412
        %v3506 = vadd.f32 %v3313, %v3414
        %v3507 = vadd.f32 %v3314, %v3416
        %v3508 = vadd.f32 %v3315, %v3418
        %v3509 = vadd.f32 %v3316, %v3420
        %v3510 = vadd.f32 %v3317, %v3422
        %v3511 = vadd.f32 %v3318, %v3424
        %v3512 = vadd.f32 %v3319, %v3426
        %v3513 = vadd.f32 %v3320, %v3428
        %v3514 = vadd.f32 %v3321, %v3430
        %v3515 = vadd.f32 %v3322, %v3432
        %v3516 = vadd.f32 %v3323, %v3434
        %v3517 = vadd.f32 %v3324, %v3436
        %v3518 = vadd.f32 %v3325, %v3438
        %v3519 = vadd.f32 %v3326, %v3440
        %v3520 = vadd.f32 %v3327, %v3442
        %v3521 = vadd.f32 %v3328, %v3444
        %v3522 = vadd.f32 %v3329, %v3446
        %v3523 = vadd.f32 %v3330, %v3448
        %v3524 = vadd.f32 %v3331, %v3450
        %v3525 = vadd.f32 %v3332, %v3452
        %v3526 = vadd.f32 %v3333, %v3454
        %v3527 = vadd.f32 %v3334, %v3456
        %v3528 = vadd.f32 %v3335, %v3458
        %v3529 = vadd.f32 %v3336, %v3460
        %v3530 = vadd.f32 %v3337, %v3462
        %v3531 = vadd.f32 %v3338, %v3464
        %v3532 = vadd.f32 %v3339, %v3466
        %v3533 = vadd.f32 %v3340, %v3468
        %v3534 = vadd.f32 %v3341, %v3470
        %3535 = vrot.lane.b32.xlu0 %v526, 96
        %v3536 = vpop.permute.xlu0 %3535
        %3537 = vrot.lane.b32.xlu0 %v530, 96
        %v3538 = vpop.permute.xlu0 %3537
        %3539 = vrot.lane.b32.xlu0 %v536, 96
        %v3540 = vpop.permute.xlu0 %3539
        %3541 = vrot.lane.b32.xlu0 %v540, 96
        %v3542 = vpop.permute.xlu0 %3541
        %3543 = vrot.lane.b32.xlu0 %v546, 96
        %v3544 = vpop.permute.xlu0 %3543
        %3545 = vrot.lane.b32.xlu0 %v550, 96
        %v3546 = vpop.permute.xlu0 %3545
        %3547 = vrot.lane.b32.xlu0 %v556, 96
        %v3548 = vpop.permute.xlu0 %3547
        %3549 = vrot.lane.b32.xlu0 %v560, 96
        %v3550 = vpop.permute.xlu0 %3549
        %3551 = vrot.lane.b32.xlu0 %v566, 96
        %v3552 = vpop.permute.xlu0 %3551
        %3553 = vrot.lane.b32.xlu0 %v570, 96
        %v3554 = vpop.permute.xlu0 %3553
        %3555 = vrot.lane.b32.xlu0 %v576, 96
        %v3556 = vpop.permute.xlu0 %3555
        %3557 = vrot.lane.b32.xlu0 %v580, 96
        %v3558 = vpop.permute.xlu0 %3557
        %3559 = vrot.lane.b32.xlu0 %v586, 96
        %v3560 = vpop.permute.xlu0 %3559
        %3561 = vrot.lane.b32.xlu0 %v590, 96
        %v3562 = vpop.permute.xlu0 %3561
        %3563 = vrot.lane.b32.xlu0 %v596, 96
        %v3564 = vpop.permute.xlu0 %3563
        %3565 = vrot.lane.b32.xlu0 %v600, 96
        %v3566 = vpop.permute.xlu0 %3565
        %3567 = vrot.lane.b32.xlu0 %v606, 96
        %v3568 = vpop.permute.xlu0 %3567
        %3569 = vrot.lane.b32.xlu0 %v610, 96
        %v3570 = vpop.permute.xlu0 %3569
        %3571 = vrot.lane.b32.xlu0 %v616, 96
        %v3572 = vpop.permute.xlu0 %3571
        %3573 = vrot.lane.b32.xlu0 %v620, 96
        %v3574 = vpop.permute.xlu0 %3573
        %3575 = vrot.lane.b32.xlu0 %v626, 96
        %v3576 = vpop.permute.xlu0 %3575
        %3577 = vrot.lane.b32.xlu0 %v630, 96
        %v3578 = vpop.permute.xlu0 %3577
        %3579 = vrot.lane.b32.xlu0 %v636, 96
        %v3580 = vpop.permute.xlu0 %3579
        %3581 = vrot.lane.b32.xlu0 %v640, 96
        %v3582 = vpop.permute.xlu0 %3581
        %3583 = vrot.lane.b32.xlu0 %v646, 96
        %v3584 = vpop.permute.xlu0 %3583
        %3585 = vrot.lane.b32.xlu0 %v650, 96
        %v3586 = vpop.permute.xlu0 %3585
        %3587 = vrot.lane.b32.xlu0 %v656, 96
        %v3588 = vpop.permute.xlu0 %3587
        %3589 = vrot.lane.b32.xlu0 %v660, 96
        %v3590 = vpop.permute.xlu0 %3589
        %3591 = vrot.lane.b32.xlu0 %v666, 96
        %v3592 = vpop.permute.xlu0 %3591
        %3593 = vrot.lane.b32.xlu0 %v670, 96
        %v3594 = vpop.permute.xlu0 %3593
        %3595 = vrot.lane.b32.xlu0 %v676, 96
        %v3596 = vpop.permute.xlu0 %3595
        %3597 = vrot.lane.b32.xlu0 %v680, 96
        %v3598 = vpop.permute.xlu0 %3597
        %v3631 = vadd.f32 %v3503, %v3536
        %v3632 = vadd.f32 %v3504, %v3538
        %v3633 = vadd.f32 %v3505, %v3540
        %v3634 = vadd.f32 %v3506, %v3542
        %v3635 = vadd.f32 %v3507, %v3544
        %v3636 = vadd.f32 %v3508, %v3546
        %v3637 = vadd.f32 %v3509, %v3548
        %v3638 = vadd.f32 %v3510, %v3550
        %v3639 = vadd.f32 %v3511, %v3552
        %v3640 = vadd.f32 %v3512, %v3554
        %v3641 = vadd.f32 %v3513, %v3556
        %v3642 = vadd.f32 %v3514, %v3558
        %v3643 = vadd.f32 %v3515, %v3560
        %v3644 = vadd.f32 %v3516, %v3562
        %v3645 = vadd.f32 %v3517, %v3564
        %v3646 = vadd.f32 %v3518, %v3566
        %v3647 = vadd.f32 %v3519, %v3568
        %v3648 = vadd.f32 %v3520, %v3570
        %v3649 = vadd.f32 %v3521, %v3572
        %v3650 = vadd.f32 %v3522, %v3574
        %v3651 = vadd.f32 %v3523, %v3576
        %v3652 = vadd.f32 %v3524, %v3578
        %v3653 = vadd.f32 %v3525, %v3580
        %v3654 = vadd.f32 %v3526, %v3582
        %v3655 = vadd.f32 %v3527, %v3584
        %v3656 = vadd.f32 %v3528, %v3586
        %v3657 = vadd.f32 %v3529, %v3588
        %v3658 = vadd.f32 %v3530, %v3590
        %v3659 = vadd.f32 %v3531, %v3592
        %v3660 = vadd.f32 %v3532, %v3594
        %v3661 = vadd.f32 %v3533, %v3596
        %v3662 = vadd.f32 %v3534, %v3598
        %v3664 = vrot.slane %v526, 1
        %v3665 = vrot.slane %v530, 1
        %v3666 = vsel %vm754, %v3664, %v3665
        %v3667 = vrot.slane %v536, 1
        %v3668 = vsel %vm754, %v3665, %v3667
        %v3669 = vrot.slane %v540, 1
        %v3670 = vsel %vm754, %v3667, %v3669
        %v3671 = vrot.slane %v546, 1
        %v3672 = vsel %vm754, %v3669, %v3671
        %v3673 = vrot.slane %v550, 1
        %v3674 = vsel %vm754, %v3671, %v3673
        %v3675 = vrot.slane %v556, 1
        %v3676 = vsel %vm754, %v3673, %v3675
        %v3677 = vrot.slane %v560, 1
        %v3678 = vsel %vm754, %v3675, %v3677
        %v3679 = vrot.slane %v566, 1
        %v3680 = vsel %vm754, %v3677, %v3679
        %v3681 = vrot.slane %v570, 1
        %v3682 = vsel %vm754, %v3679, %v3681
        %v3683 = vrot.slane %v576, 1
        %v3684 = vsel %vm754, %v3681, %v3683
        %v3685 = vrot.slane %v580, 1
        %v3686 = vsel %vm754, %v3683, %v3685
        %v3687 = vrot.slane %v586, 1
        %v3688 = vsel %vm754, %v3685, %v3687
        %v3689 = vrot.slane %v590, 1
        %v3690 = vsel %vm754, %v3687, %v3689
        %v3691 = vrot.slane %v596, 1
        %v3692 = vsel %vm754, %v3689, %v3691
        %v3693 = vrot.slane %v600, 1
        %v3694 = vsel %vm754, %v3691, %v3693
        %v3695 = vrot.slane %v606, 1
        %v3696 = vsel %vm754, %v3693, %v3695
        %v3697 = vrot.slane %v610, 1
        %v3698 = vsel %vm754, %v3695, %v3697
        %v3699 = vrot.slane %v616, 1
        %v3700 = vsel %vm754, %v3697, %v3699
        %v3701 = vrot.slane %v620, 1
        %v3702 = vsel %vm754, %v3699, %v3701
        %v3703 = vrot.slane %v626, 1
        %v3704 = vsel %vm754, %v3701, %v3703
        %v3705 = vrot.slane %v630, 1
        %v3706 = vsel %vm754, %v3703, %v3705
        %v3707 = vrot.slane %v636, 1
        %v3708 = vsel %vm754, %v3705, %v3707
        %v3709 = vrot.slane %v640, 1
        %v3710 = vsel %vm754, %v3707, %v3709
        %v3711 = vrot.slane %v646, 1
        %v3712 = vsel %vm754, %v3709, %v3711
        %v3713 = vrot.slane %v650, 1
        %v3714 = vsel %vm754, %v3711, %v3713
        %v3715 = vrot.slane %v656, 1
        %v3716 = vsel %vm754, %v3713, %v3715
        %v3717 = vrot.slane %v660, 1
        %v3718 = vsel %vm754, %v3715, %v3717
        %v3719 = vrot.slane %v666, 1
        %v3720 = vsel %vm754, %v3717, %v3719
        %v3721 = vrot.slane %v670, 1
        %v3722 = vsel %vm754, %v3719, %v3721
        %v3723 = vrot.slane %v676, 1
        %v3724 = vsel %vm754, %v3721, %v3723
        %v3725 = vrot.slane %v680, 1
        %v3726 = vsel %vm754, %v3723, %v3725
        %v3727 = vrot.slane %v685, 1
        %v3728 = vsel %vm754, %v3725, %v3727
        %3729 = vrot.lane.b32.xlu0 %v3666, 86
        %v3730 = vpop.permute.xlu0 %3729
        %3731 = vrot.lane.b32.xlu0 %v3668, 86
        %v3732 = vpop.permute.xlu0 %3731
        %3733 = vrot.lane.b32.xlu0 %v3670, 86
        %v3734 = vpop.permute.xlu0 %3733
        %3735 = vrot.lane.b32.xlu0 %v3672, 86
        %v3736 = vpop.permute.xlu0 %3735
        %3737 = vrot.lane.b32.xlu0 %v3674, 86
        %v3738 = vpop.permute.xlu0 %3737
        %3739 = vrot.lane.b32.xlu0 %v3676, 86
        %v3740 = vpop.permute.xlu0 %3739
        %3741 = vrot.lane.b32.xlu0 %v3678, 86
        %v3742 = vpop.permute.xlu0 %3741
        %3743 = vrot.lane.b32.xlu0 %v3680, 86
        %v3744 = vpop.permute.xlu0 %3743
        %3745 = vrot.lane.b32.xlu0 %v3682, 86
        %v3746 = vpop.permute.xlu0 %3745
        %3747 = vrot.lane.b32.xlu0 %v3684, 86
        %v3748 = vpop.permute.xlu0 %3747
        %3749 = vrot.lane.b32.xlu0 %v3686, 86
        %v3750 = vpop.permute.xlu0 %3749
        %3751 = vrot.lane.b32.xlu0 %v3688, 86
        %v3752 = vpop.permute.xlu0 %3751
        %3753 = vrot.lane.b32.xlu0 %v3690, 86
        %v3754 = vpop.permute.xlu0 %3753
        %3755 = vrot.lane.b32.xlu0 %v3692, 86
        %v3756 = vpop.permute.xlu0 %3755
        %3757 = vrot.lane.b32.xlu0 %v3694, 86
        %v3758 = vpop.permute.xlu0 %3757
        %3759 = vrot.lane.b32.xlu0 %v3696, 86
        %v3760 = vpop.permute.xlu0 %3759
        %3761 = vrot.lane.b32.xlu0 %v3698, 86
        %v3762 = vpop.permute.xlu0 %3761
        %3763 = vrot.lane.b32.xlu0 %v3700, 86
        %v3764 = vpop.permute.xlu0 %3763
        %3765 = vrot.lane.b32.xlu0 %v3702, 86
        %v3766 = vpop.permute.xlu0 %3765
        %3767 = vrot.lane.b32.xlu0 %v3704, 86
        %v3768 = vpop.permute.xlu0 %3767
        %3769 = vrot.lane.b32.xlu0 %v3706, 86
        %v3770 = vpop.permute.xlu0 %3769
        %3771 = vrot.lane.b32.xlu0 %v3708, 86
        %v3772 = vpop.permute.xlu0 %3771
        %3773 = vrot.lane.b32.xlu0 %v3710, 86
        %v3774 = vpop.permute.xlu0 %3773
        %3775 = vrot.lane.b32.xlu0 %v3712, 86
        %v3776 = vpop.permute.xlu0 %3775
        %3777 = vrot.lane.b32.xlu0 %v3714, 86
        %v3778 = vpop.permute.xlu0 %3777
        %3779 = vrot.lane.b32.xlu0 %v3716, 86
        %v3780 = vpop.permute.xlu0 %3779
        %3781 = vrot.lane.b32.xlu0 %v3718, 86
        %v3782 = vpop.permute.xlu0 %3781
        %3783 = vrot.lane.b32.xlu0 %v3720, 86
        %v3784 = vpop.permute.xlu0 %3783
        %3785 = vrot.lane.b32.xlu0 %v3722, 86
        %v3786 = vpop.permute.xlu0 %3785
        %3787 = vrot.lane.b32.xlu0 %v3724, 86
        %v3788 = vpop.permute.xlu0 %3787
        %3789 = vrot.lane.b32.xlu0 %v3726, 86
        %v3790 = vpop.permute.xlu0 %3789
        %3791 = vrot.lane.b32.xlu0 %v3728, 86
        %v3792 = vpop.permute.xlu0 %3791
        %v3825 = vadd.f32 %v3631, %v3730
        %v3826 = vadd.f32 %v3632, %v3732
        %v3827 = vadd.f32 %v3633, %v3734
        %v3828 = vadd.f32 %v3634, %v3736
        %v3829 = vadd.f32 %v3635, %v3738
        %v3830 = vadd.f32 %v3636, %v3740
        %v3831 = vadd.f32 %v3637, %v3742
        %v3832 = vadd.f32 %v3638, %v3744
        %v3833 = vadd.f32 %v3639, %v3746
        %v3834 = vadd.f32 %v3640, %v3748
        %v3835 = vadd.f32 %v3641, %v3750
        %v3836 = vadd.f32 %v3642, %v3752
        %v3837 = vadd.f32 %v3643, %v3754
        %v3838 = vadd.f32 %v3644, %v3756
        %v3839 = vadd.f32 %v3645, %v3758
        %v3840 = vadd.f32 %v3646, %v3760
        %v3841 = vadd.f32 %v3647, %v3762
        %v3842 = vadd.f32 %v3648, %v3764
        %v3843 = vadd.f32 %v3649, %v3766
        %v3844 = vadd.f32 %v3650, %v3768
        %v3845 = vadd.f32 %v3651, %v3770
        %v3846 = vadd.f32 %v3652, %v3772
        %v3847 = vadd.f32 %v3653, %v3774
        %v3848 = vadd.f32 %v3654, %v3776
        %v3849 = vadd.f32 %v3655, %v3778
        %v3850 = vadd.f32 %v3656, %v3780
        %v3851 = vadd.f32 %v3657, %v3782
        %v3852 = vadd.f32 %v3658, %v3784
        %v3853 = vadd.f32 %v3659, %v3786
        %v3854 = vadd.f32 %v3660, %v3788
        %v3855 = vadd.f32 %v3661, %v3790
        %v3856 = vadd.f32 %v3662, %v3792
        %v3857 = vrot.slane %v526, 2
        %v3858 = vrot.slane %v530, 2
        %v3859 = vsel %vm948, %v3857, %v3858
        %v3860 = vrot.slane %v536, 2
        %v3861 = vsel %vm948, %v3858, %v3860
        %v3862 = vrot.slane %v540, 2
        %v3863 = vsel %vm948, %v3860, %v3862
        %v3864 = vrot.slane %v546, 2
        %v3865 = vsel %vm948, %v3862, %v3864
        %v3866 = vrot.slane %v550, 2
        %v3867 = vsel %vm948, %v3864, %v3866
        %v3868 = vrot.slane %v556, 2
        %v3869 = vsel %vm948, %v3866, %v3868
        %v3870 = vrot.slane %v560, 2
        %v3871 = vsel %vm948, %v3868, %v3870
        %v3872 = vrot.slane %v566, 2
        %v3873 = vsel %vm948, %v3870, %v3872
        %v3874 = vrot.slane %v570, 2
        %v3875 = vsel %vm948, %v3872, %v3874
        %v3876 = vrot.slane %v576, 2
        %v3877 = vsel %vm948, %v3874, %v3876
        %v3878 = vrot.slane %v580, 2
        %v3879 = vsel %vm948, %v3876, %v3878
        %v3880 = vrot.slane %v586, 2
        %v3881 = vsel %vm948, %v3878, %v3880
        %v3882 = vrot.slane %v590, 2
        %v3883 = vsel %vm948, %v3880, %v3882
        %v3884 = vrot.slane %v596, 2
        %v3885 = vsel %vm948, %v3882, %v3884
        %v3886 = vrot.slane %v600, 2
        %v3887 = vsel %vm948, %v3884, %v3886
        %v3888 = vrot.slane %v606, 2
        %v3889 = vsel %vm948, %v3886, %v3888
        %v3890 = vrot.slane %v610, 2
        %v3891 = vsel %vm948, %v3888, %v3890
        %v3892 = vrot.slane %v616, 2
        %v3893 = vsel %vm948, %v3890, %v3892
        %v3894 = vrot.slane %v620, 2
        %v3895 = vsel %vm948, %v3892, %v3894
        %v3896 = vrot.slane %v626, 2
        %v3897 = vsel %vm948, %v3894, %v3896
        %v3898 = vrot.slane %v630, 2
        %v3899 = vsel %vm948, %v3896, %v3898
        %v3900 = vrot.slane %v636, 2
        %v3901 = vsel %vm948, %v3898, %v3900
        %v3902 = vrot.slane %v640, 2
        %v3903 = vsel %vm948, %v3900, %v3902
        %v3904 = vrot.slane %v646, 2
        %v3905 = vsel %vm948, %v3902, %v3904
        %v3906 = vrot.slane %v650, 2
        %v3907 = vsel %vm948, %v3904, %v3906
        %v3908 = vrot.slane %v656, 2
        %v3909 = vsel %vm948, %v3906, %v3908
        %v3910 = vrot.slane %v660, 2
        %v3911 = vsel %vm948, %v3908, %v3910
        %v3912 = vrot.slane %v666, 2
        %v3913 = vsel %vm948, %v3910, %v3912
        %v3914 = vrot.slane %v670, 2
        %v3915 = vsel %vm948, %v3912, %v3914
        %v3916 = vrot.slane %v676, 2
        %v3917 = vsel %vm948, %v3914, %v3916
        %v3918 = vrot.slane %v680, 2
        %v3919 = vsel %vm948, %v3916, %v3918
        %v3920 = vrot.slane %v685, 2
        %v3921 = vsel %vm948, %v3918, %v3920
        %3922 = vrot.lane.b32.xlu0 %v3859, 76
        %v3923 = vpop.permute.xlu0 %3922
        %3924 = vrot.lane.b32.xlu0 %v3861, 76
        %v3925 = vpop.permute.xlu0 %3924
        %3926 = vrot.lane.b32.xlu0 %v3863, 76
        %v3927 = vpop.permute.xlu0 %3926
        %3928 = vrot.lane.b32.xlu0 %v3865, 76
        %v3929 = vpop.permute.xlu0 %3928
        %3930 = vrot.lane.b32.xlu0 %v3867, 76
        %v3931 = vpop.permute.xlu0 %3930
        %3932 = vrot.lane.b32.xlu0 %v3869, 76
        %v3933 = vpop.permute.xlu0 %3932
        %3934 = vrot.lane.b32.xlu0 %v3871, 76
        %v3935 = vpop.permute.xlu0 %3934
        %3936 = vrot.lane.b32.xlu0 %v3873, 76
        %v3937 = vpop.permute.xlu0 %3936
        %3938 = vrot.lane.b32.xlu0 %v3875, 76
        %v3939 = vpop.permute.xlu0 %3938
        %3940 = vrot.lane.b32.xlu0 %v3877, 76
        %v3941 = vpop.permute.xlu0 %3940
        %3942 = vrot.lane.b32.xlu0 %v3879, 76
        %v3943 = vpop.permute.xlu0 %3942
        %3944 = vrot.lane.b32.xlu0 %v3881, 76
        %v3945 = vpop.permute.xlu0 %3944
        %3946 = vrot.lane.b32.xlu0 %v3883, 76
        %v3947 = vpop.permute.xlu0 %3946
        %3948 = vrot.lane.b32.xlu0 %v3885, 76
        %v3949 = vpop.permute.xlu0 %3948
        %3950 = vrot.lane.b32.xlu0 %v3887, 76
        %v3951 = vpop.permute.xlu0 %3950
        %3952 = vrot.lane.b32.xlu0 %v3889, 76
        %v3953 = vpop.permute.xlu0 %3952
        %3954 = vrot.lane.b32.xlu0 %v3891, 76
        %v3955 = vpop.permute.xlu0 %3954
        %3956 = vrot.lane.b32.xlu0 %v3893, 76
        %v3957 = vpop.permute.xlu0 %3956
        %3958 = vrot.lane.b32.xlu0 %v3895, 76
        %v3959 = vpop.permute.xlu0 %3958
        %3960 = vrot.lane.b32.xlu0 %v3897, 76
        %v3961 = vpop.permute.xlu0 %3960
        %3962 = vrot.lane.b32.xlu0 %v3899, 76
        %v3963 = vpop.permute.xlu0 %3962
        %3964 = vrot.lane.b32.xlu0 %v3901, 76
        %v3965 = vpop.permute.xlu0 %3964
        %3966 = vrot.lane.b32.xlu0 %v3903, 76
        %v3967 = vpop.permute.xlu0 %3966
        %3968 = vrot.lane.b32.xlu0 %v3905, 76
        %v3969 = vpop.permute.xlu0 %3968
        %3970 = vrot.lane.b32.xlu0 %v3907, 76
        %v3971 = vpop.permute.xlu0 %3970
        %3972 = vrot.lane.b32.xlu0 %v3909, 76
        %v3973 = vpop.permute.xlu0 %3972
        %3974 = vrot.lane.b32.xlu0 %v3911, 76
        %v3975 = vpop.permute.xlu0 %3974
        %3976 = vrot.lane.b32.xlu0 %v3913, 76
        %v3977 = vpop.permute.xlu0 %3976
        %3978 = vrot.lane.b32.xlu0 %v3915, 76
        %v3979 = vpop.permute.xlu0 %3978
        %3980 = vrot.lane.b32.xlu0 %v3917, 76
        %v3981 = vpop.permute.xlu0 %3980
        %3982 = vrot.lane.b32.xlu0 %v3919, 76
        %v3983 = vpop.permute.xlu0 %3982
        %3984 = vrot.lane.b32.xlu0 %v3921, 76
        %v3985 = vpop.permute.xlu0 %3984
        %v4018 = vadd.f32 %v3825, %v3923
        %v4019 = vadd.f32 %v3826, %v3925
        %v4020 = vadd.f32 %v3827, %v3927
        %v4021 = vadd.f32 %v3828, %v3929
        %v4022 = vadd.f32 %v3829, %v3931
        %v4023 = vadd.f32 %v3830, %v3933
        %v4024 = vadd.f32 %v3831, %v3935
        %v4025 = vadd.f32 %v3832, %v3937
        %v4026 = vadd.f32 %v3833, %v3939
        %v4027 = vadd.f32 %v3834, %v3941
        %v4028 = vadd.f32 %v3835, %v3943
        %v4029 = vadd.f32 %v3836, %v3945
        %v4030 = vadd.f32 %v3837, %v3947
        %v4031 = vadd.f32 %v3838, %v3949
        %v4032 = vadd.f32 %v3839, %v3951
        %v4033 = vadd.f32 %v3840, %v3953
        %v4034 = vadd.f32 %v3841, %v3955
        %v4035 = vadd.f32 %v3842, %v3957
        %v4036 = vadd.f32 %v3843, %v3959
        %v4037 = vadd.f32 %v3844, %v3961
        %v4038 = vadd.f32 %v3845, %v3963
        %v4039 = vadd.f32 %v3846, %v3965
        %v4040 = vadd.f32 %v3847, %v3967
        %v4041 = vadd.f32 %v3848, %v3969
        %v4042 = vadd.f32 %v3849, %v3971
        %v4043 = vadd.f32 %v3850, %v3973
        %v4044 = vadd.f32 %v3851, %v3975
        %v4045 = vadd.f32 %v3852, %v3977
        %v4046 = vadd.f32 %v3853, %v3979
        %v4047 = vadd.f32 %v3854, %v3981
        %v4048 = vadd.f32 %v3855, %v3983
        %v4049 = vadd.f32 %v3856, %v3985
        %v4050 = vrot.slane %v526, 3
        %v4051 = vrot.slane %v530, 3
        %v4052 = vsel %vm1142, %v4050, %v4051
        %v4053 = vrot.slane %v536, 3
        %v4054 = vsel %vm1142, %v4051, %v4053
        %v4055 = vrot.slane %v540, 3
        %v4056 = vsel %vm1142, %v4053, %v4055
        %v4057 = vrot.slane %v546, 3
        %v4058 = vsel %vm1142, %v4055, %v4057
        %v4059 = vrot.slane %v550, 3
        %v4060 = vsel %vm1142, %v4057, %v4059
        %v4061 = vrot.slane %v556, 3
        %v4062 = vsel %vm1142, %v4059, %v4061
        %v4063 = vrot.slane %v560, 3
        %v4064 = vsel %vm1142, %v4061, %v4063
        %v4065 = vrot.slane %v566, 3
        %v4066 = vsel %vm1142, %v4063, %v4065
        %v4067 = vrot.slane %v570, 3
        %v4068 = vsel %vm1142, %v4065, %v4067
        %v4069 = vrot.slane %v576, 3
        %v4070 = vsel %vm1142, %v4067, %v4069
        %v4071 = vrot.slane %v580, 3
        %v4072 = vsel %vm1142, %v4069, %v4071
        %v4073 = vrot.slane %v586, 3
        %v4074 = vsel %vm1142, %v4071, %v4073
        %v4075 = vrot.slane %v590, 3
        %v4076 = vsel %vm1142, %v4073, %v4075
        %v4077 = vrot.slane %v596, 3
        %v4078 = vsel %vm1142, %v4075, %v4077
        %v4079 = vrot.slane %v600, 3
        %v4080 = vsel %vm1142, %v4077, %v4079
        %v4081 = vrot.slane %v606, 3
        %v4082 = vsel %vm1142, %v4079, %v4081
        %v4083 = vrot.slane %v610, 3
        %v4084 = vsel %vm1142, %v4081, %v4083
        %v4085 = vrot.slane %v616, 3
        %v4086 = vsel %vm1142, %v4083, %v4085
        %v4087 = vrot.slane %v620, 3
        %v4088 = vsel %vm1142, %v4085, %v4087
        %v4089 = vrot.slane %v626, 3
        %v4090 = vsel %vm1142, %v4087, %v4089
        %v4091 = vrot.slane %v630, 3
        %v4092 = vsel %vm1142, %v4089, %v4091
        %v4093 = vrot.slane %v636, 3
        %v4094 = vsel %vm1142, %v4091, %v4093
        %v4095 = vrot.slane %v640, 3
        %v4096 = vsel %vm1142, %v4093, %v4095
        %v4097 = vrot.slane %v646, 3
        %v4098 = vsel %vm1142, %v4095, %v4097
        %v4099 = vrot.slane %v650, 3
        %v4100 = vsel %vm1142, %v4097, %v4099
        %v4101 = vrot.slane %v656, 3
        %v4102 = vsel %vm1142, %v4099, %v4101
        %v4103 = vrot.slane %v660, 3
        %v4104 = vsel %vm1142, %v4101, %v4103
        %v4105 = vrot.slane %v666, 3
        %v4106 = vsel %vm1142, %v4103, %v4105
        %v4107 = vrot.slane %v670, 3
        %v4108 = vsel %vm1142, %v4105, %v4107
        %v4109 = vrot.slane %v676, 3
        %v4110 = vsel %vm1142, %v4107, %v4109
        %v4111 = vrot.slane %v680, 3
        %v4112 = vsel %vm1142, %v4109, %v4111
        %v4113 = vrot.slane %v685, 3
        %v4114 = vsel %vm1142, %v4111, %v4113
        %4115 = vrot.lane.b32.xlu0 %v4052, 66
        %v4116 = vpop.permute.xlu0 %4115
        %4117 = vrot.lane.b32.xlu0 %v4054, 66
        %v4118 = vpop.permute.xlu0 %4117
        %4119 = vrot.lane.b32.xlu0 %v4056, 66
        %v4120 = vpop.permute.xlu0 %4119
        %4121 = vrot.lane.b32.xlu0 %v4058, 66
        %v4122 = vpop.permute.xlu0 %4121
        %4123 = vrot.lane.b32.xlu0 %v4060, 66
        %v4124 = vpop.permute.xlu0 %4123
        %4125 = vrot.lane.b32.xlu0 %v4062, 66
        %v4126 = vpop.permute.xlu0 %4125
        %4127 = vrot.lane.b32.xlu0 %v4064, 66
        %v4128 = vpop.permute.xlu0 %4127
        %4129 = vrot.lane.b32.xlu0 %v4066, 66
        %v4130 = vpop.permute.xlu0 %4129
        %4131 = vrot.lane.b32.xlu0 %v4068, 66
        %v4132 = vpop.permute.xlu0 %4131
        %4133 = vrot.lane.b32.xlu0 %v4070, 66
        %v4134 = vpop.permute.xlu0 %4133
        %4135 = vrot.lane.b32.xlu0 %v4072, 66
        %v4136 = vpop.permute.xlu0 %4135
        %4137 = vrot.lane.b32.xlu0 %v4074, 66
        %v4138 = vpop.permute.xlu0 %4137
        %4139 = vrot.lane.b32.xlu0 %v4076, 66
        %v4140 = vpop.permute.xlu0 %4139
        %4141 = vrot.lane.b32.xlu0 %v4078, 66
        %v4142 = vpop.permute.xlu0 %4141
        %4143 = vrot.lane.b32.xlu0 %v4080, 66
        %v4144 = vpop.permute.xlu0 %4143
        %4145 = vrot.lane.b32.xlu0 %v4082, 66
        %v4146 = vpop.permute.xlu0 %4145
        %4147 = vrot.lane.b32.xlu0 %v4084, 66
        %v4148 = vpop.permute.xlu0 %4147
        %4149 = vrot.lane.b32.xlu0 %v4086, 66
        %v4150 = vpop.permute.xlu0 %4149
        %4151 = vrot.lane.b32.xlu0 %v4088, 66
        %v4152 = vpop.permute.xlu0 %4151
        %4153 = vrot.lane.b32.xlu0 %v4090, 66
        %v4154 = vpop.permute.xlu0 %4153
        %4155 = vrot.lane.b32.xlu0 %v4092, 66
        %v4156 = vpop.permute.xlu0 %4155
        %4157 = vrot.lane.b32.xlu0 %v4094, 66
        %v4158 = vpop.permute.xlu0 %4157
        %4159 = vrot.lane.b32.xlu0 %v4096, 66
        %v4160 = vpop.permute.xlu0 %4159
        %4161 = vrot.lane.b32.xlu0 %v4098, 66
        %v4162 = vpop.permute.xlu0 %4161
        %4163 = vrot.lane.b32.xlu0 %v4100, 66
        %v4164 = vpop.permute.xlu0 %4163
        %4165 = vrot.lane.b32.xlu0 %v4102, 66
        %v4166 = vpop.permute.xlu0 %4165
        %4167 = vrot.lane.b32.xlu0 %v4104, 66
        %v4168 = vpop.permute.xlu0 %4167
        %4169 = vrot.lane.b32.xlu0 %v4106, 66
        %v4170 = vpop.permute.xlu0 %4169
        %4171 = vrot.lane.b32.xlu0 %v4108, 66
        %v4172 = vpop.permute.xlu0 %4171
        %4173 = vrot.lane.b32.xlu0 %v4110, 66
        %v4174 = vpop.permute.xlu0 %4173
        %4175 = vrot.lane.b32.xlu0 %v4112, 66
        %v4176 = vpop.permute.xlu0 %4175
        %4177 = vrot.lane.b32.xlu0 %v4114, 66
        %v4178 = vpop.permute.xlu0 %4177
        %v4211 = vadd.f32 %v4018, %v4116
        %v4212 = vadd.f32 %v4019, %v4118
        %v4213 = vadd.f32 %v4020, %v4120
        %v4214 = vadd.f32 %v4021, %v4122
        %v4215 = vadd.f32 %v4022, %v4124
        %v4216 = vadd.f32 %v4023, %v4126
        %v4217 = vadd.f32 %v4024, %v4128
        %v4218 = vadd.f32 %v4025, %v4130
        %v4219 = vadd.f32 %v4026, %v4132
        %v4220 = vadd.f32 %v4027, %v4134
        %v4221 = vadd.f32 %v4028, %v4136
        %v4222 = vadd.f32 %v4029, %v4138
        %v4223 = vadd.f32 %v4030, %v4140
        %v4224 = vadd.f32 %v4031, %v4142
        %v4225 = vadd.f32 %v4032, %v4144
        %v4226 = vadd.f32 %v4033, %v4146
        %v4227 = vadd.f32 %v4034, %v4148
        %v4228 = vadd.f32 %v4035, %v4150
        %v4229 = vadd.f32 %v4036, %v4152
        %v4230 = vadd.f32 %v4037, %v4154
        %v4231 = vadd.f32 %v4038, %v4156
        %v4232 = vadd.f32 %v4039, %v4158
        %v4233 = vadd.f32 %v4040, %v4160
        %v4234 = vadd.f32 %v4041, %v4162
        %v4235 = vadd.f32 %v4042, %v4164
        %v4236 = vadd.f32 %v4043, %v4166
        %v4237 = vadd.f32 %v4044, %v4168
        %v4238 = vadd.f32 %v4045, %v4170
        %v4239 = vadd.f32 %v4046, %v4172
        %v4240 = vadd.f32 %v4047, %v4174
        %v4241 = vadd.f32 %v4048, %v4176
        %v4242 = vadd.f32 %v4049, %v4178
        %v4243 = vrot.slane %v685, 4
        %v4244 = vsel %vm1336, %v2729, %v4243
        %4245 = vrot.lane.b32.xlu0 %v2668, 56
        %v4246 = vpop.permute.xlu0 %4245
        %4247 = vrot.lane.b32.xlu0 %v2670, 56
        %v4248 = vpop.permute.xlu0 %4247
        %4249 = vrot.lane.b32.xlu0 %v2672, 56
        %v4250 = vpop.permute.xlu0 %4249
        %4251 = vrot.lane.b32.xlu0 %v2674, 56
        %v4252 = vpop.permute.xlu0 %4251
        %4253 = vrot.lane.b32.xlu0 %v2676, 56
        %v4254 = vpop.permute.xlu0 %4253
        %4255 = vrot.lane.b32.xlu0 %v2678, 56
        %v4256 = vpop.permute.xlu0 %4255
        %4257 = vrot.lane.b32.xlu0 %v2680, 56
        %v4258 = vpop.permute.xlu0 %4257
        %4259 = vrot.lane.b32.xlu0 %v2682, 56
        %v4260 = vpop.permute.xlu0 %4259
        %4261 = vrot.lane.b32.xlu0 %v2684, 56
        %v4262 = vpop.permute.xlu0 %4261
        %4263 = vrot.lane.b32.xlu0 %v2686, 56
        %v4264 = vpop.permute.xlu0 %4263
        %4265 = vrot.lane.b32.xlu0 %v2688, 56
        %v4266 = vpop.permute.xlu0 %4265
        %4267 = vrot.lane.b32.xlu0 %v2690, 56
        %v4268 = vpop.permute.xlu0 %4267
        %4269 = vrot.lane.b32.xlu0 %v2692, 56
        %v4270 = vpop.permute.xlu0 %4269
        %4271 = vrot.lane.b32.xlu0 %v2694, 56
        %v4272 = vpop.permute.xlu0 %4271
        %4273 = vrot.lane.b32.xlu0 %v2696, 56
        %v4274 = vpop.permute.xlu0 %4273
        %4275 = vrot.lane.b32.xlu0 %v2698, 56
        %v4276 = vpop.permute.xlu0 %4275
        %4277 = vrot.lane.b32.xlu0 %v2700, 56
        %v4278 = vpop.permute.xlu0 %4277
        %4279 = vrot.lane.b32.xlu0 %v2702, 56
        %v4280 = vpop.permute.xlu0 %4279
        %4281 = vrot.lane.b32.xlu0 %v2704, 56
        %v4282 = vpop.permute.xlu0 %4281
        %4283 = vrot.lane.b32.xlu0 %v2706, 56
        %v4284 = vpop.permute.xlu0 %4283
        %4285 = vrot.lane.b32.xlu0 %v2708, 56
        %v4286 = vpop.permute.xlu0 %4285
        %4287 = vrot.lane.b32.xlu0 %v2710, 56
        %v4288 = vpop.permute.xlu0 %4287
        %4289 = vrot.lane.b32.xlu0 %v2712, 56
        %v4290 = vpop.permute.xlu0 %4289
        %4291 = vrot.lane.b32.xlu0 %v2714, 56
        %v4292 = vpop.permute.xlu0 %4291
        %4293 = vrot.lane.b32.xlu0 %v2716, 56
        %v4294 = vpop.permute.xlu0 %4293
        %4295 = vrot.lane.b32.xlu0 %v2718, 56
        %v4296 = vpop.permute.xlu0 %4295
        %4297 = vrot.lane.b32.xlu0 %v2720, 56
        %v4298 = vpop.permute.xlu0 %4297
        %4299 = vrot.lane.b32.xlu0 %v2722, 56
        %v4300 = vpop.permute.xlu0 %4299
        %4301 = vrot.lane.b32.xlu0 %v2724, 56
        %v4302 = vpop.permute.xlu0 %4301
        %4303 = vrot.lane.b32.xlu0 %v2726, 56
        %v4304 = vpop.permute.xlu0 %4303
        %4305 = vrot.lane.b32.xlu0 %v2730, 56
        %v4306 = vpop.permute.xlu0 %4305
        %4307 = vrot.lane.b32.xlu0 %v4244, 56
        %v4308 = vpop.permute.xlu0 %4307
        %v4341 = vadd.f32 %v4211, %v4246
        %v4342 = vadd.f32 %v4212, %v4248
        %v4343 = vadd.f32 %v4213, %v4250
        %v4344 = vadd.f32 %v4214, %v4252
        %v4345 = vadd.f32 %v4215, %v4254
        %v4346 = vadd.f32 %v4216, %v4256
        %v4347 = vadd.f32 %v4217, %v4258
        %v4348 = vadd.f32 %v4218, %v4260
        %v4349 = vadd.f32 %v4219, %v4262
        %v4350 = vadd.f32 %v4220, %v4264
        %v4351 = vadd.f32 %v4221, %v4266
        %v4352 = vadd.f32 %v4222, %v4268
        %v4353 = vadd.f32 %v4223, %v4270
        %v4354 = vadd.f32 %v4224, %v4272
        %v4355 = vadd.f32 %v4225, %v4274
        %v4356 = vadd.f32 %v4226, %v4276
        %v4357 = vadd.f32 %v4227, %v4278
        %v4358 = vadd.f32 %v4228, %v4280
        %v4359 = vadd.f32 %v4229, %v4282
        %v4360 = vadd.f32 %v4230, %v4284
        %v4361 = vadd.f32 %v4231, %v4286
        %v4362 = vadd.f32 %v4232, %v4288
        %v4363 = vadd.f32 %v4233, %v4290
        %v4364 = vadd.f32 %v4234, %v4292
        %v4365 = vadd.f32 %v4235, %v4294
        %v4366 = vadd.f32 %v4236, %v4296
        %v4367 = vadd.f32 %v4237, %v4298
        %v4368 = vadd.f32 %v4238, %v4300
        %v4369 = vadd.f32 %v4239, %v4302
        %v4370 = vadd.f32 %v4240, %v4304
        %v4371 = vadd.f32 %v4241, %v4306
        %v4372 = vadd.f32 %v4242, %v4308
        %v4373 = vrot.slane %v685, 5
        %v4374 = vsel %vm1530, %v3019, %v4373
        %4375 = vrot.lane.b32.xlu0 %v2960, 46
        %v4376 = vpop.permute.xlu0 %4375
        %4377 = vrot.lane.b32.xlu0 %v2962, 46
        %v4378 = vpop.permute.xlu0 %4377
        %4379 = vrot.lane.b32.xlu0 %v2964, 46
        %v4380 = vpop.permute.xlu0 %4379
        %4381 = vrot.lane.b32.xlu0 %v2966, 46
        %v4382 = vpop.permute.xlu0 %4381
        %4383 = vrot.lane.b32.xlu0 %v2968, 46
        %v4384 = vpop.permute.xlu0 %4383
        %4385 = vrot.lane.b32.xlu0 %v2970, 46
        %v4386 = vpop.permute.xlu0 %4385
        %4387 = vrot.lane.b32.xlu0 %v2972, 46
        %v4388 = vpop.permute.xlu0 %4387
        %4389 = vrot.lane.b32.xlu0 %v2974, 46
        %v4390 = vpop.permute.xlu0 %4389
        %4391 = vrot.lane.b32.xlu0 %v2976, 46
        %v4392 = vpop.permute.xlu0 %4391
        %4393 = vrot.lane.b32.xlu0 %v2978, 46
        %v4394 = vpop.permute.xlu0 %4393
        %4395 = vrot.lane.b32.xlu0 %v2980, 46
        %v4396 = vpop.permute.xlu0 %4395
        %4397 = vrot.lane.b32.xlu0 %v2982, 46
        %v4398 = vpop.permute.xlu0 %4397
        %4399 = vrot.lane.b32.xlu0 %v2984, 46
        %v4400 = vpop.permute.xlu0 %4399
        %4401 = vrot.lane.b32.xlu0 %v2986, 46
        %v4402 = vpop.permute.xlu0 %4401
        %4403 = vrot.lane.b32.xlu0 %v2988, 46
        %v4404 = vpop.permute.xlu0 %4403
        %4405 = vrot.lane.b32.xlu0 %v2990, 46
        %v4406 = vpop.permute.xlu0 %4405
        %4407 = vrot.lane.b32.xlu0 %v2992, 46
        %v4408 = vpop.permute.xlu0 %4407
        %4409 = vrot.lane.b32.xlu0 %v2994, 46
        %v4410 = vpop.permute.xlu0 %4409
        %4411 = vrot.lane.b32.xlu0 %v2996, 46
        %v4412 = vpop.permute.xlu0 %4411
        %4413 = vrot.lane.b32.xlu0 %v2998, 46
        %v4414 = vpop.permute.xlu0 %4413
        %4415 = vrot.lane.b32.xlu0 %v3000, 46
        %v4416 = vpop.permute.xlu0 %4415
        %4417 = vrot.lane.b32.xlu0 %v3002, 46
        %v4418 = vpop.permute.xlu0 %4417
        %4419 = vrot.lane.b32.xlu0 %v3004, 46
        %v4420 = vpop.permute.xlu0 %4419
        %4421 = vrot.lane.b32.xlu0 %v3006, 46
        %v4422 = vpop.permute.xlu0 %4421
        %4423 = vrot.lane.b32.xlu0 %v3008, 46
        %v4424 = vpop.permute.xlu0 %4423
        %4425 = vrot.lane.b32.xlu0 %v3010, 46
        %v4426 = vpop.permute.xlu0 %4425
        %4427 = vrot.lane.b32.xlu0 %v3012, 46
        %v4428 = vpop.permute.xlu0 %4427
        %4429 = vrot.lane.b32.xlu0 %v3014, 46
        %v4430 = vpop.permute.xlu0 %4429
        %4431 = vrot.lane.b32.xlu0 %v3016, 46
        %v4432 = vpop.permute.xlu0 %4431
        %4433 = vrot.lane.b32.xlu0 %v3018, 46
        %v4434 = vpop.permute.xlu0 %4433
        %4435 = vrot.lane.b32.xlu0 %v3020, 46
        %v4436 = vpop.permute.xlu0 %4435
        %4437 = vrot.lane.b32.xlu0 %v4374, 46
        %v4438 = vpop.permute.xlu0 %4437
        %v4471 = vadd.f32 %v4341, %v4376
        %v4472 = vadd.f32 %v4342, %v4378
        %v4473 = vadd.f32 %v4343, %v4380
        %v4474 = vadd.f32 %v4344, %v4382
        %v4475 = vadd.f32 %v4345, %v4384
        %v4476 = vadd.f32 %v4346, %v4386
        %v4477 = vadd.f32 %v4347, %v4388
        %v4478 = vadd.f32 %v4348, %v4390
        %v4479 = vadd.f32 %v4349, %v4392
        %v4480 = vadd.f32 %v4350, %v4394
        %v4481 = vadd.f32 %v4351, %v4396
        %v4482 = vadd.f32 %v4352, %v4398
        %v4483 = vadd.f32 %v4353, %v4400
        %v4484 = vadd.f32 %v4354, %v4402
        %v4485 = vadd.f32 %v4355, %v4404
        %v4486 = vadd.f32 %v4356, %v4406
        %v4487 = vadd.f32 %v4357, %v4408
        %v4488 = vadd.f32 %v4358, %v4410
        %v4489 = vadd.f32 %v4359, %v4412
        %v4490 = vadd.f32 %v4360, %v4414
        %v4491 = vadd.f32 %v4361, %v4416
        %v4492 = vadd.f32 %v4362, %v4418
        %v4493 = vadd.f32 %v4363, %v4420
        %v4494 = vadd.f32 %v4364, %v4422
        %v4495 = vadd.f32 %v4365, %v4424
        %v4496 = vadd.f32 %v4366, %v4426
        %v4497 = vadd.f32 %v4367, %v4428
        %v4498 = vadd.f32 %v4368, %v4430
        %v4499 = vadd.f32 %v4369, %v4432
        %v4500 = vadd.f32 %v4370, %v4434
        %v4501 = vadd.f32 %v4371, %v4436
        %v4502 = vadd.f32 %v4372, %v4438
        %v4503 = vrot.slane %v685, 6
        %v4504 = vsel %vm1724, %v3212, %v4503
        %4505 = vrot.lane.b32.xlu0 %v3153, 36
        %v4506 = vpop.permute.xlu0 %4505
        %4507 = vrot.lane.b32.xlu0 %v3155, 36
        %v4508 = vpop.permute.xlu0 %4507
        %4509 = vrot.lane.b32.xlu0 %v3157, 36
        %v4510 = vpop.permute.xlu0 %4509
        %4511 = vrot.lane.b32.xlu0 %v3159, 36
        %v4512 = vpop.permute.xlu0 %4511
        %4513 = vrot.lane.b32.xlu0 %v3161, 36
        %v4514 = vpop.permute.xlu0 %4513
        %4515 = vrot.lane.b32.xlu0 %v3163, 36
        %v4516 = vpop.permute.xlu0 %4515
        %4517 = vrot.lane.b32.xlu0 %v3165, 36
        %v4518 = vpop.permute.xlu0 %4517
        %4519 = vrot.lane.b32.xlu0 %v3167, 36
        %v4520 = vpop.permute.xlu0 %4519
        %4521 = vrot.lane.b32.xlu0 %v3169, 36
        %v4522 = vpop.permute.xlu0 %4521
        %4523 = vrot.lane.b32.xlu0 %v3171, 36
        %v4524 = vpop.permute.xlu0 %4523
        %4525 = vrot.lane.b32.xlu0 %v3173, 36
        %v4526 = vpop.permute.xlu0 %4525
        %4527 = vrot.lane.b32.xlu0 %v3175, 36
        %v4528 = vpop.permute.xlu0 %4527
        %4529 = vrot.lane.b32.xlu0 %v3177, 36
        %v4530 = vpop.permute.xlu0 %4529
        %4531 = vrot.lane.b32.xlu0 %v3179, 36
        %v4532 = vpop.permute.xlu0 %4531
        %4533 = vrot.lane.b32.xlu0 %v3181, 36
        %v4534 = vpop.permute.xlu0 %4533
        %4535 = vrot.lane.b32.xlu0 %v3183, 36
        %v4536 = vpop.permute.xlu0 %4535
        %4537 = vrot.lane.b32.xlu0 %v3185, 36
        %v4538 = vpop.permute.xlu0 %4537
        %4539 = vrot.lane.b32.xlu0 %v3187, 36
        %v4540 = vpop.permute.xlu0 %4539
        %4541 = vrot.lane.b32.xlu0 %v3189, 36
        %v4542 = vpop.permute.xlu0 %4541
        %4543 = vrot.lane.b32.xlu0 %v3191, 36
        %v4544 = vpop.permute.xlu0 %4543
        %4545 = vrot.lane.b32.xlu0 %v3193, 36
        %v4546 = vpop.permute.xlu0 %4545
        %4547 = vrot.lane.b32.xlu0 %v3195, 36
        %v4548 = vpop.permute.xlu0 %4547
        %4549 = vrot.lane.b32.xlu0 %v3197, 36
        %v4550 = vpop.permute.xlu0 %4549
        %4551 = vrot.lane.b32.xlu0 %v3199, 36
        %v4552 = vpop.permute.xlu0 %4551
        %4553 = vrot.lane.b32.xlu0 %v3201, 36
        %v4554 = vpop.permute.xlu0 %4553
        %4555 = vrot.lane.b32.xlu0 %v3203, 36
        %v4556 = vpop.permute.xlu0 %4555
        %4557 = vrot.lane.b32.xlu0 %v3205, 36
        %v4558 = vpop.permute.xlu0 %4557
        %4559 = vrot.lane.b32.xlu0 %v3207, 36
        %v4560 = vpop.permute.xlu0 %4559
        %4561 = vrot.lane.b32.xlu0 %v3209, 36
        %v4562 = vpop.permute.xlu0 %4561
        %4563 = vrot.lane.b32.xlu0 %v3211, 36
        %v4564 = vpop.permute.xlu0 %4563
        %4565 = vrot.lane.b32.xlu0 %v3213, 36
        %v4566 = vpop.permute.xlu0 %4565
        %4567 = vrot.lane.b32.xlu0 %v4504, 36
        %v4568 = vpop.permute.xlu0 %4567
        %v4601 = vadd.f32 %v4471, %v4506
        %v4602 = vadd.f32 %v4472, %v4508
        %v4603 = vadd.f32 %v4473, %v4510
        %v4604 = vadd.f32 %v4474, %v4512
        %v4605 = vadd.f32 %v4475, %v4514
        %v4606 = vadd.f32 %v4476, %v4516
        %v4607 = vadd.f32 %v4477, %v4518
        %v4608 = vadd.f32 %v4478, %v4520
        %v4609 = vadd.f32 %v4479, %v4522
        %v4610 = vadd.f32 %v4480, %v4524
        %v4611 = vadd.f32 %v4481, %v4526
        %v4612 = vadd.f32 %v4482, %v4528
        %v4613 = vadd.f32 %v4483, %v4530
        %v4614 = vadd.f32 %v4484, %v4532
        %v4615 = vadd.f32 %v4485, %v4534
        %v4616 = vadd.f32 %v4486, %v4536
        %v4617 = vadd.f32 %v4487, %v4538
        %v4618 = vadd.f32 %v4488, %v4540
        %v4619 = vadd.f32 %v4489, %v4542
        %v4620 = vadd.f32 %v4490, %v4544
        %v4621 = vadd.f32 %v4491, %v4546
        %v4622 = vadd.f32 %v4492, %v4548
        %v4623 = vadd.f32 %v4493, %v4550
        %v4624 = vadd.f32 %v4494, %v4552
        %v4625 = vadd.f32 %v4495, %v4554
        %v4626 = vadd.f32 %v4496, %v4556
        %v4627 = vadd.f32 %v4497, %v4558
        %v4628 = vadd.f32 %v4498, %v4560
        %v4629 = vadd.f32 %v4499, %v4562
        %v4630 = vadd.f32 %v4500, %v4564
        %v4631 = vadd.f32 %v4501, %v4566
        %v4632 = vadd.f32 %v4502, %v4568
        %v4633 = vrot.slane %v685, 7
        %v4634 = vsel %vm1918, %v3405, %v4633
        %4635 = vrot.lane.b32.xlu0 %v3346, 26
        %v4636 = vpop.permute.xlu0 %4635
        %4637 = vrot.lane.b32.xlu0 %v3348, 26
        %v4638 = vpop.permute.xlu0 %4637
        %4639 = vrot.lane.b32.xlu0 %v3350, 26
        %v4640 = vpop.permute.xlu0 %4639
        %4641 = vrot.lane.b32.xlu0 %v3352, 26
        %v4642 = vpop.permute.xlu0 %4641
        %4643 = vrot.lane.b32.xlu0 %v3354, 26
        %v4644 = vpop.permute.xlu0 %4643
        %4645 = vrot.lane.b32.xlu0 %v3356, 26
        %v4646 = vpop.permute.xlu0 %4645
        %4647 = vrot.lane.b32.xlu0 %v3358, 26
        %v4648 = vpop.permute.xlu0 %4647
        %4649 = vrot.lane.b32.xlu0 %v3360, 26
        %v4650 = vpop.permute.xlu0 %4649
        %4651 = vrot.lane.b32.xlu0 %v3362, 26
        %v4652 = vpop.permute.xlu0 %4651
        %4653 = vrot.lane.b32.xlu0 %v3364, 26
        %v4654 = vpop.permute.xlu0 %4653
        %4655 = vrot.lane.b32.xlu0 %v3366, 26
        %v4656 = vpop.permute.xlu0 %4655
        %4657 = vrot.lane.b32.xlu0 %v3368, 26
        %v4658 = vpop.permute.xlu0 %4657
        %4659 = vrot.lane.b32.xlu0 %v3370, 26
        %v4660 = vpop.permute.xlu0 %4659
        %4661 = vrot.lane.b32.xlu0 %v3372, 26
        %v4662 = vpop.permute.xlu0 %4661
        %4663 = vrot.lane.b32.xlu0 %v3374, 26
        %v4664 = vpop.permute.xlu0 %4663
        %4665 = vrot.lane.b32.xlu0 %v3376, 26
        %v4666 = vpop.permute.xlu0 %4665
        %4667 = vrot.lane.b32.xlu0 %v3378, 26
        %v4668 = vpop.permute.xlu0 %4667
        %4669 = vrot.lane.b32.xlu0 %v3380, 26
        %v4670 = vpop.permute.xlu0 %4669
        %4671 = vrot.lane.b32.xlu0 %v3382, 26
        %v4672 = vpop.permute.xlu0 %4671
        %4673 = vrot.lane.b32.xlu0 %v3384, 26
        %v4674 = vpop.permute.xlu0 %4673
        %4675 = vrot.lane.b32.xlu0 %v3386, 26
        %v4676 = vpop.permute.xlu0 %4675
        %4677 = vrot.lane.b32.xlu0 %v3388, 26
        %v4678 = vpop.permute.xlu0 %4677
        %4679 = vrot.lane.b32.xlu0 %v3390, 26
        %v4680 = vpop.permute.xlu0 %4679
        %4681 = vrot.lane.b32.xlu0 %v3392, 26
        %v4682 = vpop.permute.xlu0 %4681
        %4683 = vrot.lane.b32.xlu0 %v3394, 26
        %v4684 = vpop.permute.xlu0 %4683
        %4685 = vrot.lane.b32.xlu0 %v3396, 26
        %v4686 = vpop.permute.xlu0 %4685
        %4687 = vrot.lane.b32.xlu0 %v3398, 26
        %v4688 = vpop.permute.xlu0 %4687
        %4689 = vrot.lane.b32.xlu0 %v3400, 26
        %v4690 = vpop.permute.xlu0 %4689
        %4691 = vrot.lane.b32.xlu0 %v3402, 26
        %v4692 = vpop.permute.xlu0 %4691
        %4693 = vrot.lane.b32.xlu0 %v3404, 26
        %v4694 = vpop.permute.xlu0 %4693
        %4695 = vrot.lane.b32.xlu0 %v3406, 26
        %v4696 = vpop.permute.xlu0 %4695
        %4697 = vrot.lane.b32.xlu0 %v4634, 26
        %v4698 = vpop.permute.xlu0 %4697
        %v4731 = vadd.f32 %v4601, %v4636
        %v4732 = vadd.f32 %v4602, %v4638
        %v4733 = vadd.f32 %v4603, %v4640
        %v4734 = vadd.f32 %v4604, %v4642
        %v4735 = vadd.f32 %v4605, %v4644
        %v4736 = vadd.f32 %v4606, %v4646
        %v4737 = vadd.f32 %v4607, %v4648
        %v4738 = vadd.f32 %v4608, %v4650
        %v4739 = vadd.f32 %v4609, %v4652
        %v4740 = vadd.f32 %v4610, %v4654
        %v4741 = vadd.f32 %v4611, %v4656
        %v4742 = vadd.f32 %v4612, %v4658
        %v4743 = vadd.f32 %v4613, %v4660
        %v4744 = vadd.f32 %v4614, %v4662
        %v4745 = vadd.f32 %v4615, %v4664
        %v4746 = vadd.f32 %v4616, %v4666
        %v4747 = vadd.f32 %v4617, %v4668
        %v4748 = vadd.f32 %v4618, %v4670
        %v4749 = vadd.f32 %v4619, %v4672
        %v4750 = vadd.f32 %v4620, %v4674
        %v4751 = vadd.f32 %v4621, %v4676
        %v4752 = vadd.f32 %v4622, %v4678
        %v4753 = vadd.f32 %v4623, %v4680
        %v4754 = vadd.f32 %v4624, %v4682
        %v4755 = vadd.f32 %v4625, %v4684
        %v4756 = vadd.f32 %v4626, %v4686
        %v4757 = vadd.f32 %v4627, %v4688
        %v4758 = vadd.f32 %v4628, %v4690
        %v4759 = vadd.f32 %v4629, %v4692
        %v4760 = vadd.f32 %v4630, %v4694
        %v4761 = vadd.f32 %v4631, %v4696
        %v4762 = vadd.f32 %v4632, %v4698
      $region37: #{simplenet_forward.3} parent=31 // loop_footer
        %s201 = sadd.s32 1, %s197
      $region38: #{simplenet_forward.3} parent=31 // loop_footer_branch
        %196 = sbr.rel target = $region34
      $region39: #{simplenet_forward.3} parent=31 // loop_exit
        _
      %v4763 = vld [vmem:[%s2] sm:$0x1]
      %v4765 = vlaneseq
      %v4766 = vshrl.u32 %v4765, 7
      %v4767 = vsub.s32 0, %v4766
      %v4768 = vrot.slane %v4763, %v4767
      %v4770 = vadd.f32 %v202, %v4768
      %v4771 = vadd.f32 %v203, %v4768
      %v4772 = vadd.f32 %v204, %v4768
      %v4773 = vadd.f32 %v205, %v4768
      %v4774 = vadd.f32 %v206, %v4768
      %v4775 = vadd.f32 %v207, %v4768
      %v4776 = vadd.f32 %v208, %v4768
      %v4777 = vadd.f32 %v209, %v4768
      %v4778 = vadd.f32 %v210, %v4768
      %v4779 = vadd.f32 %v211, %v4768
      %v4780 = vadd.f32 %v212, %v4768
      %v4781 = vadd.f32 %v213, %v4768
      %v4782 = vadd.f32 %v214, %v4768
      %v4783 = vadd.f32 %v215, %v4768
      %v4784 = vadd.f32 %v216, %v4768
      %v4785 = vadd.f32 %v217, %v4768
      %v4786 = vadd.f32 %v218, %v4768
      %v4787 = vadd.f32 %v219, %v4768
      %v4788 = vadd.f32 %v220, %v4768
      %v4789 = vadd.f32 %v221, %v4768
      %v4790 = vadd.f32 %v222, %v4768
      %v4791 = vadd.f32 %v223, %v4768
      %v4792 = vadd.f32 %v224, %v4768
      %v4793 = vadd.f32 %v225, %v4768
      %v4794 = vadd.f32 %v226, %v4768
      %v4795 = vadd.f32 %v227, %v4768
      %v4796 = vadd.f32 %v228, %v4768
      %v4797 = vadd.f32 %v229, %v4768
      %v4798 = vadd.f32 %v230, %v4768
      %v4799 = vadd.f32 %v231, %v4768
      %v4800 = vadd.f32 %v232, %v4768
      %v4801 = vadd.f32 %v233, %v4768
      %v4802 = vmax.f32 %v4770, 0.0
      %v4803 = vmax.f32 %v4771, 0.0
      %v4804 = vmax.f32 %v4772, 0.0
      %v4805 = vmax.f32 %v4773, 0.0
      %v4806 = vmax.f32 %v4774, 0.0
      %v4807 = vmax.f32 %v4775, 0.0
      %v4808 = vmax.f32 %v4776, 0.0
      %v4809 = vmax.f32 %v4777, 0.0
      %v4810 = vmax.f32 %v4778, 0.0
      %v4811 = vmax.f32 %v4779, 0.0
      %v4812 = vmax.f32 %v4780, 0.0
      %v4813 = vmax.f32 %v4781, 0.0
      %v4814 = vmax.f32 %v4782, 0.0
      %v4815 = vmax.f32 %v4783, 0.0
      %v4816 = vmax.f32 %v4784, 0.0
      %v4817 = vmax.f32 %v4785, 0.0
      %v4818 = vmax.f32 %v4786, 0.0
      %v4819 = vmax.f32 %v4787, 0.0
      %v4820 = vmax.f32 %v4788, 0.0
      %v4821 = vmax.f32 %v4789, 0.0
      %v4822 = vmax.f32 %v4790, 0.0
      %v4823 = vmax.f32 %v4791, 0.0
      %v4824 = vmax.f32 %v4792, 0.0
      %v4825 = vmax.f32 %v4793, 0.0
      %v4826 = vmax.f32 %v4794, 0.0
      %v4827 = vmax.f32 %v4795, 0.0
      %v4828 = vmax.f32 %v4796, 0.0
      %v4829 = vmax.f32 %v4797, 0.0
      %v4830 = vmax.f32 %v4798, 0.0
      %v4831 = vmax.f32 %v4799, 0.0
      %v4832 = vmax.f32 %v4800, 0.0
      %v4833 = vmax.f32 %v4801, 0.0
      %v4834 = vand.u32 2147483647, %v4770
      %v4835 = vand.u32 2147483647, %v4771
      %v4836 = vand.u32 2147483647, %v4772
      %v4837 = vand.u32 2147483647, %v4773
      %v4838 = vand.u32 2147483647, %v4774
      %v4839 = vand.u32 2147483647, %v4775
      %v4840 = vand.u32 2147483647, %v4776
      %v4841 = vand.u32 2147483647, %v4777
      %v4842 = vand.u32 2147483647, %v4778
      %v4843 = vand.u32 2147483647, %v4779
      %v4844 = vand.u32 2147483647, %v4780
      %v4845 = vand.u32 2147483647, %v4781
      %v4846 = vand.u32 2147483647, %v4782
      %v4847 = vand.u32 2147483647, %v4783
      %v4848 = vand.u32 2147483647, %v4784
      %v4849 = vand.u32 2147483647, %v4785
      %v4850 = vand.u32 2147483647, %v4786
      %v4851 = vand.u32 2147483647, %v4787
      %v4852 = vand.u32 2147483647, %v4788
      %v4853 = vand.u32 2147483647, %v4789
      %v4854 = vand.u32 2147483647, %v4790
      %v4855 = vand.u32 2147483647, %v4791
      %v4856 = vand.u32 2147483647, %v4792
      %v4857 = vand.u32 2147483647, %v4793
      %v4858 = vand.u32 2147483647, %v4794
      %v4859 = vand.u32 2147483647, %v4795
      %v4860 = vand.u32 2147483647, %v4796
      %v4861 = vand.u32 2147483647, %v4797
      %v4862 = vand.u32 2147483647, %v4798
      %v4863 = vand.u32 2147483647, %v4799
      %v4864 = vand.u32 2147483647, %v4800
      %v4865 = vand.u32 2147483647, %v4801
      %v4866 = vsub.f32 0.0, %v4834
      %v4867 = vsub.f32 0.0, %v4835
      %v4868 = vsub.f32 0.0, %v4836
      %v4869 = vsub.f32 0.0, %v4837
      %v4870 = vsub.f32 0.0, %v4838
      %v4871 = vsub.f32 0.0, %v4839
      %v4872 = vsub.f32 0.0, %v4840
      %v4873 = vsub.f32 0.0, %v4841
      %v4874 = vsub.f32 0.0, %v4842
      %v4875 = vsub.f32 0.0, %v4843
      %v4876 = vsub.f32 0.0, %v4844
      %v4877 = vsub.f32 0.0, %v4845
      %v4878 = vsub.f32 0.0, %v4846
      %v4879 = vsub.f32 0.0, %v4847
      %v4880 = vsub.f32 0.0, %v4848
      %v4881 = vsub.f32 0.0, %v4849
      %v4882 = vsub.f32 0.0, %v4850
      %v4883 = vsub.f32 0.0, %v4851
      %v4884 = vsub.f32 0.0, %v4852
      %v4885 = vsub.f32 0.0, %v4853
      %v4886 = vsub.f32 0.0, %v4854
      %v4887 = vsub.f32 0.0, %v4855
      %v4888 = vsub.f32 0.0, %v4856
      %v4889 = vsub.f32 0.0, %v4857
      %v4890 = vsub.f32 0.0, %v4858
      %v4891 = vsub.f32 0.0, %v4859
      %v4892 = vsub.f32 0.0, %v4860
      %v4893 = vsub.f32 0.0, %v4861
      %v4894 = vsub.f32 0.0, %v4862
      %v4895 = vsub.f32 0.0, %v4863
      %v4896 = vsub.f32 0.0, %v4864
      %v4897 = vsub.f32 0.0, %v4865
      %v4898 = vmul.f32 %v4866, 1.442695
      %v4899 = vpow.pop %v4898
      %v4900 = vmul.f32 %v4867, 1.442695
      %v4901 = vpow.pop %v4900
      %v4902 = vmul.f32 %v4868, 1.442695
      %v4903 = vpow.pop %v4902
      %v4904 = vmul.f32 %v4869, 1.442695
      %v4905 = vpow.pop %v4904
      %v4906 = vmul.f32 %v4870, 1.442695
      %v4907 = vpow.pop %v4906
      %v4908 = vmul.f32 %v4871, 1.442695
      %v4909 = vpow.pop %v4908
      %v4910 = vmul.f32 %v4872, 1.442695
      %v4911 = vpow.pop %v4910
      %v4912 = vmul.f32 %v4873, 1.442695
      %v4913 = vpow.pop %v4912
      %v4914 = vmul.f32 %v4874, 1.442695
      %v4915 = vpow.pop %v4914
      %v4916 = vmul.f32 %v4875, 1.442695
      %v4917 = vpow.pop %v4916
      %v4918 = vmul.f32 %v4876, 1.442695
      %v4919 = vpow.pop %v4918
      %v4920 = vmul.f32 %v4877, 1.442695
      %v4921 = vpow.pop %v4920
      %v4922 = vmul.f32 %v4878, 1.442695
      %v4923 = vpow.pop %v4922
      %v4924 = vmul.f32 %v4879, 1.442695
      %v4925 = vpow.pop %v4924
      %v4926 = vmul.f32 %v4880, 1.442695
      %v4927 = vpow.pop %v4926
      %v4928 = vmul.f32 %v4881, 1.442695
      %v4929 = vpow.pop %v4928
      %v4930 = vmul.f32 %v4882, 1.442695
      %v4931 = vpow.pop %v4930
      %v4932 = vmul.f32 %v4883, 1.442695
      %v4933 = vpow.pop %v4932
      %v4934 = vmul.f32 %v4884, 1.442695
      %v4935 = vpow.pop %v4934
      %v4936 = vmul.f32 %v4885, 1.442695
      %v4937 = vpow.pop %v4936
      %v4938 = vmul.f32 %v4886, 1.442695
      %v4939 = vpow.pop %v4938
      %v4940 = vmul.f32 %v4887, 1.442695
      %v4941 = vpow.pop %v4940
      %v4942 = vmul.f32 %v4888, 1.442695
      %v4943 = vpow.pop %v4942
      %v4944 = vmul.f32 %v4889, 1.442695
      %v4945 = vpow.pop %v4944
      %v4946 = vmul.f32 %v4890, 1.442695
      %v4947 = vpow.pop %v4946
      %v4948 = vmul.f32 %v4891, 1.442695
      %v4949 = vpow.pop %v4948
      %v4950 = vmul.f32 %v4892, 1.442695
      %v4951 = vpow.pop %v4950
      %v4952 = vmul.f32 %v4893, 1.442695
      %v4953 = vpow.pop %v4952
      %v4954 = vmul.f32 %v4894, 1.442695
      %v4955 = vpow.pop %v4954
      %v4956 = vmul.f32 %v4895, 1.442695
      %v4957 = vpow.pop %v4956
      %v4958 = vmul.f32 %v4896, 1.442695
      %v4959 = vpow.pop %v4958
      %v4960 = vmul.f32 %v4897, 1.442695
      %v4961 = vpow.pop %v4960
      %v4962 = vadd.f32 %v4899, 1.0
      %v4963 = vlog2.pop %v4962
      %v4964 = vmul.f32 %v4963, 0.6931472
      %v4965 = vmul.f32 -0.5, %v4899
      %v4966 = vadd.f32 %v4965, 1.0
      %v4967 = vmul.f32 %v4966, %v4899
      %v4968 = vand.u32 2147483647, %v4899
      %vm4969 = vcmp.lt.f32.partialorder %v4968, 0.0004427343
      %v4970 = vsel %vm4969, %v4967, %v4964
      %v4971 = vadd.f32 %v4901, 1.0
      %v4972 = vlog2.pop %v4971
      %v4973 = vmul.f32 %v4972, 0.6931472
      %v4974 = vmul.f32 -0.5, %v4901
      %v4975 = vadd.f32 %v4974, 1.0
      %v4976 = vmul.f32 %v4975, %v4901
      %v4977 = vand.u32 2147483647, %v4901
      %vm4978 = vcmp.lt.f32.partialorder %v4977, 0.0004427343
      %v4979 = vsel %vm4978, %v4976, %v4973
      %v4980 = vadd.f32 %v4903, 1.0
      %v4981 = vlog2.pop %v4980
      %v4982 = vmul.f32 %v4981, 0.6931472
      %v4983 = vmul.f32 -0.5, %v4903
      %v4984 = vadd.f32 %v4983, 1.0
      %v4985 = vmul.f32 %v4984, %v4903
      %v4986 = vand.u32 2147483647, %v4903
      %vm4987 = vcmp.lt.f32.partialorder %v4986, 0.0004427343
      %v4988 = vsel %vm4987, %v4985, %v4982
      %v4989 = vadd.f32 %v4905, 1.0
      %v4990 = vlog2.pop %v4989
      %v4991 = vmul.f32 %v4990, 0.6931472
      %v4992 = vmul.f32 -0.5, %v4905
      %v4993 = vadd.f32 %v4992, 1.0
      %v4994 = vmul.f32 %v4993, %v4905
      %v4995 = vand.u32 2147483647, %v4905
      %vm4996 = vcmp.lt.f32.partialorder %v4995, 0.0004427343
      %v4997 = vsel %vm4996, %v4994, %v4991
      %v4998 = vadd.f32 %v4907, 1.0
      %v4999 = vlog2.pop %v4998
      %v5000 = vmul.f32 %v4999, 0.6931472
      %v5001 = vmul.f32 -0.5, %v4907
      %v5002 = vadd.f32 %v5001, 1.0
      %v5003 = vmul.f32 %v5002, %v4907
      %v5004 = vand.u32 2147483647, %v4907
      %vm5005 = vcmp.lt.f32.partialorder %v5004, 0.0004427343
      %v5006 = vsel %vm5005, %v5003, %v5000
      %v5007 = vadd.f32 %v4909, 1.0
      %v5008 = vlog2.pop %v5007
      %v5009 = vmul.f32 %v5008, 0.6931472
      %v5010 = vmul.f32 -0.5, %v4909
      %v5011 = vadd.f32 %v5010, 1.0
      %v5012 = vmul.f32 %v5011, %v4909
      %v5013 = vand.u32 2147483647, %v4909
      %vm5014 = vcmp.lt.f32.partialorder %v5013, 0.0004427343
      %v5015 = vsel %vm5014, %v5012, %v5009
      %v5016 = vadd.f32 %v4911, 1.0
      %v5017 = vlog2.pop %v5016
      %v5018 = vmul.f32 %v5017, 0.6931472
      %v5019 = vmul.f32 -0.5, %v4911
      %v5020 = vadd.f32 %v5019, 1.0
      %v5021 = vmul.f32 %v5020, %v4911
      %v5022 = vand.u32 2147483647, %v4911
      %vm5023 = vcmp.lt.f32.partialorder %v5022, 0.0004427343
      %v5024 = vsel %vm5023, %v5021, %v5018
      %v5025 = vadd.f32 %v4913, 1.0
      %v5026 = vlog2.pop %v5025
      %v5027 = vmul.f32 %v5026, 0.6931472
      %v5028 = vmul.f32 -0.5, %v4913
      %v5029 = vadd.f32 %v5028, 1.0
      %v5030 = vmul.f32 %v5029, %v4913
      %v5031 = vand.u32 2147483647, %v4913
      %vm5032 = vcmp.lt.f32.partialorder %v5031, 0.0004427343
      %v5033 = vsel %vm5032, %v5030, %v5027
      %v5034 = vadd.f32 %v4915, 1.0
      %v5035 = vlog2.pop %v5034
      %v5036 = vmul.f32 %v5035, 0.6931472
      %v5037 = vmul.f32 -0.5, %v4915
      %v5038 = vadd.f32 %v5037, 1.0
      %v5039 = vmul.f32 %v5038, %v4915
      %v5040 = vand.u32 2147483647, %v4915
      %vm5041 = vcmp.lt.f32.partialorder %v5040, 0.0004427343
      %v5042 = vsel %vm5041, %v5039, %v5036
      %v5043 = vadd.f32 %v4917, 1.0
      %v5044 = vlog2.pop %v5043
      %v5045 = vmul.f32 %v5044, 0.6931472
      %v5046 = vmul.f32 -0.5, %v4917
      %v5047 = vadd.f32 %v5046, 1.0
      %v5048 = vmul.f32 %v5047, %v4917
      %v5049 = vand.u32 2147483647, %v4917
      %vm5050 = vcmp.lt.f32.partialorder %v5049, 0.0004427343
      %v5051 = vsel %vm5050, %v5048, %v5045
      %v5052 = vadd.f32 %v4919, 1.0
      %v5053 = vlog2.pop %v5052
      %v5054 = vmul.f32 %v5053, 0.6931472
      %v5055 = vmul.f32 -0.5, %v4919
      %v5056 = vadd.f32 %v5055, 1.0
      %v5057 = vmul.f32 %v5056, %v4919
      %v5058 = vand.u32 2147483647, %v4919
      %vm5059 = vcmp.lt.f32.partialorder %v5058, 0.0004427343
      %v5060 = vsel %vm5059, %v5057, %v5054
      %v5061 = vadd.f32 %v4921, 1.0
      %v5062 = vlog2.pop %v5061
      %v5063 = vmul.f32 %v5062, 0.6931472
      %v5064 = vmul.f32 -0.5, %v4921
      %v5065 = vadd.f32 %v5064, 1.0
      %v5066 = vmul.f32 %v5065, %v4921
      %v5067 = vand.u32 2147483647, %v4921
      %vm5068 = vcmp.lt.f32.partialorder %v5067, 0.0004427343
      %v5069 = vsel %vm5068, %v5066, %v5063
      %v5070 = vadd.f32 %v4923, 1.0
      %v5071 = vlog2.pop %v5070
      %v5072 = vmul.f32 %v5071, 0.6931472
      %v5073 = vmul.f32 -0.5, %v4923
      %v5074 = vadd.f32 %v5073, 1.0
      %v5075 = vmul.f32 %v5074, %v4923
      %v5076 = vand.u32 2147483647, %v4923
      %vm5077 = vcmp.lt.f32.partialorder %v5076, 0.0004427343
      %v5078 = vsel %vm5077, %v5075, %v5072
      %v5079 = vadd.f32 %v4925, 1.0
      %v5080 = vlog2.pop %v5079
      %v5081 = vmul.f32 %v5080, 0.6931472
      %v5082 = vmul.f32 -0.5, %v4925
      %v5083 = vadd.f32 %v5082, 1.0
      %v5084 = vmul.f32 %v5083, %v4925
      %v5085 = vand.u32 2147483647, %v4925
      %vm5086 = vcmp.lt.f32.partialorder %v5085, 0.0004427343
      %v5087 = vsel %vm5086, %v5084, %v5081
      %v5088 = vadd.f32 %v4927, 1.0
      %v5089 = vlog2.pop %v5088
      %v5090 = vmul.f32 %v5089, 0.6931472
      %v5091 = vmul.f32 -0.5, %v4927
      %v5092 = vadd.f32 %v5091, 1.0
      %v5093 = vmul.f32 %v5092, %v4927
      %v5094 = vand.u32 2147483647, %v4927
      %vm5095 = vcmp.lt.f32.partialorder %v5094, 0.0004427343
      %v5096 = vsel %vm5095, %v5093, %v5090
      %v5097 = vadd.f32 %v4929, 1.0
      %v5098 = vlog2.pop %v5097
      %v5099 = vmul.f32 %v5098, 0.6931472
      %v5100 = vmul.f32 -0.5, %v4929
      %v5101 = vadd.f32 %v5100, 1.0
      %v5102 = vmul.f32 %v5101, %v4929
      %v5103 = vand.u32 2147483647, %v4929
      %vm5104 = vcmp.lt.f32.partialorder %v5103, 0.0004427343
      %v5105 = vsel %vm5104, %v5102, %v5099
      %v5106 = vadd.f32 %v4931, 1.0
      %v5107 = vlog2.pop %v5106
      %v5108 = vmul.f32 %v5107, 0.6931472
      %v5109 = vmul.f32 -0.5, %v4931
      %v5110 = vadd.f32 %v5109, 1.0
      %v5111 = vmul.f32 %v5110, %v4931
      %v5112 = vand.u32 2147483647, %v4931
      %vm5113 = vcmp.lt.f32.partialorder %v5112, 0.0004427343
      %v5114 = vsel %vm5113, %v5111, %v5108
      %v5115 = vadd.f32 %v4933, 1.0
      %v5116 = vlog2.pop %v5115
      %v5117 = vmul.f32 %v5116, 0.6931472
      %v5118 = vmul.f32 -0.5, %v4933
      %v5119 = vadd.f32 %v5118, 1.0
      %v5120 = vmul.f32 %v5119, %v4933
      %v5121 = vand.u32 2147483647, %v4933
      %vm5122 = vcmp.lt.f32.partialorder %v5121, 0.0004427343
      %v5123 = vsel %vm5122, %v5120, %v5117
      %v5124 = vadd.f32 %v4935, 1.0
      %v5125 = vlog2.pop %v5124
      %v5126 = vmul.f32 %v5125, 0.6931472
      %v5127 = vmul.f32 -0.5, %v4935
      %v5128 = vadd.f32 %v5127, 1.0
      %v5129 = vmul.f32 %v5128, %v4935
      %v5130 = vand.u32 2147483647, %v4935
      %vm5131 = vcmp.lt.f32.partialorder %v5130, 0.0004427343
      %v5132 = vsel %vm5131, %v5129, %v5126
      %v5133 = vadd.f32 %v4937, 1.0
      %v5134 = vlog2.pop %v5133
      %v5135 = vmul.f32 %v5134, 0.6931472
      %v5136 = vmul.f32 -0.5, %v4937
      %v5137 = vadd.f32 %v5136, 1.0
      %v5138 = vmul.f32 %v5137, %v4937
      %v5139 = vand.u32 2147483647, %v4937
      %vm5140 = vcmp.lt.f32.partialorder %v5139, 0.0004427343
      %v5141 = vsel %vm5140, %v5138, %v5135
      %v5142 = vadd.f32 %v4939, 1.0
      %v5143 = vlog2.pop %v5142
      %v5144 = vmul.f32 %v5143, 0.6931472
      %v5145 = vmul.f32 -0.5, %v4939
      %v5146 = vadd.f32 %v5145, 1.0
      %v5147 = vmul.f32 %v5146, %v4939
      %v5148 = vand.u32 2147483647, %v4939
      %vm5149 = vcmp.lt.f32.partialorder %v5148, 0.0004427343
      %v5150 = vsel %vm5149, %v5147, %v5144
      %v5151 = vadd.f32 %v4941, 1.0
      %v5152 = vlog2.pop %v5151
      %v5153 = vmul.f32 %v5152, 0.6931472
      %v5154 = vmul.f32 -0.5, %v4941
      %v5155 = vadd.f32 %v5154, 1.0
      %v5156 = vmul.f32 %v5155, %v4941
      %v5157 = vand.u32 2147483647, %v4941
      %vm5158 = vcmp.lt.f32.partialorder %v5157, 0.0004427343
      %v5159 = vsel %vm5158, %v5156, %v5153
      %v5160 = vadd.f32 %v4943, 1.0
      %v5161 = vlog2.pop %v5160
      %v5162 = vmul.f32 %v5161, 0.6931472
      %v5163 = vmul.f32 -0.5, %v4943
      %v5164 = vadd.f32 %v5163, 1.0
      %v5165 = vmul.f32 %v5164, %v4943
      %v5166 = vand.u32 2147483647, %v4943
      %vm5167 = vcmp.lt.f32.partialorder %v5166, 0.0004427343
      %v5168 = vsel %vm5167, %v5165, %v5162
      %v5169 = vadd.f32 %v4945, 1.0
      %v5170 = vlog2.pop %v5169
      %v5171 = vmul.f32 %v5170, 0.6931472
      %v5172 = vmul.f32 -0.5, %v4945
      %v5173 = vadd.f32 %v5172, 1.0
      %v5174 = vmul.f32 %v5173, %v4945
      %v5175 = vand.u32 2147483647, %v4945
      %vm5176 = vcmp.lt.f32.partialorder %v5175, 0.0004427343
      %v5177 = vsel %vm5176, %v5174, %v5171
      %v5178 = vadd.f32 %v4947, 1.0
      %v5179 = vlog2.pop %v5178
      %v5180 = vmul.f32 %v5179, 0.6931472
      %v5181 = vmul.f32 -0.5, %v4947
      %v5182 = vadd.f32 %v5181, 1.0
      %v5183 = vmul.f32 %v5182, %v4947
      %v5184 = vand.u32 2147483647, %v4947
      %vm5185 = vcmp.lt.f32.partialorder %v5184, 0.0004427343
      %v5186 = vsel %vm5185, %v5183, %v5180
      %v5187 = vadd.f32 %v4949, 1.0
      %v5188 = vlog2.pop %v5187
      %v5189 = vmul.f32 %v5188, 0.6931472
      %v5190 = vmul.f32 -0.5, %v4949
      %v5191 = vadd.f32 %v5190, 1.0
      %v5192 = vmul.f32 %v5191, %v4949
      %v5193 = vand.u32 2147483647, %v4949
      %vm5194 = vcmp.lt.f32.partialorder %v5193, 0.0004427343
      %v5195 = vsel %vm5194, %v5192, %v5189
      %v5196 = vadd.f32 %v4951, 1.0
      %v5197 = vlog2.pop %v5196
      %v5198 = vmul.f32 %v5197, 0.6931472
      %v5199 = vmul.f32 -0.5, %v4951
      %v5200 = vadd.f32 %v5199, 1.0
      %v5201 = vmul.f32 %v5200, %v4951
      %v5202 = vand.u32 2147483647, %v4951
      %vm5203 = vcmp.lt.f32.partialorder %v5202, 0.0004427343
      %v5204 = vsel %vm5203, %v5201, %v5198
      %v5205 = vadd.f32 %v4953, 1.0
      %v5206 = vlog2.pop %v5205
      %v5207 = vmul.f32 %v5206, 0.6931472
      %v5208 = vmul.f32 -0.5, %v4953
      %v5209 = vadd.f32 %v5208, 1.0
      %v5210 = vmul.f32 %v5209, %v4953
      %v5211 = vand.u32 2147483647, %v4953
      %vm5212 = vcmp.lt.f32.partialorder %v5211, 0.0004427343
      %v5213 = vsel %vm5212, %v5210, %v5207
      %v5214 = vadd.f32 %v4955, 1.0
      %v5215 = vlog2.pop %v5214
      %v5216 = vmul.f32 %v5215, 0.6931472
      %v5217 = vmul.f32 -0.5, %v4955
      %v5218 = vadd.f32 %v5217, 1.0
      %v5219 = vmul.f32 %v5218, %v4955
      %v5220 = vand.u32 2147483647, %v4955
      %vm5221 = vcmp.lt.f32.partialorder %v5220, 0.0004427343
      %v5222 = vsel %vm5221, %v5219, %v5216
      %v5223 = vadd.f32 %v4957, 1.0
      %v5224 = vlog2.pop %v5223
      %v5225 = vmul.f32 %v5224, 0.6931472
      %v5226 = vmul.f32 -0.5, %v4957
      %v5227 = vadd.f32 %v5226, 1.0
      %v5228 = vmul.f32 %v5227, %v4957
      %v5229 = vand.u32 2147483647, %v4957
      %vm5230 = vcmp.lt.f32.partialorder %v5229, 0.0004427343
      %v5231 = vsel %vm5230, %v5228, %v5225
      %v5232 = vadd.f32 %v4959, 1.0
      %v5233 = vlog2.pop %v5232
      %v5234 = vmul.f32 %v5233, 0.6931472
      %v5235 = vmul.f32 -0.5, %v4959
      %v5236 = vadd.f32 %v5235, 1.0
      %v5237 = vmul.f32 %v5236, %v4959
      %v5238 = vand.u32 2147483647, %v4959
      %vm5239 = vcmp.lt.f32.partialorder %v5238, 0.0004427343
      %v5240 = vsel %vm5239, %v5237, %v5234
      %v5241 = vadd.f32 %v4961, 1.0
      %v5242 = vlog2.pop %v5241
      %v5243 = vmul.f32 %v5242, 0.6931472
      %v5244 = vmul.f32 -0.5, %v4961
      %v5245 = vadd.f32 %v5244, 1.0
      %v5246 = vmul.f32 %v5245, %v4961
      %v5247 = vand.u32 2147483647, %v4961
      %vm5248 = vcmp.lt.f32.partialorder %v5247, 0.0004427343
      %v5249 = vsel %vm5248, %v5246, %v5243
      %v5250 = vadd.f32 %v4802, %v4970
      %v5251 = vadd.f32 %v4803, %v4979
      %v5252 = vadd.f32 %v4804, %v4988
      %v5253 = vadd.f32 %v4805, %v4997
      %v5254 = vadd.f32 %v4806, %v5006
      %v5255 = vadd.f32 %v4807, %v5015
      %v5256 = vadd.f32 %v4808, %v5024
      %v5257 = vadd.f32 %v4809, %v5033
      %v5258 = vadd.f32 %v4810, %v5042
      %v5259 = vadd.f32 %v4811, %v5051
      %v5260 = vadd.f32 %v4812, %v5060
      %v5261 = vadd.f32 %v4813, %v5069
      %v5262 = vadd.f32 %v4814, %v5078
      %v5263 = vadd.f32 %v4815, %v5087
      %v5264 = vadd.f32 %v4816, %v5096
      %v5265 = vadd.f32 %v4817, %v5105
      %v5266 = vadd.f32 %v4818, %v5114
      %v5267 = vadd.f32 %v4819, %v5123
      %v5268 = vadd.f32 %v4820, %v5132
      %v5269 = vadd.f32 %v4821, %v5141
      %v5270 = vadd.f32 %v4822, %v5150
      %v5271 = vadd.f32 %v4823, %v5159
      %v5272 = vadd.f32 %v4824, %v5168
      %v5273 = vadd.f32 %v4825, %v5177
      %v5274 = vadd.f32 %v4826, %v5186
      %v5275 = vadd.f32 %v4827, %v5195
      %v5276 = vadd.f32 %v4828, %v5204
      %v5277 = vadd.f32 %v4829, %v5213
      %v5278 = vadd.f32 %v4830, %v5222
      %v5279 = vadd.f32 %v4831, %v5231
      %v5280 = vadd.f32 %v4832, %v5240
      %v5281 = vadd.f32 %v4833, %v5249
      %vm5282 = vcmask 80896
      %5283 = vst.msk [vmem:[%s192] sm:$0xff] %vm5282, %v5250
      %5284 = vst.msk [vmem:[%s192 + $0x8] sm:$0xff] %vm5282, %v5251
      %5285 = vst.msk [vmem:[%s192 + $0x10] sm:$0xff] %vm5282, %v5252
      %5286 = vst.msk [vmem:[%s192 + $0x18] sm:$0xff] %vm5282, %v5253
      %5287 = vst.msk [vmem:[%s192 + $0x20] sm:$0xff] %vm5282, %v5254
      %5288 = vst.msk [vmem:[%s192 + $0x28] sm:$0xff] %vm5282, %v5255
      %5289 = vst.msk [vmem:[%s192 + $0x30] sm:$0xff] %vm5282, %v5256
      %5290 = vst.msk [vmem:[%s192 + $0x38] sm:$0xff] %vm5282, %v5257
      %5291 = vst.msk [vmem:[%s192 + $0x40] sm:$0xff] %vm5282, %v5258
      %5292 = vst.msk [vmem:[%s192 + $0x48] sm:$0xff] %vm5282, %v5259
      %5293 = vst.msk [vmem:[%s192 + $0x50] sm:$0xff] %vm5282, %v5260
      %5294 = vst.msk [vmem:[%s192 + $0x58] sm:$0xff] %vm5282, %v5261
      %5295 = vst.msk [vmem:[%s192 + $0x60] sm:$0xff] %vm5282, %v5262
      %5296 = vst.msk [vmem:[%s192 + $0x68] sm:$0xff] %vm5282, %v5263
      %5297 = vst.msk [vmem:[%s192 + $0x70] sm:$0xff] %vm5282, %v5264
      %5298 = vst.msk [vmem:[%s192 + $0x78] sm:$0xff] %vm5282, %v5265
      %5299 = vst.msk [vmem:[%s192 + $0x80] sm:$0xff] %vm5282, %v5266
      %5300 = vst.msk [vmem:[%s192 + $0x88] sm:$0xff] %vm5282, %v5267
      %5301 = vst.msk [vmem:[%s192 + $0x90] sm:$0xff] %vm5282, %v5268
      %5302 = vst.msk [vmem:[%s192 + $0x98] sm:$0xff] %vm5282, %v5269
      %5303 = vst.msk [vmem:[%s192 + $0xa0] sm:$0xff] %vm5282, %v5270
      %5304 = vst.msk [vmem:[%s192 + $0xa8] sm:$0xff] %vm5282, %v5271
      %5305 = vst.msk [vmem:[%s192 + $0xb0] sm:$0xff] %vm5282, %v5272
      %5306 = vst.msk [vmem:[%s192 + $0xb8] sm:$0xff] %vm5282, %v5273
      %5307 = vst.msk [vmem:[%s192 + $0xc0] sm:$0xff] %vm5282, %v5274
      %5308 = vst.msk [vmem:[%s192 + $0xc8] sm:$0xff] %vm5282, %v5275
      %5309 = vst.msk [vmem:[%s192 + $0xd0] sm:$0xff] %vm5282, %v5276
      %5310 = vst.msk [vmem:[%s192 + $0xd8] sm:$0xff] %vm5282, %v5277
      %5311 = vst.msk [vmem:[%s192 + $0xe0] sm:$0xff] %vm5282, %v5278
      %5312 = vst.msk [vmem:[%s192 + $0xe8] sm:$0xff] %vm5282, %v5279
      %5313 = vst.msk [vmem:[%s192 + $0xf0] sm:$0xff] %vm5282, %v5280
      %5314 = vst.msk [vmem:[%s192 + $0xf8] sm:$0xff] %vm5282, %v5281
      %s5315 = smul.u32 32, %s19
      %p5316 = scmp.lt.s32.totalorder %s18, 1
      %s5317 = scalar_select %p5316, %s18, 1
      %p5318 = scmp.lt.s32.totalorder %s5315, 31
      %s5319 = scalar_select %p5318, %s5315, 31
      %s5320 = smul.addr %s5317, 32
      %s5321 = sadd.s32 %s5319, %s5320
      %s5322 = smul.addr %s5321, 8
      %s5323 = scalar_lea.vmem %s3, %s5322
      // Predicated region
      $region40: #{simplenet_forward.3} parent=31 // pred_check
        %p5324 = pneg %p114
      $region41: #{simplenet_forward.3} parent=31 // pred_check_branch
        %5326 = sbr.rel (%p5324) target = $region43
      $region42: #{simplenet_forward.3} parent=31 // pred_region
        %s5327 = smul.u32 32, %s19
      $region43: #{simplenet_forward.3} parent=31 // pred_fallthru
        _
    $region32: #{simplenet_forward.3} parent=5 // pred_fallthru
      _
    %p5328 = scmp.le.s32.totalorder 2, %s9
    // Predicated region
    $region44: #{simplenet_forward.3} parent=5 // pred_check
      %p5329 = pneg %p5328
    $region45: #{simplenet_forward.3} parent=5 // pred_check_branch
      %5331 = sbr.rel (%p5329) target = $region47
    $region46: #{simplenet_forward.3} parent=5 // pred_region
      %s5332 = ssub.s32 %s9, 2
      // Predicated region
      $region48: #{simplenet_forward.3} parent=46 // pred_check
        %p5333 = pneg %p120
      $region49: #{simplenet_forward.3} parent=46 // pred_check_branch
        %5335 = sbr.rel (%p5333) target = $region51
      $region50: #{simplenet_forward.3} parent=46 // pred_region
        %s5336 = smul.u32 32, %s21
        %p5337 = scmp.lt.s32.totalorder %s20, 1
        %s5338 = scalar_select %p5337, %s20, 1
        %p5339 = scmp.lt.s32.totalorder %s5336, 31
        %s5340 = scalar_select %p5339, %s5336, 31
        %s5341 = smul.addr %s5338, 32
        %s5342 = sadd.s32 %s5340, %s5341
        %s5343 = smul.addr %s5342, 8
        %s5344 = scalar_lea.vmem %s3, %s5343
      $region51: #{simplenet_forward.3} parent=46 // pred_fallthru
        _
    $region47: #{simplenet_forward.3} parent=5 // pred_fallthru
      _
  $region6: #{simplenet_forward.3} parent=0 // loop_footer
    %s13 = sadd.s32 1, %s9
  $region7: #{simplenet_forward.3} parent=0 // loop_footer_branch
    %8 = sbr.rel target = $region3
  $region8: #{simplenet_forward.3} parent=0 // loop_exit
    _

</llo_original>
